<compile_context>
chip_gen: v5e
topology: v5e:2x2
jax: 0.10.0
libtpu: 0.0.40
codegen_flags: <defaults>
</compile_context>

<pallas_src>
import jax
import jax.numpy as jnp
import numpy as np
from jax.experimental import pallas as pl
from jax.experimental.pallas import tpu as pltpu


def _round_up(x, m):
    return ((x + m - 1) // m) * m


def _pick_batch_block(B, H, W):
    # Stack images per grid step so the conv matmul M dim is >= 256 rows on small
    # feature maps, but keep >= 2 grid steps when possible (v7x: 2 TCs per chip).
    if H * W >= 256:
        return 1
    best = 1
    for cand in range(min(B, max(1, 256 // (H * W))), 0, -1):
        if B % cand == 0 and (B // cand >= 2 or cand == 1):
            best = cand
            break
    return best


# ----------------------------------------------------------------------------
# Fused kernel: conv1 -> ReLU -> BN1 -> conv2 -> BN2 -> SE -> +residual -> ReLU
# One grid step == BB batch images; everything stays resident in VMEM.
# ----------------------------------------------------------------------------
def _make_fused_kernel(BB, H, W, C, CP):
    K9 = 9 * CP

    def zero_halo(col_ref):
        # SAME-padding halo: the 1-pixel strips each tap never writes must read as
        # zero.  Zeroed once per grid step (cheap: ~6*(H+W)*CP elems); correct under
        # "parallel" megacore splitting, unlike a program_id==0 one-shot init.
        zrow = jnp.zeros((BB, 1, W, CP), jnp.bfloat16)
        zcol = jnp.zeros((BB, H, 1, CP), jnp.bfloat16)
        tap = 0
        for dy in range(3):
            sy = dy - 1
            for dx in range(3):
                sx = dx - 1
                lo = tap * CP
                if sy < 0:                                   # row 0 never written
                    col_ref[:, 0:1, :, lo:lo + CP] = zrow
                if sy > 0:                                   # row H-1 never written
                    col_ref[:, H - 1:H, :, lo:lo + CP] = zrow
                if sx < 0:                                   # col 0 never written
                    col_ref[:, :, 0:1, lo:lo + CP] = zcol
                if sx > 0:                                   # col W-1 never written
                    col_ref[:, :, W - 1:W, lo:lo + CP] = zcol
                tap += 1

    def fill_im2col(col_ref, src):
        # src: (BB, H, W, C) f32.  One bf16 cast (+ zero lane-pad to CP) per conv,
        # then 9 shifted-tap writes, each a full CP-wide block at lane offset tap*CP:
        # lane-aligned, unmasked stores; padded lanes carry zeros (zero weight rows).
        s = src.astype(jnp.bfloat16)
        if CP != C:
            s = jnp.concatenate(
                [s, jnp.zeros((BB, H, W, CP - C), jnp.bfloat16)], axis=-1)
        tap = 0
        for dy in range(3):
            sy = dy - 1
            h0d, h1d = max(0, -sy), min(H, H - sy)           # static bounds
            h0s, h1s = max(0, sy), min(H, H + sy)
            for dx in range(3):
                sx = dx - 1
                w0d, w1d = max(0, -sx), min(W, W - sx)
                w0s, w1s = max(0, sx), min(W, W + sx)
                col_ref[:, h0d:h1d, w0d:w1d, tap * CP:(tap + 1) * CP] = (
                    s[:, h0s:h1s, w0s:w1s, :])
                tap += 1

    def conv3x3(col_ref, w_ref):
        # One fat im2col matmul (K = 9*CP): bf16 operands straight from the bf16
        # scratch, f32 accumulate.  Reshape merges leading dims only.
        patches = col_ref[...].reshape(BB * H * W, K9)
        return jnp.dot(patches, w_ref[...], preferred_element_type=jnp.float32)

    def kernel(x_ref, w1_ref, s1_ref, sh1_ref, w2_ref, s2_ref, sh2_ref,
               fw1_ref, fb1_ref, fw2_ref, fb2_ref, o_ref, col_ref):
        xf = x_ref[...].astype(jnp.float32)                  # (BB, H, W, C) residual

        zero_halo(col_ref)

        # conv1 -> ReLU -> BN1 (eval-mode affine; ReLU BEFORE bn1 as in PyTorch src)
        fill_im2col(col_ref, xf)
        t = conv3x3(col_ref, w1_ref)                         # (BB*H*W, C) f32
        t = jnp.maximum(t, 0.0) * s1_ref[...] + sh1_ref[...]

        # conv2 -> BN2
        fill_im2col(col_ref, t.reshape(BB, H, W, C))
        y = conv3x3(col_ref, w2_ref)                         # (BB*H*W, C) f32
        y = y * s2_ref[...] + sh2_ref[...]

        # SE: per-image global average pool -> FC -> ReLU -> FC -> sigmoid
        yb = y.reshape(BB, H * W, C)
        pooled = jnp.mean(yb, axis=1)                        # (BB, C) f32
        h = jnp.dot(pooled.astype(jnp.bfloat16), fw1_ref[...],
                    preferred_element_type=jnp.float32)
        h = jnp.maximum(h + fb1_ref[...], 0.0)               # (BB, Cr)
        g = jnp.dot(h.astype(jnp.bfloat16), fw2_ref[...],
                    preferred_element_type=jnp.float32)
        g = jax.nn.sigmoid(g + fb2_ref[...])                 # (BB, C)

        # channel gate, residual add, final ReLU
        out = yb * g[:, None, :] + xf.reshape(BB, H * W, C)
        o_ref[...] = jnp.maximum(out, 0.0).reshape(BB, H, W, C).astype(o_ref.dtype)

    return kernel


@jax.jit
def se_basic_block(x_nhwc, params):
    B, H, W, C = x_nhwc.shape
    Cr = params["fc1_w"].shape[-1]
    CP = C if C % 128 == 0 else _round_up(C, 128)   # lane-aligned per-tap stride
    BB = _pick_batch_block(B, H, W)
    assert B % BB == 0

    # Hoisted glue: conv weights HWIO -> (9*CP, Cout), zero rows for padded lanes,
    # bf16 for the MXU.  SE FC weights also bf16; BN / biases stay f32.
    def flatten_conv_w(w):
        w = w.reshape(9, C, C)
        if CP != C:
            w = jnp.concatenate([w, jnp.zeros((9, CP - C, C), w.dtype)], axis=1)
        return w.astype(jnp.bfloat16).reshape(9 * CP, C)

    w1 = flatten_conv_w(params["conv1_w"])
    w2 = flatten_conv_w(params["conv2_w"])
    s1 = params["bn1_scale"].reshape(1, C)
    sh1 = params["bn1_shift"].reshape(1, C)
    s2 = params["bn2_scale"].reshape(1, C)
    sh2 = params["bn2_shift"].reshape(1, C)
    fw1 = params["fc1_w"].astype(jnp.bfloat16)      # (C, Cr)   y = x @ W + b
    fb1 = params["fc1_b"].reshape(1, Cr)
    fw2 = params["fc2_w"].astype(jnp.bfloat16)      # (Cr, C)
    fb2 = params["fc2_b"].reshape(1, C)

    kernel = _make_fused_kernel(BB, H, W, C, CP)

    def full_spec(a):
        return pl.BlockSpec(a.shape, lambda b, _nd=a.ndim: (0,) * _nd)

    img_spec = pl.BlockSpec((BB, H, W, C), lambda b: (b, 0, 0, 0))

    # VMEM budget computed from actual block/scratch sizes (with 2x headroom),
    # clamped to [32 MiB, 64 MiB] so it is legal on v7x as well as v5e/v6e.
    itemsize = jnp.dtype(x_nhwc.dtype).itemsize
    scratch_bytes = BB * H * W * 9 * CP * 2                       # bf16 im2col
    io_bytes = 2 * 2 * BB * H * W * C * itemsize                  # in+out, dbl-buffered
    w_bytes = 2 * (2 * 9 * CP * C * 2 + 2 * C * Cr * 2 + 8 * C * 4)
    vmem_limit = int(min(64 * 1024 * 1024,
                         max(32 * 1024 * 1024,
                             2 * (scratch_bytes + io_bytes + w_bytes))))

    cost = pl.CostEstimate(
        flops=2 * 2 * B * H * W * (9 * CP) * C,      # two 3x3 convs dominate
        transcendentals=B * C,                       # sigmoid
        bytes_accessed=2 * B * H * W * C * itemsize + 2 * 9 * CP * C * 2,
    )

    return pl.pallas_call(
        kernel,
        out_shape=jax.ShapeDtypeStruct((B, H, W, C), x_nhwc.dtype),
        grid_spec=pltpu.PrefetchScalarGridSpec(
            num_scalar_prefetch=0,
            grid=(B // BB,),
            in_specs=[img_spec,
                      full_spec(w1), full_spec(s1), full_spec(sh1),
                      full_spec(w2), full_spec(s2), full_spec(sh2),
                      full_spec(fw1), full_spec(fb1),
                      full_spec(fw2), full_spec(fb2)],
            out_specs=img_spec,
            scratch_shapes=[pltpu.VMEM((BB, H, W, 9 * CP), jnp.bfloat16)]),
        compiler_params=pltpu.CompilerParams(
            dimension_semantics=("parallel",),       # both TensorCores on v7x
            vmem_limit_bytes=vmem_limit),
        cost_estimate=cost,
    )(x_nhwc, w1, s1, sh1, w2, s2, sh2, fw1, fb1, fw2, fb2)


# ----------------------------------------------------------------------------
# Pure-JAX reference for correctness checking.
# ----------------------------------------------------------------------------
def se_basic_block_ref(x, p):
    def conv(z, w):
        return jax.lax.conv_general_dilated(
            z, w, window_strides=(1, 1), padding="SAME",
            dimension_numbers=("NHWC", "HWIO", "NHWC"))
    out = conv(x, p["conv1_w"])
    out = jnp.maximum(out, 0.0)
    out = out * p["bn1_scale"] + p["bn1_shift"]
    out = conv(out, p["conv2_w"])
    out = out * p["bn2_scale"] + p["bn2_shift"]
    pooled = out.mean(axis=(1, 2))
    h = jnp.maximum(pooled @ p["fc1_w"] + p["fc1_b"], 0.0)
    s = jax.nn.sigmoid(h @ p["fc2_w"] + p["fc2_b"])
    out = out * s[:, None, None, :]
    return jnp.maximum(out + x, 0.0)


def init_params(key, inplanes, planes, reduction=8, eps=1e-5):
    assert inplanes == planes, "stride=1 / downsample=None block requires inplanes==planes"
    ks = jax.random.split(key, 12)
    cr = planes // reduction
    conv1_w = jax.random.normal(ks[0], (3, 3, inplanes, planes), jnp.float32) * 0.1
    conv2_w = jax.random.normal(ks[1], (3, 3, planes, planes), jnp.float32) * 0.1

    def bn(kw, kb, km, kv):
        gamma = 1.0 + 0.1 * jax.random.normal(kw, (planes,), jnp.float32)
        beta = 0.1 * jax.random.normal(kb, (planes,), jnp.float32)
        mean = 0.1 * jax.random.normal(km, (planes,), jnp.float32)
        var = jnp.abs(jax.random.normal(kv, (planes,), jnp.float32)) + 0.5
        scale = gamma / jnp.sqrt(var + eps)
        shift = beta - mean * scale
        return scale, shift

    bn1_scale, bn1_shift = bn(ks[2], ks[3], ks[4], ks[5])
    bn2_scale, bn2_shift = bn(ks[6], ks[7], ks[8], ks[9])
    fc1_w = jax.random.normal(ks[10], (planes, cr), jnp.float32) * 0.2
    fc1_b = jnp.zeros((cr,), jnp.float32)
    fc2_w = jax.random.normal(ks[11], (cr, planes), jnp.float32) * 0.2
    fc2_b = jnp.zeros((planes,), jnp.float32)
    return dict(conv1_w=conv1_w, conv2_w=conv2_w,
                bn1_scale=bn1_scale, bn1_shift=bn1_shift,
                bn2_scale=bn2_scale, bn2_shift=bn2_shift,
                fc1_w=fc1_w, fc1_b=fc1_b, fc2_w=fc2_w, fc2_b=fc2_b)


if __name__ == "__main__":
    B, C, H, W = 2, 16, 16, 16              # inplanes = planes = 16, reduction = 8
    key = jax.random.PRNGKey(0)
    kx, kp = jax.random.split(key)

    # PyTorch-style NCHW input, transposed once to the kernel's NHWC layout.
    x_nchw = jax.random.normal(kx, (B, C, H, W), jnp.float32)
    x_nhwc = jnp.transpose(x_nchw, (0, 2, 3, 1))

    params = init_params(kp, inplanes=C, planes=C, reduction=8)

    out = jax.block_until_ready(se_basic_block(x_nhwc, params))
    ref = jax.block_until_ready(se_basic_block_ref(x_nhwc, params))

    assert out.shape == (B, H, W, C)
    # bf16 MXU operands (f32 accumulate) -> relaxed tolerance vs the f32 reference.
    np.testing.assert_allclose(np.asarray(out), np.asarray(ref), rtol=5e-2, atol=5e-2)

    print("KERNEL_OK")
</pallas_src>

<mosaic_0001>
module attributes {stable_mosaic.version = 11 : i64} {
  func.func @kernel(%arg0: i32, %arg1: memref<1x16x16x16xf32, #tpu.memory_space<vmem>>, %arg2: memref<1152x16xbf16, #tpu.memory_space<vmem>>, %arg3: memref<1x16xf32, #tpu.memory_space<vmem>>, %arg4: memref<1x16xf32, #tpu.memory_space<vmem>>, %arg5: memref<1152x16xbf16, #tpu.memory_space<vmem>>, %arg6: memref<1x16xf32, #tpu.memory_space<vmem>>, %arg7: memref<1x16xf32, #tpu.memory_space<vmem>>, %arg8: memref<16x2xbf16, #tpu.memory_space<vmem>>, %arg9: memref<1x2xf32, #tpu.memory_space<vmem>>, %arg10: memref<2x16xbf16, #tpu.memory_space<vmem>>, %arg11: memref<1x16xf32, #tpu.memory_space<vmem>>, %arg12: memref<1x16x16x16xf32, #tpu.memory_space<vmem>>, %arg13: memref<1x16x16x1152xbf16, #tpu.memory_space<vmem>>) attributes {dimension_semantics = [#tpu.dimension_semantics<parallel>], iteration_bounds = array<i64: 2>, scalar_prefetch = 0 : i64, scratch_operands = 1 : i64, tpu.core_type = #tpu.core_type<tc>, window_params = [{transform_indices = @transform_0, window_bounds = array<i64: 1, 16, 16, 16>}, {pipeline_mode = #tpu.pipeline_mode<synchronous>, transform_indices = @transform_1, window_bounds = array<i64: 1152, 16>}, {pipeline_mode = #tpu.pipeline_mode<synchronous>, transform_indices = @transform_2, window_bounds = array<i64: 1, 16>}, {pipeline_mode = #tpu.pipeline_mode<synchronous>, transform_indices = @transform_3, window_bounds = array<i64: 1, 16>}, {pipeline_mode = #tpu.pipeline_mode<synchronous>, transform_indices = @transform_4, window_bounds = array<i64: 1152, 16>}, {pipeline_mode = #tpu.pipeline_mode<synchronous>, transform_indices = @transform_5, window_bounds = array<i64: 1, 16>}, {pipeline_mode = #tpu.pipeline_mode<synchronous>, transform_indices = @transform_6, window_bounds = array<i64: 1, 16>}, {pipeline_mode = #tpu.pipeline_mode<synchronous>, transform_indices = @transform_7, window_bounds = array<i64: 16, 2>}, {pipeline_mode = #tpu.pipeline_mode<synchronous>, transform_indices = @transform_8, window_bounds = array<i64: 1, 2>}, {pipeline_mode = #tpu.pipeline_mode<synchronous>, transform_indices = @transform_9, window_bounds = array<i64: 2, 16>}, {pipeline_mode = #tpu.pipeline_mode<synchronous>, transform_indices = @transform_10, window_bounds = array<i64: 1, 16>}, {transform_indices = @transform_11, window_bounds = array<i64: 1, 16, 16, 16>}]} {
    %c0 = arith.constant 0 : index
    %c0_0 = arith.constant 0 : index
    %c0_1 = arith.constant 0 : index
    %c0_2 = arith.constant 0 : index
    %0 = vector.load %arg1[%c0, %c0_0, %c0_1, %c0_2] : memref<1x16x16x16xf32, #tpu.memory_space<vmem>>, vector<1x16x16x16xf32>
    %cst = arith.constant 0.000000e+00 : bf16
    %1 = vector.broadcast %cst : bf16 to vector<1x1x16x128xbf16>
    %cst_3 = arith.constant 0.000000e+00 : bf16
    %2 = vector.broadcast %cst_3 : bf16 to vector<1x16x1x128xbf16>
    %c0_4 = arith.constant 0 : index
    %c0_5 = arith.constant 0 : index
    %c0_6 = arith.constant 0 : index
    %c0_7 = arith.constant 0 : index
    %3 = vector.load %arg13[%c0_4, %c0_5, %c0_6, %c0_7] : memref<1x16x16x1152xbf16, #tpu.memory_space<vmem>>, vector<1x1x16x128xbf16>
    tpu.vector_store %arg13[%c0_4, %c0_5, %c0_6, %c0_7], %1 {strides = array<i32>} : memref<1x16x16x1152xbf16, #tpu.memory_space<vmem>>, vector<1x1x16x128xbf16>,
    %c0_8 = arith.constant 0 : index
    %c0_9 = arith.constant 0 : index
    %c0_10 = arith.constant 0 : index
    %c0_11 = arith.constant 0 : index
    %4 = vector.load %arg13[%c0_8, %c0_9, %c0_10, %c0_11] : memref<1x16x16x1152xbf16, #tpu.memory_space<vmem>>, vector<1x16x1x128xbf16>
    tpu.vector_store %arg13[%c0_8, %c0_9, %c0_10, %c0_11], %2 {strides = array<i32>} : memref<1x16x16x1152xbf16, #tpu.memory_space<vmem>>, vector<1x16x1x128xbf16>,
    %c0_12 = arith.constant 0 : index
    %c0_13 = arith.constant 0 : index
    %c0_14 = arith.constant 0 : index
    %c128 = arith.constant 128 : index
    %5 = vector.load %arg13[%c0_12, %c0_13, %c0_14, %c128] : memref<1x16x16x1152xbf16, #tpu.memory_space<vmem>>, vector<1x1x16x128xbf16>
    tpu.vector_store %arg13[%c0_12, %c0_13, %c0_14, %c128], %1 {strides = array<i32>} : memref<1x16x16x1152xbf16, #tpu.memory_space<vmem>>, vector<1x1x16x128xbf16>,
    %c0_15 = arith.constant 0 : index
    %c0_16 = arith.constant 0 : index
    %c0_17 = arith.constant 0 : index
    %c256 = arith.constant 256 : index
    %6 = vector.load %arg13[%c0_15, %c0_16, %c0_17, %c256] : memref<1x16x16x1152xbf16, #tpu.memory_space<vmem>>, vector<1x1x16x128xbf16>
    tpu.vector_store %arg13[%c0_15, %c0_16, %c0_17, %c256], %1 {strides = array<i32>} : memref<1x16x16x1152xbf16, #tpu.memory_space<vmem>>, vector<1x1x16x128xbf16>,
    %c0_18 = arith.constant 0 : index
    %c0_19 = arith.constant 0 : index
    %c15 = arith.constant 15 : index
    %c256_20 = arith.constant 256 : index
    %7 = vector.load %arg13[%c0_18, %c0_19, %c15, %c256_20] : memref<1x16x16x1152xbf16, #tpu.memory_space<vmem>>, vector<1x16x1x128xbf16>
    tpu.vector_store %arg13[%c0_18, %c0_19, %c15, %c256_20], %2 {strides = array<i32>} : memref<1x16x16x1152xbf16, #tpu.memory_space<vmem>>, vector<1x16x1x128xbf16>,
    %c0_21 = arith.constant 0 : index
    %c0_22 = arith.constant 0 : index
    %c0_23 = arith.constant 0 : index
    %c384 = arith.constant 384 : index
    %8 = vector.load %arg13[%c0_21, %c0_22, %c0_23, %c384] : memref<1x16x16x1152xbf16, #tpu.memory_space<vmem>>, vector<1x16x1x128xbf16>
    tpu.vector_store %arg13[%c0_21, %c0_22, %c0_23, %c384], %2 {strides = array<i32>} : memref<1x16x16x1152xbf16, #tpu.memory_space<vmem>>, vector<1x16x1x128xbf16>,
    %c0_24 = arith.constant 0 : index
    %c0_25 = arith.constant 0 : index
    %c15_26 = arith.constant 15 : index
    %c640 = arith.constant 640 : index
    %9 = vector.load %arg13[%c0_24, %c0_25, %c15_26, %c640] : memref<1x16x16x1152xbf16, #tpu.memory_space<vmem>>, vector<1x16x1x128xbf16>
    tpu.vector_store %arg13[%c0_24, %c0_25, %c15_26, %c640], %2 {strides = array<i32>} : memref<1x16x16x1152xbf16, #tpu.memory_space<vmem>>, vector<1x16x1x128xbf16>,
    %c0_27 = arith.constant 0 : index
    %c15_28 = arith.constant 15 : index
    %c0_29 = arith.constant 0 : index
    %c768 = arith.constant 768 : index
    %10 = vector.load %arg13[%c0_27, %c15_28, %c0_29, %c768] : memref<1x16x16x1152xbf16, #tpu.memory_space<vmem>>, vector<1x1x16x128xbf16>
    tpu.vector_store %arg13[%c0_27, %c15_28, %c0_29, %c768], %1 {strides = array<i32>} : memref<1x16x16x1152xbf16, #tpu.memory_space<vmem>>, vector<1x1x16x128xbf16>,
    %c0_30 = arith.constant 0 : index
    %c0_31 = arith.constant 0 : index
    %c0_32 = arith.constant 0 : index
    %c768_33 = arith.constant 768 : index
    %11 = vector.load %arg13[%c0_30, %c0_31, %c0_32, %c768_33] : memref<1x16x16x1152xbf16, #tpu.memory_space<vmem>>, vector<1x16x1x128xbf16>
    tpu.vector_store %arg13[%c0_30, %c0_31, %c0_32, %c768_33], %2 {strides = array<i32>} : memref<1x16x16x1152xbf16, #tpu.memory_space<vmem>>, vector<1x16x1x128xbf16>,
    %c0_34 = arith.constant 0 : index
    %c15_35 = arith.constant 15 : index
    %c0_36 = arith.constant 0 : index
    %c896 = arith.constant 896 : index
    %12 = vector.load %arg13[%c0_34, %c15_35, %c0_36, %c896] : memref<1x16x16x1152xbf16, #tpu.memory_space<vmem>>, vector<1x1x16x128xbf16>
    tpu.vector_store %arg13[%c0_34, %c15_35, %c0_36, %c896], %1 {strides = array<i32>} : memref<1x16x16x1152xbf16, #tpu.memory_space<vmem>>, vector<1x1x16x128xbf16>,
    %c0_37 = arith.constant 0 : index
    %c15_38 = arith.constant 15 : index
    %c0_39 = arith.constant 0 : index
    %c1024 = arith.constant 1024 : index
    %13 = vector.load %arg13[%c0_37, %c15_38, %c0_39, %c1024] : memref<1x16x16x1152xbf16, #tpu.memory_space<vmem>>, vector<1x1x16x128xbf16>
    tpu.vector_store %arg13[%c0_37, %c15_38, %c0_39, %c1024], %1 {strides = array<i32>} : memref<1x16x16x1152xbf16, #tpu.memory_space<vmem>>, vector<1x1x16x128xbf16>,
    %c0_40 = arith.constant 0 : index
    %c0_41 = arith.constant 0 : index
    %c15_42 = arith.constant 15 : index
    %c1024_43 = arith.constant 1024 : index
    %14 = vector.load %arg13[%c0_40, %c0_41, %c15_42, %c1024_43] : memref<1x16x16x1152xbf16, #tpu.memory_space<vmem>>, vector<1x16x1x128xbf16>
    tpu.vector_store %arg13[%c0_40, %c0_41, %c15_42, %c1024_43], %2 {strides = array<i32>} : memref<1x16x16x1152xbf16, #tpu.memory_space<vmem>>, vector<1x16x1x128xbf16>,
    %15 = arith.truncf %0 : vector<1x16x16x16xf32> to vector<1x16x16x16xbf16>
    %cst_44 = arith.constant 0.000000e+00 : bf16
    %16 = vector.broadcast %cst_44 : bf16 to vector<1x16x16x112xbf16>
    %17 = tpu.concatenate %15, %16 in 3 : vector<1x16x16x16xbf16>, vector<1x16x16x112xbf16> -> vector<1x16x16x128xbf16>
    %18 = vector.extract_strided_slice %17 {offsets = [0, 0, 0, 0], sizes = [1, 15, 15, 128], strides = [1, 1, 1, 1]} : vector<1x16x16x128xbf16> to vector<1x15x15x128xbf16>
    %c0_45 = arith.constant 0 : index
    %c1 = arith.constant 1 : index
    %c1_46 = arith.constant 1 : index
    %c0_47 = arith.constant 0 : index
    %19 = vector.load %arg13[%c0_45, %c1, %c1_46, %c0_47] : memref<1x16x16x1152xbf16, #tpu.memory_space<vmem>>, vector<1x15x15x128xbf16>
    tpu.vector_store %arg13[%c0_45, %c1, %c1_46, %c0_47], %18 {strides = array<i32>} : memref<1x16x16x1152xbf16, #tpu.memory_space<vmem>>, vector<1x15x15x128xbf16>,
    %20 = vector.extract_strided_slice %17 {offsets = [0, 0, 0, 0], sizes = [1, 15, 16, 128], strides = [1, 1, 1, 1]} : vector<1x16x16x128xbf16> to vector<1x15x16x128xbf16>
    %c0_48 = arith.constant 0 : index
    %c1_49 = arith.constant 1 : index
    %c0_50 = arith.constant 0 : index
    %c128_51 = arith.constant 128 : index
    %21 = vector.load %arg13[%c0_48, %c1_49, %c0_50, %c128_51] : memref<1x16x16x1152xbf16, #tpu.memory_space<vmem>>, vector<1x15x16x128xbf16>
    tpu.vector_store %arg13[%c0_48, %c1_49, %c0_50, %c128_51], %20 {strides = array<i32>} : memref<1x16x16x1152xbf16, #tpu.memory_space<vmem>>, vector<1x15x16x128xbf16>,
    %22 = vector.extract_strided_slice %17 {offsets = [0, 0, 1, 0], sizes = [1, 15, 15, 128], strides = [1, 1, 1, 1]} : vector<1x16x16x128xbf16> to vector<1x15x15x128xbf16>
    %c0_52 = arith.constant 0 : index
    %c1_53 = arith.constant 1 : index
    %c0_54 = arith.constant 0 : index
    %c256_55 = arith.constant 256 : index
    %23 = vector.load %arg13[%c0_52, %c1_53, %c0_54, %c256_55] : memref<1x16x16x1152xbf16, #tpu.memory_space<vmem>>, vector<1x15x15x128xbf16>
    tpu.vector_store %arg13[%c0_52, %c1_53, %c0_54, %c256_55], %22 {strides = array<i32>} : memref<1x16x16x1152xbf16, #tpu.memory_space<vmem>>, vector<1x15x15x128xbf16>,
    %24 = vector.extract_strided_slice %17 {offsets = [0, 0, 0, 0], sizes = [1, 16, 15, 128], strides = [1, 1, 1, 1]} : vector<1x16x16x128xbf16> to vector<1x16x15x128xbf16>
    %c0_56 = arith.constant 0 : index
    %c0_57 = arith.constant 0 : index
    %c1_58 = arith.constant 1 : index
    %c384_59 = arith.constant 384 : index
    %25 = vector.load %arg13[%c0_56, %c0_57, %c1_58, %c384_59] : memref<1x16x16x1152xbf16, #tpu.memory_space<vmem>>, vector<1x16x15x128xbf16>
    tpu.vector_store %arg13[%c0_56, %c0_57, %c1_58, %c384_59], %24 {strides = array<i32>} : memref<1x16x16x1152xbf16, #tpu.memory_space<vmem>>, vector<1x16x15x128xbf16>,
    %c0_60 = arith.constant 0 : index
    %c0_61 = arith.constant 0 : index
    %c0_62 = arith.constant 0 : index
    %c512 = arith.constant 512 : index
    %26 = vector.load %arg13[%c0_60, %c0_61, %c0_62, %c512] : memref<1x16x16x1152xbf16, #tpu.memory_space<vmem>>, vector<1x16x16x128xbf16>
    tpu.vector_store %arg13[%c0_60, %c0_61, %c0_62, %c512], %17 {strides = array<i32>} : memref<1x16x16x1152xbf16, #tpu.memory_space<vmem>>, vector<1x16x16x128xbf16>,
    %27 = vector.extract_strided_slice %17 {offsets = [0, 0, 1, 0], sizes = [1, 16, 15, 128], strides = [1, 1, 1, 1]} : vector<1x16x16x128xbf16> to vector<1x16x15x128xbf16>
    %c0_63 = arith.constant 0 : index
    %c0_64 = arith.constant 0 : index
    %c0_65 = arith.constant 0 : index
    %c640_66 = arith.constant 640 : index
    %28 = vector.load %arg13[%c0_63, %c0_64, %c0_65, %c640_66] : memref<1x16x16x1152xbf16, #tpu.memory_space<vmem>>, vector<1x16x15x128xbf16>
    tpu.vector_store %arg13[%c0_63, %c0_64, %c0_65, %c640_66], %27 {strides = array<i32>} : memref<1x16x16x1152xbf16, #tpu.memory_space<vmem>>, vector<1x16x15x128xbf16>,
    %29 = vector.extract_strided_slice %17 {offsets = [0, 1, 0, 0], sizes = [1, 15, 15, 128], strides = [1, 1, 1, 1]} : vector<1x16x16x128xbf16> to vector<1x15x15x128xbf16>
    %c0_67 = arith.constant 0 : index
    %c0_68 = arith.constant 0 : index
    %c1_69 = arith.constant 1 : index
    %c768_70 = arith.constant 768 : index
    %30 = vector.load %arg13[%c0_67, %c0_68, %c1_69, %c768_70] : memref<1x16x16x1152xbf16, #tpu.memory_space<vmem>>, vector<1x15x15x128xbf16>
    tpu.vector_store %arg13[%c0_67, %c0_68, %c1_69, %c768_70], %29 {strides = array<i32>} : memref<1x16x16x1152xbf16, #tpu.memory_space<vmem>>, vector<1x15x15x128xbf16>,
    %31 = vector.extract_strided_slice %17 {offsets = [0, 1, 0, 0], sizes = [1, 15, 16, 128], strides = [1, 1, 1, 1]} : vector<1x16x16x128xbf16> to vector<1x15x16x128xbf16>
    %c0_71 = arith.constant 0 : index
    %c0_72 = arith.constant 0 : index
    %c0_73 = arith.constant 0 : index
    %c896_74 = arith.constant 896 : index
    %32 = vector.load %arg13[%c0_71, %c0_72, %c0_73, %c896_74] : memref<1x16x16x1152xbf16, #tpu.memory_space<vmem>>, vector<1x15x16x128xbf16>
    tpu.vector_store %arg13[%c0_71, %c0_72, %c0_73, %c896_74], %31 {strides = array<i32>} : memref<1x16x16x1152xbf16, #tpu.memory_space<vmem>>, vector<1x15x16x128xbf16>,
    %33 = vector.extract_strided_slice %17 {offsets = [0, 1, 1, 0], sizes = [1, 15, 15, 128], strides = [1, 1, 1, 1]} : vector<1x16x16x128xbf16> to vector<1x15x15x128xbf16>
    %c0_75 = arith.constant 0 : index
    %c0_76 = arith.constant 0 : index
    %c0_77 = arith.constant 0 : index
    %c1024_78 = arith.constant 1024 : index
    %34 = vector.load %arg13[%c0_75, %c0_76, %c0_77, %c1024_78] : memref<1x16x16x1152xbf16, #tpu.memory_space<vmem>>, vector<1x15x15x128xbf16>
    tpu.vector_store %arg13[%c0_75, %c0_76, %c0_77, %c1024_78], %33 {strides = array<i32>} : memref<1x16x16x1152xbf16, #tpu.memory_space<vmem>>, vector<1x15x15x128xbf16>,
    %c0_79 = arith.constant 0 : index
    %c0_80 = arith.constant 0 : index
    %c0_81 = arith.constant 0 : index
    %c0_82 = arith.constant 0 : index
    %35 = vector.load %arg13[%c0_79, %c0_80, %c0_81, %c0_82] : memref<1x16x16x1152xbf16, #tpu.memory_space<vmem>>, vector<1x16x16x1152xbf16>
    %36 = vector.shape_cast %35 : vector<1x16x16x1152xbf16> to vector<256x1152xbf16>
    %c0_83 = arith.constant 0 : index
    %c0_84 = arith.constant 0 : index
    %37 = vector.load %arg2[%c0_83, %c0_84] : memref<1152x16xbf16, #tpu.memory_space<vmem>>, vector<1152x16xbf16>
    %cst_85 = arith.constant dense<0.000000e+00> : vector<256x16xf32>
    %38 = tpu.matmul %36, %37, %cst_85 {dimension_numbers = #tpu.dot_dimension_numbers<[1], [0], [0], [1], [0, 0, 1, 1], [], []>} : vector<256x1152xbf16>, vector<1152x16xbf16>, vector<256x16xf32> -> vector<256x16xf32>
    %cst_86 = arith.constant 0.000000e+00 : f32
    %39 = vector.broadcast %cst_86 : f32 to vector<256x16xf32>
    %40 = arith.maximumf %38, %39 : vector<256x16xf32>
    %c0_87 = arith.constant 0 : index
    %c0_88 = arith.constant 0 : index
    %41 = vector.load %arg3[%c0_87, %c0_88] : memref<1x16xf32, #tpu.memory_space<vmem>>, vector<1x16xf32>
    %42 = vector.broadcast %41 : vector<1x16xf32> to vector<256x16xf32>
    %43 = arith.mulf %40, %42 : vector<256x16xf32>
    %c0_89 = arith.constant 0 : index
    %c0_90 = arith.constant 0 : index
    %44 = vector.load %arg4[%c0_89, %c0_90] : memref<1x16xf32, #tpu.memory_space<vmem>>, vector<1x16xf32>
    %45 = vector.broadcast %44 : vector<1x16xf32> to vector<256x16xf32>
    %46 = arith.addf %43, %45 : vector<256x16xf32>
    %47 = vector.shape_cast %46 : vector<256x16xf32> to vector<1x16x16x16xf32>
    %48 = arith.truncf %47 : vector<1x16x16x16xf32> to vector<1x16x16x16xbf16>
    %cst_91 = arith.constant 0.000000e+00 : bf16
    %49 = vector.broadcast %cst_91 : bf16 to vector<1x16x16x112xbf16>
    %50 = tpu.concatenate %48, %49 in 3 : vector<1x16x16x16xbf16>, vector<1x16x16x112xbf16> -> vector<1x16x16x128xbf16>
    %51 = vector.extract_strided_slice %50 {offsets = [0, 0, 0, 0], sizes = [1, 15, 15, 128], strides = [1, 1, 1, 1]} : vector<1x16x16x128xbf16> to vector<1x15x15x128xbf16>
    %c0_92 = arith.constant 0 : index
    %c1_93 = arith.constant 1 : index
    %c1_94 = arith.constant 1 : index
    %c0_95 = arith.constant 0 : index
    %52 = vector.load %arg13[%c0_92, %c1_93, %c1_94, %c0_95] : memref<1x16x16x1152xbf16, #tpu.memory_space<vmem>>, vector<1x15x15x128xbf16>
    tpu.vector_store %arg13[%c0_92, %c1_93, %c1_94, %c0_95], %51 {strides = array<i32>} : memref<1x16x16x1152xbf16, #tpu.memory_space<vmem>>, vector<1x15x15x128xbf16>,
    %53 = vector.extract_strided_slice %50 {offsets = [0, 0, 0, 0], sizes = [1, 15, 16, 128], strides = [1, 1, 1, 1]} : vector<1x16x16x128xbf16> to vector<1x15x16x128xbf16>
    %c0_96 = arith.constant 0 : index
    %c1_97 = arith.constant 1 : index
    %c0_98 = arith.constant 0 : index
    %c128_99 = arith.constant 128 : index
    %54 = vector.load %arg13[%c0_96, %c1_97, %c0_98, %c128_99] : memref<1x16x16x1152xbf16, #tpu.memory_space<vmem>>, vector<1x15x16x128xbf16>
    tpu.vector_store %arg13[%c0_96, %c1_97, %c0_98, %c128_99], %53 {strides = array<i32>} : memref<1x16x16x1152xbf16, #tpu.memory_space<vmem>>, vector<1x15x16x128xbf16>,
    %55 = vector.extract_strided_slice %50 {offsets = [0, 0, 1, 0], sizes = [1, 15, 15, 128], strides = [1, 1, 1, 1]} : vector<1x16x16x128xbf16> to vector<1x15x15x128xbf16>
    %c0_100 = arith.constant 0 : index
    %c1_101 = arith.constant 1 : index
    %c0_102 = arith.constant 0 : index
    %c256_103 = arith.constant 256 : index
    %56 = vector.load %arg13[%c0_100, %c1_101, %c0_102, %c256_103] : memref<1x16x16x1152xbf16, #tpu.memory_space<vmem>>, vector<1x15x15x128xbf16>
    tpu.vector_store %arg13[%c0_100, %c1_101, %c0_102, %c256_103], %55 {strides = array<i32>} : memref<1x16x16x1152xbf16, #tpu.memory_space<vmem>>, vector<1x15x15x128xbf16>,
    %57 = vector.extract_strided_slice %50 {offsets = [0, 0, 0, 0], sizes = [1, 16, 15, 128], strides = [1, 1, 1, 1]} : vector<1x16x16x128xbf16> to vector<1x16x15x128xbf16>
    %c0_104 = arith.constant 0 : index
    %c0_105 = arith.constant 0 : index
    %c1_106 = arith.constant 1 : index
    %c384_107 = arith.constant 384 : index
    %58 = vector.load %arg13[%c0_104, %c0_105, %c1_106, %c384_107] : memref<1x16x16x1152xbf16, #tpu.memory_space<vmem>>, vector<1x16x15x128xbf16>
    tpu.vector_store %arg13[%c0_104, %c0_105, %c1_106, %c384_107], %57 {strides = array<i32>} : memref<1x16x16x1152xbf16, #tpu.memory_space<vmem>>, vector<1x16x15x128xbf16>,
    %c0_108 = arith.constant 0 : index
    %c0_109 = arith.constant 0 : index
    %c0_110 = arith.constant 0 : index
    %c512_111 = arith.constant 512 : index
    %59 = vector.load %arg13[%c0_108, %c0_109, %c0_110, %c512_111] : memref<1x16x16x1152xbf16, #tpu.memory_space<vmem>>, vector<1x16x16x128xbf16>
    tpu.vector_store %arg13[%c0_108, %c0_109, %c0_110, %c512_111], %50 {strides = array<i32>} : memref<1x16x16x1152xbf16, #tpu.memory_space<vmem>>, vector<1x16x16x128xbf16>,
    %60 = vector.extract_strided_slice %50 {offsets = [0, 0, 1, 0], sizes = [1, 16, 15, 128], strides = [1, 1, 1, 1]} : vector<1x16x16x128xbf16> to vector<1x16x15x128xbf16>
    %c0_112 = arith.constant 0 : index
    %c0_113 = arith.constant 0 : index
    %c0_114 = arith.constant 0 : index
    %c640_115 = arith.constant 640 : index
    %61 = vector.load %arg13[%c0_112, %c0_113, %c0_114, %c640_115] : memref<1x16x16x1152xbf16, #tpu.memory_space<vmem>>, vector<1x16x15x128xbf16>
    tpu.vector_store %arg13[%c0_112, %c0_113, %c0_114, %c640_115], %60 {strides = array<i32>} : memref<1x16x16x1152xbf16, #tpu.memory_space<vmem>>, vector<1x16x15x128xbf16>,
    %62 = vector.extract_strided_slice %50 {offsets = [0, 1, 0, 0], sizes = [1, 15, 15, 128], strides = [1, 1, 1, 1]} : vector<1x16x16x128xbf16> to vector<1x15x15x128xbf16>
    %c0_116 = arith.constant 0 : index
    %c0_117 = arith.constant 0 : index
    %c1_118 = arith.constant 1 : index
    %c768_119 = arith.constant 768 : index
    %63 = vector.load %arg13[%c0_116, %c0_117, %c1_118, %c768_119] : memref<1x16x16x1152xbf16, #tpu.memory_space<vmem>>, vector<1x15x15x128xbf16>
    tpu.vector_store %arg13[%c0_116, %c0_117, %c1_118, %c768_119], %62 {strides = array<i32>} : memref<1x16x16x1152xbf16, #tpu.memory_space<vmem>>, vector<1x15x15x128xbf16>,
    %64 = vector.extract_strided_slice %50 {offsets = [0, 1, 0, 0], sizes = [1, 15, 16, 128], strides = [1, 1, 1, 1]} : vector<1x16x16x128xbf16> to vector<1x15x16x128xbf16>
    %c0_120 = arith.constant 0 : index
    %c0_121 = arith.constant 0 : index
    %c0_122 = arith.constant 0 : index
    %c896_123 = arith.constant 896 : index
    %65 = vector.load %arg13[%c0_120, %c0_121, %c0_122, %c896_123] : memref<1x16x16x1152xbf16, #tpu.memory_space<vmem>>, vector<1x15x16x128xbf16>
    tpu.vector_store %arg13[%c0_120, %c0_121, %c0_122, %c896_123], %64 {strides = array<i32>} : memref<1x16x16x1152xbf16, #tpu.memory_space<vmem>>, vector<1x15x16x128xbf16>,
    %66 = vector.extract_strided_slice %50 {offsets = [0, 1, 1, 0], sizes = [1, 15, 15, 128], strides = [1, 1, 1, 1]} : vector<1x16x16x128xbf16> to vector<1x15x15x128xbf16>
    %c0_124 = arith.constant 0 : index
    %c0_125 = arith.constant 0 : index
    %c0_126 = arith.constant 0 : index
    %c1024_127 = arith.constant 1024 : index
    %67 = vector.load %arg13[%c0_124, %c0_125, %c0_126, %c1024_127] : memref<1x16x16x1152xbf16, #tpu.memory_space<vmem>>, vector<1x15x15x128xbf16>
    tpu.vector_store %arg13[%c0_124, %c0_125, %c0_126, %c1024_127], %66 {strides = array<i32>} : memref<1x16x16x1152xbf16, #tpu.memory_space<vmem>>, vector<1x15x15x128xbf16>,
    %c0_128 = arith.constant 0 : index
    %c0_129 = arith.constant 0 : index
    %c0_130 = arith.constant 0 : index
    %c0_131 = arith.constant 0 : index
    %68 = vector.load %arg13[%c0_128, %c0_129, %c0_130, %c0_131] : memref<1x16x16x1152xbf16, #tpu.memory_space<vmem>>, vector<1x16x16x1152xbf16>
    %69 = vector.shape_cast %68 : vector<1x16x16x1152xbf16> to vector<256x1152xbf16>
    %c0_132 = arith.constant 0 : index
    %c0_133 = arith.constant 0 : index
    %70 = vector.load %arg5[%c0_132, %c0_133] : memref<1152x16xbf16, #tpu.memory_space<vmem>>, vector<1152x16xbf16>
    %cst_134 = arith.constant dense<0.000000e+00> : vector<256x16xf32>
    %71 = tpu.matmul %69, %70, %cst_134 {dimension_numbers = #tpu.dot_dimension_numbers<[1], [0], [0], [1], [0, 0, 1, 1], [], []>} : vector<256x1152xbf16>, vector<1152x16xbf16>, vector<256x16xf32> -> vector<256x16xf32>
    %c0_135 = arith.constant 0 : index
    %c0_136 = arith.constant 0 : index
    %72 = vector.load %arg6[%c0_135, %c0_136] : memref<1x16xf32, #tpu.memory_space<vmem>>, vector<1x16xf32>
    %73 = vector.broadcast %72 : vector<1x16xf32> to vector<256x16xf32>
    %74 = arith.mulf %71, %73 : vector<256x16xf32>
    %c0_137 = arith.constant 0 : index
    %c0_138 = arith.constant 0 : index
    %75 = vector.load %arg7[%c0_137, %c0_138] : memref<1x16xf32, #tpu.memory_space<vmem>>, vector<1x16xf32>
    %76 = vector.broadcast %75 : vector<1x16xf32> to vector<256x16xf32>
    %77 = arith.addf %74, %76 : vector<256x16xf32>
    %78 = vector.shape_cast %77 : vector<256x16xf32> to vector<1x256x16xf32>
    %cst_139 = arith.constant dense<0.000000e+00> : vector<1x16xf32>
    %79 = vector.multi_reduction <add>, %78, %cst_139 [1] : vector<1x256x16xf32> to vector<1x16xf32>
    %cst_140 = arith.constant 2.560000e+02 : f32
    %80 = vector.broadcast %cst_140 : f32 to vector<1x16xf32>
    %81 = arith.divf %79, %80 : vector<1x16xf32>
    %82 = arith.truncf %81 : vector<1x16xf32> to vector<1x16xbf16>
    %c0_141 = arith.constant 0 : index
    %c0_142 = arith.constant 0 : index
    %83 = vector.load %arg8[%c0_141, %c0_142] : memref<16x2xbf16, #tpu.memory_space<vmem>>, vector<16x2xbf16>
    %cst_143 = arith.constant dense<0.000000e+00> : vector<1x2xf32>
    %84 = tpu.matmul %82, %83, %cst_143 {dimension_numbers = #tpu.dot_dimension_numbers<[1], [0], [0], [1], [0, 0, 1, 1], [], []>} : vector<1x16xbf16>, vector<16x2xbf16>, vector<1x2xf32> -> vector<1x2xf32>
    %c0_144 = arith.constant 0 : index
    %c0_145 = arith.constant 0 : index
    %85 = vector.load %arg9[%c0_144, %c0_145] : memref<1x2xf32, #tpu.memory_space<vmem>>, vector<1x2xf32>
    %86 = arith.addf %84, %85 : vector<1x2xf32>
    %cst_146 = arith.constant 0.000000e+00 : f32
    %87 = vector.broadcast %cst_146 : f32 to vector<1x2xf32>
    %88 = arith.maximumf %86, %87 : vector<1x2xf32>
    %89 = arith.truncf %88 : vector<1x2xf32> to vector<1x2xbf16>
    %c0_147 = arith.constant 0 : index
    %c0_148 = arith.constant 0 : index
    %90 = vector.load %arg10[%c0_147, %c0_148] : memref<2x16xbf16, #tpu.memory_space<vmem>>, vector<2x16xbf16>
    %cst_149 = arith.constant dense<0.000000e+00> : vector<1x16xf32>
    %91 = tpu.matmul %89, %90, %cst_149 {dimension_numbers = #tpu.dot_dimension_numbers<[1], [0], [0], [1], [0, 0, 1, 1], [], []>} : vector<1x2xbf16>, vector<2x16xbf16>, vector<1x16xf32> -> vector<1x16xf32>
    %c0_150 = arith.constant 0 : index
    %c0_151 = arith.constant 0 : index
    %92 = vector.load %arg11[%c0_150, %c0_151] : memref<1x16xf32, #tpu.memory_space<vmem>>, vector<1x16xf32>
    %93 = arith.addf %91, %92 : vector<1x16xf32>
    %94 = arith.negf %93 : vector<1x16xf32>
    %95 = math.exp %94 : vector<1x16xf32>
    %cst_152 = arith.constant 1.000000e+00 : f32
    %96 = vector.broadcast %cst_152 : f32 to vector<1x16xf32>
    %97 = arith.addf %96, %95 : vector<1x16xf32>
    %98 = arith.divf %96, %97 : vector<1x16xf32>
    %99 = vector.shape_cast %98 : vector<1x16xf32> to vector<1x1x16xf32>
    %100 = vector.broadcast %99 : vector<1x1x16xf32> to vector<1x256x16xf32>
    %101 = arith.mulf %78, %100 : vector<1x256x16xf32>
    %102 = vector.shape_cast %0 : vector<1x16x16x16xf32> to vector<1x256x16xf32>
    %103 = arith.addf %101, %102 : vector<1x256x16xf32>
    %cst_153 = arith.constant 0.000000e+00 : f32
    %104 = vector.broadcast %cst_153 : f32 to vector<1x256x16xf32>
    %105 = arith.maximumf %103, %104 : vector<1x256x16xf32>
    %106 = vector.shape_cast %105 : vector<1x256x16xf32> to vector<1x16x16x16xf32>
    %c0_154 = arith.constant 0 : index
    %c0_155 = arith.constant 0 : index
    %c0_156 = arith.constant 0 : index
    %c0_157 = arith.constant 0 : index
    %107 = vector.load %arg12[%c0_154, %c0_155, %c0_156, %c0_157] : memref<1x16x16x16xf32, #tpu.memory_space<vmem>>, vector<1x16x16x16xf32>
    tpu.vector_store %arg12[%c0_154, %c0_155, %c0_156, %c0_157], %106 {strides = array<i32>} : memref<1x16x16x16xf32, #tpu.memory_space<vmem>>, vector<1x16x16x16xf32>,
    return
  }
  func.func @transform_0(%arg0: i32) -> (i32, i32, i32, i32) {
    %c0_i32 = arith.constant 0 : i32
    %c0_i32_0 = arith.constant 0 : i32
    %c0_i32_1 = arith.constant 0 : i32
    %c0_i32_2 = arith.constant 0 : i32
    return %arg0, %c0_i32, %c0_i32_0, %c0_i32_1 : i32, i32, i32, i32
  }
  func.func @transform_1(%arg0: i32) -> (i32, i32) {
    %c0_i32 = arith.constant 0 : i32
    %c0_i32_0 = arith.constant 0 : i32
    %c0_i32_1 = arith.constant 0 : i32
    return %c0_i32, %c0_i32_0 : i32, i32
  }
  func.func @transform_2(%arg0: i32) -> (i32, i32) {
    %c0_i32 = arith.constant 0 : i32
    %c0_i32_0 = arith.constant 0 : i32
    %c0_i32_1 = arith.constant 0 : i32
    return %c0_i32, %c0_i32_0 : i32, i32
  }
  func.func @transform_3(%arg0: i32) -> (i32, i32) {
    %c0_i32 = arith.constant 0 : i32
    %c0_i32_0 = arith.constant 0 : i32
    %c0_i32_1 = arith.constant 0 : i32
    return %c0_i32, %c0_i32_0 : i32, i32
  }
  func.func @transform_4(%arg0: i32) -> (i32, i32) {
    %c0_i32 = arith.constant 0 : i32
    %c0_i32_0 = arith.constant 0 : i32
    %c0_i32_1 = arith.constant 0 : i32
    return %c0_i32, %c0_i32_0 : i32, i32
  }
  func.func @transform_5(%arg0: i32) -> (i32, i32) {
    %c0_i32 = arith.constant 0 : i32
    %c0_i32_0 = arith.constant 0 : i32
    %c0_i32_1 = arith.constant 0 : i32
    return %c0_i32, %c0_i32_0 : i32, i32
  }
  func.func @transform_6(%arg0: i32) -> (i32, i32) {
    %c0_i32 = arith.constant 0 : i32
    %c0_i32_0 = arith.constant 0 : i32
    %c0_i32_1 = arith.constant 0 : i32
    return %c0_i32, %c0_i32_0 : i32, i32
  }
  func.func @transform_7(%arg0: i32) -> (i32, i32) {
    %c0_i32 = arith.constant 0 : i32
    %c0_i32_0 = arith.constant 0 : i32
    %c0_i32_1 = arith.constant 0 : i32
    return %c0_i32, %c0_i32_0 : i32, i32
  }
  func.func @transform_8(%arg0: i32) -> (i32, i32) {
    %c0_i32 = arith.constant 0 : i32
    %c0_i32_0 = arith.constant 0 : i32
    %c0_i32_1 = arith.constant 0 : i32
    return %c0_i32, %c0_i32_0 : i32, i32
  }
  func.func @transform_9(%arg0: i32) -> (i32, i32) {
    %c0_i32 = arith.constant 0 : i32
    %c0_i32_0 = arith.constant 0 : i32
    %c0_i32_1 = arith.constant 0 : i32
    return %c0_i32, %c0_i32_0 : i32, i32
  }
  func.func @transform_10(%arg0: i32) -> (i32, i32) {
    %c0_i32 = arith.constant 0 : i32
    %c0_i32_0 = arith.constant 0 : i32
    %c0_i32_1 = arith.constant 0 : i32
    return %c0_i32, %c0_i32_0 : i32, i32
  }
  func.func @transform_11(%arg0: i32) -> (i32, i32, i32, i32) {
    %c0_i32 = arith.constant 0 : i32
    %c0_i32_0 = arith.constant 0 : i32
    %c0_i32_1 = arith.constant 0 : i32
    %c0_i32_2 = arith.constant 0 : i32
    return %arg0, %c0_i32, %c0_i32_0, %c0_i32_1 : i32, i32, i32, i32
  }
}

</mosaic_0001>

<llo_original>
// kernel: se_basic_block.1
$region0: #{se_basic_block.1}
  #allocation0 [shape = 'u32[]', space=smem, size = 0x4, offset = 0x4, fixed_abs, tag = 'smem constant byte address 0x4 - core index']
  #allocation1 [shape = 'u32[72,128]{1,0:T(1,128)}', space=vmem, size = 0x9000, scoped, tag = 'internal scratch']
  #allocation2 [shape = 'bf16[1,16,16,1152]{3,2,1,0:T(8,128)(2,1)}', space=vmem, size = 0x90000, scoped, tag = 'scratch operand']
  %s0 = inlined_call_operand.vmem [shape: f32[2,16,16,16], index: 0, kind: input, shape index: {}]
  %s1 = inlined_call_operand.vmem [shape: bf16[1152,16], index: 1, kind: input, shape index: {}]
  %s2 = inlined_call_operand.vmem [shape: f32[1,16], index: 2, kind: input, shape index: {}]
  %s3 = inlined_call_operand.vmem [shape: f32[1,16], index: 3, kind: input, shape index: {}]
  %s4 = inlined_call_operand.vmem [shape: bf16[1152,16], index: 4, kind: input, shape index: {}]
  %s5 = inlined_call_operand.vmem [shape: f32[1,16], index: 5, kind: input, shape index: {}]
  %s6 = inlined_call_operand.vmem [shape: f32[1,16], index: 6, kind: input, shape index: {}]
  %s7 = inlined_call_operand.vmem [shape: bf16[16,2], index: 7, kind: input, shape index: {}]
  %s8 = inlined_call_operand.vmem [shape: f32[1,2], index: 8, kind: input, shape index: {}]
  %s9 = inlined_call_operand.vmem [shape: bf16[2,16], index: 9, kind: input, shape index: {}]
  %s10 = inlined_call_operand.vmem [shape: f32[1,16], index: 10, kind: input, shape index: {}]
  %s11 = inlined_call_operand.hbm [shape: f32[2,16,16,16], index: 11, kind: output, shape index: {}]
  %s12 = sld [smem:[#allocation0]]
  $region77: #{se_basic_block.1} parent=0
    _
  %s14 = ssub.s32 1, %s12
  %s15 = scalar_select 0, %s14, %s12
  $region1: #{se_basic_block.1} parent=0
    #allocation3 [shape = 'u8[262144]{0}', space=vmem, size = 0x40000, scoped, tag = 'output window, operand 0']
    #allocation4 [shape = 's32[2]{0}', space=sflag, size = 0x8, scoped, tag = 'scoped memory for se_basic_block.1']
    %16 = vsyncpa [#allocation4], 0
    %s17 = scalar_lea.sflag [#allocation4], 1
    %18 = vsyncpa %s17, 0
    loop: start=0, step=1, limit=4
    $region2: #{se_basic_block.1} parent=1 // loop_pre_header
      _
    $region3: #{se_basic_block.1} parent=1 // loop_header
      %s20 = sphi 0, %s24
      %p21 = scmp.ge.s32.totalorder %s20, 4
      %s30 = sphi 0, %s32
      %s33 = sphi 0, %s30
      %s34 = sphi 0, %s33
      %s50 = sphi 0, %s34
      %s54 = sphi 0, %s54
      %s56 = sphi 0, %s54
      %s57 = sphi 0, %s56
      %s71 = sphi 0, %s57
      %s75 = sphi 0, %s75
      %s77 = sphi 0, %s75
      %s78 = sphi 0, %s77
      %s92 = sphi 0, %s78
      %s96 = sphi 0, %s96
      %s98 = sphi 0, %s96
      %s99 = sphi 0, %s98
      %s113 = sphi 0, %s99
      %s117 = sphi 0, %s117
      %s119 = sphi 0, %s117
      %s120 = sphi 0, %s119
      %s134 = sphi 0, %s120
      %s138 = sphi 0, %s138
      %s140 = sphi 0, %s138
      %s141 = sphi 0, %s140
      %s155 = sphi 0, %s141
      %s159 = sphi 0, %s159
      %s161 = sphi 0, %s159
      %s162 = sphi 0, %s161
      %s176 = sphi 0, %s162
      %s180 = sphi 0, %s180
      %s182 = sphi 0, %s180
      %s183 = sphi 0, %s182
      %s197 = sphi 0, %s183
      %s201 = sphi 0, %s201
      %s203 = sphi 0, %s201
      %s204 = sphi 0, %s203
      %s218 = sphi 0, %s204
      %s222 = sphi 0, %s222
      %s224 = sphi 0, %s222
      %s225 = sphi 0, %s224
      %s239 = sphi 0, %s225
      %s243 = sphi 0, %s243
      %s245 = sphi 0, %s243
      %s246 = sphi 0, %s245
      %s260 = sphi 0, %s246
      %s266 = sphi 0, %s268
      %s269 = sphi 0, %s266
      %s270 = sphi 0, %s269
      %s286 = sphi 0, %s270
    $region4: #{se_basic_block.1} parent=1 // loop_header_branch
      %23 = sbr.rel (%p21) target = $region8
    $region5: #{se_basic_block.1} parent=1 // loop_body
      %s25 = ssub.s32 %s20, 1
      %s26 = ssub.s32 %s20, 2
      %s27 = sadd.s32 %s20, 1
      %s28 = ssub.s32 %s20, %s27
      %p29 = scmp.eq.s32.totalorder %s28, 0
      %s31 = sadd.s32 %s30, 1
      %s32 = scalar_select %p29, %s30, %s31
      %p35 = pneg %p29
      %p36 = scmp.eq.s32.totalorder %s20, 1
      %p37 = por %p35, %p36
      %p38 = scmp.ne.s32.totalorder %s30, %s33
      %p39 = scmp.eq.s32.totalorder %s20, 0
      %p40 = por %p38, %p39
      %p41 = scmp.ne.s32.totalorder %s30, %s33
      %p42 = scmp.eq.s32.totalorder %s25, 1
      %p43 = por %p41, %p42
      %p44 = scmp.ne.s32.totalorder %s33, %s34
      %p45 = scmp.eq.s32.totalorder %s25, 0
      %p46 = por %p44, %p45
      %p47 = scmp.ne.s32.totalorder %s33, %s34
      %p48 = scmp.eq.s32.totalorder %s26, 1
      %p49 = por %p47, %p48
      %p51 = scmp.ne.s32.totalorder %s34, %s50
      %p52 = scmp.eq.s32.totalorder %s26, 0
      %p53 = por %p51, %p52
      %s55 = sadd.s32 %s54, 1
      %p58 = scmp.eq.s32.totalorder %s20, 1
      %p59 = scmp.ne.s32.totalorder %s54, %s56
      %p60 = scmp.eq.s32.totalorder %s20, 0
      %p61 = por %p59, %p60
      %p62 = scmp.ne.s32.totalorder %s54, %s56
      %p63 = scmp.eq.s32.totalorder %s25, 1
      %p64 = por %p62, %p63
      %p65 = scmp.ne.s32.totalorder %s56, %s57
      %p66 = scmp.eq.s32.totalorder %s25, 0
      %p67 = por %p65, %p66
      %p68 = scmp.ne.s32.totalorder %s56, %s57
      %p69 = scmp.eq.s32.totalorder %s26, 1
      %p70 = por %p68, %p69
      %p72 = scmp.ne.s32.totalorder %s57, %s71
      %p73 = scmp.eq.s32.totalorder %s26, 0
      %p74 = por %p72, %p73
      %s76 = sadd.s32 %s75, 1
      %p79 = scmp.eq.s32.totalorder %s20, 1
      %p80 = scmp.ne.s32.totalorder %s75, %s77
      %p81 = scmp.eq.s32.totalorder %s20, 0
      %p82 = por %p80, %p81
      %p83 = scmp.ne.s32.totalorder %s75, %s77
      %p84 = scmp.eq.s32.totalorder %s25, 1
      %p85 = por %p83, %p84
      %p86 = scmp.ne.s32.totalorder %s77, %s78
      %p87 = scmp.eq.s32.totalorder %s25, 0
      %p88 = por %p86, %p87
      %p89 = scmp.ne.s32.totalorder %s77, %s78
      %p90 = scmp.eq.s32.totalorder %s26, 1
      %p91 = por %p89, %p90
      %p93 = scmp.ne.s32.totalorder %s78, %s92
      %p94 = scmp.eq.s32.totalorder %s26, 0
      %p95 = por %p93, %p94
      %s97 = sadd.s32 %s96, 1
      %p100 = scmp.eq.s32.totalorder %s20, 1
      %p101 = scmp.ne.s32.totalorder %s96, %s98
      %p102 = scmp.eq.s32.totalorder %s20, 0
      %p103 = por %p101, %p102
      %p104 = scmp.ne.s32.totalorder %s96, %s98
      %p105 = scmp.eq.s32.totalorder %s25, 1
      %p106 = por %p104, %p105
      %p107 = scmp.ne.s32.totalorder %s98, %s99
      %p108 = scmp.eq.s32.totalorder %s25, 0
      %p109 = por %p107, %p108
      %p110 = scmp.ne.s32.totalorder %s98, %s99
      %p111 = scmp.eq.s32.totalorder %s26, 1
      %p112 = por %p110, %p111
      %p114 = scmp.ne.s32.totalorder %s99, %s113
      %p115 = scmp.eq.s32.totalorder %s26, 0
      %p116 = por %p114, %p115
      %s118 = sadd.s32 %s117, 1
      %p121 = scmp.eq.s32.totalorder %s20, 1
      %p122 = scmp.ne.s32.totalorder %s117, %s119
      %p123 = scmp.eq.s32.totalorder %s20, 0
      %p124 = por %p122, %p123
      %p125 = scmp.ne.s32.totalorder %s117, %s119
      %p126 = scmp.eq.s32.totalorder %s25, 1
      %p127 = por %p125, %p126
      %p128 = scmp.ne.s32.totalorder %s119, %s120
      %p129 = scmp.eq.s32.totalorder %s25, 0
      %p130 = por %p128, %p129
      %p131 = scmp.ne.s32.totalorder %s119, %s120
      %p132 = scmp.eq.s32.totalorder %s26, 1
      %p133 = por %p131, %p132
      %p135 = scmp.ne.s32.totalorder %s120, %s134
      %p136 = scmp.eq.s32.totalorder %s26, 0
      %p137 = por %p135, %p136
      %s139 = sadd.s32 %s138, 1
      %p142 = scmp.eq.s32.totalorder %s20, 1
      %p143 = scmp.ne.s32.totalorder %s138, %s140
      %p144 = scmp.eq.s32.totalorder %s20, 0
      %p145 = por %p143, %p144
      %p146 = scmp.ne.s32.totalorder %s138, %s140
      %p147 = scmp.eq.s32.totalorder %s25, 1
      %p148 = por %p146, %p147
      %p149 = scmp.ne.s32.totalorder %s140, %s141
      %p150 = scmp.eq.s32.totalorder %s25, 0
      %p151 = por %p149, %p150
      %p152 = scmp.ne.s32.totalorder %s140, %s141
      %p153 = scmp.eq.s32.totalorder %s26, 1
      %p154 = por %p152, %p153
      %p156 = scmp.ne.s32.totalorder %s141, %s155
      %p157 = scmp.eq.s32.totalorder %s26, 0
      %p158 = por %p156, %p157
      %s160 = sadd.s32 %s159, 1
      %p163 = scmp.eq.s32.totalorder %s20, 1
      %p164 = scmp.ne.s32.totalorder %s159, %s161
      %p165 = scmp.eq.s32.totalorder %s20, 0
      %p166 = por %p164, %p165
      %p167 = scmp.ne.s32.totalorder %s159, %s161
      %p168 = scmp.eq.s32.totalorder %s25, 1
      %p169 = por %p167, %p168
      %p170 = scmp.ne.s32.totalorder %s161, %s162
      %p171 = scmp.eq.s32.totalorder %s25, 0
      %p172 = por %p170, %p171
      %p173 = scmp.ne.s32.totalorder %s161, %s162
      %p174 = scmp.eq.s32.totalorder %s26, 1
      %p175 = por %p173, %p174
      %p177 = scmp.ne.s32.totalorder %s162, %s176
      %p178 = scmp.eq.s32.totalorder %s26, 0
      %p179 = por %p177, %p178
      %s181 = sadd.s32 %s180, 1
      %p184 = scmp.eq.s32.totalorder %s20, 1
      %p185 = scmp.ne.s32.totalorder %s180, %s182
      %p186 = scmp.eq.s32.totalorder %s20, 0
      %p187 = por %p185, %p186
      %p188 = scmp.ne.s32.totalorder %s180, %s182
      %p189 = scmp.eq.s32.totalorder %s25, 1
      %p190 = por %p188, %p189
      %p191 = scmp.ne.s32.totalorder %s182, %s183
      %p192 = scmp.eq.s32.totalorder %s25, 0
      %p193 = por %p191, %p192
      %p194 = scmp.ne.s32.totalorder %s182, %s183
      %p195 = scmp.eq.s32.totalorder %s26, 1
      %p196 = por %p194, %p195
      %p198 = scmp.ne.s32.totalorder %s183, %s197
      %p199 = scmp.eq.s32.totalorder %s26, 0
      %p200 = por %p198, %p199
      %s202 = sadd.s32 %s201, 1
      %p205 = scmp.eq.s32.totalorder %s20, 1
      %p206 = scmp.ne.s32.totalorder %s201, %s203
      %p207 = scmp.eq.s32.totalorder %s20, 0
      %p208 = por %p206, %p207
      %p209 = scmp.ne.s32.totalorder %s201, %s203
      %p210 = scmp.eq.s32.totalorder %s25, 1
      %p211 = por %p209, %p210
      %p212 = scmp.ne.s32.totalorder %s203, %s204
      %p213 = scmp.eq.s32.totalorder %s25, 0
      %p214 = por %p212, %p213
      %p215 = scmp.ne.s32.totalorder %s203, %s204
      %p216 = scmp.eq.s32.totalorder %s26, 1
      %p217 = por %p215, %p216
      %p219 = scmp.ne.s32.totalorder %s204, %s218
      %p220 = scmp.eq.s32.totalorder %s26, 0
      %p221 = por %p219, %p220
      %s223 = sadd.s32 %s222, 1
      %p226 = scmp.eq.s32.totalorder %s20, 1
      %p227 = scmp.ne.s32.totalorder %s222, %s224
      %p228 = scmp.eq.s32.totalorder %s20, 0
      %p229 = por %p227, %p228
      %p230 = scmp.ne.s32.totalorder %s222, %s224
      %p231 = scmp.eq.s32.totalorder %s25, 1
      %p232 = por %p230, %p231
      %p233 = scmp.ne.s32.totalorder %s224, %s225
      %p234 = scmp.eq.s32.totalorder %s25, 0
      %p235 = por %p233, %p234
      %p236 = scmp.ne.s32.totalorder %s224, %s225
      %p237 = scmp.eq.s32.totalorder %s26, 1
      %p238 = por %p236, %p237
      %p240 = scmp.ne.s32.totalorder %s225, %s239
      %p241 = scmp.eq.s32.totalorder %s26, 0
      %p242 = por %p240, %p241
      %s244 = sadd.s32 %s243, 1
      %p247 = scmp.eq.s32.totalorder %s20, 1
      %p248 = scmp.ne.s32.totalorder %s243, %s245
      %p249 = scmp.eq.s32.totalorder %s20, 0
      %p250 = por %p248, %p249
      %p251 = scmp.ne.s32.totalorder %s243, %s245
      %p252 = scmp.eq.s32.totalorder %s25, 1
      %p253 = por %p251, %p252
      %p254 = scmp.ne.s32.totalorder %s245, %s246
      %p255 = scmp.eq.s32.totalorder %s25, 0
      %p256 = por %p254, %p255
      %p257 = scmp.ne.s32.totalorder %s245, %s246
      %p258 = scmp.eq.s32.totalorder %s26, 1
      %p259 = por %p257, %p258
      %p261 = scmp.ne.s32.totalorder %s246, %s260
      %p262 = scmp.eq.s32.totalorder %s26, 0
      %p263 = por %p261, %p262
      %s264 = ssub.s32 %s20, %s27
      %p265 = scmp.eq.s32.totalorder %s264, 0
      %s267 = sadd.s32 %s266, 1
      %s268 = scalar_select %p265, %s266, %s267
      %p271 = pneg %p265
      %p272 = scmp.eq.s32.totalorder %s20, 1
      %p273 = por %p271, %p272
      %p274 = scmp.ne.s32.totalorder %s266, %s269
      %p275 = scmp.eq.s32.totalorder %s20, 0
      %p276 = por %p274, %p275
      %p277 = scmp.ne.s32.totalorder %s266, %s269
      %p278 = scmp.eq.s32.totalorder %s25, 1
      %p279 = por %p277, %p278
      %p280 = scmp.ne.s32.totalorder %s269, %s270
      %p281 = scmp.eq.s32.totalorder %s25, 0
      %p282 = por %p280, %p281
      %p283 = scmp.ne.s32.totalorder %s269, %s270
      %p284 = scmp.eq.s32.totalorder %s26, 1
      %p285 = por %p283, %p284
      %p287 = scmp.ne.s32.totalorder %s270, %s286
      %p288 = scmp.eq.s32.totalorder %s26, 0
      %p289 = por %p287, %p288
      %p290 = scmp.le.s32.totalorder 1, %s20
      %p291 = scmp.lt.s32.totalorder %s20, 3
      %p292 = pnand %p290, %p291
      %p293 = pneg %p292
      // Predicated region
      $region9: #{se_basic_block.1} parent=5 // pred_check
        _
      $region10: #{se_basic_block.1} parent=5 // pred_check_branch
        %295 = sbr.rel (%p292) target = $region12
      $region11: #{se_basic_block.1} parent=5 // pred_region
        %s296 = ssub.s32 %s20, 1
        // Predicated region
        $region13: #{se_basic_block.1} parent=11 // pred_check
          %p297 = pneg %p67
        $region14: #{se_basic_block.1} parent=11 // pred_check_branch
          %299 = sbr.rel (%p297) target = $region16
        $region15: #{se_basic_block.1} parent=11 // pred_region
          _
        $region16: #{se_basic_block.1} parent=11 // pred_fallthru
          _
        // Predicated region
        $region17: #{se_basic_block.1} parent=11 // pred_check
          %p300 = pneg %p88
        $region18: #{se_basic_block.1} parent=11 // pred_check_branch
          %302 = sbr.rel (%p300) target = $region20
        $region19: #{se_basic_block.1} parent=11 // pred_region
          _
        $region20: #{se_basic_block.1} parent=11 // pred_fallthru
          _
        // Predicated region
        $region21: #{se_basic_block.1} parent=11 // pred_check
          %p303 = pneg %p109
        $region22: #{se_basic_block.1} parent=11 // pred_check_branch
          %305 = sbr.rel (%p303) target = $region24
        $region23: #{se_basic_block.1} parent=11 // pred_region
          _
        $region24: #{se_basic_block.1} parent=11 // pred_fallthru
          _
        // Predicated region
        $region25: #{se_basic_block.1} parent=11 // pred_check
          %p306 = pneg %p130
        $region26: #{se_basic_block.1} parent=11 // pred_check_branch
          %308 = sbr.rel (%p306) target = $region28
        $region27: #{se_basic_block.1} parent=11 // pred_region
          _
        $region28: #{se_basic_block.1} parent=11 // pred_fallthru
          _
        // Predicated region
        $region29: #{se_basic_block.1} parent=11 // pred_check
          %p309 = pneg %p151
        $region30: #{se_basic_block.1} parent=11 // pred_check_branch
          %311 = sbr.rel (%p309) target = $region32
        $region31: #{se_basic_block.1} parent=11 // pred_region
          _
        $region32: #{se_basic_block.1} parent=11 // pred_fallthru
          _
        // Predicated region
        $region33: #{se_basic_block.1} parent=11 // pred_check
          %p312 = pneg %p172
        $region34: #{se_basic_block.1} parent=11 // pred_check_branch
          %314 = sbr.rel (%p312) target = $region36
        $region35: #{se_basic_block.1} parent=11 // pred_region
          _
        $region36: #{se_basic_block.1} parent=11 // pred_fallthru
          _
        // Predicated region
        $region37: #{se_basic_block.1} parent=11 // pred_check
          %p315 = pneg %p193
        $region38: #{se_basic_block.1} parent=11 // pred_check_branch
          %317 = sbr.rel (%p315) target = $region40
        $region39: #{se_basic_block.1} parent=11 // pred_region
          _
        $region40: #{se_basic_block.1} parent=11 // pred_fallthru
          _
        // Predicated region
        $region41: #{se_basic_block.1} parent=11 // pred_check
          %p318 = pneg %p214
        $region42: #{se_basic_block.1} parent=11 // pred_check_branch
          %320 = sbr.rel (%p318) target = $region44
        $region43: #{se_basic_block.1} parent=11 // pred_region
          _
        $region44: #{se_basic_block.1} parent=11 // pred_fallthru
          _
        // Predicated region
        $region45: #{se_basic_block.1} parent=11 // pred_check
          %p321 = pneg %p235
        $region46: #{se_basic_block.1} parent=11 // pred_check_branch
          %323 = sbr.rel (%p321) target = $region48
        $region47: #{se_basic_block.1} parent=11 // pred_region
          _
        $region48: #{se_basic_block.1} parent=11 // pred_fallthru
          _
        // Predicated region
        $region49: #{se_basic_block.1} parent=11 // pred_check
          %p324 = pneg %p256
        $region50: #{se_basic_block.1} parent=11 // pred_check_branch
          %326 = sbr.rel (%p324) target = $region52
        $region51: #{se_basic_block.1} parent=11 // pred_region
          _
        $region52: #{se_basic_block.1} parent=11 // pred_fallthru
          _
      $region12: #{se_basic_block.1} parent=5 // pred_fallthru
        _
      %p327 = scmp.lt.s32.totalorder %s20, 2
      // Predicated region
      $region53: #{se_basic_block.1} parent=5 // pred_check
        %p328 = pneg %p327
      $region54: #{se_basic_block.1} parent=5 // pred_check_branch
        %330 = sbr.rel (%p328) target = $region56
      $region55: #{se_basic_block.1} parent=5 // pred_region
        // Predicated region
        $region57: #{se_basic_block.1} parent=55 // pred_check
          %p331 = pneg %p40
        $region58: #{se_basic_block.1} parent=55 // pred_check_branch
          %333 = sbr.rel (%p331) target = $region60
        $region59: #{se_basic_block.1} parent=55 // pred_region
          %p334 = scmp.lt.s32.totalorder %s20, 1
          %s335 = scalar_select %p334, %s20, 1
          %s336 = smul.addr %s335, 32
          %s337 = smul.addr %s336, 8
          %s338 = scalar_lea.vmem %s0, %s337
        $region60: #{se_basic_block.1} parent=55 // pred_fallthru
          _
      $region56: #{se_basic_block.1} parent=5 // pred_fallthru
        _
      %p339 = scmp.le.s32.totalorder 1, %s20
      %p340 = scmp.lt.s32.totalorder %s20, 3
      %p341 = pnand %p339, %p340
      %p342 = pneg %p341
      // Predicated region
      $region61: #{se_basic_block.1} parent=5 // pred_check
        _
      $region62: #{se_basic_block.1} parent=5 // pred_check_branch
        %344 = sbr.rel (%p341) target = $region64
      $region63: #{se_basic_block.1} parent=5 // pred_region
        %s345 = ssub.s32 %s20, 1
        %p346 = scmp.lt.s32.totalorder %s25, 1
        %s347 = scalar_select %p346, %s25, 1
        %s348 = smul.addr %s347, 32
        %s349 = smul.addr %s348, 8
        %s350 = scalar_lea.vmem %s0, %s349
        %p351 = pneg %p46
        %p352 = pneg %p43
        %p353 = pneg %p67
        %p354 = pneg %p64
        %p355 = pneg %p88
        %p356 = pneg %p85
        %p357 = pneg %p109
        %p358 = pneg %p106
        %p359 = pneg %p130
        %p360 = pneg %p127
        %p361 = pneg %p151
        %p362 = pneg %p148
        %p363 = pneg %p172
        %p364 = pneg %p169
        %p365 = pneg %p193
        %p366 = pneg %p190
        %p367 = pneg %p214
        %p368 = pneg %p211
        %p369 = pneg %p235
        %p370 = pneg %p232
        %p371 = pneg %p256
        %p372 = pneg %p253
        %p373 = pneg %p282
        %p374 = pneg %p279
        %s375 = sand.u32 %s269, 1
        %s376 = scalar_lea.sflag [#allocation4], %s375
        %s377 = sand.u32 %s269, 1
        %s378 = smul.addr %s377, 256
        %s379 = scalar_lea.vmem [#allocation3], %s378
        %p380 = scmp.lt.s32.totalorder %s25, 1
        %s381 = scalar_select %p380, %s25, 1
        %s382 = smul.addr %s381, 32
        %s383 = smul.addr %s382, 8
        %s384 = scalar_lea.vmem %s0, %s383
        %v386 = vld [vmem:[%s384] sm:$0xff]
        %v387 = vld [vmem:[%s384 + $0x8] sm:$0xff]
        %v388 = vld [vmem:[%s384 + $0x10] sm:$0xff]
        %v389 = vld [vmem:[%s384 + $0x18] sm:$0xff]
        %v390 = vld [vmem:[%s384 + $0x20] sm:$0xff]
        %v391 = vld [vmem:[%s384 + $0x28] sm:$0xff]
        %v392 = vld [vmem:[%s384 + $0x30] sm:$0xff]
        %v393 = vld [vmem:[%s384 + $0x38] sm:$0xff]
        %v394 = vld [vmem:[%s384 + $0x40] sm:$0xff]
        %v395 = vld [vmem:[%s384 + $0x48] sm:$0xff]
        %v396 = vld [vmem:[%s384 + $0x50] sm:$0xff]
        %v397 = vld [vmem:[%s384 + $0x58] sm:$0xff]
        %v398 = vld [vmem:[%s384 + $0x60] sm:$0xff]
        %v399 = vld [vmem:[%s384 + $0x68] sm:$0xff]
        %v400 = vld [vmem:[%s384 + $0x70] sm:$0xff]
        %v401 = vld [vmem:[%s384 + $0x78] sm:$0xff]
        %v402 = vld [vmem:[%s384 + $0x80] sm:$0xff]
        %v403 = vld [vmem:[%s384 + $0x88] sm:$0xff]
        %v404 = vld [vmem:[%s384 + $0x90] sm:$0xff]
        %v405 = vld [vmem:[%s384 + $0x98] sm:$0xff]
        %v406 = vld [vmem:[%s384 + $0xa0] sm:$0xff]
        %v407 = vld [vmem:[%s384 + $0xa8] sm:$0xff]
        %v408 = vld [vmem:[%s384 + $0xb0] sm:$0xff]
        %v409 = vld [vmem:[%s384 + $0xb8] sm:$0xff]
        %v410 = vld [vmem:[%s384 + $0xc0] sm:$0xff]
        %v411 = vld [vmem:[%s384 + $0xc8] sm:$0xff]
        %v412 = vld [vmem:[%s384 + $0xd0] sm:$0xff]
        %v413 = vld [vmem:[%s384 + $0xd8] sm:$0xff]
        %v414 = vld [vmem:[%s384 + $0xe0] sm:$0xff]
        %v415 = vld [vmem:[%s384 + $0xe8] sm:$0xff]
        %v416 = vld [vmem:[%s384 + $0xf0] sm:$0xff]
        %v417 = vld [vmem:[%s384 + $0xf8] sm:$0xff]
        %418 = vst [vmem:[#allocation2] sm:$0xf] 0
        %419 = vst [vmem:[#allocation2 + $0x24] sm:$0xf] 0
        %vm420 = vcmask 1040384
        %vm421 = vsmask.f32 256
        %vm422 = vmand %vm420, %vm421
        %v423 = vld [vmem:[#allocation2] sm:$0x1]
        %v424 = vsel %vm422, 0, %v423
        %425 = vst [vmem:[#allocation2] sm:$0x1] %v424
        %v426 = vld [vmem:[#allocation2 + $0x48] sm:$0x1]
        %v427 = vsel %vm422, 0, %v426
        %428 = vst [vmem:[#allocation2 + $0x48] sm:$0x1] %v427
        %v429 = vld [vmem:[#allocation2 + $0x90] sm:$0x1]
        %v430 = vsel %vm422, 0, %v429
        %431 = vst [vmem:[#allocation2 + $0x90] sm:$0x1] %v430
        %v432 = vld [vmem:[#allocation2 + $0xd8] sm:$0x1]
        %v433 = vsel %vm422, 0, %v432
        %434 = vst [vmem:[#allocation2 + $0xd8] sm:$0x1] %v433
        %v435 = vld [vmem:[#allocation2 + $0x120] sm:$0x1]
        %v436 = vsel %vm422, 0, %v435
        %437 = vst [vmem:[#allocation2 + $0x120] sm:$0x1] %v436
        %v438 = vld [vmem:[#allocation2 + $0x168] sm:$0x1]
        %v439 = vsel %vm422, 0, %v438
        %440 = vst [vmem:[#allocation2 + $0x168] sm:$0x1] %v439
        %v441 = vld [vmem:[#allocation2 + $0x1b0] sm:$0x1]
        %v442 = vsel %vm422, 0, %v441
        %443 = vst [vmem:[#allocation2 + $0x1b0] sm:$0x1] %v442
        %v444 = vld [vmem:[#allocation2 + $0x1f8] sm:$0x1]
        %v445 = vsel %vm422, 0, %v444
        %446 = vst [vmem:[#allocation2 + $0x1f8] sm:$0x1] %v445
        %v447 = vld [vmem:[#allocation2 + $0x240] sm:$0x1]
        %v448 = vsel %vm422, 0, %v447
        %449 = vst [vmem:[#allocation2 + $0x240] sm:$0x1] %v448
        %v450 = vld [vmem:[#allocation2 + $0x288] sm:$0x1]
        %v451 = vsel %vm422, 0, %v450
        %452 = vst [vmem:[#allocation2 + $0x288] sm:$0x1] %v451
        %v453 = vld [vmem:[#allocation2 + $0x2d0] sm:$0x1]
        %v454 = vsel %vm422, 0, %v453
        %455 = vst [vmem:[#allocation2 + $0x2d0] sm:$0x1] %v454
        %v456 = vld [vmem:[#allocation2 + $0x318] sm:$0x1]
        %v457 = vsel %vm422, 0, %v456
        %458 = vst [vmem:[#allocation2 + $0x318] sm:$0x1] %v457
        %v459 = vld [vmem:[#allocation2 + $0x360] sm:$0x1]
        %v460 = vsel %vm422, 0, %v459
        %461 = vst [vmem:[#allocation2 + $0x360] sm:$0x1] %v460
        %v462 = vld [vmem:[#allocation2 + $0x3a8] sm:$0x1]
        %v463 = vsel %vm422, 0, %v462
        %464 = vst [vmem:[#allocation2 + $0x3a8] sm:$0x1] %v463
        %v465 = vld [vmem:[#allocation2 + $0x3f0] sm:$0x1]
        %v466 = vsel %vm422, 0, %v465
        %467 = vst [vmem:[#allocation2 + $0x3f0] sm:$0x1] %v466
        %v468 = vld [vmem:[#allocation2 + $0x438] sm:$0x1]
        %v469 = vsel %vm422, 0, %v468
        %470 = vst [vmem:[#allocation2 + $0x438] sm:$0x1] %v469
        %471 = vst [vmem:[#allocation2 + $0x4] sm:$0xf] 0
        %472 = vst [vmem:[#allocation2 + $0x28] sm:$0xf] 0
        %473 = vst [vmem:[#allocation2 + $0x8] sm:$0xf] 0
        %474 = vst [vmem:[#allocation2 + $0x2c] sm:$0xf] 0
        %vm475 = vcmask 1043459
        %vm476 = vsmask.f32 7950
        %vm477 = vmand %vm475, %vm476
        %v478 = vld [vmem:[#allocation2 + $0x2c] sm:$0x8]
        %v479 = vsel %vm477, 0, %v478
        %480 = vst [vmem:[#allocation2 + $0x2c] sm:$0x8] %v479
        %v481 = vld [vmem:[#allocation2 + $0x74] sm:$0x8]
        %v482 = vsel %vm477, 0, %v481
        %483 = vst [vmem:[#allocation2 + $0x74] sm:$0x8] %v482
        %v484 = vld [vmem:[#allocation2 + $0xbc] sm:$0x8]
        %v485 = vsel %vm477, 0, %v484
        %486 = vst [vmem:[#allocation2 + $0xbc] sm:$0x8] %v485
        %v487 = vld [vmem:[#allocation2 + $0x104] sm:$0x8]
        %v488 = vsel %vm477, 0, %v487
        %489 = vst [vmem:[#allocation2 + $0x104] sm:$0x8] %v488
        %v490 = vld [vmem:[#allocation2 + $0x14c] sm:$0x8]
        %v491 = vsel %vm477, 0, %v490
        %492 = vst [vmem:[#allocation2 + $0x14c] sm:$0x8] %v491
        %v493 = vld [vmem:[#allocation2 + $0x194] sm:$0x8]
        %v494 = vsel %vm477, 0, %v493
        %495 = vst [vmem:[#allocation2 + $0x194] sm:$0x8] %v494
        %v496 = vld [vmem:[#allocation2 + $0x1dc] sm:$0x8]
        %v497 = vsel %vm477, 0, %v496
        %498 = vst [vmem:[#allocation2 + $0x1dc] sm:$0x8] %v497
        %v499 = vld [vmem:[#allocation2 + $0x224] sm:$0x8]
        %v500 = vsel %vm477, 0, %v499
        %501 = vst [vmem:[#allocation2 + $0x224] sm:$0x8] %v500
        %v502 = vld [vmem:[#allocation2 + $0x26c] sm:$0x8]
        %v503 = vsel %vm477, 0, %v502
        %504 = vst [vmem:[#allocation2 + $0x26c] sm:$0x8] %v503
        %v505 = vld [vmem:[#allocation2 + $0x2b4] sm:$0x8]
        %v506 = vsel %vm477, 0, %v505
        %507 = vst [vmem:[#allocation2 + $0x2b4] sm:$0x8] %v506
        %v508 = vld [vmem:[#allocation2 + $0x2fc] sm:$0x8]
        %v509 = vsel %vm477, 0, %v508
        %510 = vst [vmem:[#allocation2 + $0x2fc] sm:$0x8] %v509
        %v511 = vld [vmem:[#allocation2 + $0x344] sm:$0x8]
        %v512 = vsel %vm477, 0, %v511
        %513 = vst [vmem:[#allocation2 + $0x344] sm:$0x8] %v512
        %v514 = vld [vmem:[#allocation2 + $0x38c] sm:$0x8]
        %v515 = vsel %vm477, 0, %v514
        %516 = vst [vmem:[#allocation2 + $0x38c] sm:$0x8] %v515
        %v517 = vld [vmem:[#allocation2 + $0x3d4] sm:$0x8]
        %v518 = vsel %vm477, 0, %v517
        %519 = vst [vmem:[#allocation2 + $0x3d4] sm:$0x8] %v518
        %v520 = vld [vmem:[#allocation2 + $0x41c] sm:$0x8]
        %v521 = vsel %vm477, 0, %v520
        %522 = vst [vmem:[#allocation2 + $0x41c] sm:$0x8] %v521
        %v523 = vld [vmem:[#allocation2 + $0x464] sm:$0x8]
        %v524 = vsel %vm477, 0, %v523
        %525 = vst [vmem:[#allocation2 + $0x464] sm:$0x8] %v524
        %v526 = vld [vmem:[#allocation2 + $0xc] sm:$0x1]
        %v527 = vsel %vm422, 0, %v526
        %528 = vst [vmem:[#allocation2 + $0xc] sm:$0x1] %v527
        %v529 = vld [vmem:[#allocation2 + $0x54] sm:$0x1]
        %v530 = vsel %vm422, 0, %v529
        %531 = vst [vmem:[#allocation2 + $0x54] sm:$0x1] %v530
        %v532 = vld [vmem:[#allocation2 + $0x9c] sm:$0x1]
        %v533 = vsel %vm422, 0, %v532
        %534 = vst [vmem:[#allocation2 + $0x9c] sm:$0x1] %v533
        %v535 = vld [vmem:[#allocation2 + $0xe4] sm:$0x1]
        %v536 = vsel %vm422, 0, %v535
        %537 = vst [vmem:[#allocation2 + $0xe4] sm:$0x1] %v536
        %v538 = vld [vmem:[#allocation2 + $0x12c] sm:$0x1]
        %v539 = vsel %vm422, 0, %v538
        %540 = vst [vmem:[#allocation2 + $0x12c] sm:$0x1] %v539
        %v541 = vld [vmem:[#allocation2 + $0x174] sm:$0x1]
        %v542 = vsel %vm422, 0, %v541
        %543 = vst [vmem:[#allocation2 + $0x174] sm:$0x1] %v542
        %v544 = vld [vmem:[#allocation2 + $0x1bc] sm:$0x1]
        %v545 = vsel %vm422, 0, %v544
        %546 = vst [vmem:[#allocation2 + $0x1bc] sm:$0x1] %v545
        %v547 = vld [vmem:[#allocation2 + $0x204] sm:$0x1]
        %v548 = vsel %vm422, 0, %v547
        %549 = vst [vmem:[#allocation2 + $0x204] sm:$0x1] %v548
        %v550 = vld [vmem:[#allocation2 + $0x24c] sm:$0x1]
        %v551 = vsel %vm422, 0, %v550
        %552 = vst [vmem:[#allocation2 + $0x24c] sm:$0x1] %v551
        %v553 = vld [vmem:[#allocation2 + $0x294] sm:$0x1]
        %v554 = vsel %vm422, 0, %v553
        %555 = vst [vmem:[#allocation2 + $0x294] sm:$0x1] %v554
        %v556 = vld [vmem:[#allocation2 + $0x2dc] sm:$0x1]
        %v557 = vsel %vm422, 0, %v556
        %558 = vst [vmem:[#allocation2 + $0x2dc] sm:$0x1] %v557
        %v559 = vld [vmem:[#allocation2 + $0x324] sm:$0x1]
        %v560 = vsel %vm422, 0, %v559
        %561 = vst [vmem:[#allocation2 + $0x324] sm:$0x1] %v560
        %v562 = vld [vmem:[#allocation2 + $0x36c] sm:$0x1]
        %v563 = vsel %vm422, 0, %v562
        %564 = vst [vmem:[#allocation2 + $0x36c] sm:$0x1] %v563
        %v565 = vld [vmem:[#allocation2 + $0x3b4] sm:$0x1]
        %v566 = vsel %vm422, 0, %v565
        %567 = vst [vmem:[#allocation2 + $0x3b4] sm:$0x1] %v566
        %v568 = vld [vmem:[#allocation2 + $0x3fc] sm:$0x1]
        %v569 = vsel %vm422, 0, %v568
        %570 = vst [vmem:[#allocation2 + $0x3fc] sm:$0x1] %v569
        %v571 = vld [vmem:[#allocation2 + $0x444] sm:$0x1]
        %v572 = vsel %vm422, 0, %v571
        %573 = vst [vmem:[#allocation2 + $0x444] sm:$0x1] %v572
        %v574 = vld [vmem:[#allocation2 + $0x38] sm:$0x8]
        %v575 = vsel %vm477, 0, %v574
        %576 = vst [vmem:[#allocation2 + $0x38] sm:$0x8] %v575
        %v577 = vld [vmem:[#allocation2 + $0x80] sm:$0x8]
        %v578 = vsel %vm477, 0, %v577
        %579 = vst [vmem:[#allocation2 + $0x80] sm:$0x8] %v578
        %v580 = vld [vmem:[#allocation2 + $0xc8] sm:$0x8]
        %v581 = vsel %vm477, 0, %v580
        %582 = vst [vmem:[#allocation2 + $0xc8] sm:$0x8] %v581
        %v583 = vld [vmem:[#allocation2 + $0x110] sm:$0x8]
        %v584 = vsel %vm477, 0, %v583
        %585 = vst [vmem:[#allocation2 + $0x110] sm:$0x8] %v584
        %v586 = vld [vmem:[#allocation2 + $0x158] sm:$0x8]
        %v587 = vsel %vm477, 0, %v586
        %588 = vst [vmem:[#allocation2 + $0x158] sm:$0x8] %v587
        %v589 = vld [vmem:[#allocation2 + $0x1a0] sm:$0x8]
        %v590 = vsel %vm477, 0, %v589
        %591 = vst [vmem:[#allocation2 + $0x1a0] sm:$0x8] %v590
        %v592 = vld [vmem:[#allocation2 + $0x1e8] sm:$0x8]
        %v593 = vsel %vm477, 0, %v592
        %594 = vst [vmem:[#allocation2 + $0x1e8] sm:$0x8] %v593
        %v595 = vld [vmem:[#allocation2 + $0x230] sm:$0x8]
        %v596 = vsel %vm477, 0, %v595
        %597 = vst [vmem:[#allocation2 + $0x230] sm:$0x8] %v596
        %v598 = vld [vmem:[#allocation2 + $0x278] sm:$0x8]
        %v599 = vsel %vm477, 0, %v598
        %600 = vst [vmem:[#allocation2 + $0x278] sm:$0x8] %v599
        %v601 = vld [vmem:[#allocation2 + $0x2c0] sm:$0x8]
        %v602 = vsel %vm477, 0, %v601
        %603 = vst [vmem:[#allocation2 + $0x2c0] sm:$0x8] %v602
        %v604 = vld [vmem:[#allocation2 + $0x308] sm:$0x8]
        %v605 = vsel %vm477, 0, %v604
        %606 = vst [vmem:[#allocation2 + $0x308] sm:$0x8] %v605
        %v607 = vld [vmem:[#allocation2 + $0x350] sm:$0x8]
        %v608 = vsel %vm477, 0, %v607
        %609 = vst [vmem:[#allocation2 + $0x350] sm:$0x8] %v608
        %v610 = vld [vmem:[#allocation2 + $0x398] sm:$0x8]
        %v611 = vsel %vm477, 0, %v610
        %612 = vst [vmem:[#allocation2 + $0x398] sm:$0x8] %v611
        %v613 = vld [vmem:[#allocation2 + $0x3e0] sm:$0x8]
        %v614 = vsel %vm477, 0, %v613
        %615 = vst [vmem:[#allocation2 + $0x3e0] sm:$0x8] %v614
        %v616 = vld [vmem:[#allocation2 + $0x428] sm:$0x8]
        %v617 = vsel %vm477, 0, %v616
        %618 = vst [vmem:[#allocation2 + $0x428] sm:$0x8] %v617
        %v619 = vld [vmem:[#allocation2 + $0x470] sm:$0x8]
        %v620 = vsel %vm477, 0, %v619
        %621 = vst [vmem:[#allocation2 + $0x470] sm:$0x8] %v620
        %s622 = scalar_lea.vmem [#allocation2], 1080
        %623 = vst [vmem:[%s622 + $0x18] sm:$0xf] 0
        %624 = vst [vmem:[%s622 + $0x3c] sm:$0xf] 0
        %v625 = vld [vmem:[#allocation2 + $0x18] sm:$0x1]
        %v626 = vsel %vm422, 0, %v625
        %627 = vst [vmem:[#allocation2 + $0x18] sm:$0x1] %v626
        %v628 = vld [vmem:[#allocation2 + $0x60] sm:$0x1]
        %v629 = vsel %vm422, 0, %v628
        %630 = vst [vmem:[#allocation2 + $0x60] sm:$0x1] %v629
        %v631 = vld [vmem:[#allocation2 + $0xa8] sm:$0x1]
        %v632 = vsel %vm422, 0, %v631
        %633 = vst [vmem:[#allocation2 + $0xa8] sm:$0x1] %v632
        %v634 = vld [vmem:[#allocation2 + $0xf0] sm:$0x1]
        %v635 = vsel %vm422, 0, %v634
        %636 = vst [vmem:[#allocation2 + $0xf0] sm:$0x1] %v635
        %v637 = vld [vmem:[#allocation2 + $0x138] sm:$0x1]
        %v638 = vsel %vm422, 0, %v637
        %639 = vst [vmem:[#allocation2 + $0x138] sm:$0x1] %v638
        %v640 = vld [vmem:[#allocation2 + $0x180] sm:$0x1]
        %v641 = vsel %vm422, 0, %v640
        %642 = vst [vmem:[#allocation2 + $0x180] sm:$0x1] %v641
        %v643 = vld [vmem:[#allocation2 + $0x1c8] sm:$0x1]
        %v644 = vsel %vm422, 0, %v643
        %645 = vst [vmem:[#allocation2 + $0x1c8] sm:$0x1] %v644
        %v646 = vld [vmem:[#allocation2 + $0x210] sm:$0x1]
        %v647 = vsel %vm422, 0, %v646
        %648 = vst [vmem:[#allocation2 + $0x210] sm:$0x1] %v647
        %v649 = vld [vmem:[#allocation2 + $0x258] sm:$0x1]
        %v650 = vsel %vm422, 0, %v649
        %651 = vst [vmem:[#allocation2 + $0x258] sm:$0x1] %v650
        %v652 = vld [vmem:[#allocation2 + $0x2a0] sm:$0x1]
        %v653 = vsel %vm422, 0, %v652
        %654 = vst [vmem:[#allocation2 + $0x2a0] sm:$0x1] %v653
        %v655 = vld [vmem:[#allocation2 + $0x2e8] sm:$0x1]
        %v656 = vsel %vm422, 0, %v655
        %657 = vst [vmem:[#allocation2 + $0x2e8] sm:$0x1] %v656
        %v658 = vld [vmem:[#allocation2 + $0x330] sm:$0x1]
        %v659 = vsel %vm422, 0, %v658
        %660 = vst [vmem:[#allocation2 + $0x330] sm:$0x1] %v659
        %v661 = vld [vmem:[#allocation2 + $0x378] sm:$0x1]
        %v662 = vsel %vm422, 0, %v661
        %663 = vst [vmem:[#allocation2 + $0x378] sm:$0x1] %v662
        %v664 = vld [vmem:[#allocation2 + $0x3c0] sm:$0x1]
        %v665 = vsel %vm422, 0, %v664
        %666 = vst [vmem:[#allocation2 + $0x3c0] sm:$0x1] %v665
        %v667 = vld [vmem:[#allocation2 + $0x408] sm:$0x1]
        %v668 = vsel %vm422, 0, %v667
        %669 = vst [vmem:[#allocation2 + $0x408] sm:$0x1] %v668
        %v670 = vld [vmem:[#allocation2 + $0x450] sm:$0x1]
        %v671 = vsel %vm422, 0, %v670
        %672 = vst [vmem:[#allocation2 + $0x450] sm:$0x1] %v671
        %673 = vst [vmem:[%s622 + $0x1c] sm:$0xf] 0
        %674 = vst [vmem:[%s622 + $0x40] sm:$0xf] 0
        %675 = vst [vmem:[%s622 + $0x20] sm:$0xf] 0
        %676 = vst [vmem:[%s622 + $0x44] sm:$0xf] 0
        %v677 = vld [vmem:[#allocation2 + $0x44] sm:$0x8]
        %v678 = vsel %vm477, 0, %v677
        %679 = vst [vmem:[#allocation2 + $0x44] sm:$0x8] %v678
        %v680 = vld [vmem:[#allocation2 + $0x8c] sm:$0x8]
        %v681 = vsel %vm477, 0, %v680
        %682 = vst [vmem:[#allocation2 + $0x8c] sm:$0x8] %v681
        %v683 = vld [vmem:[#allocation2 + $0xd4] sm:$0x8]
        %v684 = vsel %vm477, 0, %v683
        %685 = vst [vmem:[#allocation2 + $0xd4] sm:$0x8] %v684
        %v686 = vld [vmem:[#allocation2 + $0x11c] sm:$0x8]
        %v687 = vsel %vm477, 0, %v686
        %688 = vst [vmem:[#allocation2 + $0x11c] sm:$0x8] %v687
        %v689 = vld [vmem:[#allocation2 + $0x164] sm:$0x8]
        %v690 = vsel %vm477, 0, %v689
        %691 = vst [vmem:[#allocation2 + $0x164] sm:$0x8] %v690
        %v692 = vld [vmem:[#allocation2 + $0x1ac] sm:$0x8]
        %v693 = vsel %vm477, 0, %v692
        %694 = vst [vmem:[#allocation2 + $0x1ac] sm:$0x8] %v693
        %v695 = vld [vmem:[#allocation2 + $0x1f4] sm:$0x8]
        %v696 = vsel %vm477, 0, %v695
        %697 = vst [vmem:[#allocation2 + $0x1f4] sm:$0x8] %v696
        %v698 = vld [vmem:[#allocation2 + $0x23c] sm:$0x8]
        %v699 = vsel %vm477, 0, %v698
        %700 = vst [vmem:[#allocation2 + $0x23c] sm:$0x8] %v699
        %v701 = vld [vmem:[#allocation2 + $0x284] sm:$0x8]
        %v702 = vsel %vm477, 0, %v701
        %703 = vst [vmem:[#allocation2 + $0x284] sm:$0x8] %v702
        %v704 = vld [vmem:[#allocation2 + $0x2cc] sm:$0x8]
        %v705 = vsel %vm477, 0, %v704
        %706 = vst [vmem:[#allocation2 + $0x2cc] sm:$0x8] %v705
        %v707 = vld [vmem:[#allocation2 + $0x314] sm:$0x8]
        %v708 = vsel %vm477, 0, %v707
        %709 = vst [vmem:[#allocation2 + $0x314] sm:$0x8] %v708
        %v710 = vld [vmem:[#allocation2 + $0x35c] sm:$0x8]
        %v711 = vsel %vm477, 0, %v710
        %712 = vst [vmem:[#allocation2 + $0x35c] sm:$0x8] %v711
        %v713 = vld [vmem:[#allocation2 + $0x3a4] sm:$0x8]
        %v714 = vsel %vm477, 0, %v713
        %715 = vst [vmem:[#allocation2 + $0x3a4] sm:$0x8] %v714
        %v716 = vld [vmem:[#allocation2 + $0x3ec] sm:$0x8]
        %v717 = vsel %vm477, 0, %v716
        %718 = vst [vmem:[#allocation2 + $0x3ec] sm:$0x8] %v717
        %v719 = vld [vmem:[#allocation2 + $0x434] sm:$0x8]
        %v720 = vsel %vm477, 0, %v719
        %721 = vst [vmem:[#allocation2 + $0x434] sm:$0x8] %v720
        %v722 = vld [vmem:[#allocation2 + $0x47c] sm:$0x8]
        %v723 = vsel %vm477, 0, %v722
        %724 = vst [vmem:[#allocation2 + $0x47c] sm:$0x8] %v723
        %v725 = vpack.c.bf16 %v386, %v386
        %v726 = vpack.c.bf16 %v387, %v387
        %v727 = vpack.c.bf16 %v388, %v388
        %v728 = vpack.c.bf16 %v389, %v389
        %v729 = vpack.c.bf16 %v390, %v390
        %v730 = vpack.c.bf16 %v391, %v391
        %v731 = vpack.c.bf16 %v392, %v392
        %v732 = vpack.c.bf16 %v393, %v393
        %v733 = vpack.c.bf16 %v394, %v394
        %v734 = vpack.c.bf16 %v395, %v395
        %v735 = vpack.c.bf16 %v396, %v396
        %v736 = vpack.c.bf16 %v397, %v397
        %v737 = vpack.c.bf16 %v398, %v398
        %v738 = vpack.c.bf16 %v399, %v399
        %v739 = vpack.c.bf16 %v400, %v400
        %v740 = vpack.c.bf16 %v401, %v401
        %v741 = vpack.c.bf16 %v402, %v402
        %v742 = vpack.c.bf16 %v403, %v403
        %v743 = vpack.c.bf16 %v404, %v404
        %v744 = vpack.c.bf16 %v405, %v405
        %v745 = vpack.c.bf16 %v406, %v406
        %v746 = vpack.c.bf16 %v407, %v407
        %v747 = vpack.c.bf16 %v408, %v408
        %v748 = vpack.c.bf16 %v409, %v409
        %v749 = vpack.c.bf16 %v410, %v410
        %v750 = vpack.c.bf16 %v411, %v411
        %v751 = vpack.c.bf16 %v412, %v412
        %v752 = vpack.c.bf16 %v413, %v413
        %v753 = vpack.c.bf16 %v414, %v414
        %v754 = vpack.c.bf16 %v415, %v415
        %v755 = vpack.c.bf16 %v416, %v416
        %v756 = vpack.c.bf16 %v417, %v417
        %v789 = vunpack.c.l.b16 %v725
        %v790 = vunpack.c.l.b16 %v726
        %v791 = vunpack.c.l.b16 %v727
        %v792 = vunpack.c.l.b16 %v728
        %v793 = vunpack.c.l.b16 %v729
        %v794 = vunpack.c.l.b16 %v730
        %v795 = vunpack.c.l.b16 %v731
        %v796 = vunpack.c.l.b16 %v732
        %v797 = vunpack.c.l.b16 %v733
        %v798 = vunpack.c.l.b16 %v734
        %v799 = vunpack.c.l.b16 %v735
        %v800 = vunpack.c.l.b16 %v736
        %v801 = vunpack.c.l.b16 %v737
        %v802 = vunpack.c.l.b16 %v738
        %v803 = vunpack.c.l.b16 %v739
        %v804 = vunpack.c.l.b16 %v740
        %v805 = vunpack.c.l.b16 %v741
        %v806 = vunpack.c.l.b16 %v742
        %v807 = vunpack.c.l.b16 %v743
        %v808 = vunpack.c.l.b16 %v744
        %v809 = vunpack.c.l.b16 %v745
        %v810 = vunpack.c.l.b16 %v746
        %v811 = vunpack.c.l.b16 %v747
        %v812 = vunpack.c.l.b16 %v748
        %v813 = vunpack.c.l.b16 %v749
        %v814 = vunpack.c.l.b16 %v750
        %v815 = vunpack.c.l.b16 %v751
        %v816 = vunpack.c.l.b16 %v752
        %v817 = vunpack.c.l.b16 %v753
        %v818 = vunpack.c.l.b16 %v754
        %v819 = vunpack.c.l.b16 %v755
        %v820 = vunpack.c.l.b16 %v756
        %v821 = vpack.c.b16 %v790, %v789
        %v822 = vpack.c.b16 %v792, %v791
        %v823 = vpack.c.b16 %v794, %v793
        %v824 = vpack.c.b16 %v796, %v795
        %v825 = vpack.c.b16 %v798, %v797
        %v826 = vpack.c.b16 %v800, %v799
        %v827 = vpack.c.b16 %v802, %v801
        %v828 = vpack.c.b16 %v804, %v803
        %v829 = vpack.c.b16 %v806, %v805
        %v830 = vpack.c.b16 %v808, %v807
        %v831 = vpack.c.b16 %v810, %v809
        %v832 = vpack.c.b16 %v812, %v811
        %v833 = vpack.c.b16 %v814, %v813
        %v834 = vpack.c.b16 %v816, %v815
        %v835 = vpack.c.b16 %v818, %v817
        %v836 = vpack.c.b16 %v820, %v819
        %vm837 = vcmask 130048
        %v840 = vsel %vm837, %v821, 0
        %v842 = vsel %vm837, %v822, 0
        %v844 = vsel %vm837, %v823, 0
        %v846 = vsel %vm837, %v824, 0
        %v848 = vsel %vm837, %v825, 0
        %v850 = vsel %vm837, %v826, 0
        %v852 = vsel %vm837, %v827, 0
        %v854 = vsel %vm837, %v828, 0
        %v856 = vsel %vm837, %v829, 0
        %v858 = vsel %vm837, %v830, 0
        %v860 = vsel %vm837, %v831, 0
        %v862 = vsel %vm837, %v832, 0
        %v864 = vsel %vm837, %v833, 0
        %v866 = vsel %vm837, %v834, 0
        %v868 = vsel %vm837, %v835, 0
        %v870 = vsel %vm837, %v836, 0
        %v886 = vunpack.c.l.b16 %v840
        %v887 = vunpack.c.h.b16 %v840
        %v888 = vunpack.c.l.b16 %v842
        %v889 = vunpack.c.h.b16 %v842
        %v890 = vunpack.c.l.b16 %v844
        %v891 = vunpack.c.h.b16 %v844
        %v892 = vunpack.c.l.b16 %v846
        %v893 = vunpack.c.h.b16 %v846
        %v894 = vunpack.c.l.b16 %v848
        %v895 = vunpack.c.h.b16 %v848
        %v896 = vunpack.c.l.b16 %v850
        %v897 = vunpack.c.h.b16 %v850
        %v898 = vunpack.c.l.b16 %v852
        %v899 = vunpack.c.h.b16 %v852
        %v900 = vunpack.c.l.b16 %v854
        %v901 = vunpack.c.h.b16 %v854
        %v902 = vunpack.c.l.b16 %v856
        %v903 = vunpack.c.h.b16 %v856
        %v904 = vunpack.c.l.b16 %v858
        %v905 = vunpack.c.h.b16 %v858
        %v906 = vunpack.c.l.b16 %v860
        %v907 = vunpack.c.h.b16 %v860
        %v908 = vunpack.c.l.b16 %v862
        %v909 = vunpack.c.h.b16 %v862
        %v910 = vunpack.c.l.b16 %v864
        %v911 = vunpack.c.h.b16 %v864
        %v912 = vunpack.c.l.b16 %v866
        %v913 = vunpack.c.h.b16 %v866
        %v914 = vunpack.c.l.b16 %v868
        %v915 = vunpack.c.h.b16 %v868
        %v916 = vpack.c.b16 %v886, %v886
        %v917 = vpack.c.b16 %v887, %v887
        %v918 = vpack.c.b16 %v888, %v888
        %v919 = vpack.c.b16 %v889, %v889
        %v920 = vpack.c.b16 %v890, %v890
        %v921 = vpack.c.b16 %v891, %v891
        %v922 = vpack.c.b16 %v892, %v892
        %v923 = vpack.c.b16 %v893, %v893
        %v924 = vpack.c.b16 %v894, %v894
        %v925 = vpack.c.b16 %v895, %v895
        %v926 = vpack.c.b16 %v896, %v896
        %v927 = vpack.c.b16 %v897, %v897
        %v928 = vpack.c.b16 %v898, %v898
        %v929 = vpack.c.b16 %v899, %v899
        %v930 = vpack.c.b16 %v900, %v900
        %v931 = vpack.c.b16 %v901, %v901
        %v932 = vpack.c.b16 %v902, %v902
        %v933 = vpack.c.b16 %v903, %v903
        %v934 = vpack.c.b16 %v904, %v904
        %v935 = vpack.c.b16 %v905, %v905
        %v936 = vpack.c.b16 %v906, %v906
        %v937 = vpack.c.b16 %v907, %v907
        %v938 = vpack.c.b16 %v908, %v908
        %v939 = vpack.c.b16 %v909, %v909
        %v940 = vpack.c.b16 %v910, %v910
        %v941 = vpack.c.b16 %v911, %v911
        %v942 = vpack.c.b16 %v912, %v912
        %v943 = vpack.c.b16 %v913, %v913
        %v944 = vpack.c.b16 %v914, %v914
        %v945 = vpack.c.b16 %v915, %v915
        %vm946 = vsmask.f32 4368
        %vm947 = vmor %vm421, %vm946
        %v949 = vshrl.u32 %v916, 16
        %v951 = vrot.slane %v949, 7
        %v952 = vshll.u32 %v916, 16
        %v954 = vor.u32 %v951, %v952
        %v955 = vrot.slane %v951, 4
        %v957 = vshrl.u32 %v917, 16
        %v959 = vrot.slane %v957, 7
        %v960 = vshll.u32 %v917, 16
        %v962 = vor.u32 %v959, %v960
        %v963 = vsel %vm947, %v955, %v962
        %v965 = vshrl.u32 %v918, 16
        %v967 = vrot.slane %v965, 7
        %v968 = vshll.u32 %v918, 16
        %v970 = vor.u32 %v967, %v968
        %v971 = vrot.slane %v967, 4
        %v973 = vshrl.u32 %v919, 16
        %v975 = vrot.slane %v973, 7
        %v976 = vshll.u32 %v919, 16
        %v978 = vor.u32 %v975, %v976
        %v979 = vsel %vm947, %v971, %v978
        %v981 = vshrl.u32 %v920, 16
        %v983 = vrot.slane %v981, 7
        %v984 = vshll.u32 %v920, 16
        %v986 = vor.u32 %v983, %v984
        %v987 = vrot.slane %v983, 4
        %v989 = vshrl.u32 %v921, 16
        %v991 = vrot.slane %v989, 7
        %v992 = vshll.u32 %v921, 16
        %v994 = vor.u32 %v991, %v992
        %v995 = vsel %vm947, %v987, %v994
        %v997 = vshrl.u32 %v922, 16
        %v999 = vrot.slane %v997, 7
        %v1000 = vshll.u32 %v922, 16
        %v1002 = vor.u32 %v999, %v1000
        %v1003 = vrot.slane %v999, 4
        %v1005 = vshrl.u32 %v923, 16
        %v1007 = vrot.slane %v1005, 7
        %v1008 = vshll.u32 %v923, 16
        %v1010 = vor.u32 %v1007, %v1008
        %v1011 = vsel %vm947, %v1003, %v1010
        %v1013 = vshrl.u32 %v924, 16
        %v1015 = vrot.slane %v1013, 7
        %v1016 = vshll.u32 %v924, 16
        %v1018 = vor.u32 %v1015, %v1016
        %v1019 = vrot.slane %v1015, 4
        %v1021 = vshrl.u32 %v925, 16
        %v1023 = vrot.slane %v1021, 7
        %v1024 = vshll.u32 %v925, 16
        %v1026 = vor.u32 %v1023, %v1024
        %v1027 = vsel %vm947, %v1019, %v1026
        %v1029 = vshrl.u32 %v926, 16
        %v1031 = vrot.slane %v1029, 7
        %v1032 = vshll.u32 %v926, 16
        %v1034 = vor.u32 %v1031, %v1032
        %v1035 = vrot.slane %v1031, 4
        %v1037 = vshrl.u32 %v927, 16
        %v1039 = vrot.slane %v1037, 7
        %v1040 = vshll.u32 %v927, 16
        %v1042 = vor.u32 %v1039, %v1040
        %v1043 = vsel %vm947, %v1035, %v1042
        %v1045 = vshrl.u32 %v928, 16
        %v1047 = vrot.slane %v1045, 7
        %v1048 = vshll.u32 %v928, 16
        %v1050 = vor.u32 %v1047, %v1048
        %v1051 = vrot.slane %v1047, 4
        %v1053 = vshrl.u32 %v929, 16
        %v1055 = vrot.slane %v1053, 7
        %v1056 = vshll.u32 %v929, 16
        %v1058 = vor.u32 %v1055, %v1056
        %v1059 = vsel %vm947, %v1051, %v1058
        %v1061 = vshrl.u32 %v930, 16
        %v1063 = vrot.slane %v1061, 7
        %v1064 = vshll.u32 %v930, 16
        %v1066 = vor.u32 %v1063, %v1064
        %v1067 = vrot.slane %v1063, 4
        %v1069 = vshrl.u32 %v931, 16
        %v1071 = vrot.slane %v1069, 7
        %v1072 = vshll.u32 %v931, 16
        %v1074 = vor.u32 %v1071, %v1072
        %v1075 = vsel %vm947, %v1067, %v1074
        %v1077 = vshrl.u32 %v932, 16
        %v1079 = vrot.slane %v1077, 7
        %v1080 = vshll.u32 %v932, 16
        %v1082 = vor.u32 %v1079, %v1080
        %v1083 = vrot.slane %v1079, 4
        %v1085 = vshrl.u32 %v933, 16
        %v1087 = vrot.slane %v1085, 7
        %v1088 = vshll.u32 %v933, 16
        %v1090 = vor.u32 %v1087, %v1088
        %v1091 = vsel %vm947, %v1083, %v1090
        %v1093 = vshrl.u32 %v934, 16
        %v1095 = vrot.slane %v1093, 7
        %v1096 = vshll.u32 %v934, 16
        %v1098 = vor.u32 %v1095, %v1096
        %v1099 = vrot.slane %v1095, 4
        %v1101 = vshrl.u32 %v935, 16
        %v1103 = vrot.slane %v1101, 7
        %v1104 = vshll.u32 %v935, 16
        %v1106 = vor.u32 %v1103, %v1104
        %v1107 = vsel %vm947, %v1099, %v1106
        %v1109 = vshrl.u32 %v936, 16
        %v1111 = vrot.slane %v1109, 7
        %v1112 = vshll.u32 %v936, 16
        %v1114 = vor.u32 %v1111, %v1112
        %v1115 = vrot.slane %v1111, 4
        %v1117 = vshrl.u32 %v937, 16
        %v1119 = vrot.slane %v1117, 7
        %v1120 = vshll.u32 %v937, 16
        %v1122 = vor.u32 %v1119, %v1120
        %v1123 = vsel %vm947, %v1115, %v1122
        %v1125 = vshrl.u32 %v938, 16
        %v1127 = vrot.slane %v1125, 7
        %v1128 = vshll.u32 %v938, 16
        %v1130 = vor.u32 %v1127, %v1128
        %v1131 = vrot.slane %v1127, 4
        %v1133 = vshrl.u32 %v939, 16
        %v1135 = vrot.slane %v1133, 7
        %v1136 = vshll.u32 %v939, 16
        %v1138 = vor.u32 %v1135, %v1136
        %v1139 = vsel %vm947, %v1131, %v1138
        %v1141 = vshrl.u32 %v940, 16
        %v1143 = vrot.slane %v1141, 7
        %v1144 = vshll.u32 %v940, 16
        %v1146 = vor.u32 %v1143, %v1144
        %v1147 = vrot.slane %v1143, 4
        %v1149 = vshrl.u32 %v941, 16
        %v1151 = vrot.slane %v1149, 7
        %v1152 = vshll.u32 %v941, 16
        %v1154 = vor.u32 %v1151, %v1152
        %v1155 = vsel %vm947, %v1147, %v1154
        %v1157 = vshrl.u32 %v942, 16
        %v1159 = vrot.slane %v1157, 7
        %v1160 = vshll.u32 %v942, 16
        %v1162 = vor.u32 %v1159, %v1160
        %v1163 = vrot.slane %v1159, 4
        %v1165 = vshrl.u32 %v943, 16
        %v1167 = vrot.slane %v1165, 7
        %v1168 = vshll.u32 %v943, 16
        %v1170 = vor.u32 %v1167, %v1168
        %v1171 = vsel %vm947, %v1163, %v1170
        %v1173 = vshrl.u32 %v944, 16
        %v1175 = vrot.slane %v1173, 7
        %v1176 = vshll.u32 %v944, 16
        %v1178 = vor.u32 %v1175, %v1176
        %v1179 = vrot.slane %v1175, 4
        %v1181 = vshrl.u32 %v945, 16
        %v1183 = vrot.slane %v1181, 7
        %v1184 = vshll.u32 %v945, 16
        %v1186 = vor.u32 %v1183, %v1184
        %v1187 = vsel %vm947, %v1179, %v1186
        %s1218 = scalar_lea.vmem [#allocation2], 72
        %vm1219 = vcmask 1043456
        %vm1220 = vsmask.f32 7938
        %vm1221 = vmand %vm1219, %vm1220
        %v1222 = vld [vmem:[%s1218] sm:$0xf]
        %v1223 = vsel %vm1221, %v954, %v1222
        %1224 = vst [vmem:[%s1218] sm:$0xf] %v1223
        %1225 = vst [vmem:[%s1218 + $0x24] sm:$0xf] %v963
        %v1226 = vld [vmem:[%s1218 + $0x48] sm:$0xf]
        %v1227 = vsel %vm1221, %v970, %v1226
        %1228 = vst [vmem:[%s1218 + $0x48] sm:$0xf] %v1227
        %1229 = vst [vmem:[%s1218 + $0x6c] sm:$0xf] %v979
        %v1230 = vld [vmem:[%s1218 + $0x90] sm:$0xf]
        %v1231 = vsel %vm1221, %v986, %v1230
        %1232 = vst [vmem:[%s1218 + $0x90] sm:$0xf] %v1231
        %1233 = vst [vmem:[%s1218 + $0xb4] sm:$0xf] %v995
        %v1234 = vld [vmem:[%s1218 + $0xd8] sm:$0xf]
        %v1235 = vsel %vm1221, %v1002, %v1234
        %1236 = vst [vmem:[%s1218 + $0xd8] sm:$0xf] %v1235
        %1237 = vst [vmem:[%s1218 + $0xfc] sm:$0xf] %v1011
        %v1238 = vld [vmem:[%s1218 + $0x120] sm:$0xf]
        %v1239 = vsel %vm1221, %v1018, %v1238
        %1240 = vst [vmem:[%s1218 + $0x120] sm:$0xf] %v1239
        %1241 = vst [vmem:[%s1218 + $0x144] sm:$0xf] %v1027
        %v1242 = vld [vmem:[%s1218 + $0x168] sm:$0xf]
        %v1243 = vsel %vm1221, %v1034, %v1242
        %1244 = vst [vmem:[%s1218 + $0x168] sm:$0xf] %v1243
        %1245 = vst [vmem:[%s1218 + $0x18c] sm:$0xf] %v1043
        %v1246 = vld [vmem:[%s1218 + $0x1b0] sm:$0xf]
        %v1247 = vsel %vm1221, %v1050, %v1246
        %1248 = vst [vmem:[%s1218 + $0x1b0] sm:$0xf] %v1247
        %1249 = vst [vmem:[%s1218 + $0x1d4] sm:$0xf] %v1059
        %v1250 = vld [vmem:[%s1218 + $0x1f8] sm:$0xf]
        %v1251 = vsel %vm1221, %v1066, %v1250
        %1252 = vst [vmem:[%s1218 + $0x1f8] sm:$0xf] %v1251
        %1253 = vst [vmem:[%s1218 + $0x21c] sm:$0xf] %v1075
        %v1254 = vld [vmem:[%s1218 + $0x240] sm:$0xf]
        %v1255 = vsel %vm1221, %v1082, %v1254
        %1256 = vst [vmem:[%s1218 + $0x240] sm:$0xf] %v1255
        %1257 = vst [vmem:[%s1218 + $0x264] sm:$0xf] %v1091
        %v1258 = vld [vmem:[%s1218 + $0x288] sm:$0xf]
        %v1259 = vsel %vm1221, %v1098, %v1258
        %1260 = vst [vmem:[%s1218 + $0x288] sm:$0xf] %v1259
        %1261 = vst [vmem:[%s1218 + $0x2ac] sm:$0xf] %v1107
        %v1262 = vld [vmem:[%s1218 + $0x2d0] sm:$0xf]
        %v1263 = vsel %vm1221, %v1114, %v1262
        %1264 = vst [vmem:[%s1218 + $0x2d0] sm:$0xf] %v1263
        %1265 = vst [vmem:[%s1218 + $0x2f4] sm:$0xf] %v1123
        %v1266 = vld [vmem:[%s1218 + $0x318] sm:$0xf]
        %v1267 = vsel %vm1221, %v1130, %v1266
        %1268 = vst [vmem:[%s1218 + $0x318] sm:$0xf] %v1267
        %1269 = vst [vmem:[%s1218 + $0x33c] sm:$0xf] %v1139
        %v1270 = vld [vmem:[%s1218 + $0x360] sm:$0xf]
        %v1271 = vsel %vm1221, %v1146, %v1270
        %1272 = vst [vmem:[%s1218 + $0x360] sm:$0xf] %v1271
        %1273 = vst [vmem:[%s1218 + $0x384] sm:$0xf] %v1155
        %v1274 = vld [vmem:[%s1218 + $0x3a8] sm:$0xf]
        %v1275 = vsel %vm1221, %v1162, %v1274
        %1276 = vst [vmem:[%s1218 + $0x3a8] sm:$0xf] %v1275
        %1277 = vst [vmem:[%s1218 + $0x3cc] sm:$0xf] %v1171
        %v1278 = vld [vmem:[%s1218 + $0x3f0] sm:$0xf]
        %v1279 = vsel %vm1221, %v1178, %v1278
        %1280 = vst [vmem:[%s1218 + $0x3f0] sm:$0xf] %v1279
        %1281 = vst [vmem:[%s1218 + $0x414] sm:$0xf] %v1187
        %1312 = vst [vmem:[%s1218 + $0x4] sm:$0xf] %v916
        %1313 = vst [vmem:[%s1218 + $0x28] sm:$0xf] %v917
        %1314 = vst [vmem:[%s1218 + $0x4c] sm:$0xf] %v918
        %1315 = vst [vmem:[%s1218 + $0x70] sm:$0xf] %v919
        %1316 = vst [vmem:[%s1218 + $0x94] sm:$0xf] %v920
        %1317 = vst [vmem:[%s1218 + $0xb8] sm:$0xf] %v921
        %1318 = vst [vmem:[%s1218 + $0xdc] sm:$0xf] %v922
        %1319 = vst [vmem:[%s1218 + $0x100] sm:$0xf] %v923
        %1320 = vst [vmem:[%s1218 + $0x124] sm:$0xf] %v924
        %1321 = vst [vmem:[%s1218 + $0x148] sm:$0xf] %v925
        %1322 = vst [vmem:[%s1218 + $0x16c] sm:$0xf] %v926
        %1323 = vst [vmem:[%s1218 + $0x190] sm:$0xf] %v927
        %1324 = vst [vmem:[%s1218 + $0x1b4] sm:$0xf] %v928
        %1325 = vst [vmem:[%s1218 + $0x1d8] sm:$0xf] %v929
        %1326 = vst [vmem:[%s1218 + $0x1fc] sm:$0xf] %v930
        %1327 = vst [vmem:[%s1218 + $0x220] sm:$0xf] %v931
        %1328 = vst [vmem:[%s1218 + $0x244] sm:$0xf] %v932
        %1329 = vst [vmem:[%s1218 + $0x268] sm:$0xf] %v933
        %1330 = vst [vmem:[%s1218 + $0x28c] sm:$0xf] %v934
        %1331 = vst [vmem:[%s1218 + $0x2b0] sm:$0xf] %v935
        %1332 = vst [vmem:[%s1218 + $0x2d4] sm:$0xf] %v936
        %1333 = vst [vmem:[%s1218 + $0x2f8] sm:$0xf] %v937
        %1334 = vst [vmem:[%s1218 + $0x31c] sm:$0xf] %v938
        %1335 = vst [vmem:[%s1218 + $0x340] sm:$0xf] %v939
        %1336 = vst [vmem:[%s1218 + $0x364] sm:$0xf] %v940
        %1337 = vst [vmem:[%s1218 + $0x388] sm:$0xf] %v941
        %1338 = vst [vmem:[%s1218 + $0x3ac] sm:$0xf] %v942
        %1339 = vst [vmem:[%s1218 + $0x3d0] sm:$0xf] %v943
        %1340 = vst [vmem:[%s1218 + $0x3f4] sm:$0xf] %v944
        %1341 = vst [vmem:[%s1218 + $0x418] sm:$0xf] %v945
        %vm1342 = vsmask.f32 3328
        %vm1343 = vsmask.f32 7440
        %vm1344 = vmor %vm1342, %vm1343
        %v1345 = vrot.slane %v949, 4
        %v1346 = vrot.slane %v952, 5
        %v1347 = vor.u32 %v1345, %v1346
        %v1348 = vrot.slane %v1347, 4
        %v1349 = vrot.slane %v960, 5
        %v1350 = vsel %vm1344, %v1348, %v1349
        %v1351 = vrot.slane %v957, 4
        %v1352 = vor.u32 %v1351, %v1349
        %v1353 = vrot.slane %v1352, 4
        %v1354 = vrot.slane %v965, 4
        %v1355 = vrot.slane %v968, 5
        %v1356 = vor.u32 %v1354, %v1355
        %v1357 = vrot.slane %v1356, 4
        %v1358 = vrot.slane %v976, 5
        %v1359 = vsel %vm1344, %v1357, %v1358
        %v1360 = vrot.slane %v973, 4
        %v1361 = vor.u32 %v1360, %v1358
        %v1362 = vrot.slane %v1361, 4
        %v1363 = vrot.slane %v981, 4
        %v1364 = vrot.slane %v984, 5
        %v1365 = vor.u32 %v1363, %v1364
        %v1366 = vrot.slane %v1365, 4
        %v1367 = vrot.slane %v992, 5
        %v1368 = vsel %vm1344, %v1366, %v1367
        %v1369 = vrot.slane %v989, 4
        %v1370 = vor.u32 %v1369, %v1367
        %v1371 = vrot.slane %v1370, 4
        %v1372 = vrot.slane %v997, 4
        %v1373 = vrot.slane %v1000, 5
        %v1374 = vor.u32 %v1372, %v1373
        %v1375 = vrot.slane %v1374, 4
        %v1376 = vrot.slane %v1008, 5
        %v1377 = vsel %vm1344, %v1375, %v1376
        %v1378 = vrot.slane %v1005, 4
        %v1379 = vor.u32 %v1378, %v1376
        %v1380 = vrot.slane %v1379, 4
        %v1381 = vrot.slane %v1013, 4
        %v1382 = vrot.slane %v1016, 5
        %v1383 = vor.u32 %v1381, %v1382
        %v1384 = vrot.slane %v1383, 4
        %v1385 = vrot.slane %v1024, 5
        %v1386 = vsel %vm1344, %v1384, %v1385
        %v1387 = vrot.slane %v1021, 4
        %v1388 = vor.u32 %v1387, %v1385
        %v1389 = vrot.slane %v1388, 4
        %v1390 = vrot.slane %v1029, 4
        %v1391 = vrot.slane %v1032, 5
        %v1392 = vor.u32 %v1390, %v1391
        %v1393 = vrot.slane %v1392, 4
        %v1394 = vrot.slane %v1040, 5
        %v1395 = vsel %vm1344, %v1393, %v1394
        %v1396 = vrot.slane %v1037, 4
        %v1397 = vor.u32 %v1396, %v1394
        %v1398 = vrot.slane %v1397, 4
        %v1399 = vrot.slane %v1045, 4
        %v1400 = vrot.slane %v1048, 5
        %v1401 = vor.u32 %v1399, %v1400
        %v1402 = vrot.slane %v1401, 4
        %v1403 = vrot.slane %v1056, 5
        %v1404 = vsel %vm1344, %v1402, %v1403
        %v1405 = vrot.slane %v1053, 4
        %v1406 = vor.u32 %v1405, %v1403
        %v1407 = vrot.slane %v1406, 4
        %v1408 = vrot.slane %v1061, 4
        %v1409 = vrot.slane %v1064, 5
        %v1410 = vor.u32 %v1408, %v1409
        %v1411 = vrot.slane %v1410, 4
        %v1412 = vrot.slane %v1072, 5
        %v1413 = vsel %vm1344, %v1411, %v1412
        %v1414 = vrot.slane %v1069, 4
        %v1415 = vor.u32 %v1414, %v1412
        %v1416 = vrot.slane %v1415, 4
        %v1417 = vrot.slane %v1077, 4
        %v1418 = vrot.slane %v1080, 5
        %v1419 = vor.u32 %v1417, %v1418
        %v1420 = vrot.slane %v1419, 4
        %v1421 = vrot.slane %v1088, 5
        %v1422 = vsel %vm1344, %v1420, %v1421
        %v1423 = vrot.slane %v1085, 4
        %v1424 = vor.u32 %v1423, %v1421
        %v1425 = vrot.slane %v1424, 4
        %v1426 = vrot.slane %v1093, 4
        %v1427 = vrot.slane %v1096, 5
        %v1428 = vor.u32 %v1426, %v1427
        %v1429 = vrot.slane %v1428, 4
        %v1430 = vrot.slane %v1104, 5
        %v1431 = vsel %vm1344, %v1429, %v1430
        %v1432 = vrot.slane %v1101, 4
        %v1433 = vor.u32 %v1432, %v1430
        %v1434 = vrot.slane %v1433, 4
        %v1435 = vrot.slane %v1109, 4
        %v1436 = vrot.slane %v1112, 5
        %v1437 = vor.u32 %v1435, %v1436
        %v1438 = vrot.slane %v1437, 4
        %v1439 = vrot.slane %v1120, 5
        %v1440 = vsel %vm1344, %v1438, %v1439
        %v1441 = vrot.slane %v1117, 4
        %v1442 = vor.u32 %v1441, %v1439
        %v1443 = vrot.slane %v1442, 4
        %v1444 = vrot.slane %v1125, 4
        %v1445 = vrot.slane %v1128, 5
        %v1446 = vor.u32 %v1444, %v1445
        %v1447 = vrot.slane %v1446, 4
        %v1448 = vrot.slane %v1136, 5
        %v1449 = vsel %vm1344, %v1447, %v1448
        %v1450 = vrot.slane %v1133, 4
        %v1451 = vor.u32 %v1450, %v1448
        %v1452 = vrot.slane %v1451, 4
        %v1453 = vrot.slane %v1141, 4
        %v1454 = vrot.slane %v1144, 5
        %v1455 = vor.u32 %v1453, %v1454
        %v1456 = vrot.slane %v1455, 4
        %v1457 = vrot.slane %v1152, 5
        %v1458 = vsel %vm1344, %v1456, %v1457
        %v1459 = vrot.slane %v1149, 4
        %v1460 = vor.u32 %v1459, %v1457
        %v1461 = vrot.slane %v1460, 4
        %v1462 = vrot.slane %v1157, 4
        %v1463 = vrot.slane %v1160, 5
        %v1464 = vor.u32 %v1462, %v1463
        %v1465 = vrot.slane %v1464, 4
        %v1466 = vrot.slane %v1168, 5
        %v1467 = vsel %vm1344, %v1465, %v1466
        %v1468 = vrot.slane %v1165, 4
        %v1469 = vor.u32 %v1468, %v1466
        %v1470 = vrot.slane %v1469, 4
        %v1471 = vrot.slane %v1173, 4
        %v1472 = vrot.slane %v1176, 5
        %v1473 = vor.u32 %v1471, %v1472
        %v1474 = vrot.slane %v1473, 4
        %v1475 = vrot.slane %v1184, 5
        %v1476 = vsel %vm1344, %v1474, %v1475
        %v1477 = vrot.slane %v1181, 4
        %v1478 = vor.u32 %v1477, %v1475
        %v1479 = vrot.slane %v1478, 4
        %1510 = vst [vmem:[%s1218 + $0x8] sm:$0xf] %v1350
        %vm1511 = vmand %vm1219, %vm1342
        %v1512 = vld [vmem:[%s1218 + $0x2c] sm:$0xf]
        %v1513 = vsel %vm1511, %v1353, %v1512
        %1514 = vst [vmem:[%s1218 + $0x2c] sm:$0xf] %v1513
        %1515 = vst [vmem:[%s1218 + $0x50] sm:$0xf] %v1359
        %v1516 = vld [vmem:[%s1218 + $0x74] sm:$0xf]
        %v1517 = vsel %vm1511, %v1362, %v1516
        %1518 = vst [vmem:[%s1218 + $0x74] sm:$0xf] %v1517
        %1519 = vst [vmem:[%s1218 + $0x98] sm:$0xf] %v1368
        %v1520 = vld [vmem:[%s1218 + $0xbc] sm:$0xf]
        %v1521 = vsel %vm1511, %v1371, %v1520
        %1522 = vst [vmem:[%s1218 + $0xbc] sm:$0xf] %v1521
        %1523 = vst [vmem:[%s1218 + $0xe0] sm:$0xf] %v1377
        %v1524 = vld [vmem:[%s1218 + $0x104] sm:$0xf]
        %v1525 = vsel %vm1511, %v1380, %v1524
        %1526 = vst [vmem:[%s1218 + $0x104] sm:$0xf] %v1525
        %1527 = vst [vmem:[%s1218 + $0x128] sm:$0xf] %v1386
        %v1528 = vld [vmem:[%s1218 + $0x14c] sm:$0xf]
        %v1529 = vsel %vm1511, %v1389, %v1528
        %1530 = vst [vmem:[%s1218 + $0x14c] sm:$0xf] %v1529
        %1531 = vst [vmem:[%s1218 + $0x170] sm:$0xf] %v1395
        %v1532 = vld [vmem:[%s1218 + $0x194] sm:$0xf]
        %v1533 = vsel %vm1511, %v1398, %v1532
        %1534 = vst [vmem:[%s1218 + $0x194] sm:$0xf] %v1533
        %1535 = vst [vmem:[%s1218 + $0x1b8] sm:$0xf] %v1404
        %v1536 = vld [vmem:[%s1218 + $0x1dc] sm:$0xf]
        %v1537 = vsel %vm1511, %v1407, %v1536
        %1538 = vst [vmem:[%s1218 + $0x1dc] sm:$0xf] %v1537
        %1539 = vst [vmem:[%s1218 + $0x200] sm:$0xf] %v1413
        %v1540 = vld [vmem:[%s1218 + $0x224] sm:$0xf]
        %v1541 = vsel %vm1511, %v1416, %v1540
        %1542 = vst [vmem:[%s1218 + $0x224] sm:$0xf] %v1541
        %1543 = vst [vmem:[%s1218 + $0x248] sm:$0xf] %v1422
        %v1544 = vld [vmem:[%s1218 + $0x26c] sm:$0xf]
        %v1545 = vsel %vm1511, %v1425, %v1544
        %1546 = vst [vmem:[%s1218 + $0x26c] sm:$0xf] %v1545
        %1547 = vst [vmem:[%s1218 + $0x290] sm:$0xf] %v1431
        %v1548 = vld [vmem:[%s1218 + $0x2b4] sm:$0xf]
        %v1549 = vsel %vm1511, %v1434, %v1548
        %1550 = vst [vmem:[%s1218 + $0x2b4] sm:$0xf] %v1549
        %1551 = vst [vmem:[%s1218 + $0x2d8] sm:$0xf] %v1440
        %v1552 = vld [vmem:[%s1218 + $0x2fc] sm:$0xf]
        %v1553 = vsel %vm1511, %v1443, %v1552
        %1554 = vst [vmem:[%s1218 + $0x2fc] sm:$0xf] %v1553
        %1555 = vst [vmem:[%s1218 + $0x320] sm:$0xf] %v1449
        %v1556 = vld [vmem:[%s1218 + $0x344] sm:$0xf]
        %v1557 = vsel %vm1511, %v1452, %v1556
        %1558 = vst [vmem:[%s1218 + $0x344] sm:$0xf] %v1557
        %1559 = vst [vmem:[%s1218 + $0x368] sm:$0xf] %v1458
        %v1560 = vld [vmem:[%s1218 + $0x38c] sm:$0xf]
        %v1561 = vsel %vm1511, %v1461, %v1560
        %1562 = vst [vmem:[%s1218 + $0x38c] sm:$0xf] %v1561
        %1563 = vst [vmem:[%s1218 + $0x3b0] sm:$0xf] %v1467
        %v1564 = vld [vmem:[%s1218 + $0x3d4] sm:$0xf]
        %v1565 = vsel %vm1511, %v1470, %v1564
        %1566 = vst [vmem:[%s1218 + $0x3d4] sm:$0xf] %v1565
        %1567 = vst [vmem:[%s1218 + $0x3f8] sm:$0xf] %v1476
        %v1568 = vld [vmem:[%s1218 + $0x41c] sm:$0xf]
        %v1569 = vsel %vm1511, %v1479, %v1568
        %1570 = vst [vmem:[%s1218 + $0x41c] sm:$0xf] %v1569
        %v1572 = vunpack.c.l.b16 %v870
        %v1573 = vunpack.c.h.b16 %v870
        %v1574 = vpack.c.b16 %v1572, %v1572
        %v1575 = vpack.c.b16 %v1573, %v1573
        %v1577 = vshrl.u32 %v1574, 16
        %v1579 = vrot.slane %v1577, 7
        %v1580 = vshll.u32 %v1574, 16
        %v1582 = vor.u32 %v1579, %v1580
        %v1583 = vrot.slane %v1579, 4
        %v1585 = vshrl.u32 %v1575, 16
        %v1587 = vrot.slane %v1585, 7
        %v1588 = vshll.u32 %v1575, 16
        %v1590 = vor.u32 %v1587, %v1588
        %v1591 = vsel %vm947, %v1583, %v1590
        %v1594 = vld [vmem:[#allocation2 + $0xc] sm:$0xf]
        %v1595 = vsel %vm1221, %v954, %v1594
        %1596 = vst [vmem:[#allocation2 + $0xc] sm:$0xf] %v1595
        %1597 = vst [vmem:[#allocation2 + $0x30] sm:$0xf] %v963
        %v1598 = vld [vmem:[#allocation2 + $0x54] sm:$0xf]
        %v1599 = vsel %vm1221, %v970, %v1598
        %1600 = vst [vmem:[#allocation2 + $0x54] sm:$0xf] %v1599
        %1601 = vst [vmem:[#allocation2 + $0x78] sm:$0xf] %v979
        %v1602 = vld [vmem:[#allocation2 + $0x9c] sm:$0xf]
        %v1603 = vsel %vm1221, %v986, %v1602
        %1604 = vst [vmem:[#allocation2 + $0x9c] sm:$0xf] %v1603
        %1605 = vst [vmem:[#allocation2 + $0xc0] sm:$0xf] %v995
        %v1606 = vld [vmem:[#allocation2 + $0xe4] sm:$0xf]
        %v1607 = vsel %vm1221, %v1002, %v1606
        %1608 = vst [vmem:[#allocation2 + $0xe4] sm:$0xf] %v1607
        %1609 = vst [vmem:[#allocation2 + $0x108] sm:$0xf] %v1011
        %v1610 = vld [vmem:[#allocation2 + $0x12c] sm:$0xf]
        %v1611 = vsel %vm1221, %v1018, %v1610
        %1612 = vst [vmem:[#allocation2 + $0x12c] sm:$0xf] %v1611
        %1613 = vst [vmem:[#allocation2 + $0x150] sm:$0xf] %v1027
        %v1614 = vld [vmem:[#allocation2 + $0x174] sm:$0xf]
        %v1615 = vsel %vm1221, %v1034, %v1614
        %1616 = vst [vmem:[#allocation2 + $0x174] sm:$0xf] %v1615
        %1617 = vst [vmem:[#allocation2 + $0x198] sm:$0xf] %v1043
        %v1618 = vld [vmem:[#allocation2 + $0x1bc] sm:$0xf]
        %v1619 = vsel %vm1221, %v1050, %v1618
        %1620 = vst [vmem:[#allocation2 + $0x1bc] sm:$0xf] %v1619
        %1621 = vst [vmem:[#allocation2 + $0x1e0] sm:$0xf] %v1059
        %v1622 = vld [vmem:[#allocation2 + $0x204] sm:$0xf]
        %v1623 = vsel %vm1221, %v1066, %v1622
        %1624 = vst [vmem:[#allocation2 + $0x204] sm:$0xf] %v1623
        %1625 = vst [vmem:[#allocation2 + $0x228] sm:$0xf] %v1075
        %v1626 = vld [vmem:[#allocation2 + $0x24c] sm:$0xf]
        %v1627 = vsel %vm1221, %v1082, %v1626
        %1628 = vst [vmem:[#allocation2 + $0x24c] sm:$0xf] %v1627
        %1629 = vst [vmem:[#allocation2 + $0x270] sm:$0xf] %v1091
        %v1630 = vld [vmem:[#allocation2 + $0x294] sm:$0xf]
        %v1631 = vsel %vm1221, %v1098, %v1630
        %1632 = vst [vmem:[#allocation2 + $0x294] sm:$0xf] %v1631
        %1633 = vst [vmem:[#allocation2 + $0x2b8] sm:$0xf] %v1107
        %v1634 = vld [vmem:[#allocation2 + $0x2dc] sm:$0xf]
        %v1635 = vsel %vm1221, %v1114, %v1634
        %1636 = vst [vmem:[#allocation2 + $0x2dc] sm:$0xf] %v1635
        %1637 = vst [vmem:[#allocation2 + $0x300] sm:$0xf] %v1123
        %v1638 = vld [vmem:[#allocation2 + $0x324] sm:$0xf]
        %v1639 = vsel %vm1221, %v1130, %v1638
        %1640 = vst [vmem:[#allocation2 + $0x324] sm:$0xf] %v1639
        %1641 = vst [vmem:[#allocation2 + $0x348] sm:$0xf] %v1139
        %v1642 = vld [vmem:[#allocation2 + $0x36c] sm:$0xf]
        %v1643 = vsel %vm1221, %v1146, %v1642
        %1644 = vst [vmem:[#allocation2 + $0x36c] sm:$0xf] %v1643
        %1645 = vst [vmem:[#allocation2 + $0x390] sm:$0xf] %v1155
        %v1646 = vld [vmem:[#allocation2 + $0x3b4] sm:$0xf]
        %v1647 = vsel %vm1221, %v1162, %v1646
        %1648 = vst [vmem:[#allocation2 + $0x3b4] sm:$0xf] %v1647
        %1649 = vst [vmem:[#allocation2 + $0x3d8] sm:$0xf] %v1171
        %v1650 = vld [vmem:[#allocation2 + $0x3fc] sm:$0xf]
        %v1651 = vsel %vm1221, %v1178, %v1650
        %1652 = vst [vmem:[#allocation2 + $0x3fc] sm:$0xf] %v1651
        %1653 = vst [vmem:[#allocation2 + $0x420] sm:$0xf] %v1187
        %v1654 = vld [vmem:[#allocation2 + $0x444] sm:$0xf]
        %v1655 = vsel %vm1221, %v1582, %v1654
        %1656 = vst [vmem:[#allocation2 + $0x444] sm:$0xf] %v1655
        %1657 = vst [vmem:[#allocation2 + $0x468] sm:$0xf] %v1591
        %1660 = vst [vmem:[#allocation2 + $0x10] sm:$0xf] %v916
        %1661 = vst [vmem:[#allocation2 + $0x34] sm:$0xf] %v917
        %1662 = vst [vmem:[#allocation2 + $0x58] sm:$0xf] %v918
        %1663 = vst [vmem:[#allocation2 + $0x7c] sm:$0xf] %v919
        %1664 = vst [vmem:[#allocation2 + $0xa0] sm:$0xf] %v920
        %1665 = vst [vmem:[#allocation2 + $0xc4] sm:$0xf] %v921
        %1666 = vst [vmem:[#allocation2 + $0xe8] sm:$0xf] %v922
        %1667 = vst [vmem:[#allocation2 + $0x10c] sm:$0xf] %v923
        %1668 = vst [vmem:[#allocation2 + $0x130] sm:$0xf] %v924
        %1669 = vst [vmem:[#allocation2 + $0x154] sm:$0xf] %v925
        %1670 = vst [vmem:[#allocation2 + $0x178] sm:$0xf] %v926
        %1671 = vst [vmem:[#allocation2 + $0x19c] sm:$0xf] %v927
        %1672 = vst [vmem:[#allocation2 + $0x1c0] sm:$0xf] %v928
        %1673 = vst [vmem:[#allocation2 + $0x1e4] sm:$0xf] %v929
        %1674 = vst [vmem:[#allocation2 + $0x208] sm:$0xf] %v930
        %1675 = vst [vmem:[#allocation2 + $0x22c] sm:$0xf] %v931
        %1676 = vst [vmem:[#allocation2 + $0x250] sm:$0xf] %v932
        %1677 = vst [vmem:[#allocation2 + $0x274] sm:$0xf] %v933
        %1678 = vst [vmem:[#allocation2 + $0x298] sm:$0xf] %v934
        %1679 = vst [vmem:[#allocation2 + $0x2bc] sm:$0xf] %v935
        %1680 = vst [vmem:[#allocation2 + $0x2e0] sm:$0xf] %v936
        %1681 = vst [vmem:[#allocation2 + $0x304] sm:$0xf] %v937
        %1682 = vst [vmem:[#allocation2 + $0x328] sm:$0xf] %v938
        %1683 = vst [vmem:[#allocation2 + $0x34c] sm:$0xf] %v939
        %1684 = vst [vmem:[#allocation2 + $0x370] sm:$0xf] %v940
        %1685 = vst [vmem:[#allocation2 + $0x394] sm:$0xf] %v941
        %1686 = vst [vmem:[#allocation2 + $0x3b8] sm:$0xf] %v942
        %1687 = vst [vmem:[#allocation2 + $0x3dc] sm:$0xf] %v943
        %1688 = vst [vmem:[#allocation2 + $0x400] sm:$0xf] %v944
        %1689 = vst [vmem:[#allocation2 + $0x424] sm:$0xf] %v945
        %1690 = vst [vmem:[#allocation2 + $0x448] sm:$0xf] %v1574
        %1691 = vst [vmem:[#allocation2 + $0x46c] sm:$0xf] %v1575
        %v1692 = vrot.slane %v1577, 4
        %v1693 = vrot.slane %v1580, 5
        %v1694 = vor.u32 %v1692, %v1693
        %v1695 = vrot.slane %v1694, 4
        %v1696 = vrot.slane %v1588, 5
        %v1697 = vsel %vm1344, %v1695, %v1696
        %v1698 = vrot.slane %v1585, 4
        %v1699 = vor.u32 %v1698, %v1696
        %v1700 = vrot.slane %v1699, 4
        %1703 = vst [vmem:[#allocation2 + $0x14] sm:$0xf] %v1350
        %v1704 = vld [vmem:[#allocation2 + $0x38] sm:$0xf]
        %v1705 = vsel %vm1511, %v1353, %v1704
        %1706 = vst [vmem:[#allocation2 + $0x38] sm:$0xf] %v1705
        %1707 = vst [vmem:[#allocation2 + $0x5c] sm:$0xf] %v1359
        %v1708 = vld [vmem:[#allocation2 + $0x80] sm:$0xf]
        %v1709 = vsel %vm1511, %v1362, %v1708
        %1710 = vst [vmem:[#allocation2 + $0x80] sm:$0xf] %v1709
        %1711 = vst [vmem:[#allocation2 + $0xa4] sm:$0xf] %v1368
        %v1712 = vld [vmem:[#allocation2 + $0xc8] sm:$0xf]
        %v1713 = vsel %vm1511, %v1371, %v1712
        %1714 = vst [vmem:[#allocation2 + $0xc8] sm:$0xf] %v1713
        %1715 = vst [vmem:[#allocation2 + $0xec] sm:$0xf] %v1377
        %v1716 = vld [vmem:[#allocation2 + $0x110] sm:$0xf]
        %v1717 = vsel %vm1511, %v1380, %v1716
        %1718 = vst [vmem:[#allocation2 + $0x110] sm:$0xf] %v1717
        %1719 = vst [vmem:[#allocation2 + $0x134] sm:$0xf] %v1386
        %v1720 = vld [vmem:[#allocation2 + $0x158] sm:$0xf]
        %v1721 = vsel %vm1511, %v1389, %v1720
        %1722 = vst [vmem:[#allocation2 + $0x158] sm:$0xf] %v1721
        %1723 = vst [vmem:[#allocation2 + $0x17c] sm:$0xf] %v1395
        %v1724 = vld [vmem:[#allocation2 + $0x1a0] sm:$0xf]
        %v1725 = vsel %vm1511, %v1398, %v1724
        %1726 = vst [vmem:[#allocation2 + $0x1a0] sm:$0xf] %v1725
        %1727 = vst [vmem:[#allocation2 + $0x1c4] sm:$0xf] %v1404
        %v1728 = vld [vmem:[#allocation2 + $0x1e8] sm:$0xf]
        %v1729 = vsel %vm1511, %v1407, %v1728
        %1730 = vst [vmem:[#allocation2 + $0x1e8] sm:$0xf] %v1729
        %1731 = vst [vmem:[#allocation2 + $0x20c] sm:$0xf] %v1413
        %v1732 = vld [vmem:[#allocation2 + $0x230] sm:$0xf]
        %v1733 = vsel %vm1511, %v1416, %v1732
        %1734 = vst [vmem:[#allocation2 + $0x230] sm:$0xf] %v1733
        %1735 = vst [vmem:[#allocation2 + $0x254] sm:$0xf] %v1422
        %v1736 = vld [vmem:[#allocation2 + $0x278] sm:$0xf]
        %v1737 = vsel %vm1511, %v1425, %v1736
        %1738 = vst [vmem:[#allocation2 + $0x278] sm:$0xf] %v1737
        %1739 = vst [vmem:[#allocation2 + $0x29c] sm:$0xf] %v1431
        %v1740 = vld [vmem:[#allocation2 + $0x2c0] sm:$0xf]
        %v1741 = vsel %vm1511, %v1434, %v1740
        %1742 = vst [vmem:[#allocation2 + $0x2c0] sm:$0xf] %v1741
        %1743 = vst [vmem:[#allocation2 + $0x2e4] sm:$0xf] %v1440
        %v1744 = vld [vmem:[#allocation2 + $0x308] sm:$0xf]
        %v1745 = vsel %vm1511, %v1443, %v1744
        %1746 = vst [vmem:[#allocation2 + $0x308] sm:$0xf] %v1745
        %1747 = vst [vmem:[#allocation2 + $0x32c] sm:$0xf] %v1449
        %v1748 = vld [vmem:[#allocation2 + $0x350] sm:$0xf]
        %v1749 = vsel %vm1511, %v1452, %v1748
        %1750 = vst [vmem:[#allocation2 + $0x350] sm:$0xf] %v1749
        %1751 = vst [vmem:[#allocation2 + $0x374] sm:$0xf] %v1458
        %v1752 = vld [vmem:[#allocation2 + $0x398] sm:$0xf]
        %v1753 = vsel %vm1511, %v1461, %v1752
        %1754 = vst [vmem:[#allocation2 + $0x398] sm:$0xf] %v1753
        %1755 = vst [vmem:[#allocation2 + $0x3bc] sm:$0xf] %v1467
        %v1756 = vld [vmem:[#allocation2 + $0x3e0] sm:$0xf]
        %v1757 = vsel %vm1511, %v1470, %v1756
        %1758 = vst [vmem:[#allocation2 + $0x3e0] sm:$0xf] %v1757
        %1759 = vst [vmem:[#allocation2 + $0x404] sm:$0xf] %v1476
        %v1760 = vld [vmem:[#allocation2 + $0x428] sm:$0xf]
        %v1761 = vsel %vm1511, %v1479, %v1760
        %1762 = vst [vmem:[#allocation2 + $0x428] sm:$0xf] %v1761
        %1763 = vst [vmem:[#allocation2 + $0x44c] sm:$0xf] %v1697
        %v1764 = vld [vmem:[#allocation2 + $0x470] sm:$0xf]
        %v1765 = vsel %vm1511, %v1700, %v1764
        %1766 = vst [vmem:[#allocation2 + $0x470] sm:$0xf] %v1765
        %v1767 = vld [vmem:[#allocation2 + $0x18] sm:$0xf]
        %v1768 = vsel %vm1221, %v970, %v1767
        %1769 = vst [vmem:[#allocation2 + $0x18] sm:$0xf] %v1768
        %1770 = vst [vmem:[#allocation2 + $0x3c] sm:$0xf] %v979
        %v1771 = vld [vmem:[#allocation2 + $0x60] sm:$0xf]
        %v1772 = vsel %vm1221, %v986, %v1771
        %1773 = vst [vmem:[#allocation2 + $0x60] sm:$0xf] %v1772
        %1774 = vst [vmem:[#allocation2 + $0x84] sm:$0xf] %v995
        %v1775 = vld [vmem:[#allocation2 + $0xa8] sm:$0xf]
        %v1776 = vsel %vm1221, %v1002, %v1775
        %1777 = vst [vmem:[#allocation2 + $0xa8] sm:$0xf] %v1776
        %1778 = vst [vmem:[#allocation2 + $0xcc] sm:$0xf] %v1011
        %v1779 = vld [vmem:[#allocation2 + $0xf0] sm:$0xf]
        %v1780 = vsel %vm1221, %v1018, %v1779
        %1781 = vst [vmem:[#allocation2 + $0xf0] sm:$0xf] %v1780
        %1782 = vst [vmem:[#allocation2 + $0x114] sm:$0xf] %v1027
        %v1783 = vld [vmem:[#allocation2 + $0x138] sm:$0xf]
        %v1784 = vsel %vm1221, %v1034, %v1783
        %1785 = vst [vmem:[#allocation2 + $0x138] sm:$0xf] %v1784
        %1786 = vst [vmem:[#allocation2 + $0x15c] sm:$0xf] %v1043
        %v1787 = vld [vmem:[#allocation2 + $0x180] sm:$0xf]
        %v1788 = vsel %vm1221, %v1050, %v1787
        %1789 = vst [vmem:[#allocation2 + $0x180] sm:$0xf] %v1788
        %1790 = vst [vmem:[#allocation2 + $0x1a4] sm:$0xf] %v1059
        %v1791 = vld [vmem:[#allocation2 + $0x1c8] sm:$0xf]
        %v1792 = vsel %vm1221, %v1066, %v1791
        %1793 = vst [vmem:[#allocation2 + $0x1c8] sm:$0xf] %v1792
        %1794 = vst [vmem:[#allocation2 + $0x1ec] sm:$0xf] %v1075
        %v1795 = vld [vmem:[#allocation2 + $0x210] sm:$0xf]
        %v1796 = vsel %vm1221, %v1082, %v1795
        %1797 = vst [vmem:[#allocation2 + $0x210] sm:$0xf] %v1796
        %1798 = vst [vmem:[#allocation2 + $0x234] sm:$0xf] %v1091
        %v1799 = vld [vmem:[#allocation2 + $0x258] sm:$0xf]
        %v1800 = vsel %vm1221, %v1098, %v1799
        %1801 = vst [vmem:[#allocation2 + $0x258] sm:$0xf] %v1800
        %1802 = vst [vmem:[#allocation2 + $0x27c] sm:$0xf] %v1107
        %v1803 = vld [vmem:[#allocation2 + $0x2a0] sm:$0xf]
        %v1804 = vsel %vm1221, %v1114, %v1803
        %1805 = vst [vmem:[#allocation2 + $0x2a0] sm:$0xf] %v1804
        %1806 = vst [vmem:[#allocation2 + $0x2c4] sm:$0xf] %v1123
        %v1807 = vld [vmem:[#allocation2 + $0x2e8] sm:$0xf]
        %v1808 = vsel %vm1221, %v1130, %v1807
        %1809 = vst [vmem:[#allocation2 + $0x2e8] sm:$0xf] %v1808
        %1810 = vst [vmem:[#allocation2 + $0x30c] sm:$0xf] %v1139
        %v1811 = vld [vmem:[#allocation2 + $0x330] sm:$0xf]
        %v1812 = vsel %vm1221, %v1146, %v1811
        %1813 = vst [vmem:[#allocation2 + $0x330] sm:$0xf] %v1812
        %1814 = vst [vmem:[#allocation2 + $0x354] sm:$0xf] %v1155
        %v1815 = vld [vmem:[#allocation2 + $0x378] sm:$0xf]
        %v1816 = vsel %vm1221, %v1162, %v1815
        %1817 = vst [vmem:[#allocation2 + $0x378] sm:$0xf] %v1816
        %1818 = vst [vmem:[#allocation2 + $0x39c] sm:$0xf] %v1171
        %v1819 = vld [vmem:[#allocation2 + $0x3c0] sm:$0xf]
        %v1820 = vsel %vm1221, %v1178, %v1819
        %1821 = vst [vmem:[#allocation2 + $0x3c0] sm:$0xf] %v1820
        %1822 = vst [vmem:[#allocation2 + $0x3e4] sm:$0xf] %v1187
        %v1823 = vld [vmem:[#allocation2 + $0x408] sm:$0xf]
        %v1824 = vsel %vm1221, %v1582, %v1823
        %1825 = vst [vmem:[#allocation2 + $0x408] sm:$0xf] %v1824
        %1826 = vst [vmem:[#allocation2 + $0x42c] sm:$0xf] %v1591
        %1827 = vst [vmem:[#allocation2 + $0x1c] sm:$0xf] %v918
        %1828 = vst [vmem:[#allocation2 + $0x40] sm:$0xf] %v919
        %1829 = vst [vmem:[#allocation2 + $0x64] sm:$0xf] %v920
        %1830 = vst [vmem:[#allocation2 + $0x88] sm:$0xf] %v921
        %1831 = vst [vmem:[#allocation2 + $0xac] sm:$0xf] %v922
        %1832 = vst [vmem:[#allocation2 + $0xd0] sm:$0xf] %v923
        %1833 = vst [vmem:[#allocation2 + $0xf4] sm:$0xf] %v924
        %1834 = vst [vmem:[#allocation2 + $0x118] sm:$0xf] %v925
        %1835 = vst [vmem:[#allocation2 + $0x13c] sm:$0xf] %v926
        %1836 = vst [vmem:[#allocation2 + $0x160] sm:$0xf] %v927
        %1837 = vst [vmem:[#allocation2 + $0x184] sm:$0xf] %v928
        %1838 = vst [vmem:[#allocation2 + $0x1a8] sm:$0xf] %v929
        %1839 = vst [vmem:[#allocation2 + $0x1cc] sm:$0xf] %v930
        %1840 = vst [vmem:[#allocation2 + $0x1f0] sm:$0xf] %v931
        %1841 = vst [vmem:[#allocation2 + $0x214] sm:$0xf] %v932
        %1842 = vst [vmem:[#allocation2 + $0x238] sm:$0xf] %v933
        %1843 = vst [vmem:[#allocation2 + $0x25c] sm:$0xf] %v934
        %1844 = vst [vmem:[#allocation2 + $0x280] sm:$0xf] %v935
        %1845 = vst [vmem:[#allocation2 + $0x2a4] sm:$0xf] %v936
        %1846 = vst [vmem:[#allocation2 + $0x2c8] sm:$0xf] %v937
        %1847 = vst [vmem:[#allocation2 + $0x2ec] sm:$0xf] %v938
        %1848 = vst [vmem:[#allocation2 + $0x310] sm:$0xf] %v939
        %1849 = vst [vmem:[#allocation2 + $0x334] sm:$0xf] %v940
        %1850 = vst [vmem:[#allocation2 + $0x358] sm:$0xf] %v941
        %1851 = vst [vmem:[#allocation2 + $0x37c] sm:$0xf] %v942
        %1852 = vst [vmem:[#allocation2 + $0x3a0] sm:$0xf] %v943
        %1853 = vst [vmem:[#allocation2 + $0x3c4] sm:$0xf] %v944
        %1854 = vst [vmem:[#allocation2 + $0x3e8] sm:$0xf] %v945
        %1855 = vst [vmem:[#allocation2 + $0x40c] sm:$0xf] %v1574
        %1856 = vst [vmem:[#allocation2 + $0x430] sm:$0xf] %v1575
        %1857 = vst [vmem:[#allocation2 + $0x20] sm:$0xf] %v1359
        %v1858 = vld [vmem:[#allocation2 + $0x44] sm:$0xf]
        %v1859 = vsel %vm1511, %v1362, %v1858
        %1860 = vst [vmem:[#allocation2 + $0x44] sm:$0xf] %v1859
        %1861 = vst [vmem:[#allocation2 + $0x68] sm:$0xf] %v1368
        %v1862 = vld [vmem:[#allocation2 + $0x8c] sm:$0xf]
        %v1863 = vsel %vm1511, %v1371, %v1862
        %1864 = vst [vmem:[#allocation2 + $0x8c] sm:$0xf] %v1863
        %1865 = vst [vmem:[#allocation2 + $0xb0] sm:$0xf] %v1377
        %v1866 = vld [vmem:[#allocation2 + $0xd4] sm:$0xf]
        %v1867 = vsel %vm1511, %v1380, %v1866
        %1868 = vst [vmem:[#allocation2 + $0xd4] sm:$0xf] %v1867
        %1869 = vst [vmem:[#allocation2 + $0xf8] sm:$0xf] %v1386
        %v1870 = vld [vmem:[#allocation2 + $0x11c] sm:$0xf]
        %v1871 = vsel %vm1511, %v1389, %v1870
        %1872 = vst [vmem:[#allocation2 + $0x11c] sm:$0xf] %v1871
        %1873 = vst [vmem:[#allocation2 + $0x140] sm:$0xf] %v1395
        %v1874 = vld [vmem:[#allocation2 + $0x164] sm:$0xf]
        %v1875 = vsel %vm1511, %v1398, %v1874
        %1876 = vst [vmem:[#allocation2 + $0x164] sm:$0xf] %v1875
        %1877 = vst [vmem:[#allocation2 + $0x188] sm:$0xf] %v1404
        %v1878 = vld [vmem:[#allocation2 + $0x1ac] sm:$0xf]
        %v1879 = vsel %vm1511, %v1407, %v1878
        %1880 = vst [vmem:[#allocation2 + $0x1ac] sm:$0xf] %v1879
        %1881 = vst [vmem:[#allocation2 + $0x1d0] sm:$0xf] %v1413
        %v1882 = vld [vmem:[#allocation2 + $0x1f4] sm:$0xf]
        %v1883 = vsel %vm1511, %v1416, %v1882
        %1884 = vst [vmem:[#allocation2 + $0x1f4] sm:$0xf] %v1883
        %1885 = vst [vmem:[#allocation2 + $0x218] sm:$0xf] %v1422
        %v1886 = vld [vmem:[#allocation2 + $0x23c] sm:$0xf]
        %v1887 = vsel %vm1511, %v1425, %v1886
        %1888 = vst [vmem:[#allocation2 + $0x23c] sm:$0xf] %v1887
        %1889 = vst [vmem:[#allocation2 + $0x260] sm:$0xf] %v1431
        %v1890 = vld [vmem:[#allocation2 + $0x284] sm:$0xf]
        %v1891 = vsel %vm1511, %v1434, %v1890
        %1892 = vst [vmem:[#allocation2 + $0x284] sm:$0xf] %v1891
        %1893 = vst [vmem:[#allocation2 + $0x2a8] sm:$0xf] %v1440
        %v1894 = vld [vmem:[#allocation2 + $0x2cc] sm:$0xf]
        %v1895 = vsel %vm1511, %v1443, %v1894
        %1896 = vst [vmem:[#allocation2 + $0x2cc] sm:$0xf] %v1895
        %1897 = vst [vmem:[#allocation2 + $0x2f0] sm:$0xf] %v1449
        %v1898 = vld [vmem:[#allocation2 + $0x314] sm:$0xf]
        %v1899 = vsel %vm1511, %v1452, %v1898
        %1900 = vst [vmem:[#allocation2 + $0x314] sm:$0xf] %v1899
        %1901 = vst [vmem:[#allocation2 + $0x338] sm:$0xf] %v1458
        %v1902 = vld [vmem:[#allocation2 + $0x35c] sm:$0xf]
        %v1903 = vsel %vm1511, %v1461, %v1902
        %1904 = vst [vmem:[#allocation2 + $0x35c] sm:$0xf] %v1903
        %1905 = vst [vmem:[#allocation2 + $0x380] sm:$0xf] %v1467
        %v1906 = vld [vmem:[#allocation2 + $0x3a4] sm:$0xf]
        %v1907 = vsel %vm1511, %v1470, %v1906
        %1908 = vst [vmem:[#allocation2 + $0x3a4] sm:$0xf] %v1907
        %1909 = vst [vmem:[#allocation2 + $0x3c8] sm:$0xf] %v1476
        %v1910 = vld [vmem:[#allocation2 + $0x3ec] sm:$0xf]
        %v1911 = vsel %vm1511, %v1479, %v1910
        %1912 = vst [vmem:[#allocation2 + $0x3ec] sm:$0xf] %v1911
        %1913 = vst [vmem:[#allocation2 + $0x410] sm:$0xf] %v1697
        %v1914 = vld [vmem:[#allocation2 + $0x434] sm:$0xf]
        %v1915 = vsel %vm1511, %v1700, %v1914
        %1916 = vst [vmem:[#allocation2 + $0x434] sm:$0xf] %v1915
        %v1917 = vld [vmem:[#allocation2] sm:$0xff]
        %v1918 = vld [vmem:[#allocation2 + $0x8] sm:$0xff]
        %v1919 = vld [vmem:[#allocation2 + $0x10] sm:$0xff]
        %v1920 = vld [vmem:[#allocation2 + $0x18] sm:$0xff]
        %v1921 = vld [vmem:[#allocation2 + $0x20] sm:$0xf]
        %v1922 = vld [vmem:[#allocation2 + $0x24] sm:$0xff]
        %v1923 = vld [vmem:[#allocation2 + $0x2c] sm:$0xff]
        %v1924 = vld [vmem:[#allocation2 + $0x34] sm:$0xff]
        %v1925 = vld [vmem:[#allocation2 + $0x3c] sm:$0xff]
        %v1926 = vld [vmem:[#allocation2 + $0x44] sm:$0xf]
        %v1927 = vld [vmem:[#allocation2 + $0x48] sm:$0xff]
        %v1928 = vld [vmem:[#allocation2 + $0x50] sm:$0xff]
        %v1929 = vld [vmem:[#allocation2 + $0x58] sm:$0xff]
        %v1930 = vld [vmem:[#allocation2 + $0x60] sm:$0xff]
        %v1931 = vld [vmem:[#allocation2 + $0x68] sm:$0xf]
        %v1932 = vld [vmem:[#allocation2 + $0x6c] sm:$0xff]
        %v1933 = vld [vmem:[#allocation2 + $0x74] sm:$0xff]
        %v1934 = vld [vmem:[#allocation2 + $0x7c] sm:$0xff]
        %v1935 = vld [vmem:[#allocation2 + $0x84] sm:$0xff]
        %v1936 = vld [vmem:[#allocation2 + $0x8c] sm:$0xf]
        %v1937 = vld [vmem:[#allocation2 + $0x90] sm:$0xff]
        %v1938 = vld [vmem:[#allocation2 + $0x98] sm:$0xff]
        %v1939 = vld [vmem:[#allocation2 + $0xa0] sm:$0xff]
        %v1940 = vld [vmem:[#allocation2 + $0xa8] sm:$0xff]
        %v1941 = vld [vmem:[#allocation2 + $0xb0] sm:$0xf]
        %v1942 = vld [vmem:[#allocation2 + $0xb4] sm:$0xff]
        %v1943 = vld [vmem:[#allocation2 + $0xbc] sm:$0xff]
        %v1944 = vld [vmem:[#allocation2 + $0xc4] sm:$0xff]
        %v1945 = vld [vmem:[#allocation2 + $0xcc] sm:$0xff]
        %v1946 = vld [vmem:[#allocation2 + $0xd4] sm:$0xf]
        %v1947 = vld [vmem:[#allocation2 + $0xd8] sm:$0xff]
        %v1948 = vld [vmem:[#allocation2 + $0xe0] sm:$0xff]
        %v1949 = vld [vmem:[#allocation2 + $0xe8] sm:$0xff]
        %v1950 = vld [vmem:[#allocation2 + $0xf0] sm:$0xff]
        %v1951 = vld [vmem:[#allocation2 + $0xf8] sm:$0xf]
        %v1952 = vld [vmem:[#allocation2 + $0xfc] sm:$0xff]
        %v1953 = vld [vmem:[#allocation2 + $0x104] sm:$0xff]
        %v1954 = vld [vmem:[#allocation2 + $0x10c] sm:$0xff]
        %v1955 = vld [vmem:[#allocation2 + $0x114] sm:$0xff]
        %v1956 = vld [vmem:[#allocation2 + $0x11c] sm:$0xf]
        %v1957 = vld [vmem:[#allocation2 + $0x120] sm:$0xff]
        %v1958 = vld [vmem:[#allocation2 + $0x128] sm:$0xff]
        %v1959 = vld [vmem:[#allocation2 + $0x130] sm:$0xff]
        %v1960 = vld [vmem:[#allocation2 + $0x138] sm:$0xff]
        %v1961 = vld [vmem:[#allocation2 + $0x140] sm:$0xf]
        %v1962 = vld [vmem:[#allocation2 + $0x144] sm:$0xff]
        %v1963 = vld [vmem:[#allocation2 + $0x14c] sm:$0xff]
        %v1964 = vld [vmem:[#allocation2 + $0x154] sm:$0xff]
        %v1965 = vld [vmem:[#allocation2 + $0x15c] sm:$0xff]
        %v1966 = vld [vmem:[#allocation2 + $0x164] sm:$0xf]
        %v1967 = vld [vmem:[#allocation2 + $0x168] sm:$0xff]
        %v1968 = vld [vmem:[#allocation2 + $0x170] sm:$0xff]
        %v1969 = vld [vmem:[#allocation2 + $0x178] sm:$0xff]
        %v1970 = vld [vmem:[#allocation2 + $0x180] sm:$0xff]
        %v1971 = vld [vmem:[#allocation2 + $0x188] sm:$0xf]
        %v1972 = vld [vmem:[#allocation2 + $0x18c] sm:$0xff]
        %v1973 = vld [vmem:[#allocation2 + $0x194] sm:$0xff]
        %v1974 = vld [vmem:[#allocation2 + $0x19c] sm:$0xff]
        %v1975 = vld [vmem:[#allocation2 + $0x1a4] sm:$0xff]
        %v1976 = vld [vmem:[#allocation2 + $0x1ac] sm:$0xf]
        %v1977 = vld [vmem:[#allocation2 + $0x1b0] sm:$0xff]
        %v1978 = vld [vmem:[#allocation2 + $0x1b8] sm:$0xff]
        %v1979 = vld [vmem:[#allocation2 + $0x1c0] sm:$0xff]
        %v1980 = vld [vmem:[#allocation2 + $0x1c8] sm:$0xff]
        %v1981 = vld [vmem:[#allocation2 + $0x1d0] sm:$0xf]
        %v1982 = vld [vmem:[#allocation2 + $0x1d4] sm:$0xff]
        %v1983 = vld [vmem:[#allocation2 + $0x1dc] sm:$0xff]
        %v1984 = vld [vmem:[#allocation2 + $0x1e4] sm:$0xff]
        %v1985 = vld [vmem:[#allocation2 + $0x1ec] sm:$0xff]
        %v1986 = vld [vmem:[#allocation2 + $0x1f4] sm:$0xf]
        %v1987 = vld [vmem:[#allocation2 + $0x1f8] sm:$0xff]
        %v1988 = vld [vmem:[#allocation2 + $0x200] sm:$0xff]
        %v1989 = vld [vmem:[#allocation2 + $0x208] sm:$0xff]
        %v1990 = vld [vmem:[#allocation2 + $0x210] sm:$0xff]
        %v1991 = vld [vmem:[#allocation2 + $0x218] sm:$0xf]
        %v1992 = vld [vmem:[#allocation2 + $0x21c] sm:$0xff]
        %v1993 = vld [vmem:[#allocation2 + $0x224] sm:$0xff]
        %v1994 = vld [vmem:[#allocation2 + $0x22c] sm:$0xff]
        %v1995 = vld [vmem:[#allocation2 + $0x234] sm:$0xff]
        %v1996 = vld [vmem:[#allocation2 + $0x23c] sm:$0xf]
        %v1997 = vld [vmem:[#allocation2 + $0x240] sm:$0xff]
        %v1998 = vld [vmem:[#allocation2 + $0x248] sm:$0xff]
        %v1999 = vld [vmem:[#allocation2 + $0x250] sm:$0xff]
        %v2000 = vld [vmem:[#allocation2 + $0x258] sm:$0xff]
        %v2001 = vld [vmem:[#allocation2 + $0x260] sm:$0xf]
        %v2002 = vld [vmem:[#allocation2 + $0x264] sm:$0xff]
        %v2003 = vld [vmem:[#allocation2 + $0x26c] sm:$0xff]
        %v2004 = vld [vmem:[#allocation2 + $0x274] sm:$0xff]
        %v2005 = vld [vmem:[#allocation2 + $0x27c] sm:$0xff]
        %v2006 = vld [vmem:[#allocation2 + $0x284] sm:$0xf]
        %v2007 = vld [vmem:[#allocation2 + $0x288] sm:$0xff]
        %v2008 = vld [vmem:[#allocation2 + $0x290] sm:$0xff]
        %v2009 = vld [vmem:[#allocation2 + $0x298] sm:$0xff]
        %v2010 = vld [vmem:[#allocation2 + $0x2a0] sm:$0xff]
        %v2011 = vld [vmem:[#allocation2 + $0x2a8] sm:$0xf]
        %v2012 = vld [vmem:[#allocation2 + $0x2ac] sm:$0xff]
        %v2013 = vld [vmem:[#allocation2 + $0x2b4] sm:$0xff]
        %v2014 = vld [vmem:[#allocation2 + $0x2bc] sm:$0xff]
        %v2015 = vld [vmem:[#allocation2 + $0x2c4] sm:$0xff]
        %v2016 = vld [vmem:[#allocation2 + $0x2cc] sm:$0xf]
        %v2017 = vld [vmem:[#allocation2 + $0x2d0] sm:$0xff]
        %v2018 = vld [vmem:[#allocation2 + $0x2d8] sm:$0xff]
        %v2019 = vld [vmem:[#allocation2 + $0x2e0] sm:$0xff]
        %v2020 = vld [vmem:[#allocation2 + $0x2e8] sm:$0xff]
        %v2021 = vld [vmem:[#allocation2 + $0x2f0] sm:$0xf]
        %v2022 = vld [vmem:[#allocation2 + $0x2f4] sm:$0xff]
        %v2023 = vld [vmem:[#allocation2 + $0x2fc] sm:$0xff]
        %v2024 = vld [vmem:[#allocation2 + $0x304] sm:$0xff]
        %v2025 = vld [vmem:[#allocation2 + $0x30c] sm:$0xff]
        %v2026 = vld [vmem:[#allocation2 + $0x314] sm:$0xf]
        %v2027 = vld [vmem:[#allocation2 + $0x318] sm:$0xff]
        %v2028 = vld [vmem:[#allocation2 + $0x320] sm:$0xff]
        %v2029 = vld [vmem:[#allocation2 + $0x328] sm:$0xff]
        %v2030 = vld [vmem:[#allocation2 + $0x330] sm:$0xff]
        %v2031 = vld [vmem:[#allocation2 + $0x338] sm:$0xf]
        %v2032 = vld [vmem:[#allocation2 + $0x33c] sm:$0xff]
        %v2033 = vld [vmem:[#allocation2 + $0x344] sm:$0xff]
        %v2034 = vld [vmem:[#allocation2 + $0x34c] sm:$0xff]
        %v2035 = vld [vmem:[#allocation2 + $0x354] sm:$0xff]
        %v2036 = vld [vmem:[#allocation2 + $0x35c] sm:$0xf]
        %v2037 = vld [vmem:[#allocation2 + $0x360] sm:$0xff]
        %v2038 = vld [vmem:[#allocation2 + $0x368] sm:$0xff]
        %v2039 = vld [vmem:[#allocation2 + $0x370] sm:$0xff]
        %v2040 = vld [vmem:[#allocation2 + $0x378] sm:$0xff]
        %v2041 = vld [vmem:[#allocation2 + $0x380] sm:$0xf]
        %v2042 = vld [vmem:[#allocation2 + $0x384] sm:$0xff]
        %v2043 = vld [vmem:[#allocation2 + $0x38c] sm:$0xff]
        %v2044 = vld [vmem:[#allocation2 + $0x394] sm:$0xff]
        %v2045 = vld [vmem:[#allocation2 + $0x39c] sm:$0xff]
        %v2046 = vld [vmem:[#allocation2 + $0x3a4] sm:$0xf]
        %v2047 = vld [vmem:[#allocation2 + $0x3a8] sm:$0xff]
        %v2048 = vld [vmem:[#allocation2 + $0x3b0] sm:$0xff]
        %v2049 = vld [vmem:[#allocation2 + $0x3b8] sm:$0xff]
        %v2050 = vld [vmem:[#allocation2 + $0x3c0] sm:$0xff]
        %v2051 = vld [vmem:[#allocation2 + $0x3c8] sm:$0xf]
        %v2052 = vld [vmem:[#allocation2 + $0x3cc] sm:$0xff]
        %v2053 = vld [vmem:[#allocation2 + $0x3d4] sm:$0xff]
        %v2054 = vld [vmem:[#allocation2 + $0x3dc] sm:$0xff]
        %v2055 = vld [vmem:[#allocation2 + $0x3e4] sm:$0xff]
        %v2056 = vld [vmem:[#allocation2 + $0x3ec] sm:$0xf]
        %v2057 = vld [vmem:[#allocation2 + $0x3f0] sm:$0xff]
        %v2058 = vld [vmem:[#allocation2 + $0x3f8] sm:$0xff]
        %v2059 = vld [vmem:[#allocation2 + $0x400] sm:$0xff]
        %v2060 = vld [vmem:[#allocation2 + $0x408] sm:$0xff]
        %v2061 = vld [vmem:[#allocation2 + $0x410] sm:$0xf]
        %v2062 = vld [vmem:[#allocation2 + $0x414] sm:$0xff]
        %v2063 = vld [vmem:[#allocation2 + $0x41c] sm:$0xff]
        %v2064 = vld [vmem:[#allocation2 + $0x424] sm:$0xff]
        %v2065 = vld [vmem:[#allocation2 + $0x42c] sm:$0xff]
        %v2066 = vld [vmem:[#allocation2 + $0x434] sm:$0xf]
        %v2067 = vld [vmem:[#allocation2 + $0x438] sm:$0xff]
        %v2068 = vld [vmem:[#allocation2 + $0x440] sm:$0xff]
        %v2069 = vld [vmem:[#allocation2 + $0x448] sm:$0xff]
        %v2070 = vld [vmem:[#allocation2 + $0x450] sm:$0xff]
        %v2071 = vld [vmem:[#allocation2 + $0x458] sm:$0xf]
        %v2072 = vld [vmem:[#allocation2 + $0x45c] sm:$0xff]
        %v2073 = vld [vmem:[#allocation2 + $0x464] sm:$0xff]
        %v2074 = vld [vmem:[#allocation2 + $0x46c] sm:$0xff]
        %v2075 = vld [vmem:[#allocation2 + $0x474] sm:$0xff]
        %v2076 = vld [vmem:[#allocation2 + $0x47c] sm:$0xf]
        %v2077 = vld [vmem:[%s1] sm:$0xf]
        %v2078 = vld [vmem:[%s1 + $0x4] sm:$0xf]
        %v2079 = vld [vmem:[%s1 + $0x8] sm:$0xf]
        %v2080 = vld [vmem:[%s1 + $0xc] sm:$0xf]
        %v2081 = vld [vmem:[%s1 + $0x10] sm:$0xf]
        %v2082 = vld [vmem:[%s1 + $0x14] sm:$0xf]
        %v2083 = vld [vmem:[%s1 + $0x18] sm:$0xf]
        %v2084 = vld [vmem:[%s1 + $0x1c] sm:$0xf]
        %v2085 = vld [vmem:[%s1 + $0x20] sm:$0xf]
        %v2086 = vld [vmem:[%s1 + $0x24] sm:$0xf]
        %v2087 = vld [vmem:[%s1 + $0x28] sm:$0xf]
        %v2088 = vld [vmem:[%s1 + $0x2c] sm:$0xf]
        %v2089 = vld [vmem:[%s1 + $0x30] sm:$0xf]
        %v2090 = vld [vmem:[%s1 + $0x34] sm:$0xf]
        %v2091 = vld [vmem:[%s1 + $0x38] sm:$0xf]
        %v2092 = vld [vmem:[%s1 + $0x3c] sm:$0xf]
        %v2093 = vld [vmem:[%s1 + $0x40] sm:$0xf]
        %v2094 = vld [vmem:[%s1 + $0x44] sm:$0xf]
        %v2095 = vld [vmem:[%s1 + $0x48] sm:$0xf]
        %v2096 = vld [vmem:[%s1 + $0x4c] sm:$0xf]
        %v2097 = vld [vmem:[%s1 + $0x50] sm:$0xf]
        %v2098 = vld [vmem:[%s1 + $0x54] sm:$0xf]
        %v2099 = vld [vmem:[%s1 + $0x58] sm:$0xf]
        %v2100 = vld [vmem:[%s1 + $0x5c] sm:$0xf]
        %v2101 = vld [vmem:[%s1 + $0x60] sm:$0xf]
        %v2102 = vld [vmem:[%s1 + $0x64] sm:$0xf]
        %v2103 = vld [vmem:[%s1 + $0x68] sm:$0xf]
        %v2104 = vld [vmem:[%s1 + $0x6c] sm:$0xf]
        %v2105 = vld [vmem:[%s1 + $0x70] sm:$0xf]
        %v2106 = vld [vmem:[%s1 + $0x74] sm:$0xf]
        %v2107 = vld [vmem:[%s1 + $0x78] sm:$0xf]
        %v2108 = vld [vmem:[%s1 + $0x7c] sm:$0xf]
        %v2109 = vld [vmem:[%s1 + $0x80] sm:$0xf]
        %v2110 = vld [vmem:[%s1 + $0x84] sm:$0xf]
        %v2111 = vld [vmem:[%s1 + $0x88] sm:$0xf]
        %v2112 = vld [vmem:[%s1 + $0x8c] sm:$0xf]
        %v2113 = vld [vmem:[%s1 + $0x90] sm:$0xf]
        %v2114 = vld [vmem:[%s1 + $0x94] sm:$0xf]
        %v2115 = vld [vmem:[%s1 + $0x98] sm:$0xf]
        %v2116 = vld [vmem:[%s1 + $0x9c] sm:$0xf]
        %v2117 = vld [vmem:[%s1 + $0xa0] sm:$0xf]
        %v2118 = vld [vmem:[%s1 + $0xa4] sm:$0xf]
        %v2119 = vld [vmem:[%s1 + $0xa8] sm:$0xf]
        %v2120 = vld [vmem:[%s1 + $0xac] sm:$0xf]
        %v2121 = vld [vmem:[%s1 + $0xb0] sm:$0xf]
        %v2122 = vld [vmem:[%s1 + $0xb4] sm:$0xf]
        %v2123 = vld [vmem:[%s1 + $0xb8] sm:$0xf]
        %v2124 = vld [vmem:[%s1 + $0xbc] sm:$0xf]
        %v2125 = vld [vmem:[%s1 + $0xc0] sm:$0xf]
        %v2126 = vld [vmem:[%s1 + $0xc4] sm:$0xf]
        %v2127 = vld [vmem:[%s1 + $0xc8] sm:$0xf]
        %v2128 = vld [vmem:[%s1 + $0xcc] sm:$0xf]
        %v2129 = vld [vmem:[%s1 + $0xd0] sm:$0xf]
        %v2130 = vld [vmem:[%s1 + $0xd4] sm:$0xf]
        %v2131 = vld [vmem:[%s1 + $0xd8] sm:$0xf]
        %v2132 = vld [vmem:[%s1 + $0xdc] sm:$0xf]
        %v2133 = vld [vmem:[%s1 + $0xe0] sm:$0xf]
        %v2134 = vld [vmem:[%s1 + $0xe4] sm:$0xf]
        %v2135 = vld [vmem:[%s1 + $0xe8] sm:$0xf]
        %v2136 = vld [vmem:[%s1 + $0xec] sm:$0xf]
        %v2137 = vld [vmem:[%s1 + $0xf0] sm:$0xf]
        %v2138 = vld [vmem:[%s1 + $0xf4] sm:$0xf]
        %v2139 = vld [vmem:[%s1 + $0xf8] sm:$0xf]
        %v2140 = vld [vmem:[%s1 + $0xfc] sm:$0xf]
        %v2141 = vld [vmem:[%s1 + $0x100] sm:$0xf]
        %v2142 = vld [vmem:[%s1 + $0x104] sm:$0xf]
        %v2143 = vld [vmem:[%s1 + $0x108] sm:$0xf]
        %v2144 = vld [vmem:[%s1 + $0x10c] sm:$0xf]
        %v2145 = vld [vmem:[%s1 + $0x110] sm:$0xf]
        %v2146 = vld [vmem:[%s1 + $0x114] sm:$0xf]
        %v2147 = vld [vmem:[%s1 + $0x118] sm:$0xf]
        %v2148 = vld [vmem:[%s1 + $0x11c] sm:$0xf]
        %v2149 = vld [vmem:[%s1 + $0x120] sm:$0xf]
        %v2150 = vld [vmem:[%s1 + $0x124] sm:$0xf]
        %v2151 = vld [vmem:[%s1 + $0x128] sm:$0xf]
        %v2152 = vld [vmem:[%s1 + $0x12c] sm:$0xf]
        %v2153 = vld [vmem:[%s1 + $0x130] sm:$0xf]
        %v2154 = vld [vmem:[%s1 + $0x134] sm:$0xf]
        %v2155 = vld [vmem:[%s1 + $0x138] sm:$0xf]
        %v2156 = vld [vmem:[%s1 + $0x13c] sm:$0xf]
        %v2157 = vld [vmem:[%s1 + $0x140] sm:$0xf]
        %v2158 = vld [vmem:[%s1 + $0x144] sm:$0xf]
        %v2159 = vld [vmem:[%s1 + $0x148] sm:$0xf]
        %v2160 = vld [vmem:[%s1 + $0x14c] sm:$0xf]
        %v2161 = vld [vmem:[%s1 + $0x150] sm:$0xf]
        %v2162 = vld [vmem:[%s1 + $0x154] sm:$0xf]
        %v2163 = vld [vmem:[%s1 + $0x158] sm:$0xf]
        %v2164 = vld [vmem:[%s1 + $0x15c] sm:$0xf]
        %v2165 = vld [vmem:[%s1 + $0x160] sm:$0xf]
        %v2166 = vld [vmem:[%s1 + $0x164] sm:$0xf]
        %v2167 = vld [vmem:[%s1 + $0x168] sm:$0xf]
        %v2168 = vld [vmem:[%s1 + $0x16c] sm:$0xf]
        %v2169 = vld [vmem:[%s1 + $0x170] sm:$0xf]
        %v2170 = vld [vmem:[%s1 + $0x174] sm:$0xf]
        %v2171 = vld [vmem:[%s1 + $0x178] sm:$0xf]
        %v2172 = vld [vmem:[%s1 + $0x17c] sm:$0xf]
        %v2173 = vld [vmem:[%s1 + $0x180] sm:$0xf]
        %v2174 = vld [vmem:[%s1 + $0x184] sm:$0xf]
        %v2175 = vld [vmem:[%s1 + $0x188] sm:$0xf]
        %v2176 = vld [vmem:[%s1 + $0x18c] sm:$0xf]
        %v2177 = vld [vmem:[%s1 + $0x190] sm:$0xf]
        %v2178 = vld [vmem:[%s1 + $0x194] sm:$0xf]
        %v2179 = vld [vmem:[%s1 + $0x198] sm:$0xf]
        %v2180 = vld [vmem:[%s1 + $0x19c] sm:$0xf]
        %v2181 = vld [vmem:[%s1 + $0x1a0] sm:$0xf]
        %v2182 = vld [vmem:[%s1 + $0x1a4] sm:$0xf]
        %v2183 = vld [vmem:[%s1 + $0x1a8] sm:$0xf]
        %v2184 = vld [vmem:[%s1 + $0x1ac] sm:$0xf]
        %v2185 = vld [vmem:[%s1 + $0x1b0] sm:$0xf]
        %v2186 = vld [vmem:[%s1 + $0x1b4] sm:$0xf]
        %v2187 = vld [vmem:[%s1 + $0x1b8] sm:$0xf]
        %v2188 = vld [vmem:[%s1 + $0x1bc] sm:$0xf]
        %v2189 = vld [vmem:[%s1 + $0x1c0] sm:$0xf]
        %v2190 = vld [vmem:[%s1 + $0x1c4] sm:$0xf]
        %v2191 = vld [vmem:[%s1 + $0x1c8] sm:$0xf]
        %v2192 = vld [vmem:[%s1 + $0x1cc] sm:$0xf]
        %v2193 = vld [vmem:[%s1 + $0x1d0] sm:$0xf]
        %v2194 = vld [vmem:[%s1 + $0x1d4] sm:$0xf]
        %v2195 = vld [vmem:[%s1 + $0x1d8] sm:$0xf]
        %v2196 = vld [vmem:[%s1 + $0x1dc] sm:$0xf]
        %v2197 = vld [vmem:[%s1 + $0x1e0] sm:$0xf]
        %v2198 = vld [vmem:[%s1 + $0x1e4] sm:$0xf]
        %v2199 = vld [vmem:[%s1 + $0x1e8] sm:$0xf]
        %v2200 = vld [vmem:[%s1 + $0x1ec] sm:$0xf]
        %v2201 = vld [vmem:[%s1 + $0x1f0] sm:$0xf]
        %v2202 = vld [vmem:[%s1 + $0x1f4] sm:$0xf]
        %v2203 = vld [vmem:[%s1 + $0x1f8] sm:$0xf]
        %v2204 = vld [vmem:[%s1 + $0x1fc] sm:$0xf]
        %v2205 = vld [vmem:[%s1 + $0x200] sm:$0xf]
        %v2206 = vld [vmem:[%s1 + $0x204] sm:$0xf]
        %v2207 = vld [vmem:[%s1 + $0x208] sm:$0xf]
        %v2208 = vld [vmem:[%s1 + $0x20c] sm:$0xf]
        %v2209 = vld [vmem:[%s1 + $0x210] sm:$0xf]
        %v2210 = vld [vmem:[%s1 + $0x214] sm:$0xf]
        %v2211 = vld [vmem:[%s1 + $0x218] sm:$0xf]
        %v2212 = vld [vmem:[%s1 + $0x21c] sm:$0xf]
        %v2213 = vld [vmem:[%s1 + $0x220] sm:$0xf]
        %v2214 = vld [vmem:[%s1 + $0x224] sm:$0xf]
        %v2215 = vld [vmem:[%s1 + $0x228] sm:$0xf]
        %v2216 = vld [vmem:[%s1 + $0x22c] sm:$0xf]
        %v2217 = vld [vmem:[%s1 + $0x230] sm:$0xf]
        %v2218 = vld [vmem:[%s1 + $0x234] sm:$0xf]
        %v2219 = vld [vmem:[%s1 + $0x238] sm:$0xf]
        %v2220 = vld [vmem:[%s1 + $0x23c] sm:$0xf]
        %v2381 = vunpack.c.l.b16 %v1917
        %v2382 = vunpack.c.h.b16 %v1917
        %v2383 = vunpack.c.l.b16 %v1918
        %v2384 = vunpack.c.h.b16 %v1918
        %v2385 = vunpack.c.l.b16 %v1919
        %v2386 = vunpack.c.h.b16 %v1919
        %v2387 = vunpack.c.l.b16 %v1920
        %v2388 = vunpack.c.h.b16 %v1920
        %v2389 = vunpack.c.l.b16 %v1921
        %v2390 = vunpack.c.l.b16 %v1922
        %v2391 = vunpack.c.h.b16 %v1922
        %v2392 = vunpack.c.l.b16 %v1923
        %v2393 = vunpack.c.h.b16 %v1923
        %v2394 = vunpack.c.l.b16 %v1924
        %v2395 = vunpack.c.h.b16 %v1924
        %v2396 = vunpack.c.l.b16 %v1925
        %v2397 = vunpack.c.h.b16 %v1925
        %v2398 = vunpack.c.l.b16 %v1926
        %v2399 = vunpack.c.l.b16 %v1927
        %v2400 = vunpack.c.h.b16 %v1927
        %v2401 = vunpack.c.l.b16 %v1928
        %v2402 = vunpack.c.h.b16 %v1928
        %v2403 = vunpack.c.l.b16 %v1929
        %v2404 = vunpack.c.h.b16 %v1929
        %v2405 = vunpack.c.l.b16 %v1930
        %v2406 = vunpack.c.h.b16 %v1930
        %v2407 = vunpack.c.l.b16 %v1931
        %v2408 = vunpack.c.l.b16 %v1932
        %v2409 = vunpack.c.h.b16 %v1932
        %v2410 = vunpack.c.l.b16 %v1933
        %v2411 = vunpack.c.h.b16 %v1933
        %v2412 = vunpack.c.l.b16 %v1934
        %v2413 = vunpack.c.h.b16 %v1934
        %v2414 = vunpack.c.l.b16 %v1935
        %v2415 = vunpack.c.h.b16 %v1935
        %v2416 = vunpack.c.l.b16 %v1936
        %v2417 = vunpack.c.l.b16 %v1937
        %v2418 = vunpack.c.h.b16 %v1937
        %v2419 = vunpack.c.l.b16 %v1938
        %v2420 = vunpack.c.h.b16 %v1938
        %v2421 = vunpack.c.l.b16 %v1939
        %v2422 = vunpack.c.h.b16 %v1939
        %v2423 = vunpack.c.l.b16 %v1940
        %v2424 = vunpack.c.h.b16 %v1940
        %v2425 = vunpack.c.l.b16 %v1941
        %v2426 = vunpack.c.l.b16 %v1942
        %v2427 = vunpack.c.h.b16 %v1942
        %v2428 = vunpack.c.l.b16 %v1943
        %v2429 = vunpack.c.h.b16 %v1943
        %v2430 = vunpack.c.l.b16 %v1944
        %v2431 = vunpack.c.h.b16 %v1944
        %v2432 = vunpack.c.l.b16 %v1945
        %v2433 = vunpack.c.h.b16 %v1945
        %v2434 = vunpack.c.l.b16 %v1946
        %v2435 = vunpack.c.l.b16 %v1947
        %v2436 = vunpack.c.h.b16 %v1947
        %v2437 = vunpack.c.l.b16 %v1948
        %v2438 = vunpack.c.h.b16 %v1948
        %v2439 = vunpack.c.l.b16 %v1949
        %v2440 = vunpack.c.h.b16 %v1949
        %v2441 = vunpack.c.l.b16 %v1950
        %v2442 = vunpack.c.h.b16 %v1950
        %v2443 = vunpack.c.l.b16 %v1951
        %v2444 = vunpack.c.l.b16 %v1952
        %v2445 = vunpack.c.h.b16 %v1952
        %v2446 = vunpack.c.l.b16 %v1953
        %v2447 = vunpack.c.h.b16 %v1953
        %v2448 = vunpack.c.l.b16 %v1954
        %v2449 = vunpack.c.h.b16 %v1954
        %v2450 = vunpack.c.l.b16 %v1955
        %v2451 = vunpack.c.h.b16 %v1955
        %v2452 = vunpack.c.l.b16 %v1956
        %v2453 = vunpack.c.l.b16 %v1957
        %v2454 = vunpack.c.h.b16 %v1957
        %v2455 = vunpack.c.l.b16 %v1958
        %v2456 = vunpack.c.h.b16 %v1958
        %v2457 = vunpack.c.l.b16 %v1959
        %v2458 = vunpack.c.h.b16 %v1959
        %v2459 = vunpack.c.l.b16 %v1960
        %v2460 = vunpack.c.h.b16 %v1960
        %v2461 = vunpack.c.l.b16 %v1961
        %v2462 = vunpack.c.l.b16 %v1962
        %v2463 = vunpack.c.h.b16 %v1962
        %v2464 = vunpack.c.l.b16 %v1963
        %v2465 = vunpack.c.h.b16 %v1963
        %v2466 = vunpack.c.l.b16 %v1964
        %v2467 = vunpack.c.h.b16 %v1964
        %v2468 = vunpack.c.l.b16 %v1965
        %v2469 = vunpack.c.h.b16 %v1965
        %v2470 = vunpack.c.l.b16 %v1966
        %v2471 = vunpack.c.l.b16 %v1967
        %v2472 = vunpack.c.h.b16 %v1967
        %v2473 = vunpack.c.l.b16 %v1968
        %v2474 = vunpack.c.h.b16 %v1968
        %v2475 = vunpack.c.l.b16 %v1969
        %v2476 = vunpack.c.h.b16 %v1969
        %v2477 = vunpack.c.l.b16 %v1970
        %v2478 = vunpack.c.h.b16 %v1970
        %v2479 = vunpack.c.l.b16 %v1971
        %v2480 = vunpack.c.l.b16 %v1972
        %v2481 = vunpack.c.h.b16 %v1972
        %v2482 = vunpack.c.l.b16 %v1973
        %v2483 = vunpack.c.h.b16 %v1973
        %v2484 = vunpack.c.l.b16 %v1974
        %v2485 = vunpack.c.h.b16 %v1974
        %v2486 = vunpack.c.l.b16 %v1975
        %v2487 = vunpack.c.h.b16 %v1975
        %v2488 = vunpack.c.l.b16 %v1976
        %v2489 = vunpack.c.l.b16 %v1977
        %v2490 = vunpack.c.h.b16 %v1977
        %v2491 = vunpack.c.l.b16 %v1978
        %v2492 = vunpack.c.h.b16 %v1978
        %v2493 = vunpack.c.l.b16 %v1979
        %v2494 = vunpack.c.h.b16 %v1979
        %v2495 = vunpack.c.l.b16 %v1980
        %v2496 = vunpack.c.h.b16 %v1980
        %v2497 = vunpack.c.l.b16 %v1981
        %v2498 = vunpack.c.l.b16 %v1982
        %v2499 = vunpack.c.h.b16 %v1982
        %v2500 = vunpack.c.l.b16 %v1983
        %v2501 = vunpack.c.h.b16 %v1983
        %v2502 = vunpack.c.l.b16 %v1984
        %v2503 = vunpack.c.h.b16 %v1984
        %v2504 = vunpack.c.l.b16 %v1985
        %v2505 = vunpack.c.h.b16 %v1985
        %v2506 = vunpack.c.l.b16 %v1986
        %v2507 = vunpack.c.l.b16 %v1987
        %v2508 = vunpack.c.h.b16 %v1987
        %v2509 = vunpack.c.l.b16 %v1988
        %v2510 = vunpack.c.h.b16 %v1988
        %v2511 = vunpack.c.l.b16 %v1989
        %v2512 = vunpack.c.h.b16 %v1989
        %v2513 = vunpack.c.l.b16 %v1990
        %v2514 = vunpack.c.h.b16 %v1990
        %v2515 = vunpack.c.l.b16 %v1991
        %v2516 = vunpack.c.l.b16 %v1992
        %v2517 = vunpack.c.h.b16 %v1992
        %v2518 = vunpack.c.l.b16 %v1993
        %v2519 = vunpack.c.h.b16 %v1993
        %v2520 = vunpack.c.l.b16 %v1994
        %v2521 = vunpack.c.h.b16 %v1994
        %v2522 = vunpack.c.l.b16 %v1995
        %v2523 = vunpack.c.h.b16 %v1995
        %v2524 = vunpack.c.l.b16 %v1996
        %v2525 = vunpack.c.l.b16 %v1997
        %v2526 = vunpack.c.h.b16 %v1997
        %v2527 = vunpack.c.l.b16 %v1998
        %v2528 = vunpack.c.h.b16 %v1998
        %v2529 = vunpack.c.l.b16 %v1999
        %v2530 = vunpack.c.h.b16 %v1999
        %v2531 = vunpack.c.l.b16 %v2000
        %v2532 = vunpack.c.h.b16 %v2000
        %v2533 = vunpack.c.l.b16 %v2001
        %v2534 = vunpack.c.l.b16 %v2002
        %v2535 = vunpack.c.h.b16 %v2002
        %v2536 = vunpack.c.l.b16 %v2003
        %v2537 = vunpack.c.h.b16 %v2003
        %v2538 = vunpack.c.l.b16 %v2004
        %v2539 = vunpack.c.h.b16 %v2004
        %v2540 = vunpack.c.l.b16 %v2005
        %v2541 = vunpack.c.h.b16 %v2005
        %v2542 = vunpack.c.l.b16 %v2006
        %v2543 = vunpack.c.l.b16 %v2007
        %v2544 = vunpack.c.h.b16 %v2007
        %v2545 = vunpack.c.l.b16 %v2008
        %v2546 = vunpack.c.h.b16 %v2008
        %v2547 = vunpack.c.l.b16 %v2009
        %v2548 = vunpack.c.h.b16 %v2009
        %v2549 = vunpack.c.l.b16 %v2010
        %v2550 = vunpack.c.h.b16 %v2010
        %v2551 = vunpack.c.l.b16 %v2011
        %v2552 = vunpack.c.l.b16 %v2012
        %v2553 = vunpack.c.h.b16 %v2012
        %v2554 = vunpack.c.l.b16 %v2013
        %v2555 = vunpack.c.h.b16 %v2013
        %v2556 = vunpack.c.l.b16 %v2014
        %v2557 = vunpack.c.h.b16 %v2014
        %v2558 = vunpack.c.l.b16 %v2015
        %v2559 = vunpack.c.h.b16 %v2015
        %v2560 = vunpack.c.l.b16 %v2016
        %v2561 = vunpack.c.l.b16 %v2017
        %v2562 = vunpack.c.h.b16 %v2017
        %v2563 = vunpack.c.l.b16 %v2018
        %v2564 = vunpack.c.h.b16 %v2018
        %v2565 = vunpack.c.l.b16 %v2019
        %v2566 = vunpack.c.h.b16 %v2019
        %v2567 = vunpack.c.l.b16 %v2020
        %v2568 = vunpack.c.h.b16 %v2020
        %v2569 = vunpack.c.l.b16 %v2021
        %v2570 = vunpack.c.l.b16 %v2022
        %v2571 = vunpack.c.h.b16 %v2022
        %v2572 = vunpack.c.l.b16 %v2023
        %v2573 = vunpack.c.h.b16 %v2023
        %v2574 = vunpack.c.l.b16 %v2024
        %v2575 = vunpack.c.h.b16 %v2024
        %v2576 = vunpack.c.l.b16 %v2025
        %v2577 = vunpack.c.h.b16 %v2025
        %v2578 = vunpack.c.l.b16 %v2026
        %v2579 = vunpack.c.l.b16 %v2027
        %v2580 = vunpack.c.h.b16 %v2027
        %v2581 = vunpack.c.l.b16 %v2028
        %v2582 = vunpack.c.h.b16 %v2028
        %v2583 = vunpack.c.l.b16 %v2029
        %v2584 = vunpack.c.h.b16 %v2029
        %v2585 = vunpack.c.l.b16 %v2030
        %v2586 = vunpack.c.h.b16 %v2030
        %v2587 = vunpack.c.l.b16 %v2031
        %v2588 = vunpack.c.l.b16 %v2032
        %v2589 = vunpack.c.h.b16 %v2032
        %v2590 = vunpack.c.l.b16 %v2033
        %v2591 = vunpack.c.h.b16 %v2033
        %v2592 = vunpack.c.l.b16 %v2034
        %v2593 = vunpack.c.h.b16 %v2034
        %v2594 = vunpack.c.l.b16 %v2035
        %v2595 = vunpack.c.h.b16 %v2035
        %v2596 = vunpack.c.l.b16 %v2036
        %v2597 = vunpack.c.l.b16 %v2037
        %v2598 = vunpack.c.h.b16 %v2037
        %v2599 = vunpack.c.l.b16 %v2038
        %v2600 = vunpack.c.h.b16 %v2038
        %v2601 = vunpack.c.l.b16 %v2039
        %v2602 = vunpack.c.h.b16 %v2039
        %v2603 = vunpack.c.l.b16 %v2040
        %v2604 = vunpack.c.h.b16 %v2040
        %v2605 = vunpack.c.l.b16 %v2041
        %v2606 = vunpack.c.l.b16 %v2042
        %v2607 = vunpack.c.h.b16 %v2042
        %v2608 = vunpack.c.l.b16 %v2043
        %v2609 = vunpack.c.h.b16 %v2043
        %v2610 = vunpack.c.l.b16 %v2044
        %v2611 = vunpack.c.h.b16 %v2044
        %v2612 = vunpack.c.l.b16 %v2045
        %v2613 = vunpack.c.h.b16 %v2045
        %v2614 = vunpack.c.l.b16 %v2046
        %v2615 = vunpack.c.l.b16 %v2047
        %v2616 = vunpack.c.h.b16 %v2047
        %v2617 = vunpack.c.l.b16 %v2048
        %v2618 = vunpack.c.h.b16 %v2048
        %v2619 = vunpack.c.l.b16 %v2049
        %v2620 = vunpack.c.h.b16 %v2049
        %v2621 = vunpack.c.l.b16 %v2050
        %v2622 = vunpack.c.h.b16 %v2050
        %v2623 = vunpack.c.l.b16 %v2051
        %v2624 = vunpack.c.l.b16 %v2052
        %v2625 = vunpack.c.h.b16 %v2052
        %v2626 = vunpack.c.l.b16 %v2053
        %v2627 = vunpack.c.h.b16 %v2053
        %v2628 = vunpack.c.l.b16 %v2054
        %v2629 = vunpack.c.h.b16 %v2054
        %v2630 = vunpack.c.l.b16 %v2055
        %v2631 = vunpack.c.h.b16 %v2055
        %v2632 = vunpack.c.l.b16 %v2056
        %v2633 = vunpack.c.l.b16 %v2057
        %v2634 = vunpack.c.h.b16 %v2057
        %v2635 = vunpack.c.l.b16 %v2058
        %v2636 = vunpack.c.h.b16 %v2058
        %v2637 = vunpack.c.l.b16 %v2059
        %v2638 = vunpack.c.h.b16 %v2059
        %v2639 = vunpack.c.l.b16 %v2060
        %v2640 = vunpack.c.h.b16 %v2060
        %v2641 = vunpack.c.l.b16 %v2061
        %v2642 = vunpack.c.l.b16 %v2062
        %v2643 = vunpack.c.h.b16 %v2062
        %v2644 = vunpack.c.l.b16 %v2063
        %v2645 = vunpack.c.h.b16 %v2063
        %v2646 = vunpack.c.l.b16 %v2064
        %v2647 = vunpack.c.h.b16 %v2064
        %v2648 = vunpack.c.l.b16 %v2065
        %v2649 = vunpack.c.h.b16 %v2065
        %v2650 = vunpack.c.l.b16 %v2066
        %v2651 = vunpack.c.l.b16 %v2067
        %v2652 = vunpack.c.h.b16 %v2067
        %v2653 = vunpack.c.l.b16 %v2068
        %v2654 = vunpack.c.h.b16 %v2068
        %v2655 = vunpack.c.l.b16 %v2069
        %v2656 = vunpack.c.h.b16 %v2069
        %v2657 = vunpack.c.l.b16 %v2070
        %v2658 = vunpack.c.h.b16 %v2070
        %v2659 = vunpack.c.l.b16 %v2071
        %v2660 = vunpack.c.l.b16 %v2072
        %v2661 = vunpack.c.h.b16 %v2072
        %v2662 = vunpack.c.l.b16 %v2073
        %v2663 = vunpack.c.h.b16 %v2073
        %v2664 = vunpack.c.l.b16 %v2074
        %v2665 = vunpack.c.h.b16 %v2074
        %v2666 = vunpack.c.l.b16 %v2075
        %v2667 = vunpack.c.h.b16 %v2075
        %v2668 = vunpack.c.l.b16 %v2076
        %v2669 = vpack.c.b16 %v2390, %v2381
        %v2670 = vpack.c.b16 %v2391, %v2382
        %v2671 = vpack.c.b16 %v2392, %v2383
        %v2672 = vpack.c.b16 %v2393, %v2384
        %v2673 = vpack.c.b16 %v2394, %v2385
        %v2674 = vpack.c.b16 %v2395, %v2386
        %v2675 = vpack.c.b16 %v2396, %v2387
        %v2676 = vpack.c.b16 %v2397, %v2388
        %v2677 = vpack.c.b16 %v2398, %v2389
        %v2678 = vpack.c.b16 %v2408, %v2399
        %v2679 = vpack.c.b16 %v2409, %v2400
        %v2680 = vpack.c.b16 %v2410, %v2401
        %v2681 = vpack.c.b16 %v2411, %v2402
        %v2682 = vpack.c.b16 %v2412, %v2403
        %v2683 = vpack.c.b16 %v2413, %v2404
        %v2684 = vpack.c.b16 %v2414, %v2405
        %v2685 = vpack.c.b16 %v2415, %v2406
        %v2686 = vpack.c.b16 %v2416, %v2407
        %v2687 = vpack.c.b16 %v2426, %v2417
        %v2688 = vpack.c.b16 %v2427, %v2418
        %v2689 = vpack.c.b16 %v2428, %v2419
        %v2690 = vpack.c.b16 %v2429, %v2420
        %v2691 = vpack.c.b16 %v2430, %v2421
        %v2692 = vpack.c.b16 %v2431, %v2422
        %v2693 = vpack.c.b16 %v2432, %v2423
        %v2694 = vpack.c.b16 %v2433, %v2424
        %v2695 = vpack.c.b16 %v2434, %v2425
        %v2696 = vpack.c.b16 %v2444, %v2435
        %v2697 = vpack.c.b16 %v2445, %v2436
        %v2698 = vpack.c.b16 %v2446, %v2437
        %v2699 = vpack.c.b16 %v2447, %v2438
        %v2700 = vpack.c.b16 %v2448, %v2439
        %v2701 = vpack.c.b16 %v2449, %v2440
        %v2702 = vpack.c.b16 %v2450, %v2441
        %v2703 = vpack.c.b16 %v2451, %v2442
        %v2704 = vpack.c.b16 %v2452, %v2443
        %v2705 = vpack.c.b16 %v2462, %v2453
        %v2706 = vpack.c.b16 %v2463, %v2454
        %v2707 = vpack.c.b16 %v2464, %v2455
        %v2708 = vpack.c.b16 %v2465, %v2456
        %v2709 = vpack.c.b16 %v2466, %v2457
        %v2710 = vpack.c.b16 %v2467, %v2458
        %v2711 = vpack.c.b16 %v2468, %v2459
        %v2712 = vpack.c.b16 %v2469, %v2460
        %v2713 = vpack.c.b16 %v2470, %v2461
        %v2714 = vpack.c.b16 %v2480, %v2471
        %v2715 = vpack.c.b16 %v2481, %v2472
        %v2716 = vpack.c.b16 %v2482, %v2473
        %v2717 = vpack.c.b16 %v2483, %v2474
        %v2718 = vpack.c.b16 %v2484, %v2475
        %v2719 = vpack.c.b16 %v2485, %v2476
        %v2720 = vpack.c.b16 %v2486, %v2477
        %v2721 = vpack.c.b16 %v2487, %v2478
        %v2722 = vpack.c.b16 %v2488, %v2479
        %v2723 = vpack.c.b16 %v2498, %v2489
        %v2724 = vpack.c.b16 %v2499, %v2490
        %v2725 = vpack.c.b16 %v2500, %v2491
        %v2726 = vpack.c.b16 %v2501, %v2492
        %v2727 = vpack.c.b16 %v2502, %v2493
        %v2728 = vpack.c.b16 %v2503, %v2494
        %v2729 = vpack.c.b16 %v2504, %v2495
        %v2730 = vpack.c.b16 %v2505, %v2496
        %v2731 = vpack.c.b16 %v2506, %v2497
        %v2732 = vpack.c.b16 %v2516, %v2507
        %v2733 = vpack.c.b16 %v2517, %v2508
        %v2734 = vpack.c.b16 %v2518, %v2509
        %v2735 = vpack.c.b16 %v2519, %v2510
        %v2736 = vpack.c.b16 %v2520, %v2511
        %v2737 = vpack.c.b16 %v2521, %v2512
        %v2738 = vpack.c.b16 %v2522, %v2513
        %v2739 = vpack.c.b16 %v2523, %v2514
        %v2740 = vpack.c.b16 %v2524, %v2515
        %v2741 = vpack.c.b16 %v2534, %v2525
        %v2742 = vpack.c.b16 %v2535, %v2526
        %v2743 = vpack.c.b16 %v2536, %v2527
        %v2744 = vpack.c.b16 %v2537, %v2528
        %v2745 = vpack.c.b16 %v2538, %v2529
        %v2746 = vpack.c.b16 %v2539, %v2530
        %v2747 = vpack.c.b16 %v2540, %v2531
        %v2748 = vpack.c.b16 %v2541, %v2532
        %v2749 = vpack.c.b16 %v2542, %v2533
        %v2750 = vpack.c.b16 %v2552, %v2543
        %v2751 = vpack.c.b16 %v2553, %v2544
        %v2752 = vpack.c.b16 %v2554, %v2545
        %v2753 = vpack.c.b16 %v2555, %v2546
        %v2754 = vpack.c.b16 %v2556, %v2547
        %v2755 = vpack.c.b16 %v2557, %v2548
        %v2756 = vpack.c.b16 %v2558, %v2549
        %v2757 = vpack.c.b16 %v2559, %v2550
        %v2758 = vpack.c.b16 %v2560, %v2551
        %v2759 = vpack.c.b16 %v2570, %v2561
        %v2760 = vpack.c.b16 %v2571, %v2562
        %v2761 = vpack.c.b16 %v2572, %v2563
        %v2762 = vpack.c.b16 %v2573, %v2564
        %v2763 = vpack.c.b16 %v2574, %v2565
        %v2764 = vpack.c.b16 %v2575, %v2566
        %v2765 = vpack.c.b16 %v2576, %v2567
        %v2766 = vpack.c.b16 %v2577, %v2568
        %v2767 = vpack.c.b16 %v2578, %v2569
        %v2768 = vpack.c.b16 %v2588, %v2579
        %v2769 = vpack.c.b16 %v2589, %v2580
        %v2770 = vpack.c.b16 %v2590, %v2581
        %v2771 = vpack.c.b16 %v2591, %v2582
        %v2772 = vpack.c.b16 %v2592, %v2583
        %v2773 = vpack.c.b16 %v2593, %v2584
        %v2774 = vpack.c.b16 %v2594, %v2585
        %v2775 = vpack.c.b16 %v2595, %v2586
        %v2776 = vpack.c.b16 %v2596, %v2587
        %v2777 = vpack.c.b16 %v2606, %v2597
        %v2778 = vpack.c.b16 %v2607, %v2598
        %v2779 = vpack.c.b16 %v2608, %v2599
        %v2780 = vpack.c.b16 %v2609, %v2600
        %v2781 = vpack.c.b16 %v2610, %v2601
        %v2782 = vpack.c.b16 %v2611, %v2602
        %v2783 = vpack.c.b16 %v2612, %v2603
        %v2784 = vpack.c.b16 %v2613, %v2604
        %v2785 = vpack.c.b16 %v2614, %v2605
        %v2786 = vpack.c.b16 %v2624, %v2615
        %v2787 = vpack.c.b16 %v2625, %v2616
        %v2788 = vpack.c.b16 %v2626, %v2617
        %v2789 = vpack.c.b16 %v2627, %v2618
        %v2790 = vpack.c.b16 %v2628, %v2619
        %v2791 = vpack.c.b16 %v2629, %v2620
        %v2792 = vpack.c.b16 %v2630, %v2621
        %v2793 = vpack.c.b16 %v2631, %v2622
        %v2794 = vpack.c.b16 %v2632, %v2623
        %v2795 = vpack.c.b16 %v2642, %v2633
        %v2796 = vpack.c.b16 %v2643, %v2634
        %v2797 = vpack.c.b16 %v2644, %v2635
        %v2798 = vpack.c.b16 %v2645, %v2636
        %v2799 = vpack.c.b16 %v2646, %v2637
        %v2800 = vpack.c.b16 %v2647, %v2638
        %v2801 = vpack.c.b16 %v2648, %v2639
        %v2802 = vpack.c.b16 %v2649, %v2640
        %v2803 = vpack.c.b16 %v2650, %v2641
        %v2804 = vpack.c.b16 %v2660, %v2651
        %v2805 = vpack.c.b16 %v2661, %v2652
        %v2806 = vpack.c.b16 %v2662, %v2653
        %v2807 = vpack.c.b16 %v2663, %v2654
        %v2808 = vpack.c.b16 %v2664, %v2655
        %v2809 = vpack.c.b16 %v2665, %v2656
        %v2810 = vpack.c.b16 %v2666, %v2657
        %v2811 = vpack.c.b16 %v2667, %v2658
        %v2812 = vpack.c.b16 %v2668, %v2659
        %v3101 = vunpack.c.l.b16 %v2077
        %v3102 = vunpack.c.l.b16 %v2078
        %v3103 = vunpack.c.l.b16 %v2079
        %v3104 = vunpack.c.l.b16 %v2080
        %v3105 = vunpack.c.l.b16 %v2081
        %v3106 = vunpack.c.l.b16 %v2082
        %v3107 = vunpack.c.l.b16 %v2083
        %v3108 = vunpack.c.l.b16 %v2084
        %v3109 = vunpack.c.l.b16 %v2085
        %v3110 = vunpack.c.l.b16 %v2086
        %v3111 = vunpack.c.l.b16 %v2087
        %v3112 = vunpack.c.l.b16 %v2088
        %v3113 = vunpack.c.l.b16 %v2089
        %v3114 = vunpack.c.l.b16 %v2090
        %v3115 = vunpack.c.l.b16 %v2091
        %v3116 = vunpack.c.l.b16 %v2092
        %v3117 = vunpack.c.l.b16 %v2093
        %v3118 = vunpack.c.l.b16 %v2094
        %v3119 = vunpack.c.l.b16 %v2095
        %v3120 = vunpack.c.l.b16 %v2096
        %v3121 = vunpack.c.l.b16 %v2097
        %v3122 = vunpack.c.l.b16 %v2098
        %v3123 = vunpack.c.l.b16 %v2099
        %v3124 = vunpack.c.l.b16 %v2100
        %v3125 = vunpack.c.l.b16 %v2101
        %v3126 = vunpack.c.l.b16 %v2102
        %v3127 = vunpack.c.l.b16 %v2103
        %v3128 = vunpack.c.l.b16 %v2104
        %v3129 = vunpack.c.l.b16 %v2105
        %v3130 = vunpack.c.l.b16 %v2106
        %v3131 = vunpack.c.l.b16 %v2107
        %v3132 = vunpack.c.l.b16 %v2108
        %v3133 = vunpack.c.l.b16 %v2109
        %v3134 = vunpack.c.l.b16 %v2110
        %v3135 = vunpack.c.l.b16 %v2111
        %v3136 = vunpack.c.l.b16 %v2112
        %v3137 = vunpack.c.l.b16 %v2113
        %v3138 = vunpack.c.l.b16 %v2114
        %v3139 = vunpack.c.l.b16 %v2115
        %v3140 = vunpack.c.l.b16 %v2116
        %v3141 = vunpack.c.l.b16 %v2117
        %v3142 = vunpack.c.l.b16 %v2118
        %v3143 = vunpack.c.l.b16 %v2119
        %v3144 = vunpack.c.l.b16 %v2120
        %v3145 = vunpack.c.l.b16 %v2121
        %v3146 = vunpack.c.l.b16 %v2122
        %v3147 = vunpack.c.l.b16 %v2123
        %v3148 = vunpack.c.l.b16 %v2124
        %v3149 = vunpack.c.l.b16 %v2125
        %v3150 = vunpack.c.l.b16 %v2126
        %v3151 = vunpack.c.l.b16 %v2127
        %v3152 = vunpack.c.l.b16 %v2128
        %v3153 = vunpack.c.l.b16 %v2129
        %v3154 = vunpack.c.l.b16 %v2130
        %v3155 = vunpack.c.l.b16 %v2131
        %v3156 = vunpack.c.l.b16 %v2132
        %v3157 = vunpack.c.l.b16 %v2133
        %v3158 = vunpack.c.l.b16 %v2134
        %v3159 = vunpack.c.l.b16 %v2135
        %v3160 = vunpack.c.l.b16 %v2136
        %v3161 = vunpack.c.l.b16 %v2137
        %v3162 = vunpack.c.l.b16 %v2138
        %v3163 = vunpack.c.l.b16 %v2139
        %v3164 = vunpack.c.l.b16 %v2140
        %v3165 = vunpack.c.l.b16 %v2141
        %v3166 = vunpack.c.l.b16 %v2142
        %v3167 = vunpack.c.l.b16 %v2143
        %v3168 = vunpack.c.l.b16 %v2144
        %v3169 = vunpack.c.l.b16 %v2145
        %v3170 = vunpack.c.l.b16 %v2146
        %v3171 = vunpack.c.l.b16 %v2147
        %v3172 = vunpack.c.l.b16 %v2148
        %v3173 = vunpack.c.l.b16 %v2149
        %v3174 = vunpack.c.l.b16 %v2150
        %v3175 = vunpack.c.l.b16 %v2151
        %v3176 = vunpack.c.l.b16 %v2152
        %v3177 = vunpack.c.l.b16 %v2153
        %v3178 = vunpack.c.l.b16 %v2154
        %v3179 = vunpack.c.l.b16 %v2155
        %v3180 = vunpack.c.l.b16 %v2156
        %v3181 = vunpack.c.l.b16 %v2157
        %v3182 = vunpack.c.l.b16 %v2158
        %v3183 = vunpack.c.l.b16 %v2159
        %v3184 = vunpack.c.l.b16 %v2160
        %v3185 = vunpack.c.l.b16 %v2161
        %v3186 = vunpack.c.l.b16 %v2162
        %v3187 = vunpack.c.l.b16 %v2163
        %v3188 = vunpack.c.l.b16 %v2164
        %v3189 = vunpack.c.l.b16 %v2165
        %v3190 = vunpack.c.l.b16 %v2166
        %v3191 = vunpack.c.l.b16 %v2167
        %v3192 = vunpack.c.l.b16 %v2168
        %v3193 = vunpack.c.l.b16 %v2169
        %v3194 = vunpack.c.l.b16 %v2170
        %v3195 = vunpack.c.l.b16 %v2171
        %v3196 = vunpack.c.l.b16 %v2172
        %v3197 = vunpack.c.l.b16 %v2173
        %v3198 = vunpack.c.l.b16 %v2174
        %v3199 = vunpack.c.l.b16 %v2175
        %v3200 = vunpack.c.l.b16 %v2176
        %v3201 = vunpack.c.l.b16 %v2177
        %v3202 = vunpack.c.l.b16 %v2178
        %v3203 = vunpack.c.l.b16 %v2179
        %v3204 = vunpack.c.l.b16 %v2180
        %v3205 = vunpack.c.l.b16 %v2181
        %v3206 = vunpack.c.l.b16 %v2182
        %v3207 = vunpack.c.l.b16 %v2183
        %v3208 = vunpack.c.l.b16 %v2184
        %v3209 = vunpack.c.l.b16 %v2185
        %v3210 = vunpack.c.l.b16 %v2186
        %v3211 = vunpack.c.l.b16 %v2187
        %v3212 = vunpack.c.l.b16 %v2188
        %v3213 = vunpack.c.l.b16 %v2189
        %v3214 = vunpack.c.l.b16 %v2190
        %v3215 = vunpack.c.l.b16 %v2191
        %v3216 = vunpack.c.l.b16 %v2192
        %v3217 = vunpack.c.l.b16 %v2193
        %v3218 = vunpack.c.l.b16 %v2194
        %v3219 = vunpack.c.l.b16 %v2195
        %v3220 = vunpack.c.l.b16 %v2196
        %v3221 = vunpack.c.l.b16 %v2197
        %v3222 = vunpack.c.l.b16 %v2198
        %v3223 = vunpack.c.l.b16 %v2199
        %v3224 = vunpack.c.l.b16 %v2200
        %v3225 = vunpack.c.l.b16 %v2201
        %v3226 = vunpack.c.l.b16 %v2202
        %v3227 = vunpack.c.l.b16 %v2203
        %v3228 = vunpack.c.l.b16 %v2204
        %v3229 = vunpack.c.l.b16 %v2205
        %v3230 = vunpack.c.l.b16 %v2206
        %v3231 = vunpack.c.l.b16 %v2207
        %v3232 = vunpack.c.l.b16 %v2208
        %v3233 = vunpack.c.l.b16 %v2209
        %v3234 = vunpack.c.l.b16 %v2210
        %v3235 = vunpack.c.l.b16 %v2211
        %v3236 = vunpack.c.l.b16 %v2212
        %v3237 = vunpack.c.l.b16 %v2213
        %v3238 = vunpack.c.l.b16 %v2214
        %v3239 = vunpack.c.l.b16 %v2215
        %v3240 = vunpack.c.l.b16 %v2216
        %v3241 = vunpack.c.l.b16 %v2217
        %v3242 = vunpack.c.l.b16 %v2218
        %v3243 = vunpack.c.l.b16 %v2219
        %v3244 = vunpack.c.l.b16 %v2220
        %v3245 = vpack.c.b16 %v3102, %v3101
        %v3246 = vpack.c.b16 %v3104, %v3103
        %v3247 = vpack.c.b16 %v3106, %v3105
        %v3248 = vpack.c.b16 %v3108, %v3107
        %v3249 = vpack.c.b16 %v3110, %v3109
        %v3250 = vpack.c.b16 %v3112, %v3111
        %v3251 = vpack.c.b16 %v3114, %v3113
        %v3252 = vpack.c.b16 %v3116, %v3115
        %v3253 = vpack.c.b16 %v3118, %v3117
        %v3254 = vpack.c.b16 %v3120, %v3119
        %v3255 = vpack.c.b16 %v3122, %v3121
        %v3256 = vpack.c.b16 %v3124, %v3123
        %v3257 = vpack.c.b16 %v3126, %v3125
        %v3258 = vpack.c.b16 %v3128, %v3127
        %v3259 = vpack.c.b16 %v3130, %v3129
        %v3260 = vpack.c.b16 %v3132, %v3131
        %v3261 = vpack.c.b16 %v3134, %v3133
        %v3262 = vpack.c.b16 %v3136, %v3135
        %v3263 = vpack.c.b16 %v3138, %v3137
        %v3264 = vpack.c.b16 %v3140, %v3139
        %v3265 = vpack.c.b16 %v3142, %v3141
        %v3266 = vpack.c.b16 %v3144, %v3143
        %v3267 = vpack.c.b16 %v3146, %v3145
        %v3268 = vpack.c.b16 %v3148, %v3147
        %v3269 = vpack.c.b16 %v3150, %v3149
        %v3270 = vpack.c.b16 %v3152, %v3151
        %v3271 = vpack.c.b16 %v3154, %v3153
        %v3272 = vpack.c.b16 %v3156, %v3155
        %v3273 = vpack.c.b16 %v3158, %v3157
        %v3274 = vpack.c.b16 %v3160, %v3159
        %v3275 = vpack.c.b16 %v3162, %v3161
        %v3276 = vpack.c.b16 %v3164, %v3163
        %v3277 = vpack.c.b16 %v3166, %v3165
        %v3278 = vpack.c.b16 %v3168, %v3167
        %v3279 = vpack.c.b16 %v3170, %v3169
        %v3280 = vpack.c.b16 %v3172, %v3171
        %v3281 = vpack.c.b16 %v3174, %v3173
        %v3282 = vpack.c.b16 %v3176, %v3175
        %v3283 = vpack.c.b16 %v3178, %v3177
        %v3284 = vpack.c.b16 %v3180, %v3179
        %v3285 = vpack.c.b16 %v3182, %v3181
        %v3286 = vpack.c.b16 %v3184, %v3183
        %v3287 = vpack.c.b16 %v3186, %v3185
        %v3288 = vpack.c.b16 %v3188, %v3187
        %v3289 = vpack.c.b16 %v3190, %v3189
        %v3290 = vpack.c.b16 %v3192, %v3191
        %v3291 = vpack.c.b16 %v3194, %v3193
        %v3292 = vpack.c.b16 %v3196, %v3195
        %v3293 = vpack.c.b16 %v3198, %v3197
        %v3294 = vpack.c.b16 %v3200, %v3199
        %v3295 = vpack.c.b16 %v3202, %v3201
        %v3296 = vpack.c.b16 %v3204, %v3203
        %v3297 = vpack.c.b16 %v3206, %v3205
        %v3298 = vpack.c.b16 %v3208, %v3207
        %v3299 = vpack.c.b16 %v3210, %v3209
        %v3300 = vpack.c.b16 %v3212, %v3211
        %v3301 = vpack.c.b16 %v3214, %v3213
        %v3302 = vpack.c.b16 %v3216, %v3215
        %v3303 = vpack.c.b16 %v3218, %v3217
        %v3304 = vpack.c.b16 %v3220, %v3219
        %v3305 = vpack.c.b16 %v3222, %v3221
        %v3306 = vpack.c.b16 %v3224, %v3223
        %v3307 = vpack.c.b16 %v3226, %v3225
        %v3308 = vpack.c.b16 %v3228, %v3227
        %v3309 = vpack.c.b16 %v3230, %v3229
        %v3310 = vpack.c.b16 %v3232, %v3231
        %v3311 = vpack.c.b16 %v3234, %v3233
        %v3312 = vpack.c.b16 %v3236, %v3235
        %v3313 = vpack.c.b16 %v3238, %v3237
        %v3314 = vpack.c.b16 %v3240, %v3239
        %v3315 = vpack.c.b16 %v3242, %v3241
        %v3316 = vpack.c.b16 %v3244, %v3243
        %3389 = vmatpush.bf16.msra.mxu0 %v3252
        %3390 = vmatpush.bf16.msra.mxu0 %v3251
        %3391 = vmatpush.bf16.msra.mxu0 %v3250
        %3392 = vmatpush.bf16.msra.mxu0 %v3249
        %3393 = vmatpush.bf16.msra.mxu0 %v3248
        %3394 = vmatpush.bf16.msra.mxu0 %v3247
        %3395 = vmatpush.bf16.msra.mxu0 %v3246
        %3396 = vmatpush.bf16.msra.mxu0 %v3245
        %3397 = vmatmul.bf16.gmra.mxu0 %v2669
        %v3398 = vpop.f32.mrf.mxu0
        %v3399 = vadd.f32 0.0, %v3398
        %v3400 = vpop.f32.mrf.mxu0
        %v3401 = vadd.f32 0.0, %v3400
        %3402 = vmatmul.bf16.gmra.mxu0 %v2678
        %v3403 = vpop.f32.mrf.mxu0
        %v3404 = vadd.f32 0.0, %v3403
        %v3405 = vpop.f32.mrf.mxu0
        %v3406 = vadd.f32 0.0, %v3405
        %3407 = vmatmul.bf16.gmra.mxu0 %v2687
        %v3408 = vpop.f32.mrf.mxu0
        %v3409 = vadd.f32 0.0, %v3408
        %v3410 = vpop.f32.mrf.mxu0
        %v3411 = vadd.f32 0.0, %v3410
        %3412 = vmatmul.bf16.gmra.mxu0 %v2696
        %v3413 = vpop.f32.mrf.mxu0
        %v3414 = vadd.f32 0.0, %v3413
        %v3415 = vpop.f32.mrf.mxu0
        %v3416 = vadd.f32 0.0, %v3415
        %3417 = vmatmul.bf16.gmra.mxu0 %v2705
        %v3418 = vpop.f32.mrf.mxu0
        %v3419 = vadd.f32 0.0, %v3418
        %v3420 = vpop.f32.mrf.mxu0
        %v3421 = vadd.f32 0.0, %v3420
        %3422 = vmatmul.bf16.gmra.mxu0 %v2714
        %v3423 = vpop.f32.mrf.mxu0
        %v3424 = vadd.f32 0.0, %v3423
        %v3425 = vpop.f32.mrf.mxu0
        %v3426 = vadd.f32 0.0, %v3425
        %3427 = vmatmul.bf16.gmra.mxu0 %v2723
        %v3428 = vpop.f32.mrf.mxu0
        %v3429 = vadd.f32 0.0, %v3428
        %v3430 = vpop.f32.mrf.mxu0
        %v3431 = vadd.f32 0.0, %v3430
        %3432 = vmatmul.bf16.gmra.mxu0 %v2732
        %v3433 = vpop.f32.mrf.mxu0
        %v3434 = vadd.f32 0.0, %v3433
        %v3435 = vpop.f32.mrf.mxu0
        %v3436 = vadd.f32 0.0, %v3435
        %3437 = vmatmul.bf16.gmra.mxu0 %v2741
        %v3438 = vpop.f32.mrf.mxu0
        %v3439 = vadd.f32 0.0, %v3438
        %v3440 = vpop.f32.mrf.mxu0
        %v3441 = vadd.f32 0.0, %v3440
        %3442 = vmatmul.bf16.gmra.mxu0 %v2750
        %v3443 = vpop.f32.mrf.mxu0
        %v3444 = vadd.f32 0.0, %v3443
        %v3445 = vpop.f32.mrf.mxu0
        %v3446 = vadd.f32 0.0, %v3445
        %3447 = vmatmul.bf16.gmra.mxu0 %v2759
        %v3448 = vpop.f32.mrf.mxu0
        %v3449 = vadd.f32 0.0, %v3448
        %v3450 = vpop.f32.mrf.mxu0
        %v3451 = vadd.f32 0.0, %v3450
        %3452 = vmatmul.bf16.gmra.mxu0 %v2768
        %v3453 = vpop.f32.mrf.mxu0
        %v3454 = vadd.f32 0.0, %v3453
        %v3455 = vpop.f32.mrf.mxu0
        %v3456 = vadd.f32 0.0, %v3455
        %3457 = vmatmul.bf16.gmra.mxu0 %v2777
        %v3458 = vpop.f32.mrf.mxu0
        %v3459 = vadd.f32 0.0, %v3458
        %v3460 = vpop.f32.mrf.mxu0
        %v3461 = vadd.f32 0.0, %v3460
        %3462 = vmatmul.bf16.gmra.mxu0 %v2786
        %v3463 = vpop.f32.mrf.mxu0
        %v3464 = vadd.f32 0.0, %v3463
        %v3465 = vpop.f32.mrf.mxu0
        %v3466 = vadd.f32 0.0, %v3465
        %3467 = vmatmul.bf16.gmra.mxu0 %v2795
        %v3468 = vpop.f32.mrf.mxu0
        %v3469 = vadd.f32 0.0, %v3468
        %v3470 = vpop.f32.mrf.mxu0
        %v3471 = vadd.f32 0.0, %v3470
        %3472 = vmatmul.bf16.gmra.mxu0 %v2804
        %v3473 = vpop.f32.mrf.mxu0
        %v3474 = vadd.f32 0.0, %v3473
        %v3475 = vpop.f32.mrf.mxu0
        %v3476 = vadd.f32 0.0, %v3475
        %3477 = vdwg.mxu0
        %3478 = vmatpush.bf16.msra.mxu0 %v3260
        %3479 = vmatpush.bf16.msra.mxu0 %v3259
        %3480 = vmatpush.bf16.msra.mxu0 %v3258
        %3481 = vmatpush.bf16.msra.mxu0 %v3257
        %3482 = vmatpush.bf16.msra.mxu0 %v3256
        %3483 = vmatpush.bf16.msra.mxu0 %v3255
        %3484 = vmatpush.bf16.msra.mxu0 %v3254
        %3485 = vmatpush.bf16.msra.mxu0 %v3253
        %3486 = vmatmul.bf16.gmra.mxu0 %v2670
        %v3487 = vpop.f32.mrf.mxu0
        %v3488 = vadd.f32 %v3399, %v3487
        %v3489 = vpop.f32.mrf.mxu0
        %v3490 = vadd.f32 %v3401, %v3489
        %3491 = vmatmul.bf16.gmra.mxu0 %v2679
        %v3492 = vpop.f32.mrf.mxu0
        %v3493 = vadd.f32 %v3404, %v3492
        %v3494 = vpop.f32.mrf.mxu0
        %v3495 = vadd.f32 %v3406, %v3494
        %3496 = vmatmul.bf16.gmra.mxu0 %v2688
        %v3497 = vpop.f32.mrf.mxu0
        %v3498 = vadd.f32 %v3409, %v3497
        %v3499 = vpop.f32.mrf.mxu0
        %v3500 = vadd.f32 %v3411, %v3499
        %3501 = vmatmul.bf16.gmra.mxu0 %v2697
        %v3502 = vpop.f32.mrf.mxu0
        %v3503 = vadd.f32 %v3414, %v3502
        %v3504 = vpop.f32.mrf.mxu0
        %v3505 = vadd.f32 %v3416, %v3504
        %3506 = vmatmul.bf16.gmra.mxu0 %v2706
        %v3507 = vpop.f32.mrf.mxu0
        %v3508 = vadd.f32 %v3419, %v3507
        %v3509 = vpop.f32.mrf.mxu0
        %v3510 = vadd.f32 %v3421, %v3509
        %3511 = vmatmul.bf16.gmra.mxu0 %v2715
        %v3512 = vpop.f32.mrf.mxu0
        %v3513 = vadd.f32 %v3424, %v3512
        %v3514 = vpop.f32.mrf.mxu0
        %v3515 = vadd.f32 %v3426, %v3514
        %3516 = vmatmul.bf16.gmra.mxu0 %v2724
        %v3517 = vpop.f32.mrf.mxu0
        %v3518 = vadd.f32 %v3429, %v3517
        %v3519 = vpop.f32.mrf.mxu0
        %v3520 = vadd.f32 %v3431, %v3519
        %3521 = vmatmul.bf16.gmra.mxu0 %v2733
        %v3522 = vpop.f32.mrf.mxu0
        %v3523 = vadd.f32 %v3434, %v3522
        %v3524 = vpop.f32.mrf.mxu0
        %v3525 = vadd.f32 %v3436, %v3524
        %3526 = vmatmul.bf16.gmra.mxu0 %v2742
        %v3527 = vpop.f32.mrf.mxu0
        %v3528 = vadd.f32 %v3439, %v3527
        %v3529 = vpop.f32.mrf.mxu0
        %v3530 = vadd.f32 %v3441, %v3529
        %3531 = vmatmul.bf16.gmra.mxu0 %v2751
        %v3532 = vpop.f32.mrf.mxu0
        %v3533 = vadd.f32 %v3444, %v3532
        %v3534 = vpop.f32.mrf.mxu0
        %v3535 = vadd.f32 %v3446, %v3534
        %3536 = vmatmul.bf16.gmra.mxu0 %v2760
        %v3537 = vpop.f32.mrf.mxu0
        %v3538 = vadd.f32 %v3449, %v3537
        %v3539 = vpop.f32.mrf.mxu0
        %v3540 = vadd.f32 %v3451, %v3539
        %3541 = vmatmul.bf16.gmra.mxu0 %v2769
        %v3542 = vpop.f32.mrf.mxu0
        %v3543 = vadd.f32 %v3454, %v3542
        %v3544 = vpop.f32.mrf.mxu0
        %v3545 = vadd.f32 %v3456, %v3544
        %3546 = vmatmul.bf16.gmra.mxu0 %v2778
        %v3547 = vpop.f32.mrf.mxu0
        %v3548 = vadd.f32 %v3459, %v3547
        %v3549 = vpop.f32.mrf.mxu0
        %v3550 = vadd.f32 %v3461, %v3549
        %3551 = vmatmul.bf16.gmra.mxu0 %v2787
        %v3552 = vpop.f32.mrf.mxu0
        %v3553 = vadd.f32 %v3464, %v3552
        %v3554 = vpop.f32.mrf.mxu0
        %v3555 = vadd.f32 %v3466, %v3554
        %3556 = vmatmul.bf16.gmra.mxu0 %v2796
        %v3557 = vpop.f32.mrf.mxu0
        %v3558 = vadd.f32 %v3469, %v3557
        %v3559 = vpop.f32.mrf.mxu0
        %v3560 = vadd.f32 %v3471, %v3559
        %3561 = vmatmul.bf16.gmra.mxu0 %v2805
        %v3562 = vpop.f32.mrf.mxu0
        %v3563 = vadd.f32 %v3474, %v3562
        %v3564 = vpop.f32.mrf.mxu0
        %v3565 = vadd.f32 %v3476, %v3564
        %3566 = vdwg.mxu0
        %3567 = vmatpush.bf16.msra.mxu0 %v3268
        %3568 = vmatpush.bf16.msra.mxu0 %v3267
        %3569 = vmatpush.bf16.msra.mxu0 %v3266
        %3570 = vmatpush.bf16.msra.mxu0 %v3265
        %3571 = vmatpush.bf16.msra.mxu0 %v3264
        %3572 = vmatpush.bf16.msra.mxu0 %v3263
        %3573 = vmatpush.bf16.msra.mxu0 %v3262
        %3574 = vmatpush.bf16.msra.mxu0 %v3261
        %3575 = vmatmul.bf16.gmra.mxu0 %v2671
        %v3576 = vpop.f32.mrf.mxu0
        %v3577 = vadd.f32 %v3488, %v3576
        %v3578 = vpop.f32.mrf.mxu0
        %v3579 = vadd.f32 %v3490, %v3578
        %3580 = vmatmul.bf16.gmra.mxu0 %v2680
        %v3581 = vpop.f32.mrf.mxu0
        %v3582 = vadd.f32 %v3493, %v3581
        %v3583 = vpop.f32.mrf.mxu0
        %v3584 = vadd.f32 %v3495, %v3583
        %3585 = vmatmul.bf16.gmra.mxu0 %v2689
        %v3586 = vpop.f32.mrf.mxu0
        %v3587 = vadd.f32 %v3498, %v3586
        %v3588 = vpop.f32.mrf.mxu0
        %v3589 = vadd.f32 %v3500, %v3588
        %3590 = vmatmul.bf16.gmra.mxu0 %v2698
        %v3591 = vpop.f32.mrf.mxu0
        %v3592 = vadd.f32 %v3503, %v3591
        %v3593 = vpop.f32.mrf.mxu0
        %v3594 = vadd.f32 %v3505, %v3593
        %3595 = vmatmul.bf16.gmra.mxu0 %v2707
        %v3596 = vpop.f32.mrf.mxu0
        %v3597 = vadd.f32 %v3508, %v3596
        %v3598 = vpop.f32.mrf.mxu0
        %v3599 = vadd.f32 %v3510, %v3598
        %3600 = vmatmul.bf16.gmra.mxu0 %v2716
        %v3601 = vpop.f32.mrf.mxu0
        %v3602 = vadd.f32 %v3513, %v3601
        %v3603 = vpop.f32.mrf.mxu0
        %v3604 = vadd.f32 %v3515, %v3603
        %3605 = vmatmul.bf16.gmra.mxu0 %v2725
        %v3606 = vpop.f32.mrf.mxu0
        %v3607 = vadd.f32 %v3518, %v3606
        %v3608 = vpop.f32.mrf.mxu0
        %v3609 = vadd.f32 %v3520, %v3608
        %3610 = vmatmul.bf16.gmra.mxu0 %v2734
        %v3611 = vpop.f32.mrf.mxu0
        %v3612 = vadd.f32 %v3523, %v3611
        %v3613 = vpop.f32.mrf.mxu0
        %v3614 = vadd.f32 %v3525, %v3613
        %3615 = vmatmul.bf16.gmra.mxu0 %v2743
        %v3616 = vpop.f32.mrf.mxu0
        %v3617 = vadd.f32 %v3528, %v3616
        %v3618 = vpop.f32.mrf.mxu0
        %v3619 = vadd.f32 %v3530, %v3618
        %3620 = vmatmul.bf16.gmra.mxu0 %v2752
        %v3621 = vpop.f32.mrf.mxu0
        %v3622 = vadd.f32 %v3533, %v3621
        %v3623 = vpop.f32.mrf.mxu0
        %v3624 = vadd.f32 %v3535, %v3623
        %3625 = vmatmul.bf16.gmra.mxu0 %v2761
        %v3626 = vpop.f32.mrf.mxu0
        %v3627 = vadd.f32 %v3538, %v3626
        %v3628 = vpop.f32.mrf.mxu0
        %v3629 = vadd.f32 %v3540, %v3628
        %3630 = vmatmul.bf16.gmra.mxu0 %v2770
        %v3631 = vpop.f32.mrf.mxu0
        %v3632 = vadd.f32 %v3543, %v3631
        %v3633 = vpop.f32.mrf.mxu0
        %v3634 = vadd.f32 %v3545, %v3633
        %3635 = vmatmul.bf16.gmra.mxu0 %v2779
        %v3636 = vpop.f32.mrf.mxu0
        %v3637 = vadd.f32 %v3548, %v3636
        %v3638 = vpop.f32.mrf.mxu0
        %v3639 = vadd.f32 %v3550, %v3638
        %3640 = vmatmul.bf16.gmra.mxu0 %v2788
        %v3641 = vpop.f32.mrf.mxu0
        %v3642 = vadd.f32 %v3553, %v3641
        %v3643 = vpop.f32.mrf.mxu0
        %v3644 = vadd.f32 %v3555, %v3643
        %3645 = vmatmul.bf16.gmra.mxu0 %v2797
        %v3646 = vpop.f32.mrf.mxu0
        %v3647 = vadd.f32 %v3558, %v3646
        %v3648 = vpop.f32.mrf.mxu0
        %v3649 = vadd.f32 %v3560, %v3648
        %3650 = vmatmul.bf16.gmra.mxu0 %v2806
        %v3651 = vpop.f32.mrf.mxu0
        %v3652 = vadd.f32 %v3563, %v3651
        %v3653 = vpop.f32.mrf.mxu0
        %v3654 = vadd.f32 %v3565, %v3653
        %3655 = vdwg.mxu0
        %3656 = vmatpush.bf16.msra.mxu0 %v3276
        %3657 = vmatpush.bf16.msra.mxu0 %v3275
        %3658 = vmatpush.bf16.msra.mxu0 %v3274
        %3659 = vmatpush.bf16.msra.mxu0 %v3273
        %3660 = vmatpush.bf16.msra.mxu0 %v3272
        %3661 = vmatpush.bf16.msra.mxu0 %v3271
        %3662 = vmatpush.bf16.msra.mxu0 %v3270
        %3663 = vmatpush.bf16.msra.mxu0 %v3269
        %3664 = vmatmul.bf16.gmra.mxu0 %v2672
        %v3665 = vpop.f32.mrf.mxu0
        %v3666 = vadd.f32 %v3577, %v3665
        %v3667 = vpop.f32.mrf.mxu0
        %v3668 = vadd.f32 %v3579, %v3667
        %3669 = vmatmul.bf16.gmra.mxu0 %v2681
        %v3670 = vpop.f32.mrf.mxu0
        %v3671 = vadd.f32 %v3582, %v3670
        %v3672 = vpop.f32.mrf.mxu0
        %v3673 = vadd.f32 %v3584, %v3672
        %3674 = vmatmul.bf16.gmra.mxu0 %v2690
        %v3675 = vpop.f32.mrf.mxu0
        %v3676 = vadd.f32 %v3587, %v3675
        %v3677 = vpop.f32.mrf.mxu0
        %v3678 = vadd.f32 %v3589, %v3677
        %3679 = vmatmul.bf16.gmra.mxu0 %v2699
        %v3680 = vpop.f32.mrf.mxu0
        %v3681 = vadd.f32 %v3592, %v3680
        %v3682 = vpop.f32.mrf.mxu0
        %v3683 = vadd.f32 %v3594, %v3682
        %3684 = vmatmul.bf16.gmra.mxu0 %v2708
        %v3685 = vpop.f32.mrf.mxu0
        %v3686 = vadd.f32 %v3597, %v3685
        %v3687 = vpop.f32.mrf.mxu0
        %v3688 = vadd.f32 %v3599, %v3687
        %3689 = vmatmul.bf16.gmra.mxu0 %v2717
        %v3690 = vpop.f32.mrf.mxu0
        %v3691 = vadd.f32 %v3602, %v3690
        %v3692 = vpop.f32.mrf.mxu0
        %v3693 = vadd.f32 %v3604, %v3692
        %3694 = vmatmul.bf16.gmra.mxu0 %v2726
        %v3695 = vpop.f32.mrf.mxu0
        %v3696 = vadd.f32 %v3607, %v3695
        %v3697 = vpop.f32.mrf.mxu0
        %v3698 = vadd.f32 %v3609, %v3697
        %3699 = vmatmul.bf16.gmra.mxu0 %v2735
        %v3700 = vpop.f32.mrf.mxu0
        %v3701 = vadd.f32 %v3612, %v3700
        %v3702 = vpop.f32.mrf.mxu0
        %v3703 = vadd.f32 %v3614, %v3702
        %3704 = vmatmul.bf16.gmra.mxu0 %v2744
        %v3705 = vpop.f32.mrf.mxu0
        %v3706 = vadd.f32 %v3617, %v3705
        %v3707 = vpop.f32.mrf.mxu0
        %v3708 = vadd.f32 %v3619, %v3707
        %3709 = vmatmul.bf16.gmra.mxu0 %v2753
        %v3710 = vpop.f32.mrf.mxu0
        %v3711 = vadd.f32 %v3622, %v3710
        %v3712 = vpop.f32.mrf.mxu0
        %v3713 = vadd.f32 %v3624, %v3712
        %3714 = vmatmul.bf16.gmra.mxu0 %v2762
        %v3715 = vpop.f32.mrf.mxu0
        %v3716 = vadd.f32 %v3627, %v3715
        %v3717 = vpop.f32.mrf.mxu0
        %v3718 = vadd.f32 %v3629, %v3717
        %3719 = vmatmul.bf16.gmra.mxu0 %v2771
        %v3720 = vpop.f32.mrf.mxu0
        %v3721 = vadd.f32 %v3632, %v3720
        %v3722 = vpop.f32.mrf.mxu0
        %v3723 = vadd.f32 %v3634, %v3722
        %3724 = vmatmul.bf16.gmra.mxu0 %v2780
        %v3725 = vpop.f32.mrf.mxu0
        %v3726 = vadd.f32 %v3637, %v3725
        %v3727 = vpop.f32.mrf.mxu0
        %v3728 = vadd.f32 %v3639, %v3727
        %3729 = vmatmul.bf16.gmra.mxu0 %v2789
        %v3730 = vpop.f32.mrf.mxu0
        %v3731 = vadd.f32 %v3642, %v3730
        %v3732 = vpop.f32.mrf.mxu0
        %v3733 = vadd.f32 %v3644, %v3732
        %3734 = vmatmul.bf16.gmra.mxu0 %v2798
        %v3735 = vpop.f32.mrf.mxu0
        %v3736 = vadd.f32 %v3647, %v3735
        %v3737 = vpop.f32.mrf.mxu0
        %v3738 = vadd.f32 %v3649, %v3737
        %3739 = vmatmul.bf16.gmra.mxu0 %v2807
        %v3740 = vpop.f32.mrf.mxu0
        %v3741 = vadd.f32 %v3652, %v3740
        %v3742 = vpop.f32.mrf.mxu0
        %v3743 = vadd.f32 %v3654, %v3742
        %3744 = vdwg.mxu0
        %3745 = vmatpush.bf16.msra.mxu0 %v3284
        %3746 = vmatpush.bf16.msra.mxu0 %v3283
        %3747 = vmatpush.bf16.msra.mxu0 %v3282
        %3748 = vmatpush.bf16.msra.mxu0 %v3281
        %3749 = vmatpush.bf16.msra.mxu0 %v3280
        %3750 = vmatpush.bf16.msra.mxu0 %v3279
        %3751 = vmatpush.bf16.msra.mxu0 %v3278
        %3752 = vmatpush.bf16.msra.mxu0 %v3277
        %3753 = vmatmul.bf16.gmra.mxu0 %v2673
        %v3754 = vpop.f32.mrf.mxu0
        %v3755 = vadd.f32 %v3666, %v3754
        %v3756 = vpop.f32.mrf.mxu0
        %v3757 = vadd.f32 %v3668, %v3756
        %3758 = vmatmul.bf16.gmra.mxu0 %v2682
        %v3759 = vpop.f32.mrf.mxu0
        %v3760 = vadd.f32 %v3671, %v3759
        %v3761 = vpop.f32.mrf.mxu0
        %v3762 = vadd.f32 %v3673, %v3761
        %3763 = vmatmul.bf16.gmra.mxu0 %v2691
        %v3764 = vpop.f32.mrf.mxu0
        %v3765 = vadd.f32 %v3676, %v3764
        %v3766 = vpop.f32.mrf.mxu0
        %v3767 = vadd.f32 %v3678, %v3766
        %3768 = vmatmul.bf16.gmra.mxu0 %v2700
        %v3769 = vpop.f32.mrf.mxu0
        %v3770 = vadd.f32 %v3681, %v3769
        %v3771 = vpop.f32.mrf.mxu0
        %v3772 = vadd.f32 %v3683, %v3771
        %3773 = vmatmul.bf16.gmra.mxu0 %v2709
        %v3774 = vpop.f32.mrf.mxu0
        %v3775 = vadd.f32 %v3686, %v3774
        %v3776 = vpop.f32.mrf.mxu0
        %v3777 = vadd.f32 %v3688, %v3776
        %3778 = vmatmul.bf16.gmra.mxu0 %v2718
        %v3779 = vpop.f32.mrf.mxu0
        %v3780 = vadd.f32 %v3691, %v3779
        %v3781 = vpop.f32.mrf.mxu0
        %v3782 = vadd.f32 %v3693, %v3781
        %3783 = vmatmul.bf16.gmra.mxu0 %v2727
        %v3784 = vpop.f32.mrf.mxu0
        %v3785 = vadd.f32 %v3696, %v3784
        %v3786 = vpop.f32.mrf.mxu0
        %v3787 = vadd.f32 %v3698, %v3786
        %3788 = vmatmul.bf16.gmra.mxu0 %v2736
        %v3789 = vpop.f32.mrf.mxu0
        %v3790 = vadd.f32 %v3701, %v3789
        %v3791 = vpop.f32.mrf.mxu0
        %v3792 = vadd.f32 %v3703, %v3791
        %3793 = vmatmul.bf16.gmra.mxu0 %v2745
        %v3794 = vpop.f32.mrf.mxu0
        %v3795 = vadd.f32 %v3706, %v3794
        %v3796 = vpop.f32.mrf.mxu0
        %v3797 = vadd.f32 %v3708, %v3796
        %3798 = vmatmul.bf16.gmra.mxu0 %v2754
        %v3799 = vpop.f32.mrf.mxu0
        %v3800 = vadd.f32 %v3711, %v3799
        %v3801 = vpop.f32.mrf.mxu0
        %v3802 = vadd.f32 %v3713, %v3801
        %3803 = vmatmul.bf16.gmra.mxu0 %v2763
        %v3804 = vpop.f32.mrf.mxu0
        %v3805 = vadd.f32 %v3716, %v3804
        %v3806 = vpop.f32.mrf.mxu0
        %v3807 = vadd.f32 %v3718, %v3806
        %3808 = vmatmul.bf16.gmra.mxu0 %v2772
        %v3809 = vpop.f32.mrf.mxu0
        %v3810 = vadd.f32 %v3721, %v3809
        %v3811 = vpop.f32.mrf.mxu0
        %v3812 = vadd.f32 %v3723, %v3811
        %3813 = vmatmul.bf16.gmra.mxu0 %v2781
        %v3814 = vpop.f32.mrf.mxu0
        %v3815 = vadd.f32 %v3726, %v3814
        %v3816 = vpop.f32.mrf.mxu0
        %v3817 = vadd.f32 %v3728, %v3816
        %3818 = vmatmul.bf16.gmra.mxu0 %v2790
        %v3819 = vpop.f32.mrf.mxu0
        %v3820 = vadd.f32 %v3731, %v3819
        %v3821 = vpop.f32.mrf.mxu0
        %v3822 = vadd.f32 %v3733, %v3821
        %3823 = vmatmul.bf16.gmra.mxu0 %v2799
        %v3824 = vpop.f32.mrf.mxu0
        %v3825 = vadd.f32 %v3736, %v3824
        %v3826 = vpop.f32.mrf.mxu0
        %v3827 = vadd.f32 %v3738, %v3826
        %3828 = vmatmul.bf16.gmra.mxu0 %v2808
        %v3829 = vpop.f32.mrf.mxu0
        %v3830 = vadd.f32 %v3741, %v3829
        %v3831 = vpop.f32.mrf.mxu0
        %v3832 = vadd.f32 %v3743, %v3831
        %3833 = vdwg.mxu0
        %3834 = vmatpush.bf16.msra.mxu0 %v3292
        %3835 = vmatpush.bf16.msra.mxu0 %v3291
        %3836 = vmatpush.bf16.msra.mxu0 %v3290
        %3837 = vmatpush.bf16.msra.mxu0 %v3289
        %3838 = vmatpush.bf16.msra.mxu0 %v3288
        %3839 = vmatpush.bf16.msra.mxu0 %v3287
        %3840 = vmatpush.bf16.msra.mxu0 %v3286
        %3841 = vmatpush.bf16.msra.mxu0 %v3285
        %3842 = vmatmul.bf16.gmra.mxu0 %v2674
        %v3843 = vpop.f32.mrf.mxu0
        %v3844 = vadd.f32 %v3755, %v3843
        %v3845 = vpop.f32.mrf.mxu0
        %v3846 = vadd.f32 %v3757, %v3845
        %3847 = vmatmul.bf16.gmra.mxu0 %v2683
        %v3848 = vpop.f32.mrf.mxu0
        %v3849 = vadd.f32 %v3760, %v3848
        %v3850 = vpop.f32.mrf.mxu0
        %v3851 = vadd.f32 %v3762, %v3850
        %3852 = vmatmul.bf16.gmra.mxu0 %v2692
        %v3853 = vpop.f32.mrf.mxu0
        %v3854 = vadd.f32 %v3765, %v3853
        %v3855 = vpop.f32.mrf.mxu0
        %v3856 = vadd.f32 %v3767, %v3855
        %3857 = vmatmul.bf16.gmra.mxu0 %v2701
        %v3858 = vpop.f32.mrf.mxu0
        %v3859 = vadd.f32 %v3770, %v3858
        %v3860 = vpop.f32.mrf.mxu0
        %v3861 = vadd.f32 %v3772, %v3860
        %3862 = vmatmul.bf16.gmra.mxu0 %v2710
        %v3863 = vpop.f32.mrf.mxu0
        %v3864 = vadd.f32 %v3775, %v3863
        %v3865 = vpop.f32.mrf.mxu0
        %v3866 = vadd.f32 %v3777, %v3865
        %3867 = vmatmul.bf16.gmra.mxu0 %v2719
        %v3868 = vpop.f32.mrf.mxu0
        %v3869 = vadd.f32 %v3780, %v3868
        %v3870 = vpop.f32.mrf.mxu0
        %v3871 = vadd.f32 %v3782, %v3870
        %3872 = vmatmul.bf16.gmra.mxu0 %v2728
        %v3873 = vpop.f32.mrf.mxu0
        %v3874 = vadd.f32 %v3785, %v3873
        %v3875 = vpop.f32.mrf.mxu0
        %v3876 = vadd.f32 %v3787, %v3875
        %3877 = vmatmul.bf16.gmra.mxu0 %v2737
        %v3878 = vpop.f32.mrf.mxu0
        %v3879 = vadd.f32 %v3790, %v3878
        %v3880 = vpop.f32.mrf.mxu0
        %v3881 = vadd.f32 %v3792, %v3880
        %3882 = vmatmul.bf16.gmra.mxu0 %v2746
        %v3883 = vpop.f32.mrf.mxu0
        %v3884 = vadd.f32 %v3795, %v3883
        %v3885 = vpop.f32.mrf.mxu0
        %v3886 = vadd.f32 %v3797, %v3885
        %3887 = vmatmul.bf16.gmra.mxu0 %v2755
        %v3888 = vpop.f32.mrf.mxu0
        %v3889 = vadd.f32 %v3800, %v3888
        %v3890 = vpop.f32.mrf.mxu0
        %v3891 = vadd.f32 %v3802, %v3890
        %3892 = vmatmul.bf16.gmra.mxu0 %v2764
        %v3893 = vpop.f32.mrf.mxu0
        %v3894 = vadd.f32 %v3805, %v3893
        %v3895 = vpop.f32.mrf.mxu0
        %v3896 = vadd.f32 %v3807, %v3895
        %3897 = vmatmul.bf16.gmra.mxu0 %v2773
        %v3898 = vpop.f32.mrf.mxu0
        %v3899 = vadd.f32 %v3810, %v3898
        %v3900 = vpop.f32.mrf.mxu0
        %v3901 = vadd.f32 %v3812, %v3900
        %3902 = vmatmul.bf16.gmra.mxu0 %v2782
        %v3903 = vpop.f32.mrf.mxu0
        %v3904 = vadd.f32 %v3815, %v3903
        %v3905 = vpop.f32.mrf.mxu0
        %v3906 = vadd.f32 %v3817, %v3905
        %3907 = vmatmul.bf16.gmra.mxu0 %v2791
        %v3908 = vpop.f32.mrf.mxu0
        %v3909 = vadd.f32 %v3820, %v3908
        %v3910 = vpop.f32.mrf.mxu0
        %v3911 = vadd.f32 %v3822, %v3910
        %3912 = vmatmul.bf16.gmra.mxu0 %v2800
        %v3913 = vpop.f32.mrf.mxu0
        %v3914 = vadd.f32 %v3825, %v3913
        %v3915 = vpop.f32.mrf.mxu0
        %v3916 = vadd.f32 %v3827, %v3915
        %3917 = vmatmul.bf16.gmra.mxu0 %v2809
        %v3918 = vpop.f32.mrf.mxu0
        %v3919 = vadd.f32 %v3830, %v3918
        %v3920 = vpop.f32.mrf.mxu0
        %v3921 = vadd.f32 %v3832, %v3920
        %3922 = vdwg.mxu0
        %3923 = vmatpush.bf16.msra.mxu0 %v3300
        %3924 = vmatpush.bf16.msra.mxu0 %v3299
        %3925 = vmatpush.bf16.msra.mxu0 %v3298
        %3926 = vmatpush.bf16.msra.mxu0 %v3297
        %3927 = vmatpush.bf16.msra.mxu0 %v3296
        %3928 = vmatpush.bf16.msra.mxu0 %v3295
        %3929 = vmatpush.bf16.msra.mxu0 %v3294
        %3930 = vmatpush.bf16.msra.mxu0 %v3293
        %3931 = vmatmul.bf16.gmra.mxu0 %v2675
        %v3932 = vpop.f32.mrf.mxu0
        %v3933 = vadd.f32 %v3844, %v3932
        %v3934 = vpop.f32.mrf.mxu0
        %v3935 = vadd.f32 %v3846, %v3934
        %3936 = vmatmul.bf16.gmra.mxu0 %v2684
        %v3937 = vpop.f32.mrf.mxu0
        %v3938 = vadd.f32 %v3849, %v3937
        %v3939 = vpop.f32.mrf.mxu0
        %v3940 = vadd.f32 %v3851, %v3939
        %3941 = vmatmul.bf16.gmra.mxu0 %v2693
        %v3942 = vpop.f32.mrf.mxu0
        %v3943 = vadd.f32 %v3854, %v3942
        %v3944 = vpop.f32.mrf.mxu0
        %v3945 = vadd.f32 %v3856, %v3944
        %3946 = vmatmul.bf16.gmra.mxu0 %v2702
        %v3947 = vpop.f32.mrf.mxu0
        %v3948 = vadd.f32 %v3859, %v3947
        %v3949 = vpop.f32.mrf.mxu0
        %v3950 = vadd.f32 %v3861, %v3949
        %3951 = vmatmul.bf16.gmra.mxu0 %v2711
        %v3952 = vpop.f32.mrf.mxu0
        %v3953 = vadd.f32 %v3864, %v3952
        %v3954 = vpop.f32.mrf.mxu0
        %v3955 = vadd.f32 %v3866, %v3954
        %3956 = vmatmul.bf16.gmra.mxu0 %v2720
        %v3957 = vpop.f32.mrf.mxu0
        %v3958 = vadd.f32 %v3869, %v3957
        %v3959 = vpop.f32.mrf.mxu0
        %v3960 = vadd.f32 %v3871, %v3959
        %3961 = vmatmul.bf16.gmra.mxu0 %v2729
        %v3962 = vpop.f32.mrf.mxu0
        %v3963 = vadd.f32 %v3874, %v3962
        %v3964 = vpop.f32.mrf.mxu0
        %v3965 = vadd.f32 %v3876, %v3964
        %3966 = vmatmul.bf16.gmra.mxu0 %v2738
        %v3967 = vpop.f32.mrf.mxu0
        %v3968 = vadd.f32 %v3879, %v3967
        %v3969 = vpop.f32.mrf.mxu0
        %v3970 = vadd.f32 %v3881, %v3969
        %3971 = vmatmul.bf16.gmra.mxu0 %v2747
        %v3972 = vpop.f32.mrf.mxu0
        %v3973 = vadd.f32 %v3884, %v3972
        %v3974 = vpop.f32.mrf.mxu0
        %v3975 = vadd.f32 %v3886, %v3974
        %3976 = vmatmul.bf16.gmra.mxu0 %v2756
        %v3977 = vpop.f32.mrf.mxu0
        %v3978 = vadd.f32 %v3889, %v3977
        %v3979 = vpop.f32.mrf.mxu0
        %v3980 = vadd.f32 %v3891, %v3979
        %3981 = vmatmul.bf16.gmra.mxu0 %v2765
        %v3982 = vpop.f32.mrf.mxu0
        %v3983 = vadd.f32 %v3894, %v3982
        %v3984 = vpop.f32.mrf.mxu0
        %v3985 = vadd.f32 %v3896, %v3984
        %3986 = vmatmul.bf16.gmra.mxu0 %v2774
        %v3987 = vpop.f32.mrf.mxu0
        %v3988 = vadd.f32 %v3899, %v3987
        %v3989 = vpop.f32.mrf.mxu0
        %v3990 = vadd.f32 %v3901, %v3989
        %3991 = vmatmul.bf16.gmra.mxu0 %v2783
        %v3992 = vpop.f32.mrf.mxu0
        %v3993 = vadd.f32 %v3904, %v3992
        %v3994 = vpop.f32.mrf.mxu0
        %v3995 = vadd.f32 %v3906, %v3994
        %3996 = vmatmul.bf16.gmra.mxu0 %v2792
        %v3997 = vpop.f32.mrf.mxu0
        %v3998 = vadd.f32 %v3909, %v3997
        %v3999 = vpop.f32.mrf.mxu0
        %v4000 = vadd.f32 %v3911, %v3999
        %4001 = vmatmul.bf16.gmra.mxu0 %v2801
        %v4002 = vpop.f32.mrf.mxu0
        %v4003 = vadd.f32 %v3914, %v4002
        %v4004 = vpop.f32.mrf.mxu0
        %v4005 = vadd.f32 %v3916, %v4004
        %4006 = vmatmul.bf16.gmra.mxu0 %v2810
        %v4007 = vpop.f32.mrf.mxu0
        %v4008 = vadd.f32 %v3919, %v4007
        %v4009 = vpop.f32.mrf.mxu0
        %v4010 = vadd.f32 %v3921, %v4009
        %4011 = vdwg.mxu0
        %4012 = vmatpush.bf16.msra.mxu0 %v3308
        %4013 = vmatpush.bf16.msra.mxu0 %v3307
        %4014 = vmatpush.bf16.msra.mxu0 %v3306
        %4015 = vmatpush.bf16.msra.mxu0 %v3305
        %4016 = vmatpush.bf16.msra.mxu0 %v3304
        %4017 = vmatpush.bf16.msra.mxu0 %v3303
        %4018 = vmatpush.bf16.msra.mxu0 %v3302
        %4019 = vmatpush.bf16.msra.mxu0 %v3301
        %4020 = vmatmul.bf16.gmra.mxu0 %v2676
        %v4021 = vpop.f32.mrf.mxu0
        %v4022 = vadd.f32 %v3933, %v4021
        %v4023 = vpop.f32.mrf.mxu0
        %v4024 = vadd.f32 %v3935, %v4023
        %4025 = vmatmul.bf16.gmra.mxu0 %v2685
        %v4026 = vpop.f32.mrf.mxu0
        %v4027 = vadd.f32 %v3938, %v4026
        %v4028 = vpop.f32.mrf.mxu0
        %v4029 = vadd.f32 %v3940, %v4028
        %4030 = vmatmul.bf16.gmra.mxu0 %v2694
        %v4031 = vpop.f32.mrf.mxu0
        %v4032 = vadd.f32 %v3943, %v4031
        %v4033 = vpop.f32.mrf.mxu0
        %v4034 = vadd.f32 %v3945, %v4033
        %4035 = vmatmul.bf16.gmra.mxu0 %v2703
        %v4036 = vpop.f32.mrf.mxu0
        %v4037 = vadd.f32 %v3948, %v4036
        %v4038 = vpop.f32.mrf.mxu0
        %v4039 = vadd.f32 %v3950, %v4038
        %4040 = vmatmul.bf16.gmra.mxu0 %v2712
        %v4041 = vpop.f32.mrf.mxu0
        %v4042 = vadd.f32 %v3953, %v4041
        %v4043 = vpop.f32.mrf.mxu0
        %v4044 = vadd.f32 %v3955, %v4043
        %4045 = vmatmul.bf16.gmra.mxu0 %v2721
        %v4046 = vpop.f32.mrf.mxu0
        %v4047 = vadd.f32 %v3958, %v4046
        %v4048 = vpop.f32.mrf.mxu0
        %v4049 = vadd.f32 %v3960, %v4048
        %4050 = vmatmul.bf16.gmra.mxu0 %v2730
        %v4051 = vpop.f32.mrf.mxu0
        %v4052 = vadd.f32 %v3963, %v4051
        %v4053 = vpop.f32.mrf.mxu0
        %v4054 = vadd.f32 %v3965, %v4053
        %4055 = vmatmul.bf16.gmra.mxu0 %v2739
        %v4056 = vpop.f32.mrf.mxu0
        %v4057 = vadd.f32 %v3968, %v4056
        %v4058 = vpop.f32.mrf.mxu0
        %v4059 = vadd.f32 %v3970, %v4058
        %4060 = vmatmul.bf16.gmra.mxu0 %v2748
        %v4061 = vpop.f32.mrf.mxu0
        %v4062 = vadd.f32 %v3973, %v4061
        %v4063 = vpop.f32.mrf.mxu0
        %v4064 = vadd.f32 %v3975, %v4063
        %4065 = vmatmul.bf16.gmra.mxu0 %v2757
        %v4066 = vpop.f32.mrf.mxu0
        %v4067 = vadd.f32 %v3978, %v4066
        %v4068 = vpop.f32.mrf.mxu0
        %v4069 = vadd.f32 %v3980, %v4068
        %4070 = vmatmul.bf16.gmra.mxu0 %v2766
        %v4071 = vpop.f32.mrf.mxu0
        %v4072 = vadd.f32 %v3983, %v4071
        %v4073 = vpop.f32.mrf.mxu0
        %v4074 = vadd.f32 %v3985, %v4073
        %4075 = vmatmul.bf16.gmra.mxu0 %v2775
        %v4076 = vpop.f32.mrf.mxu0
        %v4077 = vadd.f32 %v3988, %v4076
        %v4078 = vpop.f32.mrf.mxu0
        %v4079 = vadd.f32 %v3990, %v4078
        %4080 = vmatmul.bf16.gmra.mxu0 %v2784
        %v4081 = vpop.f32.mrf.mxu0
        %v4082 = vadd.f32 %v3993, %v4081
        %v4083 = vpop.f32.mrf.mxu0
        %v4084 = vadd.f32 %v3995, %v4083
        %4085 = vmatmul.bf16.gmra.mxu0 %v2793
        %v4086 = vpop.f32.mrf.mxu0
        %v4087 = vadd.f32 %v3998, %v4086
        %v4088 = vpop.f32.mrf.mxu0
        %v4089 = vadd.f32 %v4000, %v4088
        %4090 = vmatmul.bf16.gmra.mxu0 %v2802
        %v4091 = vpop.f32.mrf.mxu0
        %v4092 = vadd.f32 %v4003, %v4091
        %v4093 = vpop.f32.mrf.mxu0
        %v4094 = vadd.f32 %v4005, %v4093
        %4095 = vmatmul.bf16.gmra.mxu0 %v2811
        %v4096 = vpop.f32.mrf.mxu0
        %v4097 = vadd.f32 %v4008, %v4096
        %v4098 = vpop.f32.mrf.mxu0
        %v4099 = vadd.f32 %v4010, %v4098
        %4100 = vdwg.mxu0
        %4101 = vmatpush.bf16.msra.mxu0 %v3316
        %4102 = vmatpush.bf16.msra.mxu0 %v3315
        %4103 = vmatpush.bf16.msra.mxu0 %v3314
        %4104 = vmatpush.bf16.msra.mxu0 %v3313
        %4105 = vmatpush.bf16.msra.mxu0 %v3312
        %4106 = vmatpush.bf16.msra.mxu0 %v3311
        %4107 = vmatpush.bf16.msra.mxu0 %v3310
        %4108 = vmatpush.bf16.msra.mxu0 %v3309
        %4109 = vmatmul.bf16.gmra.mxu0 %v2677
        %v4110 = vpop.f32.mrf.mxu0
        %v4111 = vadd.f32 %v4022, %v4110
        %v4112 = vpop.f32.mrf.mxu0
        %v4113 = vadd.f32 %v4024, %v4112
        %4114 = vmatmul.bf16.gmra.mxu0 %v2686
        %v4115 = vpop.f32.mrf.mxu0
        %v4116 = vadd.f32 %v4027, %v4115
        %v4117 = vpop.f32.mrf.mxu0
        %v4118 = vadd.f32 %v4029, %v4117
        %4119 = vmatmul.bf16.gmra.mxu0 %v2695
        %v4120 = vpop.f32.mrf.mxu0
        %v4121 = vadd.f32 %v4032, %v4120
        %v4122 = vpop.f32.mrf.mxu0
        %v4123 = vadd.f32 %v4034, %v4122
        %4124 = vmatmul.bf16.gmra.mxu0 %v2704
        %v4125 = vpop.f32.mrf.mxu0
        %v4126 = vadd.f32 %v4037, %v4125
        %v4127 = vpop.f32.mrf.mxu0
        %v4128 = vadd.f32 %v4039, %v4127
        %4129 = vmatmul.bf16.gmra.mxu0 %v2713
        %v4130 = vpop.f32.mrf.mxu0
        %v4131 = vadd.f32 %v4042, %v4130
        %v4132 = vpop.f32.mrf.mxu0
        %v4133 = vadd.f32 %v4044, %v4132
        %4134 = vmatmul.bf16.gmra.mxu0 %v2722
        %v4135 = vpop.f32.mrf.mxu0
        %v4136 = vadd.f32 %v4047, %v4135
        %v4137 = vpop.f32.mrf.mxu0
        %v4138 = vadd.f32 %v4049, %v4137
        %4139 = vmatmul.bf16.gmra.mxu0 %v2731
        %v4140 = vpop.f32.mrf.mxu0
        %v4141 = vadd.f32 %v4052, %v4140
        %v4142 = vpop.f32.mrf.mxu0
        %v4143 = vadd.f32 %v4054, %v4142
        %4144 = vmatmul.bf16.gmra.mxu0 %v2740
        %v4145 = vpop.f32.mrf.mxu0
        %v4146 = vadd.f32 %v4057, %v4145
        %v4147 = vpop.f32.mrf.mxu0
        %v4148 = vadd.f32 %v4059, %v4147
        %4149 = vmatmul.bf16.gmra.mxu0 %v2749
        %v4150 = vpop.f32.mrf.mxu0
        %v4151 = vadd.f32 %v4062, %v4150
        %v4152 = vpop.f32.mrf.mxu0
        %v4153 = vadd.f32 %v4064, %v4152
        %4154 = vmatmul.bf16.gmra.mxu0 %v2758
        %v4155 = vpop.f32.mrf.mxu0
        %v4156 = vadd.f32 %v4067, %v4155
        %v4157 = vpop.f32.mrf.mxu0
        %v4158 = vadd.f32 %v4069, %v4157
        %4159 = vmatmul.bf16.gmra.mxu0 %v2767
        %v4160 = vpop.f32.mrf.mxu0
        %v4161 = vadd.f32 %v4072, %v4160
        %v4162 = vpop.f32.mrf.mxu0
        %v4163 = vadd.f32 %v4074, %v4162
        %4164 = vmatmul.bf16.gmra.mxu0 %v2776
        %v4165 = vpop.f32.mrf.mxu0
        %v4166 = vadd.f32 %v4077, %v4165
        %v4167 = vpop.f32.mrf.mxu0
        %v4168 = vadd.f32 %v4079, %v4167
        %4169 = vmatmul.bf16.gmra.mxu0 %v2785
        %v4170 = vpop.f32.mrf.mxu0
        %v4171 = vadd.f32 %v4082, %v4170
        %v4172 = vpop.f32.mrf.mxu0
        %v4173 = vadd.f32 %v4084, %v4172
        %4174 = vmatmul.bf16.gmra.mxu0 %v2794
        %v4175 = vpop.f32.mrf.mxu0
        %v4176 = vadd.f32 %v4087, %v4175
        %v4177 = vpop.f32.mrf.mxu0
        %v4178 = vadd.f32 %v4089, %v4177
        %4179 = vmatmul.bf16.gmra.mxu0 %v2803
        %v4180 = vpop.f32.mrf.mxu0
        %v4181 = vadd.f32 %v4092, %v4180
        %v4182 = vpop.f32.mrf.mxu0
        %v4183 = vadd.f32 %v4094, %v4182
        %4184 = vmatmul.bf16.gmra.mxu0 %v2812
        %v4185 = vpop.f32.mrf.mxu0
        %v4186 = vadd.f32 %v4097, %v4185
        %v4187 = vpop.f32.mrf.mxu0
        %v4188 = vadd.f32 %v4099, %v4187
        %4189 = vdwg.mxu0
        %v4190 = vmax.f32 %v4111, 0.0
        %v4191 = vmax.f32 %v4113, 0.0
        %v4192 = vmax.f32 %v4116, 0.0
        %v4193 = vmax.f32 %v4118, 0.0
        %v4194 = vmax.f32 %v4121, 0.0
        %v4195 = vmax.f32 %v4123, 0.0
        %v4196 = vmax.f32 %v4126, 0.0
        %v4197 = vmax.f32 %v4128, 0.0
        %v4198 = vmax.f32 %v4131, 0.0
        %v4199 = vmax.f32 %v4133, 0.0
        %v4200 = vmax.f32 %v4136, 0.0
        %v4201 = vmax.f32 %v4138, 0.0
        %v4202 = vmax.f32 %v4141, 0.0
        %v4203 = vmax.f32 %v4143, 0.0
        %v4204 = vmax.f32 %v4146, 0.0
        %v4205 = vmax.f32 %v4148, 0.0
        %v4206 = vmax.f32 %v4151, 0.0
        %v4207 = vmax.f32 %v4153, 0.0
        %v4208 = vmax.f32 %v4156, 0.0
        %v4209 = vmax.f32 %v4158, 0.0
        %v4210 = vmax.f32 %v4161, 0.0
        %v4211 = vmax.f32 %v4163, 0.0
        %v4212 = vmax.f32 %v4166, 0.0
        %v4213 = vmax.f32 %v4168, 0.0
        %v4214 = vmax.f32 %v4171, 0.0
        %v4215 = vmax.f32 %v4173, 0.0
        %v4216 = vmax.f32 %v4176, 0.0
        %v4217 = vmax.f32 %v4178, 0.0
        %v4218 = vmax.f32 %v4181, 0.0
        %v4219 = vmax.f32 %v4183, 0.0
        %v4220 = vmax.f32 %v4186, 0.0
        %v4221 = vmax.f32 %v4188, 0.0
        %v4222 = vld [vmem:[%s2] sm:$0x1]
        %v4224 = vperm.slane %v4222, 0
        %v4226 = vmul.f32 %v4190, %v4224
        %v4227 = vmul.f32 %v4191, %v4224
        %v4228 = vmul.f32 %v4192, %v4224
        %v4229 = vmul.f32 %v4193, %v4224
        %v4230 = vmul.f32 %v4194, %v4224
        %v4231 = vmul.f32 %v4195, %v4224
        %v4232 = vmul.f32 %v4196, %v4224
        %v4233 = vmul.f32 %v4197, %v4224
        %v4234 = vmul.f32 %v4198, %v4224
        %v4235 = vmul.f32 %v4199, %v4224
        %v4236 = vmul.f32 %v4200, %v4224
        %v4237 = vmul.f32 %v4201, %v4224
        %v4238 = vmul.f32 %v4202, %v4224
        %v4239 = vmul.f32 %v4203, %v4224
        %v4240 = vmul.f32 %v4204, %v4224
        %v4241 = vmul.f32 %v4205, %v4224
        %v4242 = vmul.f32 %v4206, %v4224
        %v4243 = vmul.f32 %v4207, %v4224
        %v4244 = vmul.f32 %v4208, %v4224
        %v4245 = vmul.f32 %v4209, %v4224
        %v4246 = vmul.f32 %v4210, %v4224
        %v4247 = vmul.f32 %v4211, %v4224
        %v4248 = vmul.f32 %v4212, %v4224
        %v4249 = vmul.f32 %v4213, %v4224
        %v4250 = vmul.f32 %v4214, %v4224
        %v4251 = vmul.f32 %v4215, %v4224
        %v4252 = vmul.f32 %v4216, %v4224
        %v4253 = vmul.f32 %v4217, %v4224
        %v4254 = vmul.f32 %v4218, %v4224
        %v4255 = vmul.f32 %v4219, %v4224
        %v4256 = vmul.f32 %v4220, %v4224
        %v4257 = vmul.f32 %v4221, %v4224
        %v4258 = vld [vmem:[%s3] sm:$0x1]
        %v4260 = vperm.slane %v4258, 0
        %v4262 = vadd.f32 %v4226, %v4260
        %v4263 = vadd.f32 %v4227, %v4260
        %v4264 = vadd.f32 %v4228, %v4260
        %v4265 = vadd.f32 %v4229, %v4260
        %v4266 = vadd.f32 %v4230, %v4260
        %v4267 = vadd.f32 %v4231, %v4260
        %v4268 = vadd.f32 %v4232, %v4260
        %v4269 = vadd.f32 %v4233, %v4260
        %v4270 = vadd.f32 %v4234, %v4260
        %v4271 = vadd.f32 %v4235, %v4260
        %v4272 = vadd.f32 %v4236, %v4260
        %v4273 = vadd.f32 %v4237, %v4260
        %v4274 = vadd.f32 %v4238, %v4260
        %v4275 = vadd.f32 %v4239, %v4260
        %v4276 = vadd.f32 %v4240, %v4260
        %v4277 = vadd.f32 %v4241, %v4260
        %v4278 = vadd.f32 %v4242, %v4260
        %v4279 = vadd.f32 %v4243, %v4260
        %v4280 = vadd.f32 %v4244, %v4260
        %v4281 = vadd.f32 %v4245, %v4260
        %v4282 = vadd.f32 %v4246, %v4260
        %v4283 = vadd.f32 %v4247, %v4260
        %v4284 = vadd.f32 %v4248, %v4260
        %v4285 = vadd.f32 %v4249, %v4260
        %v4286 = vadd.f32 %v4250, %v4260
        %v4287 = vadd.f32 %v4251, %v4260
        %v4288 = vadd.f32 %v4252, %v4260
        %v4289 = vadd.f32 %v4253, %v4260
        %v4290 = vadd.f32 %v4254, %v4260
        %v4291 = vadd.f32 %v4255, %v4260
        %v4292 = vadd.f32 %v4256, %v4260
        %v4293 = vadd.f32 %v4257, %v4260
        %v4294 = vpack.c.bf16 %v4262, %v4262
        %v4295 = vpack.c.bf16 %v4263, %v4263
        %v4296 = vpack.c.bf16 %v4264, %v4264
        %v4297 = vpack.c.bf16 %v4265, %v4265
        %v4298 = vpack.c.bf16 %v4266, %v4266
        %v4299 = vpack.c.bf16 %v4267, %v4267
        %v4300 = vpack.c.bf16 %v4268, %v4268
        %v4301 = vpack.c.bf16 %v4269, %v4269
        %v4302 = vpack.c.bf16 %v4270, %v4270
        %v4303 = vpack.c.bf16 %v4271, %v4271
        %v4304 = vpack.c.bf16 %v4272, %v4272
        %v4305 = vpack.c.bf16 %v4273, %v4273
        %v4306 = vpack.c.bf16 %v4274, %v4274
        %v4307 = vpack.c.bf16 %v4275, %v4275
        %v4308 = vpack.c.bf16 %v4276, %v4276
        %v4309 = vpack.c.bf16 %v4277, %v4277
        %v4310 = vpack.c.bf16 %v4278, %v4278
        %v4311 = vpack.c.bf16 %v4279, %v4279
        %v4312 = vpack.c.bf16 %v4280, %v4280
        %v4313 = vpack.c.bf16 %v4281, %v4281
        %v4314 = vpack.c.bf16 %v4282, %v4282
        %v4315 = vpack.c.bf16 %v4283, %v4283
        %v4316 = vpack.c.bf16 %v4284, %v4284
        %v4317 = vpack.c.bf16 %v4285, %v4285
        %v4318 = vpack.c.bf16 %v4286, %v4286
        %v4319 = vpack.c.bf16 %v4287, %v4287
        %v4320 = vpack.c.bf16 %v4288, %v4288
        %v4321 = vpack.c.bf16 %v4289, %v4289
        %v4322 = vpack.c.bf16 %v4290, %v4290
        %v4323 = vpack.c.bf16 %v4291, %v4291
        %v4324 = vpack.c.bf16 %v4292, %v4292
        %v4325 = vpack.c.bf16 %v4293, %v4293
        %v4358 = vunpack.c.l.b16 %v4294
        %v4359 = vunpack.c.l.b16 %v4295
        %v4360 = vunpack.c.l.b16 %v4296
        %v4361 = vunpack.c.l.b16 %v4297
        %v4362 = vunpack.c.l.b16 %v4298
        %v4363 = vunpack.c.l.b16 %v4299
        %v4364 = vunpack.c.l.b16 %v4300
        %v4365 = vunpack.c.l.b16 %v4301
        %v4366 = vunpack.c.l.b16 %v4302
        %v4367 = vunpack.c.l.b16 %v4303
        %v4368 = vunpack.c.l.b16 %v4304
        %v4369 = vunpack.c.l.b16 %v4305
        %v4370 = vunpack.c.l.b16 %v4306
        %v4371 = vunpack.c.l.b16 %v4307
        %v4372 = vunpack.c.l.b16 %v4308
        %v4373 = vunpack.c.l.b16 %v4309
        %v4374 = vunpack.c.l.b16 %v4310
        %v4375 = vunpack.c.l.b16 %v4311
        %v4376 = vunpack.c.l.b16 %v4312
        %v4377 = vunpack.c.l.b16 %v4313
        %v4378 = vunpack.c.l.b16 %v4314
        %v4379 = vunpack.c.l.b16 %v4315
        %v4380 = vunpack.c.l.b16 %v4316
        %v4381 = vunpack.c.l.b16 %v4317
        %v4382 = vunpack.c.l.b16 %v4318
        %v4383 = vunpack.c.l.b16 %v4319
        %v4384 = vunpack.c.l.b16 %v4320
        %v4385 = vunpack.c.l.b16 %v4321
        %v4386 = vunpack.c.l.b16 %v4322
        %v4387 = vunpack.c.l.b16 %v4323
        %v4388 = vunpack.c.l.b16 %v4324
        %v4389 = vunpack.c.l.b16 %v4325
        %v4390 = vpack.c.b16 %v4359, %v4358
        %v4391 = vpack.c.b16 %v4361, %v4360
        %v4392 = vpack.c.b16 %v4363, %v4362
        %v4393 = vpack.c.b16 %v4365, %v4364
        %v4394 = vpack.c.b16 %v4367, %v4366
        %v4395 = vpack.c.b16 %v4369, %v4368
        %v4396 = vpack.c.b16 %v4371, %v4370
        %v4397 = vpack.c.b16 %v4373, %v4372
        %v4398 = vpack.c.b16 %v4375, %v4374
        %v4399 = vpack.c.b16 %v4377, %v4376
        %v4400 = vpack.c.b16 %v4379, %v4378
        %v4401 = vpack.c.b16 %v4381, %v4380
        %v4402 = vpack.c.b16 %v4383, %v4382
        %v4403 = vpack.c.b16 %v4385, %v4384
        %v4404 = vpack.c.b16 %v4387, %v4386
        %v4405 = vpack.c.b16 %v4389, %v4388
        %v4407 = vsel %vm837, %v4390, 0
        %v4409 = vsel %vm837, %v4391, 0
        %v4411 = vsel %vm837, %v4392, 0
        %v4413 = vsel %vm837, %v4393, 0
        %v4415 = vsel %vm837, %v4394, 0
        %v4417 = vsel %vm837, %v4395, 0
        %v4419 = vsel %vm837, %v4396, 0
        %v4421 = vsel %vm837, %v4397, 0
        %v4423 = vsel %vm837, %v4398, 0
        %v4425 = vsel %vm837, %v4399, 0
        %v4427 = vsel %vm837, %v4400, 0
        %v4429 = vsel %vm837, %v4401, 0
        %v4431 = vsel %vm837, %v4402, 0
        %v4433 = vsel %vm837, %v4403, 0
        %v4435 = vsel %vm837, %v4404, 0
        %v4437 = vsel %vm837, %v4405, 0
        %v4453 = vunpack.c.l.b16 %v4407
        %v4454 = vunpack.c.h.b16 %v4407
        %v4455 = vunpack.c.l.b16 %v4409
        %v4456 = vunpack.c.h.b16 %v4409
        %v4457 = vunpack.c.l.b16 %v4411
        %v4458 = vunpack.c.h.b16 %v4411
        %v4459 = vunpack.c.l.b16 %v4413
        %v4460 = vunpack.c.h.b16 %v4413
        %v4461 = vunpack.c.l.b16 %v4415
        %v4462 = vunpack.c.h.b16 %v4415
        %v4463 = vunpack.c.l.b16 %v4417
        %v4464 = vunpack.c.h.b16 %v4417
        %v4465 = vunpack.c.l.b16 %v4419
        %v4466 = vunpack.c.h.b16 %v4419
        %v4467 = vunpack.c.l.b16 %v4421
        %v4468 = vunpack.c.h.b16 %v4421
        %v4469 = vunpack.c.l.b16 %v4423
        %v4470 = vunpack.c.h.b16 %v4423
        %v4471 = vunpack.c.l.b16 %v4425
        %v4472 = vunpack.c.h.b16 %v4425
        %v4473 = vunpack.c.l.b16 %v4427
        %v4474 = vunpack.c.h.b16 %v4427
        %v4475 = vunpack.c.l.b16 %v4429
        %v4476 = vunpack.c.h.b16 %v4429
        %v4477 = vunpack.c.l.b16 %v4431
        %v4478 = vunpack.c.h.b16 %v4431
        %v4479 = vunpack.c.l.b16 %v4433
        %v4480 = vunpack.c.h.b16 %v4433
        %v4481 = vunpack.c.l.b16 %v4435
        %v4482 = vunpack.c.h.b16 %v4435
        %v4483 = vpack.c.b16 %v4453, %v4453
        %v4484 = vpack.c.b16 %v4454, %v4454
        %v4485 = vpack.c.b16 %v4455, %v4455
        %v4486 = vpack.c.b16 %v4456, %v4456
        %v4487 = vpack.c.b16 %v4457, %v4457
        %v4488 = vpack.c.b16 %v4458, %v4458
        %v4489 = vpack.c.b16 %v4459, %v4459
        %v4490 = vpack.c.b16 %v4460, %v4460
        %v4491 = vpack.c.b16 %v4461, %v4461
        %v4492 = vpack.c.b16 %v4462, %v4462
        %v4493 = vpack.c.b16 %v4463, %v4463
        %v4494 = vpack.c.b16 %v4464, %v4464
        %v4495 = vpack.c.b16 %v4465, %v4465
        %v4496 = vpack.c.b16 %v4466, %v4466
        %v4497 = vpack.c.b16 %v4467, %v4467
        %v4498 = vpack.c.b16 %v4468, %v4468
        %v4499 = vpack.c.b16 %v4469, %v4469
        %v4500 = vpack.c.b16 %v4470, %v4470
        %v4501 = vpack.c.b16 %v4471, %v4471
        %v4502 = vpack.c.b16 %v4472, %v4472
        %v4503 = vpack.c.b16 %v4473, %v4473
        %v4504 = vpack.c.b16 %v4474, %v4474
        %v4505 = vpack.c.b16 %v4475, %v4475
        %v4506 = vpack.c.b16 %v4476, %v4476
        %v4507 = vpack.c.b16 %v4477, %v4477
        %v4508 = vpack.c.b16 %v4478, %v4478
        %v4509 = vpack.c.b16 %v4479, %v4479
        %v4510 = vpack.c.b16 %v4480, %v4480
        %v4511 = vpack.c.b16 %v4481, %v4481
        %v4512 = vpack.c.b16 %v4482, %v4482
        %v4514 = vshrl.u32 %v4483, 16
        %v4516 = vrot.slane %v4514, 7
        %v4517 = vshll.u32 %v4483, 16
        %v4519 = vor.u32 %v4516, %v4517
        %v4520 = vrot.slane %v4516, 4
        %v4522 = vshrl.u32 %v4484, 16
        %v4524 = vrot.slane %v4522, 7
        %v4525 = vshll.u32 %v4484, 16
        %v4527 = vor.u32 %v4524, %v4525
        %v4528 = vsel %vm947, %v4520, %v4527
        %v4530 = vshrl.u32 %v4485, 16
        %v4532 = vrot.slane %v4530, 7
        %v4533 = vshll.u32 %v4485, 16
        %v4535 = vor.u32 %v4532, %v4533
        %v4536 = vrot.slane %v4532, 4
        %v4538 = vshrl.u32 %v4486, 16
        %v4540 = vrot.slane %v4538, 7
        %v4541 = vshll.u32 %v4486, 16
        %v4543 = vor.u32 %v4540, %v4541
        %v4544 = vsel %vm947, %v4536, %v4543
        %v4546 = vshrl.u32 %v4487, 16
        %v4548 = vrot.slane %v4546, 7
        %v4549 = vshll.u32 %v4487, 16
        %v4551 = vor.u32 %v4548, %v4549
        %v4552 = vrot.slane %v4548, 4
        %v4554 = vshrl.u32 %v4488, 16
        %v4556 = vrot.slane %v4554, 7
        %v4557 = vshll.u32 %v4488, 16
        %v4559 = vor.u32 %v4556, %v4557
        %v4560 = vsel %vm947, %v4552, %v4559
        %v4562 = vshrl.u32 %v4489, 16
        %v4564 = vrot.slane %v4562, 7
        %v4565 = vshll.u32 %v4489, 16
        %v4567 = vor.u32 %v4564, %v4565
        %v4568 = vrot.slane %v4564, 4
        %v4570 = vshrl.u32 %v4490, 16
        %v4572 = vrot.slane %v4570, 7
        %v4573 = vshll.u32 %v4490, 16
        %v4575 = vor.u32 %v4572, %v4573
        %v4576 = vsel %vm947, %v4568, %v4575
        %v4578 = vshrl.u32 %v4491, 16
        %v4580 = vrot.slane %v4578, 7
        %v4581 = vshll.u32 %v4491, 16
        %v4583 = vor.u32 %v4580, %v4581
        %v4584 = vrot.slane %v4580, 4
        %v4586 = vshrl.u32 %v4492, 16
        %v4588 = vrot.slane %v4586, 7
        %v4589 = vshll.u32 %v4492, 16
        %v4591 = vor.u32 %v4588, %v4589
        %v4592 = vsel %vm947, %v4584, %v4591
        %v4594 = vshrl.u32 %v4493, 16
        %v4596 = vrot.slane %v4594, 7
        %v4597 = vshll.u32 %v4493, 16
        %v4599 = vor.u32 %v4596, %v4597
        %v4600 = vrot.slane %v4596, 4
        %v4602 = vshrl.u32 %v4494, 16
        %v4604 = vrot.slane %v4602, 7
        %v4605 = vshll.u32 %v4494, 16
        %v4607 = vor.u32 %v4604, %v4605
        %v4608 = vsel %vm947, %v4600, %v4607
        %v4610 = vshrl.u32 %v4495, 16
        %v4612 = vrot.slane %v4610, 7
        %v4613 = vshll.u32 %v4495, 16
        %v4615 = vor.u32 %v4612, %v4613
        %v4616 = vrot.slane %v4612, 4
        %v4618 = vshrl.u32 %v4496, 16
        %v4620 = vrot.slane %v4618, 7
        %v4621 = vshll.u32 %v4496, 16
        %v4623 = vor.u32 %v4620, %v4621
        %v4624 = vsel %vm947, %v4616, %v4623
        %v4626 = vshrl.u32 %v4497, 16
        %v4628 = vrot.slane %v4626, 7
        %v4629 = vshll.u32 %v4497, 16
        %v4631 = vor.u32 %v4628, %v4629
        %v4632 = vrot.slane %v4628, 4
        %v4634 = vshrl.u32 %v4498, 16
        %v4636 = vrot.slane %v4634, 7
        %v4637 = vshll.u32 %v4498, 16
        %v4639 = vor.u32 %v4636, %v4637
        %v4640 = vsel %vm947, %v4632, %v4639
        %v4642 = vshrl.u32 %v4499, 16
        %v4644 = vrot.slane %v4642, 7
        %v4645 = vshll.u32 %v4499, 16
        %v4647 = vor.u32 %v4644, %v4645
        %v4648 = vrot.slane %v4644, 4
        %v4650 = vshrl.u32 %v4500, 16
        %v4652 = vrot.slane %v4650, 7
        %v4653 = vshll.u32 %v4500, 16
        %v4655 = vor.u32 %v4652, %v4653
        %v4656 = vsel %vm947, %v4648, %v4655
        %v4658 = vshrl.u32 %v4501, 16
        %v4660 = vrot.slane %v4658, 7
        %v4661 = vshll.u32 %v4501, 16
        %v4663 = vor.u32 %v4660, %v4661
        %v4664 = vrot.slane %v4660, 4
        %v4666 = vshrl.u32 %v4502, 16
        %v4668 = vrot.slane %v4666, 7
        %v4669 = vshll.u32 %v4502, 16
        %v4671 = vor.u32 %v4668, %v4669
        %v4672 = vsel %vm947, %v4664, %v4671
        %v4674 = vshrl.u32 %v4503, 16
        %v4676 = vrot.slane %v4674, 7
        %v4677 = vshll.u32 %v4503, 16
        %v4679 = vor.u32 %v4676, %v4677
        %v4680 = vrot.slane %v4676, 4
        %v4682 = vshrl.u32 %v4504, 16
        %v4684 = vrot.slane %v4682, 7
        %v4685 = vshll.u32 %v4504, 16
        %v4687 = vor.u32 %v4684, %v4685
        %v4688 = vsel %vm947, %v4680, %v4687
        %v4690 = vshrl.u32 %v4505, 16
        %v4692 = vrot.slane %v4690, 7
        %v4693 = vshll.u32 %v4505, 16
        %v4695 = vor.u32 %v4692, %v4693
        %v4696 = vrot.slane %v4692, 4
        %v4698 = vshrl.u32 %v4506, 16
        %v4700 = vrot.slane %v4698, 7
        %v4701 = vshll.u32 %v4506, 16
        %v4703 = vor.u32 %v4700, %v4701
        %v4704 = vsel %vm947, %v4696, %v4703
        %v4706 = vshrl.u32 %v4507, 16
        %v4708 = vrot.slane %v4706, 7
        %v4709 = vshll.u32 %v4507, 16
        %v4711 = vor.u32 %v4708, %v4709
        %v4712 = vrot.slane %v4708, 4
        %v4714 = vshrl.u32 %v4508, 16
        %v4716 = vrot.slane %v4714, 7
        %v4717 = vshll.u32 %v4508, 16
        %v4719 = vor.u32 %v4716, %v4717
        %v4720 = vsel %vm947, %v4712, %v4719
        %v4722 = vshrl.u32 %v4509, 16
        %v4724 = vrot.slane %v4722, 7
        %v4725 = vshll.u32 %v4509, 16
        %v4727 = vor.u32 %v4724, %v4725
        %v4728 = vrot.slane %v4724, 4
        %v4730 = vshrl.u32 %v4510, 16
        %v4732 = vrot.slane %v4730, 7
        %v4733 = vshll.u32 %v4510, 16
        %v4735 = vor.u32 %v4732, %v4733
        %v4736 = vsel %vm947, %v4728, %v4735
        %v4738 = vshrl.u32 %v4511, 16
        %v4740 = vrot.slane %v4738, 7
        %v4741 = vshll.u32 %v4511, 16
        %v4743 = vor.u32 %v4740, %v4741
        %v4744 = vrot.slane %v4740, 4
        %v4746 = vshrl.u32 %v4512, 16
        %v4748 = vrot.slane %v4746, 7
        %v4749 = vshll.u32 %v4512, 16
        %v4751 = vor.u32 %v4748, %v4749
        %v4752 = vsel %vm947, %v4744, %v4751
        %v4783 = vld [vmem:[%s1218] sm:$0xf]
        %v4784 = vsel %vm1221, %v4519, %v4783
        %4785 = vst [vmem:[%s1218] sm:$0xf] %v4784
        %4786 = vst [vmem:[%s1218 + $0x24] sm:$0xf] %v4528
        %v4787 = vld [vmem:[%s1218 + $0x48] sm:$0xf]
        %v4788 = vsel %vm1221, %v4535, %v4787
        %4789 = vst [vmem:[%s1218 + $0x48] sm:$0xf] %v4788
        %4790 = vst [vmem:[%s1218 + $0x6c] sm:$0xf] %v4544
        %v4791 = vld [vmem:[%s1218 + $0x90] sm:$0xf]
        %v4792 = vsel %vm1221, %v4551, %v4791
        %4793 = vst [vmem:[%s1218 + $0x90] sm:$0xf] %v4792
        %4794 = vst [vmem:[%s1218 + $0xb4] sm:$0xf] %v4560
        %v4795 = vld [vmem:[%s1218 + $0xd8] sm:$0xf]
        %v4796 = vsel %vm1221, %v4567, %v4795
        %4797 = vst [vmem:[%s1218 + $0xd8] sm:$0xf] %v4796
        %4798 = vst [vmem:[%s1218 + $0xfc] sm:$0xf] %v4576
        %v4799 = vld [vmem:[%s1218 + $0x120] sm:$0xf]
        %v4800 = vsel %vm1221, %v4583, %v4799
        %4801 = vst [vmem:[%s1218 + $0x120] sm:$0xf] %v4800
        %4802 = vst [vmem:[%s1218 + $0x144] sm:$0xf] %v4592
        %v4803 = vld [vmem:[%s1218 + $0x168] sm:$0xf]
        %v4804 = vsel %vm1221, %v4599, %v4803
        %4805 = vst [vmem:[%s1218 + $0x168] sm:$0xf] %v4804
        %4806 = vst [vmem:[%s1218 + $0x18c] sm:$0xf] %v4608
        %v4807 = vld [vmem:[%s1218 + $0x1b0] sm:$0xf]
        %v4808 = vsel %vm1221, %v4615, %v4807
        %4809 = vst [vmem:[%s1218 + $0x1b0] sm:$0xf] %v4808
        %4810 = vst [vmem:[%s1218 + $0x1d4] sm:$0xf] %v4624
        %v4811 = vld [vmem:[%s1218 + $0x1f8] sm:$0xf]
        %v4812 = vsel %vm1221, %v4631, %v4811
        %4813 = vst [vmem:[%s1218 + $0x1f8] sm:$0xf] %v4812
        %4814 = vst [vmem:[%s1218 + $0x21c] sm:$0xf] %v4640
        %v4815 = vld [vmem:[%s1218 + $0x240] sm:$0xf]
        %v4816 = vsel %vm1221, %v4647, %v4815
        %4817 = vst [vmem:[%s1218 + $0x240] sm:$0xf] %v4816
        %4818 = vst [vmem:[%s1218 + $0x264] sm:$0xf] %v4656
        %v4819 = vld [vmem:[%s1218 + $0x288] sm:$0xf]
        %v4820 = vsel %vm1221, %v4663, %v4819
        %4821 = vst [vmem:[%s1218 + $0x288] sm:$0xf] %v4820
        %4822 = vst [vmem:[%s1218 + $0x2ac] sm:$0xf] %v4672
        %v4823 = vld [vmem:[%s1218 + $0x2d0] sm:$0xf]
        %v4824 = vsel %vm1221, %v4679, %v4823
        %4825 = vst [vmem:[%s1218 + $0x2d0] sm:$0xf] %v4824
        %4826 = vst [vmem:[%s1218 + $0x2f4] sm:$0xf] %v4688
        %v4827 = vld [vmem:[%s1218 + $0x318] sm:$0xf]
        %v4828 = vsel %vm1221, %v4695, %v4827
        %4829 = vst [vmem:[%s1218 + $0x318] sm:$0xf] %v4828
        %4830 = vst [vmem:[%s1218 + $0x33c] sm:$0xf] %v4704
        %v4831 = vld [vmem:[%s1218 + $0x360] sm:$0xf]
        %v4832 = vsel %vm1221, %v4711, %v4831
        %4833 = vst [vmem:[%s1218 + $0x360] sm:$0xf] %v4832
        %4834 = vst [vmem:[%s1218 + $0x384] sm:$0xf] %v4720
        %v4835 = vld [vmem:[%s1218 + $0x3a8] sm:$0xf]
        %v4836 = vsel %vm1221, %v4727, %v4835
        %4837 = vst [vmem:[%s1218 + $0x3a8] sm:$0xf] %v4836
        %4838 = vst [vmem:[%s1218 + $0x3cc] sm:$0xf] %v4736
        %v4839 = vld [vmem:[%s1218 + $0x3f0] sm:$0xf]
        %v4840 = vsel %vm1221, %v4743, %v4839
        %4841 = vst [vmem:[%s1218 + $0x3f0] sm:$0xf] %v4840
        %4842 = vst [vmem:[%s1218 + $0x414] sm:$0xf] %v4752
        %4873 = vst [vmem:[%s1218 + $0x4] sm:$0xf] %v4483
        %4874 = vst [vmem:[%s1218 + $0x28] sm:$0xf] %v4484
        %4875 = vst [vmem:[%s1218 + $0x4c] sm:$0xf] %v4485
        %4876 = vst [vmem:[%s1218 + $0x70] sm:$0xf] %v4486
        %4877 = vst [vmem:[%s1218 + $0x94] sm:$0xf] %v4487
        %4878 = vst [vmem:[%s1218 + $0xb8] sm:$0xf] %v4488
        %4879 = vst [vmem:[%s1218 + $0xdc] sm:$0xf] %v4489
        %4880 = vst [vmem:[%s1218 + $0x100] sm:$0xf] %v4490
        %4881 = vst [vmem:[%s1218 + $0x124] sm:$0xf] %v4491
        %4882 = vst [vmem:[%s1218 + $0x148] sm:$0xf] %v4492
        %4883 = vst [vmem:[%s1218 + $0x16c] sm:$0xf] %v4493
        %4884 = vst [vmem:[%s1218 + $0x190] sm:$0xf] %v4494
        %4885 = vst [vmem:[%s1218 + $0x1b4] sm:$0xf] %v4495
        %4886 = vst [vmem:[%s1218 + $0x1d8] sm:$0xf] %v4496
        %4887 = vst [vmem:[%s1218 + $0x1fc] sm:$0xf] %v4497
        %4888 = vst [vmem:[%s1218 + $0x220] sm:$0xf] %v4498
        %4889 = vst [vmem:[%s1218 + $0x244] sm:$0xf] %v4499
        %4890 = vst [vmem:[%s1218 + $0x268] sm:$0xf] %v4500
        %4891 = vst [vmem:[%s1218 + $0x28c] sm:$0xf] %v4501
        %4892 = vst [vmem:[%s1218 + $0x2b0] sm:$0xf] %v4502
        %4893 = vst [vmem:[%s1218 + $0x2d4] sm:$0xf] %v4503
        %4894 = vst [vmem:[%s1218 + $0x2f8] sm:$0xf] %v4504
        %4895 = vst [vmem:[%s1218 + $0x31c] sm:$0xf] %v4505
        %4896 = vst [vmem:[%s1218 + $0x340] sm:$0xf] %v4506
        %4897 = vst [vmem:[%s1218 + $0x364] sm:$0xf] %v4507
        %4898 = vst [vmem:[%s1218 + $0x388] sm:$0xf] %v4508
        %4899 = vst [vmem:[%s1218 + $0x3ac] sm:$0xf] %v4509
        %4900 = vst [vmem:[%s1218 + $0x3d0] sm:$0xf] %v4510
        %4901 = vst [vmem:[%s1218 + $0x3f4] sm:$0xf] %v4511
        %4902 = vst [vmem:[%s1218 + $0x418] sm:$0xf] %v4512
        %v4903 = vrot.slane %v4514, 4
        %v4904 = vrot.slane %v4517, 5
        %v4905 = vor.u32 %v4903, %v4904
        %v4906 = vrot.slane %v4905, 4
        %v4907 = vrot.slane %v4525, 5
        %v4908 = vsel %vm1344, %v4906, %v4907
        %v4909 = vrot.slane %v4522, 4
        %v4910 = vor.u32 %v4909, %v4907
        %v4911 = vrot.slane %v4910, 4
        %v4912 = vrot.slane %v4530, 4
        %v4913 = vrot.slane %v4533, 5
        %v4914 = vor.u32 %v4912, %v4913
        %v4915 = vrot.slane %v4914, 4
        %v4916 = vrot.slane %v4541, 5
        %v4917 = vsel %vm1344, %v4915, %v4916
        %v4918 = vrot.slane %v4538, 4
        %v4919 = vor.u32 %v4918, %v4916
        %v4920 = vrot.slane %v4919, 4
        %v4921 = vrot.slane %v4546, 4
        %v4922 = vrot.slane %v4549, 5
        %v4923 = vor.u32 %v4921, %v4922
        %v4924 = vrot.slane %v4923, 4
        %v4925 = vrot.slane %v4557, 5
        %v4926 = vsel %vm1344, %v4924, %v4925
        %v4927 = vrot.slane %v4554, 4
        %v4928 = vor.u32 %v4927, %v4925
        %v4929 = vrot.slane %v4928, 4
        %v4930 = vrot.slane %v4562, 4
        %v4931 = vrot.slane %v4565, 5
        %v4932 = vor.u32 %v4930, %v4931
        %v4933 = vrot.slane %v4932, 4
        %v4934 = vrot.slane %v4573, 5
        %v4935 = vsel %vm1344, %v4933, %v4934
        %v4936 = vrot.slane %v4570, 4
        %v4937 = vor.u32 %v4936, %v4934
        %v4938 = vrot.slane %v4937, 4
        %v4939 = vrot.slane %v4578, 4
        %v4940 = vrot.slane %v4581, 5
        %v4941 = vor.u32 %v4939, %v4940
        %v4942 = vrot.slane %v4941, 4
        %v4943 = vrot.slane %v4589, 5
        %v4944 = vsel %vm1344, %v4942, %v4943
        %v4945 = vrot.slane %v4586, 4
        %v4946 = vor.u32 %v4945, %v4943
        %v4947 = vrot.slane %v4946, 4
        %v4948 = vrot.slane %v4594, 4
        %v4949 = vrot.slane %v4597, 5
        %v4950 = vor.u32 %v4948, %v4949
        %v4951 = vrot.slane %v4950, 4
        %v4952 = vrot.slane %v4605, 5
        %v4953 = vsel %vm1344, %v4951, %v4952
        %v4954 = vrot.slane %v4602, 4
        %v4955 = vor.u32 %v4954, %v4952
        %v4956 = vrot.slane %v4955, 4
        %v4957 = vrot.slane %v4610, 4
        %v4958 = vrot.slane %v4613, 5
        %v4959 = vor.u32 %v4957, %v4958
        %v4960 = vrot.slane %v4959, 4
        %v4961 = vrot.slane %v4621, 5
        %v4962 = vsel %vm1344, %v4960, %v4961
        %v4963 = vrot.slane %v4618, 4
        %v4964 = vor.u32 %v4963, %v4961
        %v4965 = vrot.slane %v4964, 4
        %v4966 = vrot.slane %v4626, 4
        %v4967 = vrot.slane %v4629, 5
        %v4968 = vor.u32 %v4966, %v4967
        %v4969 = vrot.slane %v4968, 4
        %v4970 = vrot.slane %v4637, 5
        %v4971 = vsel %vm1344, %v4969, %v4970
        %v4972 = vrot.slane %v4634, 4
        %v4973 = vor.u32 %v4972, %v4970
        %v4974 = vrot.slane %v4973, 4
        %v4975 = vrot.slane %v4642, 4
        %v4976 = vrot.slane %v4645, 5
        %v4977 = vor.u32 %v4975, %v4976
        %v4978 = vrot.slane %v4977, 4
        %v4979 = vrot.slane %v4653, 5
        %v4980 = vsel %vm1344, %v4978, %v4979
        %v4981 = vrot.slane %v4650, 4
        %v4982 = vor.u32 %v4981, %v4979
        %v4983 = vrot.slane %v4982, 4
        %v4984 = vrot.slane %v4658, 4
        %v4985 = vrot.slane %v4661, 5
        %v4986 = vor.u32 %v4984, %v4985
        %v4987 = vrot.slane %v4986, 4
        %v4988 = vrot.slane %v4669, 5
        %v4989 = vsel %vm1344, %v4987, %v4988
        %v4990 = vrot.slane %v4666, 4
        %v4991 = vor.u32 %v4990, %v4988
        %v4992 = vrot.slane %v4991, 4
        %v4993 = vrot.slane %v4674, 4
        %v4994 = vrot.slane %v4677, 5
        %v4995 = vor.u32 %v4993, %v4994
        %v4996 = vrot.slane %v4995, 4
        %v4997 = vrot.slane %v4685, 5
        %v4998 = vsel %vm1344, %v4996, %v4997
        %v4999 = vrot.slane %v4682, 4
        %v5000 = vor.u32 %v4999, %v4997
        %v5001 = vrot.slane %v5000, 4
        %v5002 = vrot.slane %v4690, 4
        %v5003 = vrot.slane %v4693, 5
        %v5004 = vor.u32 %v5002, %v5003
        %v5005 = vrot.slane %v5004, 4
        %v5006 = vrot.slane %v4701, 5
        %v5007 = vsel %vm1344, %v5005, %v5006
        %v5008 = vrot.slane %v4698, 4
        %v5009 = vor.u32 %v5008, %v5006
        %v5010 = vrot.slane %v5009, 4
        %v5011 = vrot.slane %v4706, 4
        %v5012 = vrot.slane %v4709, 5
        %v5013 = vor.u32 %v5011, %v5012
        %v5014 = vrot.slane %v5013, 4
        %v5015 = vrot.slane %v4717, 5
        %v5016 = vsel %vm1344, %v5014, %v5015
        %v5017 = vrot.slane %v4714, 4
        %v5018 = vor.u32 %v5017, %v5015
        %v5019 = vrot.slane %v5018, 4
        %v5020 = vrot.slane %v4722, 4
        %v5021 = vrot.slane %v4725, 5
        %v5022 = vor.u32 %v5020, %v5021
        %v5023 = vrot.slane %v5022, 4
        %v5024 = vrot.slane %v4733, 5
        %v5025 = vsel %vm1344, %v5023, %v5024
        %v5026 = vrot.slane %v4730, 4
        %v5027 = vor.u32 %v5026, %v5024
        %v5028 = vrot.slane %v5027, 4
        %v5029 = vrot.slane %v4738, 4
        %v5030 = vrot.slane %v4741, 5
        %v5031 = vor.u32 %v5029, %v5030
        %v5032 = vrot.slane %v5031, 4
        %v5033 = vrot.slane %v4749, 5
        %v5034 = vsel %vm1344, %v5032, %v5033
        %v5035 = vrot.slane %v4746, 4
        %v5036 = vor.u32 %v5035, %v5033
        %v5037 = vrot.slane %v5036, 4
        %5068 = vst [vmem:[%s1218 + $0x8] sm:$0xf] %v4908
        %v5069 = vld [vmem:[%s1218 + $0x2c] sm:$0xf]
        %v5070 = vsel %vm1511, %v4911, %v5069
        %5071 = vst [vmem:[%s1218 + $0x2c] sm:$0xf] %v5070
        %5072 = vst [vmem:[%s1218 + $0x50] sm:$0xf] %v4917
        %v5073 = vld [vmem:[%s1218 + $0x74] sm:$0xf]
        %v5074 = vsel %vm1511, %v4920, %v5073
        %5075 = vst [vmem:[%s1218 + $0x74] sm:$0xf] %v5074
        %5076 = vst [vmem:[%s1218 + $0x98] sm:$0xf] %v4926
        %v5077 = vld [vmem:[%s1218 + $0xbc] sm:$0xf]
        %v5078 = vsel %vm1511, %v4929, %v5077
        %5079 = vst [vmem:[%s1218 + $0xbc] sm:$0xf] %v5078
        %5080 = vst [vmem:[%s1218 + $0xe0] sm:$0xf] %v4935
        %v5081 = vld [vmem:[%s1218 + $0x104] sm:$0xf]
        %v5082 = vsel %vm1511, %v4938, %v5081
        %5083 = vst [vmem:[%s1218 + $0x104] sm:$0xf] %v5082
        %5084 = vst [vmem:[%s1218 + $0x128] sm:$0xf] %v4944
        %v5085 = vld [vmem:[%s1218 + $0x14c] sm:$0xf]
        %v5086 = vsel %vm1511, %v4947, %v5085
        %5087 = vst [vmem:[%s1218 + $0x14c] sm:$0xf] %v5086
        %5088 = vst [vmem:[%s1218 + $0x170] sm:$0xf] %v4953
        %v5089 = vld [vmem:[%s1218 + $0x194] sm:$0xf]
        %v5090 = vsel %vm1511, %v4956, %v5089
        %5091 = vst [vmem:[%s1218 + $0x194] sm:$0xf] %v5090
        %5092 = vst [vmem:[%s1218 + $0x1b8] sm:$0xf] %v4962
        %v5093 = vld [vmem:[%s1218 + $0x1dc] sm:$0xf]
        %v5094 = vsel %vm1511, %v4965, %v5093
        %5095 = vst [vmem:[%s1218 + $0x1dc] sm:$0xf] %v5094
        %5096 = vst [vmem:[%s1218 + $0x200] sm:$0xf] %v4971
        %v5097 = vld [vmem:[%s1218 + $0x224] sm:$0xf]
        %v5098 = vsel %vm1511, %v4974, %v5097
        %5099 = vst [vmem:[%s1218 + $0x224] sm:$0xf] %v5098
        %5100 = vst [vmem:[%s1218 + $0x248] sm:$0xf] %v4980
        %v5101 = vld [vmem:[%s1218 + $0x26c] sm:$0xf]
        %v5102 = vsel %vm1511, %v4983, %v5101
        %5103 = vst [vmem:[%s1218 + $0x26c] sm:$0xf] %v5102
        %5104 = vst [vmem:[%s1218 + $0x290] sm:$0xf] %v4989
        %v5105 = vld [vmem:[%s1218 + $0x2b4] sm:$0xf]
        %v5106 = vsel %vm1511, %v4992, %v5105
        %5107 = vst [vmem:[%s1218 + $0x2b4] sm:$0xf] %v5106
        %5108 = vst [vmem:[%s1218 + $0x2d8] sm:$0xf] %v4998
        %v5109 = vld [vmem:[%s1218 + $0x2fc] sm:$0xf]
        %v5110 = vsel %vm1511, %v5001, %v5109
        %5111 = vst [vmem:[%s1218 + $0x2fc] sm:$0xf] %v5110
        %5112 = vst [vmem:[%s1218 + $0x320] sm:$0xf] %v5007
        %v5113 = vld [vmem:[%s1218 + $0x344] sm:$0xf]
        %v5114 = vsel %vm1511, %v5010, %v5113
        %5115 = vst [vmem:[%s1218 + $0x344] sm:$0xf] %v5114
        %5116 = vst [vmem:[%s1218 + $0x368] sm:$0xf] %v5016
        %v5117 = vld [vmem:[%s1218 + $0x38c] sm:$0xf]
        %v5118 = vsel %vm1511, %v5019, %v5117
        %5119 = vst [vmem:[%s1218 + $0x38c] sm:$0xf] %v5118
        %5120 = vst [vmem:[%s1218 + $0x3b0] sm:$0xf] %v5025
        %v5121 = vld [vmem:[%s1218 + $0x3d4] sm:$0xf]
        %v5122 = vsel %vm1511, %v5028, %v5121
        %5123 = vst [vmem:[%s1218 + $0x3d4] sm:$0xf] %v5122
        %5124 = vst [vmem:[%s1218 + $0x3f8] sm:$0xf] %v5034
        %v5125 = vld [vmem:[%s1218 + $0x41c] sm:$0xf]
        %v5126 = vsel %vm1511, %v5037, %v5125
        %5127 = vst [vmem:[%s1218 + $0x41c] sm:$0xf] %v5126
        %v5129 = vunpack.c.l.b16 %v4437
        %v5130 = vunpack.c.h.b16 %v4437
        %v5131 = vpack.c.b16 %v5129, %v5129
        %v5132 = vpack.c.b16 %v5130, %v5130
        %v5134 = vshrl.u32 %v5131, 16
        %v5136 = vrot.slane %v5134, 7
        %v5137 = vshll.u32 %v5131, 16
        %v5139 = vor.u32 %v5136, %v5137
        %v5140 = vrot.slane %v5136, 4
        %v5142 = vshrl.u32 %v5132, 16
        %v5144 = vrot.slane %v5142, 7
        %v5145 = vshll.u32 %v5132, 16
        %v5147 = vor.u32 %v5144, %v5145
        %v5148 = vsel %vm947, %v5140, %v5147
        %v5151 = vld [vmem:[#allocation2 + $0xc] sm:$0xf]
        %v5152 = vsel %vm1221, %v4519, %v5151
        %5153 = vst [vmem:[#allocation2 + $0xc] sm:$0xf] %v5152
        %5154 = vst [vmem:[#allocation2 + $0x30] sm:$0xf] %v4528
        %v5155 = vld [vmem:[#allocation2 + $0x54] sm:$0xf]
        %v5156 = vsel %vm1221, %v4535, %v5155
        %5157 = vst [vmem:[#allocation2 + $0x54] sm:$0xf] %v5156
        %5158 = vst [vmem:[#allocation2 + $0x78] sm:$0xf] %v4544
        %v5159 = vld [vmem:[#allocation2 + $0x9c] sm:$0xf]
        %v5160 = vsel %vm1221, %v4551, %v5159
        %5161 = vst [vmem:[#allocation2 + $0x9c] sm:$0xf] %v5160
        %5162 = vst [vmem:[#allocation2 + $0xc0] sm:$0xf] %v4560
        %v5163 = vld [vmem:[#allocation2 + $0xe4] sm:$0xf]
        %v5164 = vsel %vm1221, %v4567, %v5163
        %5165 = vst [vmem:[#allocation2 + $0xe4] sm:$0xf] %v5164
        %5166 = vst [vmem:[#allocation2 + $0x108] sm:$0xf] %v4576
        %v5167 = vld [vmem:[#allocation2 + $0x12c] sm:$0xf]
        %v5168 = vsel %vm1221, %v4583, %v5167
        %5169 = vst [vmem:[#allocation2 + $0x12c] sm:$0xf] %v5168
        %5170 = vst [vmem:[#allocation2 + $0x150] sm:$0xf] %v4592
        %v5171 = vld [vmem:[#allocation2 + $0x174] sm:$0xf]
        %v5172 = vsel %vm1221, %v4599, %v5171
        %5173 = vst [vmem:[#allocation2 + $0x174] sm:$0xf] %v5172
        %5174 = vst [vmem:[#allocation2 + $0x198] sm:$0xf] %v4608
        %v5175 = vld [vmem:[#allocation2 + $0x1bc] sm:$0xf]
        %v5176 = vsel %vm1221, %v4615, %v5175
        %5177 = vst [vmem:[#allocation2 + $0x1bc] sm:$0xf] %v5176
        %5178 = vst [vmem:[#allocation2 + $0x1e0] sm:$0xf] %v4624
        %v5179 = vld [vmem:[#allocation2 + $0x204] sm:$0xf]
        %v5180 = vsel %vm1221, %v4631, %v5179
        %5181 = vst [vmem:[#allocation2 + $0x204] sm:$0xf] %v5180
        %5182 = vst [vmem:[#allocation2 + $0x228] sm:$0xf] %v4640
        %v5183 = vld [vmem:[#allocation2 + $0x24c] sm:$0xf]
        %v5184 = vsel %vm1221, %v4647, %v5183
        %5185 = vst [vmem:[#allocation2 + $0x24c] sm:$0xf] %v5184
        %5186 = vst [vmem:[#allocation2 + $0x270] sm:$0xf] %v4656
        %v5187 = vld [vmem:[#allocation2 + $0x294] sm:$0xf]
        %v5188 = vsel %vm1221, %v4663, %v5187
        %5189 = vst [vmem:[#allocation2 + $0x294] sm:$0xf] %v5188
        %5190 = vst [vmem:[#allocation2 + $0x2b8] sm:$0xf] %v4672
        %v5191 = vld [vmem:[#allocation2 + $0x2dc] sm:$0xf]
        %v5192 = vsel %vm1221, %v4679, %v5191
        %5193 = vst [vmem:[#allocation2 + $0x2dc] sm:$0xf] %v5192
        %5194 = vst [vmem:[#allocation2 + $0x300] sm:$0xf] %v4688
        %v5195 = vld [vmem:[#allocation2 + $0x324] sm:$0xf]
        %v5196 = vsel %vm1221, %v4695, %v5195
        %5197 = vst [vmem:[#allocation2 + $0x324] sm:$0xf] %v5196
        %5198 = vst [vmem:[#allocation2 + $0x348] sm:$0xf] %v4704
        %v5199 = vld [vmem:[#allocation2 + $0x36c] sm:$0xf]
        %v5200 = vsel %vm1221, %v4711, %v5199
        %5201 = vst [vmem:[#allocation2 + $0x36c] sm:$0xf] %v5200
        %5202 = vst [vmem:[#allocation2 + $0x390] sm:$0xf] %v4720
        %v5203 = vld [vmem:[#allocation2 + $0x3b4] sm:$0xf]
        %v5204 = vsel %vm1221, %v4727, %v5203
        %5205 = vst [vmem:[#allocation2 + $0x3b4] sm:$0xf] %v5204
        %5206 = vst [vmem:[#allocation2 + $0x3d8] sm:$0xf] %v4736
        %v5207 = vld [vmem:[#allocation2 + $0x3fc] sm:$0xf]
        %v5208 = vsel %vm1221, %v4743, %v5207
        %5209 = vst [vmem:[#allocation2 + $0x3fc] sm:$0xf] %v5208
        %5210 = vst [vmem:[#allocation2 + $0x420] sm:$0xf] %v4752
        %v5211 = vld [vmem:[#allocation2 + $0x444] sm:$0xf]
        %v5212 = vsel %vm1221, %v5139, %v5211
        %5213 = vst [vmem:[#allocation2 + $0x444] sm:$0xf] %v5212
        %5214 = vst [vmem:[#allocation2 + $0x468] sm:$0xf] %v5148
        %5217 = vst [vmem:[#allocation2 + $0x10] sm:$0xf] %v4483
        %5218 = vst [vmem:[#allocation2 + $0x34] sm:$0xf] %v4484
        %5219 = vst [vmem:[#allocation2 + $0x58] sm:$0xf] %v4485
        %5220 = vst [vmem:[#allocation2 + $0x7c] sm:$0xf] %v4486
        %5221 = vst [vmem:[#allocation2 + $0xa0] sm:$0xf] %v4487
        %5222 = vst [vmem:[#allocation2 + $0xc4] sm:$0xf] %v4488
        %5223 = vst [vmem:[#allocation2 + $0xe8] sm:$0xf] %v4489
        %5224 = vst [vmem:[#allocation2 + $0x10c] sm:$0xf] %v4490
        %5225 = vst [vmem:[#allocation2 + $0x130] sm:$0xf] %v4491
        %5226 = vst [vmem:[#allocation2 + $0x154] sm:$0xf] %v4492
        %5227 = vst [vmem:[#allocation2 + $0x178] sm:$0xf] %v4493
        %5228 = vst [vmem:[#allocation2 + $0x19c] sm:$0xf] %v4494
        %5229 = vst [vmem:[#allocation2 + $0x1c0] sm:$0xf] %v4495
        %5230 = vst [vmem:[#allocation2 + $0x1e4] sm:$0xf] %v4496
        %5231 = vst [vmem:[#allocation2 + $0x208] sm:$0xf] %v4497
        %5232 = vst [vmem:[#allocation2 + $0x22c] sm:$0xf] %v4498
        %5233 = vst [vmem:[#allocation2 + $0x250] sm:$0xf] %v4499
        %5234 = vst [vmem:[#allocation2 + $0x274] sm:$0xf] %v4500
        %5235 = vst [vmem:[#allocation2 + $0x298] sm:$0xf] %v4501
        %5236 = vst [vmem:[#allocation2 + $0x2bc] sm:$0xf] %v4502
        %5237 = vst [vmem:[#allocation2 + $0x2e0] sm:$0xf] %v4503
        %5238 = vst [vmem:[#allocation2 + $0x304] sm:$0xf] %v4504
        %5239 = vst [vmem:[#allocation2 + $0x328] sm:$0xf] %v4505
        %5240 = vst [vmem:[#allocation2 + $0x34c] sm:$0xf] %v4506
        %5241 = vst [vmem:[#allocation2 + $0x370] sm:$0xf] %v4507
        %5242 = vst [vmem:[#allocation2 + $0x394] sm:$0xf] %v4508
        %5243 = vst [vmem:[#allocation2 + $0x3b8] sm:$0xf] %v4509
        %5244 = vst [vmem:[#allocation2 + $0x3dc] sm:$0xf] %v4510
        %5245 = vst [vmem:[#allocation2 + $0x400] sm:$0xf] %v4511
        %5246 = vst [vmem:[#allocation2 + $0x424] sm:$0xf] %v4512
        %5247 = vst [vmem:[#allocation2 + $0x448] sm:$0xf] %v5131
        %5248 = vst [vmem:[#allocation2 + $0x46c] sm:$0xf] %v5132
        %v5249 = vrot.slane %v5134, 4
        %v5250 = vrot.slane %v5137, 5
        %v5251 = vor.u32 %v5249, %v5250
        %v5252 = vrot.slane %v5251, 4
        %v5253 = vrot.slane %v5145, 5
        %v5254 = vsel %vm1344, %v5252, %v5253
        %v5255 = vrot.slane %v5142, 4
        %v5256 = vor.u32 %v5255, %v5253
        %v5257 = vrot.slane %v5256, 4
        %5260 = vst [vmem:[#allocation2 + $0x14] sm:$0xf] %v4908
        %v5261 = vld [vmem:[#allocation2 + $0x38] sm:$0xf]
        %v5262 = vsel %vm1511, %v4911, %v5261
        %5263 = vst [vmem:[#allocation2 + $0x38] sm:$0xf] %v5262
        %5264 = vst [vmem:[#allocation2 + $0x5c] sm:$0xf] %v4917
        %v5265 = vld [vmem:[#allocation2 + $0x80] sm:$0xf]
        %v5266 = vsel %vm1511, %v4920, %v5265
        %5267 = vst [vmem:[#allocation2 + $0x80] sm:$0xf] %v5266
        %5268 = vst [vmem:[#allocation2 + $0xa4] sm:$0xf] %v4926
        %v5269 = vld [vmem:[#allocation2 + $0xc8] sm:$0xf]
        %v5270 = vsel %vm1511, %v4929, %v5269
        %5271 = vst [vmem:[#allocation2 + $0xc8] sm:$0xf] %v5270
        %5272 = vst [vmem:[#allocation2 + $0xec] sm:$0xf] %v4935
        %v5273 = vld [vmem:[#allocation2 + $0x110] sm:$0xf]
        %v5274 = vsel %vm1511, %v4938, %v5273
        %5275 = vst [vmem:[#allocation2 + $0x110] sm:$0xf] %v5274
        %5276 = vst [vmem:[#allocation2 + $0x134] sm:$0xf] %v4944
        %v5277 = vld [vmem:[#allocation2 + $0x158] sm:$0xf]
        %v5278 = vsel %vm1511, %v4947, %v5277
        %5279 = vst [vmem:[#allocation2 + $0x158] sm:$0xf] %v5278
        %5280 = vst [vmem:[#allocation2 + $0x17c] sm:$0xf] %v4953
        %v5281 = vld [vmem:[#allocation2 + $0x1a0] sm:$0xf]
        %v5282 = vsel %vm1511, %v4956, %v5281
        %5283 = vst [vmem:[#allocation2 + $0x1a0] sm:$0xf] %v5282
        %5284 = vst [vmem:[#allocation2 + $0x1c4] sm:$0xf] %v4962
        %v5285 = vld [vmem:[#allocation2 + $0x1e8] sm:$0xf]
        %v5286 = vsel %vm1511, %v4965, %v5285
        %5287 = vst [vmem:[#allocation2 + $0x1e8] sm:$0xf] %v5286
        %5288 = vst [vmem:[#allocation2 + $0x20c] sm:$0xf] %v4971
        %v5289 = vld [vmem:[#allocation2 + $0x230] sm:$0xf]
        %v5290 = vsel %vm1511, %v4974, %v5289
        %5291 = vst [vmem:[#allocation2 + $0x230] sm:$0xf] %v5290
        %5292 = vst [vmem:[#allocation2 + $0x254] sm:$0xf] %v4980
        %v5293 = vld [vmem:[#allocation2 + $0x278] sm:$0xf]
        %v5294 = vsel %vm1511, %v4983, %v5293
        %5295 = vst [vmem:[#allocation2 + $0x278] sm:$0xf] %v5294
        %5296 = vst [vmem:[#allocation2 + $0x29c] sm:$0xf] %v4989
        %v5297 = vld [vmem:[#allocation2 + $0x2c0] sm:$0xf]
        %v5298 = vsel %vm1511, %v4992, %v5297
        %5299 = vst [vmem:[#allocation2 + $0x2c0] sm:$0xf] %v5298
        %5300 = vst [vmem:[#allocation2 + $0x2e4] sm:$0xf] %v4998
        %v5301 = vld [vmem:[#allocation2 + $0x308] sm:$0xf]
        %v5302 = vsel %vm1511, %v5001, %v5301
        %5303 = vst [vmem:[#allocation2 + $0x308] sm:$0xf] %v5302
        %5304 = vst [vmem:[#allocation2 + $0x32c] sm:$0xf] %v5007
        %v5305 = vld [vmem:[#allocation2 + $0x350] sm:$0xf]
        %v5306 = vsel %vm1511, %v5010, %v5305
        %5307 = vst [vmem:[#allocation2 + $0x350] sm:$0xf] %v5306
        %5308 = vst [vmem:[#allocation2 + $0x374] sm:$0xf] %v5016
        %v5309 = vld [vmem:[#allocation2 + $0x398] sm:$0xf]
        %v5310 = vsel %vm1511, %v5019, %v5309
        %5311 = vst [vmem:[#allocation2 + $0x398] sm:$0xf] %v5310
        %5312 = vst [vmem:[#allocation2 + $0x3bc] sm:$0xf] %v5025
        %v5313 = vld [vmem:[#allocation2 + $0x3e0] sm:$0xf]
        %v5314 = vsel %vm1511, %v5028, %v5313
        %5315 = vst [vmem:[#allocation2 + $0x3e0] sm:$0xf] %v5314
        %5316 = vst [vmem:[#allocation2 + $0x404] sm:$0xf] %v5034
        %v5317 = vld [vmem:[#allocation2 + $0x428] sm:$0xf]
        %v5318 = vsel %vm1511, %v5037, %v5317
        %5319 = vst [vmem:[#allocation2 + $0x428] sm:$0xf] %v5318
        %5320 = vst [vmem:[#allocation2 + $0x44c] sm:$0xf] %v5254
        %v5321 = vld [vmem:[#allocation2 + $0x470] sm:$0xf]
        %v5322 = vsel %vm1511, %v5257, %v5321
        %5323 = vst [vmem:[#allocation2 + $0x470] sm:$0xf] %v5322
        %v5324 = vld [vmem:[#allocation2 + $0x18] sm:$0xf]
        %v5325 = vsel %vm1221, %v4535, %v5324
        %5326 = vst [vmem:[#allocation2 + $0x18] sm:$0xf] %v5325
        %5327 = vst [vmem:[#allocation2 + $0x3c] sm:$0xf] %v4544
        %v5328 = vld [vmem:[#allocation2 + $0x60] sm:$0xf]
        %v5329 = vsel %vm1221, %v4551, %v5328
        %5330 = vst [vmem:[#allocation2 + $0x60] sm:$0xf] %v5329
        %5331 = vst [vmem:[#allocation2 + $0x84] sm:$0xf] %v4560
        %v5332 = vld [vmem:[#allocation2 + $0xa8] sm:$0xf]
        %v5333 = vsel %vm1221, %v4567, %v5332
        %5334 = vst [vmem:[#allocation2 + $0xa8] sm:$0xf] %v5333
        %5335 = vst [vmem:[#allocation2 + $0xcc] sm:$0xf] %v4576
        %v5336 = vld [vmem:[#allocation2 + $0xf0] sm:$0xf]
        %v5337 = vsel %vm1221, %v4583, %v5336
        %5338 = vst [vmem:[#allocation2 + $0xf0] sm:$0xf] %v5337
        %5339 = vst [vmem:[#allocation2 + $0x114] sm:$0xf] %v4592
        %v5340 = vld [vmem:[#allocation2 + $0x138] sm:$0xf]
        %v5341 = vsel %vm1221, %v4599, %v5340
        %5342 = vst [vmem:[#allocation2 + $0x138] sm:$0xf] %v5341
        %5343 = vst [vmem:[#allocation2 + $0x15c] sm:$0xf] %v4608
        %v5344 = vld [vmem:[#allocation2 + $0x180] sm:$0xf]
        %v5345 = vsel %vm1221, %v4615, %v5344
        %5346 = vst [vmem:[#allocation2 + $0x180] sm:$0xf] %v5345
        %5347 = vst [vmem:[#allocation2 + $0x1a4] sm:$0xf] %v4624
        %v5348 = vld [vmem:[#allocation2 + $0x1c8] sm:$0xf]
        %v5349 = vsel %vm1221, %v4631, %v5348
        %5350 = vst [vmem:[#allocation2 + $0x1c8] sm:$0xf] %v5349
        %5351 = vst [vmem:[#allocation2 + $0x1ec] sm:$0xf] %v4640
        %v5352 = vld [vmem:[#allocation2 + $0x210] sm:$0xf]
        %v5353 = vsel %vm1221, %v4647, %v5352
        %5354 = vst [vmem:[#allocation2 + $0x210] sm:$0xf] %v5353
        %5355 = vst [vmem:[#allocation2 + $0x234] sm:$0xf] %v4656
        %v5356 = vld [vmem:[#allocation2 + $0x258] sm:$0xf]
        %v5357 = vsel %vm1221, %v4663, %v5356
        %5358 = vst [vmem:[#allocation2 + $0x258] sm:$0xf] %v5357
        %5359 = vst [vmem:[#allocation2 + $0x27c] sm:$0xf] %v4672
        %v5360 = vld [vmem:[#allocation2 + $0x2a0] sm:$0xf]
        %v5361 = vsel %vm1221, %v4679, %v5360
        %5362 = vst [vmem:[#allocation2 + $0x2a0] sm:$0xf] %v5361
        %5363 = vst [vmem:[#allocation2 + $0x2c4] sm:$0xf] %v4688
        %v5364 = vld [vmem:[#allocation2 + $0x2e8] sm:$0xf]
        %v5365 = vsel %vm1221, %v4695, %v5364
        %5366 = vst [vmem:[#allocation2 + $0x2e8] sm:$0xf] %v5365
        %5367 = vst [vmem:[#allocation2 + $0x30c] sm:$0xf] %v4704
        %v5368 = vld [vmem:[#allocation2 + $0x330] sm:$0xf]
        %v5369 = vsel %vm1221, %v4711, %v5368
        %5370 = vst [vmem:[#allocation2 + $0x330] sm:$0xf] %v5369
        %5371 = vst [vmem:[#allocation2 + $0x354] sm:$0xf] %v4720
        %v5372 = vld [vmem:[#allocation2 + $0x378] sm:$0xf]
        %v5373 = vsel %vm1221, %v4727, %v5372
        %5374 = vst [vmem:[#allocation2 + $0x378] sm:$0xf] %v5373
        %5375 = vst [vmem:[#allocation2 + $0x39c] sm:$0xf] %v4736
        %v5376 = vld [vmem:[#allocation2 + $0x3c0] sm:$0xf]
        %v5377 = vsel %vm1221, %v4743, %v5376
        %5378 = vst [vmem:[#allocation2 + $0x3c0] sm:$0xf] %v5377
        %5379 = vst [vmem:[#allocation2 + $0x3e4] sm:$0xf] %v4752
        %v5380 = vld [vmem:[#allocation2 + $0x408] sm:$0xf]
        %v5381 = vsel %vm1221, %v5139, %v5380
        %5382 = vst [vmem:[#allocation2 + $0x408] sm:$0xf] %v5381
        %5383 = vst [vmem:[#allocation2 + $0x42c] sm:$0xf] %v5148
        %5384 = vst [vmem:[#allocation2 + $0x1c] sm:$0xf] %v4485
        %5385 = vst [vmem:[#allocation2 + $0x40] sm:$0xf] %v4486
        %5386 = vst [vmem:[#allocation2 + $0x64] sm:$0xf] %v4487
        %5387 = vst [vmem:[#allocation2 + $0x88] sm:$0xf] %v4488
        %5388 = vst [vmem:[#allocation2 + $0xac] sm:$0xf] %v4489
        %5389 = vst [vmem:[#allocation2 + $0xd0] sm:$0xf] %v4490
        %5390 = vst [vmem:[#allocation2 + $0xf4] sm:$0xf] %v4491
        %5391 = vst [vmem:[#allocation2 + $0x118] sm:$0xf] %v4492
        %5392 = vst [vmem:[#allocation2 + $0x13c] sm:$0xf] %v4493
        %5393 = vst [vmem:[#allocation2 + $0x160] sm:$0xf] %v4494
        %5394 = vst [vmem:[#allocation2 + $0x184] sm:$0xf] %v4495
        %5395 = vst [vmem:[#allocation2 + $0x1a8] sm:$0xf] %v4496
        %5396 = vst [vmem:[#allocation2 + $0x1cc] sm:$0xf] %v4497
        %5397 = vst [vmem:[#allocation2 + $0x1f0] sm:$0xf] %v4498
        %5398 = vst [vmem:[#allocation2 + $0x214] sm:$0xf] %v4499
        %5399 = vst [vmem:[#allocation2 + $0x238] sm:$0xf] %v4500
        %5400 = vst [vmem:[#allocation2 + $0x25c] sm:$0xf] %v4501
        %5401 = vst [vmem:[#allocation2 + $0x280] sm:$0xf] %v4502
        %5402 = vst [vmem:[#allocation2 + $0x2a4] sm:$0xf] %v4503
        %5403 = vst [vmem:[#allocation2 + $0x2c8] sm:$0xf] %v4504
        %5404 = vst [vmem:[#allocation2 + $0x2ec] sm:$0xf] %v4505
        %5405 = vst [vmem:[#allocation2 + $0x310] sm:$0xf] %v4506
        %5406 = vst [vmem:[#allocation2 + $0x334] sm:$0xf] %v4507
        %5407 = vst [vmem:[#allocation2 + $0x358] sm:$0xf] %v4508
        %5408 = vst [vmem:[#allocation2 + $0x37c] sm:$0xf] %v4509
        %5409 = vst [vmem:[#allocation2 + $0x3a0] sm:$0xf] %v4510
        %5410 = vst [vmem:[#allocation2 + $0x3c4] sm:$0xf] %v4511
        %5411 = vst [vmem:[#allocation2 + $0x3e8] sm:$0xf] %v4512
        %5412 = vst [vmem:[#allocation2 + $0x40c] sm:$0xf] %v5131
        %5413 = vst [vmem:[#allocation2 + $0x430] sm:$0xf] %v5132
        %5414 = vst [vmem:[#allocation2 + $0x20] sm:$0xf] %v4917
        %v5415 = vld [vmem:[#allocation2 + $0x44] sm:$0xf]
        %v5416 = vsel %vm1511, %v4920, %v5415
        %5417 = vst [vmem:[#allocation2 + $0x44] sm:$0xf] %v5416
        %5418 = vst [vmem:[#allocation2 + $0x68] sm:$0xf] %v4926
        %v5419 = vld [vmem:[#allocation2 + $0x8c] sm:$0xf]
        %v5420 = vsel %vm1511, %v4929, %v5419
        %5421 = vst [vmem:[#allocation2 + $0x8c] sm:$0xf] %v5420
        %5422 = vst [vmem:[#allocation2 + $0xb0] sm:$0xf] %v4935
        %v5423 = vld [vmem:[#allocation2 + $0xd4] sm:$0xf]
        %v5424 = vsel %vm1511, %v4938, %v5423
        %5425 = vst [vmem:[#allocation2 + $0xd4] sm:$0xf] %v5424
        %5426 = vst [vmem:[#allocation2 + $0xf8] sm:$0xf] %v4944
        %v5427 = vld [vmem:[#allocation2 + $0x11c] sm:$0xf]
        %v5428 = vsel %vm1511, %v4947, %v5427
        %5429 = vst [vmem:[#allocation2 + $0x11c] sm:$0xf] %v5428
        %5430 = vst [vmem:[#allocation2 + $0x140] sm:$0xf] %v4953
        %v5431 = vld [vmem:[#allocation2 + $0x164] sm:$0xf]
        %v5432 = vsel %vm1511, %v4956, %v5431
        %5433 = vst [vmem:[#allocation2 + $0x164] sm:$0xf] %v5432
        %5434 = vst [vmem:[#allocation2 + $0x188] sm:$0xf] %v4962
        %v5435 = vld [vmem:[#allocation2 + $0x1ac] sm:$0xf]
        %v5436 = vsel %vm1511, %v4965, %v5435
        %5437 = vst [vmem:[#allocation2 + $0x1ac] sm:$0xf] %v5436
        %5438 = vst [vmem:[#allocation2 + $0x1d0] sm:$0xf] %v4971
        %v5439 = vld [vmem:[#allocation2 + $0x1f4] sm:$0xf]
        %v5440 = vsel %vm1511, %v4974, %v5439
        %5441 = vst [vmem:[#allocation2 + $0x1f4] sm:$0xf] %v5440
        %5442 = vst [vmem:[#allocation2 + $0x218] sm:$0xf] %v4980
        %v5443 = vld [vmem:[#allocation2 + $0x23c] sm:$0xf]
        %v5444 = vsel %vm1511, %v4983, %v5443
        %5445 = vst [vmem:[#allocation2 + $0x23c] sm:$0xf] %v5444
        %5446 = vst [vmem:[#allocation2 + $0x260] sm:$0xf] %v4989
        %v5447 = vld [vmem:[#allocation2 + $0x284] sm:$0xf]
        %v5448 = vsel %vm1511, %v4992, %v5447
        %5449 = vst [vmem:[#allocation2 + $0x284] sm:$0xf] %v5448
        %5450 = vst [vmem:[#allocation2 + $0x2a8] sm:$0xf] %v4998
        %v5451 = vld [vmem:[#allocation2 + $0x2cc] sm:$0xf]
        %v5452 = vsel %vm1511, %v5001, %v5451
        %5453 = vst [vmem:[#allocation2 + $0x2cc] sm:$0xf] %v5452
        %5454 = vst [vmem:[#allocation2 + $0x2f0] sm:$0xf] %v5007
        %v5455 = vld [vmem:[#allocation2 + $0x314] sm:$0xf]
        %v5456 = vsel %vm1511, %v5010, %v5455
        %5457 = vst [vmem:[#allocation2 + $0x314] sm:$0xf] %v5456
        %5458 = vst [vmem:[#allocation2 + $0x338] sm:$0xf] %v5016
        %v5459 = vld [vmem:[#allocation2 + $0x35c] sm:$0xf]
        %v5460 = vsel %vm1511, %v5019, %v5459
        %5461 = vst [vmem:[#allocation2 + $0x35c] sm:$0xf] %v5460
        %5462 = vst [vmem:[#allocation2 + $0x380] sm:$0xf] %v5025
        %v5463 = vld [vmem:[#allocation2 + $0x3a4] sm:$0xf]
        %v5464 = vsel %vm1511, %v5028, %v5463
        %5465 = vst [vmem:[#allocation2 + $0x3a4] sm:$0xf] %v5464
        %5466 = vst [vmem:[#allocation2 + $0x3c8] sm:$0xf] %v5034
        %v5467 = vld [vmem:[#allocation2 + $0x3ec] sm:$0xf]
        %v5468 = vsel %vm1511, %v5037, %v5467
        %5469 = vst [vmem:[#allocation2 + $0x3ec] sm:$0xf] %v5468
        %5470 = vst [vmem:[#allocation2 + $0x410] sm:$0xf] %v5254
        %v5471 = vld [vmem:[#allocation2 + $0x434] sm:$0xf]
        %v5472 = vsel %vm1511, %v5257, %v5471
        %5473 = vst [vmem:[#allocation2 + $0x434] sm:$0xf] %v5472
        %v5474 = vld [vmem:[#allocation2] sm:$0xff]
        %v5475 = vld [vmem:[#allocation2 + $0x8] sm:$0xff]
        %v5476 = vld [vmem:[#allocation2 + $0x10] sm:$0xff]
        %v5477 = vld [vmem:[#allocation2 + $0x18] sm:$0xff]
        %v5478 = vld [vmem:[#allocation2 + $0x20] sm:$0xf]
        %v5479 = vld [vmem:[#allocation2 + $0x24] sm:$0xff]
        %v5480 = vld [vmem:[#allocation2 + $0x2c] sm:$0xff]
        %v5481 = vld [vmem:[#allocation2 + $0x34] sm:$0xff]
        %v5482 = vld [vmem:[#allocation2 + $0x3c] sm:$0xff]
        %v5483 = vld [vmem:[#allocation2 + $0x44] sm:$0xf]
        %v5484 = vld [vmem:[#allocation2 + $0x48] sm:$0xff]
        %v5485 = vld [vmem:[#allocation2 + $0x50] sm:$0xff]
        %v5486 = vld [vmem:[#allocation2 + $0x58] sm:$0xff]
        %v5487 = vld [vmem:[#allocation2 + $0x60] sm:$0xff]
        %v5488 = vld [vmem:[#allocation2 + $0x68] sm:$0xf]
        %v5489 = vld [vmem:[#allocation2 + $0x6c] sm:$0xff]
        %v5490 = vld [vmem:[#allocation2 + $0x74] sm:$0xff]
        %v5491 = vld [vmem:[#allocation2 + $0x7c] sm:$0xff]
        %v5492 = vld [vmem:[#allocation2 + $0x84] sm:$0xff]
        %v5493 = vld [vmem:[#allocation2 + $0x8c] sm:$0xf]
        %v5494 = vld [vmem:[#allocation2 + $0x90] sm:$0xff]
        %v5495 = vld [vmem:[#allocation2 + $0x98] sm:$0xff]
        %v5496 = vld [vmem:[#allocation2 + $0xa0] sm:$0xff]
        %v5497 = vld [vmem:[#allocation2 + $0xa8] sm:$0xff]
        %v5498 = vld [vmem:[#allocation2 + $0xb0] sm:$0xf]
        %v5499 = vld [vmem:[#allocation2 + $0xb4] sm:$0xff]
        %v5500 = vld [vmem:[#allocation2 + $0xbc] sm:$0xff]
        %v5501 = vld [vmem:[#allocation2 + $0xc4] sm:$0xff]
        %v5502 = vld [vmem:[#allocation2 + $0xcc] sm:$0xff]
        %v5503 = vld [vmem:[#allocation2 + $0xd4] sm:$0xf]
        %v5504 = vld [vmem:[#allocation2 + $0xd8] sm:$0xff]
        %v5505 = vld [vmem:[#allocation2 + $0xe0] sm:$0xff]
        %v5506 = vld [vmem:[#allocation2 + $0xe8] sm:$0xff]
        %v5507 = vld [vmem:[#allocation2 + $0xf0] sm:$0xff]
        %v5508 = vld [vmem:[#allocation2 + $0xf8] sm:$0xf]
        %v5509 = vld [vmem:[#allocation2 + $0xfc] sm:$0xff]
        %v5510 = vld [vmem:[#allocation2 + $0x104] sm:$0xff]
        %v5511 = vld [vmem:[#allocation2 + $0x10c] sm:$0xff]
        %v5512 = vld [vmem:[#allocation2 + $0x114] sm:$0xff]
        %v5513 = vld [vmem:[#allocation2 + $0x11c] sm:$0xf]
        %v5514 = vld [vmem:[#allocation2 + $0x120] sm:$0xff]
        %v5515 = vld [vmem:[#allocation2 + $0x128] sm:$0xff]
        %v5516 = vld [vmem:[#allocation2 + $0x130] sm:$0xff]
        %v5517 = vld [vmem:[#allocation2 + $0x138] sm:$0xff]
        %v5518 = vld [vmem:[#allocation2 + $0x140] sm:$0xf]
        %v5519 = vld [vmem:[#allocation2 + $0x144] sm:$0xff]
        %v5520 = vld [vmem:[#allocation2 + $0x14c] sm:$0xff]
        %v5521 = vld [vmem:[#allocation2 + $0x154] sm:$0xff]
        %v5522 = vld [vmem:[#allocation2 + $0x15c] sm:$0xff]
        %v5523 = vld [vmem:[#allocation2 + $0x164] sm:$0xf]
        %v5524 = vld [vmem:[#allocation2 + $0x168] sm:$0xff]
        %v5525 = vld [vmem:[#allocation2 + $0x170] sm:$0xff]
        %v5526 = vld [vmem:[#allocation2 + $0x178] sm:$0xff]
        %v5527 = vld [vmem:[#allocation2 + $0x180] sm:$0xff]
        %v5528 = vld [vmem:[#allocation2 + $0x188] sm:$0xf]
        %v5529 = vld [vmem:[#allocation2 + $0x18c] sm:$0xff]
        %v5530 = vld [vmem:[#allocation2 + $0x194] sm:$0xff]
        %v5531 = vld [vmem:[#allocation2 + $0x19c] sm:$0xff]
        %v5532 = vld [vmem:[#allocation2 + $0x1a4] sm:$0xff]
        %v5533 = vld [vmem:[#allocation2 + $0x1ac] sm:$0xf]
        %v5534 = vld [vmem:[#allocation2 + $0x1b0] sm:$0xff]
        %v5535 = vld [vmem:[#allocation2 + $0x1b8] sm:$0xff]
        %v5536 = vld [vmem:[#allocation2 + $0x1c0] sm:$0xff]
        %v5537 = vld [vmem:[#allocation2 + $0x1c8] sm:$0xff]
        %v5538 = vld [vmem:[#allocation2 + $0x1d0] sm:$0xf]
        %v5539 = vld [vmem:[#allocation2 + $0x1d4] sm:$0xff]
        %v5540 = vld [vmem:[#allocation2 + $0x1dc] sm:$0xff]
        %v5541 = vld [vmem:[#allocation2 + $0x1e4] sm:$0xff]
        %v5542 = vld [vmem:[#allocation2 + $0x1ec] sm:$0xff]
        %v5543 = vld [vmem:[#allocation2 + $0x1f4] sm:$0xf]
        %v5544 = vld [vmem:[#allocation2 + $0x1f8] sm:$0xff]
        %v5545 = vld [vmem:[#allocation2 + $0x200] sm:$0xff]
        %v5546 = vld [vmem:[#allocation2 + $0x208] sm:$0xff]
        %v5547 = vld [vmem:[#allocation2 + $0x210] sm:$0xff]
        %v5548 = vld [vmem:[#allocation2 + $0x218] sm:$0xf]
        %v5549 = vld [vmem:[#allocation2 + $0x21c] sm:$0xff]
        %v5550 = vld [vmem:[#allocation2 + $0x224] sm:$0xff]
        %v5551 = vld [vmem:[#allocation2 + $0x22c] sm:$0xff]
        %v5552 = vld [vmem:[#allocation2 + $0x234] sm:$0xff]
        %v5553 = vld [vmem:[#allocation2 + $0x23c] sm:$0xf]
        %v5554 = vld [vmem:[#allocation2 + $0x240] sm:$0xff]
        %v5555 = vld [vmem:[#allocation2 + $0x248] sm:$0xff]
        %v5556 = vld [vmem:[#allocation2 + $0x250] sm:$0xff]
        %v5557 = vld [vmem:[#allocation2 + $0x258] sm:$0xff]
        %v5558 = vld [vmem:[#allocation2 + $0x260] sm:$0xf]
        %v5559 = vld [vmem:[#allocation2 + $0x264] sm:$0xff]
        %v5560 = vld [vmem:[#allocation2 + $0x26c] sm:$0xff]
        %v5561 = vld [vmem:[#allocation2 + $0x274] sm:$0xff]
        %v5562 = vld [vmem:[#allocation2 + $0x27c] sm:$0xff]
        %v5563 = vld [vmem:[#allocation2 + $0x284] sm:$0xf]
        %v5564 = vld [vmem:[#allocation2 + $0x288] sm:$0xff]
        %v5565 = vld [vmem:[#allocation2 + $0x290] sm:$0xff]
        %v5566 = vld [vmem:[#allocation2 + $0x298] sm:$0xff]
        %v5567 = vld [vmem:[#allocation2 + $0x2a0] sm:$0xff]
        %v5568 = vld [vmem:[#allocation2 + $0x2a8] sm:$0xf]
        %v5569 = vld [vmem:[#allocation2 + $0x2ac] sm:$0xff]
        %v5570 = vld [vmem:[#allocation2 + $0x2b4] sm:$0xff]
        %v5571 = vld [vmem:[#allocation2 + $0x2bc] sm:$0xff]
        %v5572 = vld [vmem:[#allocation2 + $0x2c4] sm:$0xff]
        %v5573 = vld [vmem:[#allocation2 + $0x2cc] sm:$0xf]
        %v5574 = vld [vmem:[#allocation2 + $0x2d0] sm:$0xff]
        %v5575 = vld [vmem:[#allocation2 + $0x2d8] sm:$0xff]
        %v5576 = vld [vmem:[#allocation2 + $0x2e0] sm:$0xff]
        %v5577 = vld [vmem:[#allocation2 + $0x2e8] sm:$0xff]
        %v5578 = vld [vmem:[#allocation2 + $0x2f0] sm:$0xf]
        %v5579 = vld [vmem:[#allocation2 + $0x2f4] sm:$0xff]
        %v5580 = vld [vmem:[#allocation2 + $0x2fc] sm:$0xff]
        %v5581 = vld [vmem:[#allocation2 + $0x304] sm:$0xff]
        %v5582 = vld [vmem:[#allocation2 + $0x30c] sm:$0xff]
        %v5583 = vld [vmem:[#allocation2 + $0x314] sm:$0xf]
        %v5584 = vld [vmem:[#allocation2 + $0x318] sm:$0xff]
        %v5585 = vld [vmem:[#allocation2 + $0x320] sm:$0xff]
        %v5586 = vld [vmem:[#allocation2 + $0x328] sm:$0xff]
        %v5587 = vld [vmem:[#allocation2 + $0x330] sm:$0xff]
        %v5588 = vld [vmem:[#allocation2 + $0x338] sm:$0xf]
        %v5589 = vld [vmem:[#allocation2 + $0x33c] sm:$0xff]
        %v5590 = vld [vmem:[#allocation2 + $0x344] sm:$0xff]
        %v5591 = vld [vmem:[#allocation2 + $0x34c] sm:$0xff]
        %v5592 = vld [vmem:[#allocation2 + $0x354] sm:$0xff]
        %v5593 = vld [vmem:[#allocation2 + $0x35c] sm:$0xf]
        %v5594 = vld [vmem:[#allocation2 + $0x360] sm:$0xff]
        %v5595 = vld [vmem:[#allocation2 + $0x368] sm:$0xff]
        %v5596 = vld [vmem:[#allocation2 + $0x370] sm:$0xff]
        %v5597 = vld [vmem:[#allocation2 + $0x378] sm:$0xff]
        %v5598 = vld [vmem:[#allocation2 + $0x380] sm:$0xf]
        %v5599 = vld [vmem:[#allocation2 + $0x384] sm:$0xff]
        %v5600 = vld [vmem:[#allocation2 + $0x38c] sm:$0xff]
        %v5601 = vld [vmem:[#allocation2 + $0x394] sm:$0xff]
        %v5602 = vld [vmem:[#allocation2 + $0x39c] sm:$0xff]
        %v5603 = vld [vmem:[#allocation2 + $0x3a4] sm:$0xf]
        %v5604 = vld [vmem:[#allocation2 + $0x3a8] sm:$0xff]
        %v5605 = vld [vmem:[#allocation2 + $0x3b0] sm:$0xff]
        %v5606 = vld [vmem:[#allocation2 + $0x3b8] sm:$0xff]
        %v5607 = vld [vmem:[#allocation2 + $0x3c0] sm:$0xff]
        %v5608 = vld [vmem:[#allocation2 + $0x3c8] sm:$0xf]
        %v5609 = vld [vmem:[#allocation2 + $0x3cc] sm:$0xff]
        %v5610 = vld [vmem:[#allocation2 + $0x3d4] sm:$0xff]
        %v5611 = vld [vmem:[#allocation2 + $0x3dc] sm:$0xff]
        %v5612 = vld [vmem:[#allocation2 + $0x3e4] sm:$0xff]
        %v5613 = vld [vmem:[#allocation2 + $0x3ec] sm:$0xf]
        %v5614 = vld [vmem:[#allocation2 + $0x3f0] sm:$0xff]
        %v5615 = vld [vmem:[#allocation2 + $0x3f8] sm:$0xff]
        %v5616 = vld [vmem:[#allocation2 + $0x400] sm:$0xff]
        %v5617 = vld [vmem:[#allocation2 + $0x408] sm:$0xff]
        %v5618 = vld [vmem:[#allocation2 + $0x410] sm:$0xf]
        %v5619 = vld [vmem:[#allocation2 + $0x414] sm:$0xff]
        %v5620 = vld [vmem:[#allocation2 + $0x41c] sm:$0xff]
        %v5621 = vld [vmem:[#allocation2 + $0x424] sm:$0xff]
        %v5622 = vld [vmem:[#allocation2 + $0x42c] sm:$0xff]
        %v5623 = vld [vmem:[#allocation2 + $0x434] sm:$0xf]
        %v5624 = vld [vmem:[#allocation2 + $0x438] sm:$0xff]
        %v5625 = vld [vmem:[#allocation2 + $0x440] sm:$0xff]
        %v5626 = vld [vmem:[#allocation2 + $0x448] sm:$0xff]
        %v5627 = vld [vmem:[#allocation2 + $0x450] sm:$0xff]
        %v5628 = vld [vmem:[#allocation2 + $0x458] sm:$0xf]
        %v5629 = vld [vmem:[#allocation2 + $0x45c] sm:$0xff]
        %v5630 = vld [vmem:[#allocation2 + $0x464] sm:$0xff]
        %v5631 = vld [vmem:[#allocation2 + $0x46c] sm:$0xff]
        %v5632 = vld [vmem:[#allocation2 + $0x474] sm:$0xff]
        %v5633 = vld [vmem:[#allocation2 + $0x47c] sm:$0xf]
        %v5634 = vld [vmem:[%s4] sm:$0xf]
        %v5635 = vld [vmem:[%s4 + $0x4] sm:$0xf]
        %v5636 = vld [vmem:[%s4 + $0x8] sm:$0xf]
        %v5637 = vld [vmem:[%s4 + $0xc] sm:$0xf]
        %v5638 = vld [vmem:[%s4 + $0x10] sm:$0xf]
        %v5639 = vld [vmem:[%s4 + $0x14] sm:$0xf]
        %v5640 = vld [vmem:[%s4 + $0x18] sm:$0xf]
        %v5641 = vld [vmem:[%s4 + $0x1c] sm:$0xf]
        %v5642 = vld [vmem:[%s4 + $0x20] sm:$0xf]
        %v5643 = vld [vmem:[%s4 + $0x24] sm:$0xf]
        %v5644 = vld [vmem:[%s4 + $0x28] sm:$0xf]
        %v5645 = vld [vmem:[%s4 + $0x2c] sm:$0xf]
        %v5646 = vld [vmem:[%s4 + $0x30] sm:$0xf]
        %v5647 = vld [vmem:[%s4 + $0x34] sm:$0xf]
        %v5648 = vld [vmem:[%s4 + $0x38] sm:$0xf]
        %v5649 = vld [vmem:[%s4 + $0x3c] sm:$0xf]
        %v5650 = vld [vmem:[%s4 + $0x40] sm:$0xf]
        %v5651 = vld [vmem:[%s4 + $0x44] sm:$0xf]
        %v5652 = vld [vmem:[%s4 + $0x48] sm:$0xf]
        %v5653 = vld [vmem:[%s4 + $0x4c] sm:$0xf]
        %v5654 = vld [vmem:[%s4 + $0x50] sm:$0xf]
        %v5655 = vld [vmem:[%s4 + $0x54] sm:$0xf]
        %v5656 = vld [vmem:[%s4 + $0x58] sm:$0xf]
        %v5657 = vld [vmem:[%s4 + $0x5c] sm:$0xf]
        %v5658 = vld [vmem:[%s4 + $0x60] sm:$0xf]
        %v5659 = vld [vmem:[%s4 + $0x64] sm:$0xf]
        %v5660 = vld [vmem:[%s4 + $0x68] sm:$0xf]
        %v5661 = vld [vmem:[%s4 + $0x6c] sm:$0xf]
        %v5662 = vld [vmem:[%s4 + $0x70] sm:$0xf]
        %v5663 = vld [vmem:[%s4 + $0x74] sm:$0xf]
        %v5664 = vld [vmem:[%s4 + $0x78] sm:$0xf]
        %v5665 = vld [vmem:[%s4 + $0x7c] sm:$0xf]
        %v5666 = vld [vmem:[%s4 + $0x80] sm:$0xf]
        %v5667 = vld [vmem:[%s4 + $0x84] sm:$0xf]
        %v5668 = vld [vmem:[%s4 + $0x88] sm:$0xf]
        %v5669 = vld [vmem:[%s4 + $0x8c] sm:$0xf]
        %v5670 = vld [vmem:[%s4 + $0x90] sm:$0xf]
        %v5671 = vld [vmem:[%s4 + $0x94] sm:$0xf]
        %v5672 = vld [vmem:[%s4 + $0x98] sm:$0xf]
        %v5673 = vld [vmem:[%s4 + $0x9c] sm:$0xf]
        %v5674 = vld [vmem:[%s4 + $0xa0] sm:$0xf]
        %v5675 = vld [vmem:[%s4 + $0xa4] sm:$0xf]
        %v5676 = vld [vmem:[%s4 + $0xa8] sm:$0xf]
        %v5677 = vld [vmem:[%s4 + $0xac] sm:$0xf]
        %v5678 = vld [vmem:[%s4 + $0xb0] sm:$0xf]
        %v5679 = vld [vmem:[%s4 + $0xb4] sm:$0xf]
        %v5680 = vld [vmem:[%s4 + $0xb8] sm:$0xf]
        %v5681 = vld [vmem:[%s4 + $0xbc] sm:$0xf]
        %v5682 = vld [vmem:[%s4 + $0xc0] sm:$0xf]
        %v5683 = vld [vmem:[%s4 + $0xc4] sm:$0xf]
        %v5684 = vld [vmem:[%s4 + $0xc8] sm:$0xf]
        %v5685 = vld [vmem:[%s4 + $0xcc] sm:$0xf]
        %v5686 = vld [vmem:[%s4 + $0xd0] sm:$0xf]
        %v5687 = vld [vmem:[%s4 + $0xd4] sm:$0xf]
        %v5688 = vld [vmem:[%s4 + $0xd8] sm:$0xf]
        %v5689 = vld [vmem:[%s4 + $0xdc] sm:$0xf]
        %v5690 = vld [vmem:[%s4 + $0xe0] sm:$0xf]
        %v5691 = vld [vmem:[%s4 + $0xe4] sm:$0xf]
        %v5692 = vld [vmem:[%s4 + $0xe8] sm:$0xf]
        %v5693 = vld [vmem:[%s4 + $0xec] sm:$0xf]
        %v5694 = vld [vmem:[%s4 + $0xf0] sm:$0xf]
        %v5695 = vld [vmem:[%s4 + $0xf4] sm:$0xf]
        %v5696 = vld [vmem:[%s4 + $0xf8] sm:$0xf]
        %v5697 = vld [vmem:[%s4 + $0xfc] sm:$0xf]
        %v5698 = vld [vmem:[%s4 + $0x100] sm:$0xf]
        %v5699 = vld [vmem:[%s4 + $0x104] sm:$0xf]
        %v5700 = vld [vmem:[%s4 + $0x108] sm:$0xf]
        %v5701 = vld [vmem:[%s4 + $0x10c] sm:$0xf]
        %v5702 = vld [vmem:[%s4 + $0x110] sm:$0xf]
        %v5703 = vld [vmem:[%s4 + $0x114] sm:$0xf]
        %v5704 = vld [vmem:[%s4 + $0x118] sm:$0xf]
        %v5705 = vld [vmem:[%s4 + $0x11c] sm:$0xf]
        %v5706 = vld [vmem:[%s4 + $0x120] sm:$0xf]
        %v5707 = vld [vmem:[%s4 + $0x124] sm:$0xf]
        %v5708 = vld [vmem:[%s4 + $0x128] sm:$0xf]
        %v5709 = vld [vmem:[%s4 + $0x12c] sm:$0xf]
        %v5710 = vld [vmem:[%s4 + $0x130] sm:$0xf]
        %v5711 = vld [vmem:[%s4 + $0x134] sm:$0xf]
        %v5712 = vld [vmem:[%s4 + $0x138] sm:$0xf]
        %v5713 = vld [vmem:[%s4 + $0x13c] sm:$0xf]
        %v5714 = vld [vmem:[%s4 + $0x140] sm:$0xf]
        %v5715 = vld [vmem:[%s4 + $0x144] sm:$0xf]
        %v5716 = vld [vmem:[%s4 + $0x148] sm:$0xf]
        %v5717 = vld [vmem:[%s4 + $0x14c] sm:$0xf]
        %v5718 = vld [vmem:[%s4 + $0x150] sm:$0xf]
        %v5719 = vld [vmem:[%s4 + $0x154] sm:$0xf]
        %v5720 = vld [vmem:[%s4 + $0x158] sm:$0xf]
        %v5721 = vld [vmem:[%s4 + $0x15c] sm:$0xf]
        %v5722 = vld [vmem:[%s4 + $0x160] sm:$0xf]
        %v5723 = vld [vmem:[%s4 + $0x164] sm:$0xf]
        %v5724 = vld [vmem:[%s4 + $0x168] sm:$0xf]
        %v5725 = vld [vmem:[%s4 + $0x16c] sm:$0xf]
        %v5726 = vld [vmem:[%s4 + $0x170] sm:$0xf]
        %v5727 = vld [vmem:[%s4 + $0x174] sm:$0xf]
        %v5728 = vld [vmem:[%s4 + $0x178] sm:$0xf]
        %v5729 = vld [vmem:[%s4 + $0x17c] sm:$0xf]
        %v5730 = vld [vmem:[%s4 + $0x180] sm:$0xf]
        %v5731 = vld [vmem:[%s4 + $0x184] sm:$0xf]
        %v5732 = vld [vmem:[%s4 + $0x188] sm:$0xf]
        %v5733 = vld [vmem:[%s4 + $0x18c] sm:$0xf]
        %v5734 = vld [vmem:[%s4 + $0x190] sm:$0xf]
        %v5735 = vld [vmem:[%s4 + $0x194] sm:$0xf]
        %v5736 = vld [vmem:[%s4 + $0x198] sm:$0xf]
        %v5737 = vld [vmem:[%s4 + $0x19c] sm:$0xf]
        %v5738 = vld [vmem:[%s4 + $0x1a0] sm:$0xf]
        %v5739 = vld [vmem:[%s4 + $0x1a4] sm:$0xf]
        %v5740 = vld [vmem:[%s4 + $0x1a8] sm:$0xf]
        %v5741 = vld [vmem:[%s4 + $0x1ac] sm:$0xf]
        %v5742 = vld [vmem:[%s4 + $0x1b0] sm:$0xf]
        %v5743 = vld [vmem:[%s4 + $0x1b4] sm:$0xf]
        %v5744 = vld [vmem:[%s4 + $0x1b8] sm:$0xf]
        %v5745 = vld [vmem:[%s4 + $0x1bc] sm:$0xf]
        %v5746 = vld [vmem:[%s4 + $0x1c0] sm:$0xf]
        %v5747 = vld [vmem:[%s4 + $0x1c4] sm:$0xf]
        %v5748 = vld [vmem:[%s4 + $0x1c8] sm:$0xf]
        %v5749 = vld [vmem:[%s4 + $0x1cc] sm:$0xf]
        %v5750 = vld [vmem:[%s4 + $0x1d0] sm:$0xf]
        %v5751 = vld [vmem:[%s4 + $0x1d4] sm:$0xf]
        %v5752 = vld [vmem:[%s4 + $0x1d8] sm:$0xf]
        %v5753 = vld [vmem:[%s4 + $0x1dc] sm:$0xf]
        %v5754 = vld [vmem:[%s4 + $0x1e0] sm:$0xf]
        %v5755 = vld [vmem:[%s4 + $0x1e4] sm:$0xf]
        %v5756 = vld [vmem:[%s4 + $0x1e8] sm:$0xf]
        %v5757 = vld [vmem:[%s4 + $0x1ec] sm:$0xf]
        %v5758 = vld [vmem:[%s4 + $0x1f0] sm:$0xf]
        %v5759 = vld [vmem:[%s4 + $0x1f4] sm:$0xf]
        %v5760 = vld [vmem:[%s4 + $0x1f8] sm:$0xf]
        %v5761 = vld [vmem:[%s4 + $0x1fc] sm:$0xf]
        %v5762 = vld [vmem:[%s4 + $0x200] sm:$0xf]
        %v5763 = vld [vmem:[%s4 + $0x204] sm:$0xf]
        %v5764 = vld [vmem:[%s4 + $0x208] sm:$0xf]
        %v5765 = vld [vmem:[%s4 + $0x20c] sm:$0xf]
        %v5766 = vld [vmem:[%s4 + $0x210] sm:$0xf]
        %v5767 = vld [vmem:[%s4 + $0x214] sm:$0xf]
        %v5768 = vld [vmem:[%s4 + $0x218] sm:$0xf]
        %v5769 = vld [vmem:[%s4 + $0x21c] sm:$0xf]
        %v5770 = vld [vmem:[%s4 + $0x220] sm:$0xf]
        %v5771 = vld [vmem:[%s4 + $0x224] sm:$0xf]
        %v5772 = vld [vmem:[%s4 + $0x228] sm:$0xf]
        %v5773 = vld [vmem:[%s4 + $0x22c] sm:$0xf]
        %v5774 = vld [vmem:[%s4 + $0x230] sm:$0xf]
        %v5775 = vld [vmem:[%s4 + $0x234] sm:$0xf]
        %v5776 = vld [vmem:[%s4 + $0x238] sm:$0xf]
        %v5777 = vld [vmem:[%s4 + $0x23c] sm:$0xf]
        %v5938 = vunpack.c.l.b16 %v5474
        %v5939 = vunpack.c.h.b16 %v5474
        %v5940 = vunpack.c.l.b16 %v5475
        %v5941 = vunpack.c.h.b16 %v5475
        %v5942 = vunpack.c.l.b16 %v5476
        %v5943 = vunpack.c.h.b16 %v5476
        %v5944 = vunpack.c.l.b16 %v5477
        %v5945 = vunpack.c.h.b16 %v5477
        %v5946 = vunpack.c.l.b16 %v5478
        %v5947 = vunpack.c.l.b16 %v5479
        %v5948 = vunpack.c.h.b16 %v5479
        %v5949 = vunpack.c.l.b16 %v5480
        %v5950 = vunpack.c.h.b16 %v5480
        %v5951 = vunpack.c.l.b16 %v5481
        %v5952 = vunpack.c.h.b16 %v5481
        %v5953 = vunpack.c.l.b16 %v5482
        %v5954 = vunpack.c.h.b16 %v5482
        %v5955 = vunpack.c.l.b16 %v5483
        %v5956 = vunpack.c.l.b16 %v5484
        %v5957 = vunpack.c.h.b16 %v5484
        %v5958 = vunpack.c.l.b16 %v5485
        %v5959 = vunpack.c.h.b16 %v5485
        %v5960 = vunpack.c.l.b16 %v5486
        %v5961 = vunpack.c.h.b16 %v5486
        %v5962 = vunpack.c.l.b16 %v5487
        %v5963 = vunpack.c.h.b16 %v5487
        %v5964 = vunpack.c.l.b16 %v5488
        %v5965 = vunpack.c.l.b16 %v5489
        %v5966 = vunpack.c.h.b16 %v5489
        %v5967 = vunpack.c.l.b16 %v5490
        %v5968 = vunpack.c.h.b16 %v5490
        %v5969 = vunpack.c.l.b16 %v5491
        %v5970 = vunpack.c.h.b16 %v5491
        %v5971 = vunpack.c.l.b16 %v5492
        %v5972 = vunpack.c.h.b16 %v5492
        %v5973 = vunpack.c.l.b16 %v5493
        %v5974 = vunpack.c.l.b16 %v5494
        %v5975 = vunpack.c.h.b16 %v5494
        %v5976 = vunpack.c.l.b16 %v5495
        %v5977 = vunpack.c.h.b16 %v5495
        %v5978 = vunpack.c.l.b16 %v5496
        %v5979 = vunpack.c.h.b16 %v5496
        %v5980 = vunpack.c.l.b16 %v5497
        %v5981 = vunpack.c.h.b16 %v5497
        %v5982 = vunpack.c.l.b16 %v5498
        %v5983 = vunpack.c.l.b16 %v5499
        %v5984 = vunpack.c.h.b16 %v5499
        %v5985 = vunpack.c.l.b16 %v5500
        %v5986 = vunpack.c.h.b16 %v5500
        %v5987 = vunpack.c.l.b16 %v5501
        %v5988 = vunpack.c.h.b16 %v5501
        %v5989 = vunpack.c.l.b16 %v5502
        %v5990 = vunpack.c.h.b16 %v5502
        %v5991 = vunpack.c.l.b16 %v5503
        %v5992 = vunpack.c.l.b16 %v5504
        %v5993 = vunpack.c.h.b16 %v5504
        %v5994 = vunpack.c.l.b16 %v5505
        %v5995 = vunpack.c.h.b16 %v5505
        %v5996 = vunpack.c.l.b16 %v5506
        %v5997 = vunpack.c.h.b16 %v5506
        %v5998 = vunpack.c.l.b16 %v5507
        %v5999 = vunpack.c.h.b16 %v5507
        %v6000 = vunpack.c.l.b16 %v5508
        %v6001 = vunpack.c.l.b16 %v5509
        %v6002 = vunpack.c.h.b16 %v5509
        %v6003 = vunpack.c.l.b16 %v5510
        %v6004 = vunpack.c.h.b16 %v5510
        %v6005 = vunpack.c.l.b16 %v5511
        %v6006 = vunpack.c.h.b16 %v5511
        %v6007 = vunpack.c.l.b16 %v5512
        %v6008 = vunpack.c.h.b16 %v5512
        %v6009 = vunpack.c.l.b16 %v5513
        %v6010 = vunpack.c.l.b16 %v5514
        %v6011 = vunpack.c.h.b16 %v5514
        %v6012 = vunpack.c.l.b16 %v5515
        %v6013 = vunpack.c.h.b16 %v5515
        %v6014 = vunpack.c.l.b16 %v5516
        %v6015 = vunpack.c.h.b16 %v5516
        %v6016 = vunpack.c.l.b16 %v5517
        %v6017 = vunpack.c.h.b16 %v5517
        %v6018 = vunpack.c.l.b16 %v5518
        %v6019 = vunpack.c.l.b16 %v5519
        %v6020 = vunpack.c.h.b16 %v5519
        %v6021 = vunpack.c.l.b16 %v5520
        %v6022 = vunpack.c.h.b16 %v5520
        %v6023 = vunpack.c.l.b16 %v5521
        %v6024 = vunpack.c.h.b16 %v5521
        %v6025 = vunpack.c.l.b16 %v5522
        %v6026 = vunpack.c.h.b16 %v5522
        %v6027 = vunpack.c.l.b16 %v5523
        %v6028 = vunpack.c.l.b16 %v5524
        %v6029 = vunpack.c.h.b16 %v5524
        %v6030 = vunpack.c.l.b16 %v5525
        %v6031 = vunpack.c.h.b16 %v5525
        %v6032 = vunpack.c.l.b16 %v5526
        %v6033 = vunpack.c.h.b16 %v5526
        %v6034 = vunpack.c.l.b16 %v5527
        %v6035 = vunpack.c.h.b16 %v5527
        %v6036 = vunpack.c.l.b16 %v5528
        %v6037 = vunpack.c.l.b16 %v5529
        %v6038 = vunpack.c.h.b16 %v5529
        %v6039 = vunpack.c.l.b16 %v5530
        %v6040 = vunpack.c.h.b16 %v5530
        %v6041 = vunpack.c.l.b16 %v5531
        %v6042 = vunpack.c.h.b16 %v5531
        %v6043 = vunpack.c.l.b16 %v5532
        %v6044 = vunpack.c.h.b16 %v5532
        %v6045 = vunpack.c.l.b16 %v5533
        %v6046 = vunpack.c.l.b16 %v5534
        %v6047 = vunpack.c.h.b16 %v5534
        %v6048 = vunpack.c.l.b16 %v5535
        %v6049 = vunpack.c.h.b16 %v5535
        %v6050 = vunpack.c.l.b16 %v5536
        %v6051 = vunpack.c.h.b16 %v5536
        %v6052 = vunpack.c.l.b16 %v5537
        %v6053 = vunpack.c.h.b16 %v5537
        %v6054 = vunpack.c.l.b16 %v5538
        %v6055 = vunpack.c.l.b16 %v5539
        %v6056 = vunpack.c.h.b16 %v5539
        %v6057 = vunpack.c.l.b16 %v5540
        %v6058 = vunpack.c.h.b16 %v5540
        %v6059 = vunpack.c.l.b16 %v5541
        %v6060 = vunpack.c.h.b16 %v5541
        %v6061 = vunpack.c.l.b16 %v5542
        %v6062 = vunpack.c.h.b16 %v5542
        %v6063 = vunpack.c.l.b16 %v5543
        %v6064 = vunpack.c.l.b16 %v5544
        %v6065 = vunpack.c.h.b16 %v5544
        %v6066 = vunpack.c.l.b16 %v5545
        %v6067 = vunpack.c.h.b16 %v5545
        %v6068 = vunpack.c.l.b16 %v5546
        %v6069 = vunpack.c.h.b16 %v5546
        %v6070 = vunpack.c.l.b16 %v5547
        %v6071 = vunpack.c.h.b16 %v5547
        %v6072 = vunpack.c.l.b16 %v5548
        %v6073 = vunpack.c.l.b16 %v5549
        %v6074 = vunpack.c.h.b16 %v5549
        %v6075 = vunpack.c.l.b16 %v5550
        %v6076 = vunpack.c.h.b16 %v5550
        %v6077 = vunpack.c.l.b16 %v5551
        %v6078 = vunpack.c.h.b16 %v5551
        %v6079 = vunpack.c.l.b16 %v5552
        %v6080 = vunpack.c.h.b16 %v5552
        %v6081 = vunpack.c.l.b16 %v5553
        %v6082 = vunpack.c.l.b16 %v5554
        %v6083 = vunpack.c.h.b16 %v5554
        %v6084 = vunpack.c.l.b16 %v5555
        %v6085 = vunpack.c.h.b16 %v5555
        %v6086 = vunpack.c.l.b16 %v5556
        %v6087 = vunpack.c.h.b16 %v5556
        %v6088 = vunpack.c.l.b16 %v5557
        %v6089 = vunpack.c.h.b16 %v5557
        %v6090 = vunpack.c.l.b16 %v5558
        %v6091 = vunpack.c.l.b16 %v5559
        %v6092 = vunpack.c.h.b16 %v5559
        %v6093 = vunpack.c.l.b16 %v5560
        %v6094 = vunpack.c.h.b16 %v5560
        %v6095 = vunpack.c.l.b16 %v5561
        %v6096 = vunpack.c.h.b16 %v5561
        %v6097 = vunpack.c.l.b16 %v5562
        %v6098 = vunpack.c.h.b16 %v5562
        %v6099 = vunpack.c.l.b16 %v5563
        %v6100 = vunpack.c.l.b16 %v5564
        %v6101 = vunpack.c.h.b16 %v5564
        %v6102 = vunpack.c.l.b16 %v5565
        %v6103 = vunpack.c.h.b16 %v5565
        %v6104 = vunpack.c.l.b16 %v5566
        %v6105 = vunpack.c.h.b16 %v5566
        %v6106 = vunpack.c.l.b16 %v5567
        %v6107 = vunpack.c.h.b16 %v5567
        %v6108 = vunpack.c.l.b16 %v5568
        %v6109 = vunpack.c.l.b16 %v5569
        %v6110 = vunpack.c.h.b16 %v5569
        %v6111 = vunpack.c.l.b16 %v5570
        %v6112 = vunpack.c.h.b16 %v5570
        %v6113 = vunpack.c.l.b16 %v5571
        %v6114 = vunpack.c.h.b16 %v5571
        %v6115 = vunpack.c.l.b16 %v5572
        %v6116 = vunpack.c.h.b16 %v5572
        %v6117 = vunpack.c.l.b16 %v5573
        %v6118 = vunpack.c.l.b16 %v5574
        %v6119 = vunpack.c.h.b16 %v5574
        %v6120 = vunpack.c.l.b16 %v5575
        %v6121 = vunpack.c.h.b16 %v5575
        %v6122 = vunpack.c.l.b16 %v5576
        %v6123 = vunpack.c.h.b16 %v5576
        %v6124 = vunpack.c.l.b16 %v5577
        %v6125 = vunpack.c.h.b16 %v5577
        %v6126 = vunpack.c.l.b16 %v5578
        %v6127 = vunpack.c.l.b16 %v5579
        %v6128 = vunpack.c.h.b16 %v5579
        %v6129 = vunpack.c.l.b16 %v5580
        %v6130 = vunpack.c.h.b16 %v5580
        %v6131 = vunpack.c.l.b16 %v5581
        %v6132 = vunpack.c.h.b16 %v5581
        %v6133 = vunpack.c.l.b16 %v5582
        %v6134 = vunpack.c.h.b16 %v5582
        %v6135 = vunpack.c.l.b16 %v5583
        %v6136 = vunpack.c.l.b16 %v5584
        %v6137 = vunpack.c.h.b16 %v5584
        %v6138 = vunpack.c.l.b16 %v5585
        %v6139 = vunpack.c.h.b16 %v5585
        %v6140 = vunpack.c.l.b16 %v5586
        %v6141 = vunpack.c.h.b16 %v5586
        %v6142 = vunpack.c.l.b16 %v5587
        %v6143 = vunpack.c.h.b16 %v5587
        %v6144 = vunpack.c.l.b16 %v5588
        %v6145 = vunpack.c.l.b16 %v5589
        %v6146 = vunpack.c.h.b16 %v5589
        %v6147 = vunpack.c.l.b16 %v5590
        %v6148 = vunpack.c.h.b16 %v5590
        %v6149 = vunpack.c.l.b16 %v5591
        %v6150 = vunpack.c.h.b16 %v5591
        %v6151 = vunpack.c.l.b16 %v5592
        %v6152 = vunpack.c.h.b16 %v5592
        %v6153 = vunpack.c.l.b16 %v5593
        %v6154 = vunpack.c.l.b16 %v5594
        %v6155 = vunpack.c.h.b16 %v5594
        %v6156 = vunpack.c.l.b16 %v5595
        %v6157 = vunpack.c.h.b16 %v5595
        %v6158 = vunpack.c.l.b16 %v5596
        %v6159 = vunpack.c.h.b16 %v5596
        %v6160 = vunpack.c.l.b16 %v5597
        %v6161 = vunpack.c.h.b16 %v5597
        %v6162 = vunpack.c.l.b16 %v5598
        %v6163 = vunpack.c.l.b16 %v5599
        %v6164 = vunpack.c.h.b16 %v5599
        %v6165 = vunpack.c.l.b16 %v5600
        %v6166 = vunpack.c.h.b16 %v5600
        %v6167 = vunpack.c.l.b16 %v5601
        %v6168 = vunpack.c.h.b16 %v5601
        %v6169 = vunpack.c.l.b16 %v5602
        %v6170 = vunpack.c.h.b16 %v5602
        %v6171 = vunpack.c.l.b16 %v5603
        %v6172 = vunpack.c.l.b16 %v5604
        %v6173 = vunpack.c.h.b16 %v5604
        %v6174 = vunpack.c.l.b16 %v5605
        %v6175 = vunpack.c.h.b16 %v5605
        %v6176 = vunpack.c.l.b16 %v5606
        %v6177 = vunpack.c.h.b16 %v5606
        %v6178 = vunpack.c.l.b16 %v5607
        %v6179 = vunpack.c.h.b16 %v5607
        %v6180 = vunpack.c.l.b16 %v5608
        %v6181 = vunpack.c.l.b16 %v5609
        %v6182 = vunpack.c.h.b16 %v5609
        %v6183 = vunpack.c.l.b16 %v5610
        %v6184 = vunpack.c.h.b16 %v5610
        %v6185 = vunpack.c.l.b16 %v5611
        %v6186 = vunpack.c.h.b16 %v5611
        %v6187 = vunpack.c.l.b16 %v5612
        %v6188 = vunpack.c.h.b16 %v5612
        %v6189 = vunpack.c.l.b16 %v5613
        %v6190 = vunpack.c.l.b16 %v5614
        %v6191 = vunpack.c.h.b16 %v5614
        %v6192 = vunpack.c.l.b16 %v5615
        %v6193 = vunpack.c.h.b16 %v5615
        %v6194 = vunpack.c.l.b16 %v5616
        %v6195 = vunpack.c.h.b16 %v5616
        %v6196 = vunpack.c.l.b16 %v5617
        %v6197 = vunpack.c.h.b16 %v5617
        %v6198 = vunpack.c.l.b16 %v5618
        %v6199 = vunpack.c.l.b16 %v5619
        %v6200 = vunpack.c.h.b16 %v5619
        %v6201 = vunpack.c.l.b16 %v5620
        %v6202 = vunpack.c.h.b16 %v5620
        %v6203 = vunpack.c.l.b16 %v5621
        %v6204 = vunpack.c.h.b16 %v5621
        %v6205 = vunpack.c.l.b16 %v5622
        %v6206 = vunpack.c.h.b16 %v5622
        %v6207 = vunpack.c.l.b16 %v5623
        %v6208 = vunpack.c.l.b16 %v5624
        %v6209 = vunpack.c.h.b16 %v5624
        %v6210 = vunpack.c.l.b16 %v5625
        %v6211 = vunpack.c.h.b16 %v5625
        %v6212 = vunpack.c.l.b16 %v5626
        %v6213 = vunpack.c.h.b16 %v5626
        %v6214 = vunpack.c.l.b16 %v5627
        %v6215 = vunpack.c.h.b16 %v5627
        %v6216 = vunpack.c.l.b16 %v5628
        %v6217 = vunpack.c.l.b16 %v5629
        %v6218 = vunpack.c.h.b16 %v5629
        %v6219 = vunpack.c.l.b16 %v5630
        %v6220 = vunpack.c.h.b16 %v5630
        %v6221 = vunpack.c.l.b16 %v5631
        %v6222 = vunpack.c.h.b16 %v5631
        %v6223 = vunpack.c.l.b16 %v5632
        %v6224 = vunpack.c.h.b16 %v5632
        %v6225 = vunpack.c.l.b16 %v5633
        %v6226 = vpack.c.b16 %v5947, %v5938
        %v6227 = vpack.c.b16 %v5948, %v5939
        %v6228 = vpack.c.b16 %v5949, %v5940
        %v6229 = vpack.c.b16 %v5950, %v5941
        %v6230 = vpack.c.b16 %v5951, %v5942
        %v6231 = vpack.c.b16 %v5952, %v5943
        %v6232 = vpack.c.b16 %v5953, %v5944
        %v6233 = vpack.c.b16 %v5954, %v5945
        %v6234 = vpack.c.b16 %v5955, %v5946
        %v6235 = vpack.c.b16 %v5965, %v5956
        %v6236 = vpack.c.b16 %v5966, %v5957
        %v6237 = vpack.c.b16 %v5967, %v5958
        %v6238 = vpack.c.b16 %v5968, %v5959
        %v6239 = vpack.c.b16 %v5969, %v5960
        %v6240 = vpack.c.b16 %v5970, %v5961
        %v6241 = vpack.c.b16 %v5971, %v5962
        %v6242 = vpack.c.b16 %v5972, %v5963
        %v6243 = vpack.c.b16 %v5973, %v5964
        %v6244 = vpack.c.b16 %v5983, %v5974
        %v6245 = vpack.c.b16 %v5984, %v5975
        %v6246 = vpack.c.b16 %v5985, %v5976
        %v6247 = vpack.c.b16 %v5986, %v5977
        %v6248 = vpack.c.b16 %v5987, %v5978
        %v6249 = vpack.c.b16 %v5988, %v5979
        %v6250 = vpack.c.b16 %v5989, %v5980
        %v6251 = vpack.c.b16 %v5990, %v5981
        %v6252 = vpack.c.b16 %v5991, %v5982
        %v6253 = vpack.c.b16 %v6001, %v5992
        %v6254 = vpack.c.b16 %v6002, %v5993
        %v6255 = vpack.c.b16 %v6003, %v5994
        %v6256 = vpack.c.b16 %v6004, %v5995
        %v6257 = vpack.c.b16 %v6005, %v5996
        %v6258 = vpack.c.b16 %v6006, %v5997
        %v6259 = vpack.c.b16 %v6007, %v5998
        %v6260 = vpack.c.b16 %v6008, %v5999
        %v6261 = vpack.c.b16 %v6009, %v6000
        %v6262 = vpack.c.b16 %v6019, %v6010
        %v6263 = vpack.c.b16 %v6020, %v6011
        %v6264 = vpack.c.b16 %v6021, %v6012
        %v6265 = vpack.c.b16 %v6022, %v6013
        %v6266 = vpack.c.b16 %v6023, %v6014
        %v6267 = vpack.c.b16 %v6024, %v6015
        %v6268 = vpack.c.b16 %v6025, %v6016
        %v6269 = vpack.c.b16 %v6026, %v6017
        %v6270 = vpack.c.b16 %v6027, %v6018
        %v6271 = vpack.c.b16 %v6037, %v6028
        %v6272 = vpack.c.b16 %v6038, %v6029
        %v6273 = vpack.c.b16 %v6039, %v6030
        %v6274 = vpack.c.b16 %v6040, %v6031
        %v6275 = vpack.c.b16 %v6041, %v6032
        %v6276 = vpack.c.b16 %v6042, %v6033
        %v6277 = vpack.c.b16 %v6043, %v6034
        %v6278 = vpack.c.b16 %v6044, %v6035
        %v6279 = vpack.c.b16 %v6045, %v6036
        %v6280 = vpack.c.b16 %v6055, %v6046
        %v6281 = vpack.c.b16 %v6056, %v6047
        %v6282 = vpack.c.b16 %v6057, %v6048
        %v6283 = vpack.c.b16 %v6058, %v6049
        %v6284 = vpack.c.b16 %v6059, %v6050
        %v6285 = vpack.c.b16 %v6060, %v6051
        %v6286 = vpack.c.b16 %v6061, %v6052
        %v6287 = vpack.c.b16 %v6062, %v6053
        %v6288 = vpack.c.b16 %v6063, %v6054
        %v6289 = vpack.c.b16 %v6073, %v6064
        %v6290 = vpack.c.b16 %v6074, %v6065
        %v6291 = vpack.c.b16 %v6075, %v6066
        %v6292 = vpack.c.b16 %v6076, %v6067
        %v6293 = vpack.c.b16 %v6077, %v6068
        %v6294 = vpack.c.b16 %v6078, %v6069
        %v6295 = vpack.c.b16 %v6079, %v6070
        %v6296 = vpack.c.b16 %v6080, %v6071
        %v6297 = vpack.c.b16 %v6081, %v6072
        %v6298 = vpack.c.b16 %v6091, %v6082
        %v6299 = vpack.c.b16 %v6092, %v6083
        %v6300 = vpack.c.b16 %v6093, %v6084
        %v6301 = vpack.c.b16 %v6094, %v6085
        %v6302 = vpack.c.b16 %v6095, %v6086
        %v6303 = vpack.c.b16 %v6096, %v6087
        %v6304 = vpack.c.b16 %v6097, %v6088
        %v6305 = vpack.c.b16 %v6098, %v6089
        %v6306 = vpack.c.b16 %v6099, %v6090
        %v6307 = vpack.c.b16 %v6109, %v6100
        %v6308 = vpack.c.b16 %v6110, %v6101
        %v6309 = vpack.c.b16 %v6111, %v6102
        %v6310 = vpack.c.b16 %v6112, %v6103
        %v6311 = vpack.c.b16 %v6113, %v6104
        %v6312 = vpack.c.b16 %v6114, %v6105
        %v6313 = vpack.c.b16 %v6115, %v6106
        %v6314 = vpack.c.b16 %v6116, %v6107
        %v6315 = vpack.c.b16 %v6117, %v6108
        %v6316 = vpack.c.b16 %v6127, %v6118
        %v6317 = vpack.c.b16 %v6128, %v6119
        %v6318 = vpack.c.b16 %v6129, %v6120
        %v6319 = vpack.c.b16 %v6130, %v6121
        %v6320 = vpack.c.b16 %v6131, %v6122
        %v6321 = vpack.c.b16 %v6132, %v6123
        %v6322 = vpack.c.b16 %v6133, %v6124
        %v6323 = vpack.c.b16 %v6134, %v6125
        %v6324 = vpack.c.b16 %v6135, %v6126
        %v6325 = vpack.c.b16 %v6145, %v6136
        %v6326 = vpack.c.b16 %v6146, %v6137
        %v6327 = vpack.c.b16 %v6147, %v6138
        %v6328 = vpack.c.b16 %v6148, %v6139
        %v6329 = vpack.c.b16 %v6149, %v6140
        %v6330 = vpack.c.b16 %v6150, %v6141
        %v6331 = vpack.c.b16 %v6151, %v6142
        %v6332 = vpack.c.b16 %v6152, %v6143
        %v6333 = vpack.c.b16 %v6153, %v6144
        %v6334 = vpack.c.b16 %v6163, %v6154
        %v6335 = vpack.c.b16 %v6164, %v6155
        %v6336 = vpack.c.b16 %v6165, %v6156
        %v6337 = vpack.c.b16 %v6166, %v6157
        %v6338 = vpack.c.b16 %v6167, %v6158
        %v6339 = vpack.c.b16 %v6168, %v6159
        %v6340 = vpack.c.b16 %v6169, %v6160
        %v6341 = vpack.c.b16 %v6170, %v6161
        %v6342 = vpack.c.b16 %v6171, %v6162
        %v6343 = vpack.c.b16 %v6181, %v6172
        %v6344 = vpack.c.b16 %v6182, %v6173
        %v6345 = vpack.c.b16 %v6183, %v6174
        %v6346 = vpack.c.b16 %v6184, %v6175
        %v6347 = vpack.c.b16 %v6185, %v6176
        %v6348 = vpack.c.b16 %v6186, %v6177
        %v6349 = vpack.c.b16 %v6187, %v6178
        %v6350 = vpack.c.b16 %v6188, %v6179
        %v6351 = vpack.c.b16 %v6189, %v6180
        %v6352 = vpack.c.b16 %v6199, %v6190
        %v6353 = vpack.c.b16 %v6200, %v6191
        %v6354 = vpack.c.b16 %v6201, %v6192
        %v6355 = vpack.c.b16 %v6202, %v6193
        %v6356 = vpack.c.b16 %v6203, %v6194
        %v6357 = vpack.c.b16 %v6204, %v6195
        %v6358 = vpack.c.b16 %v6205, %v6196
        %v6359 = vpack.c.b16 %v6206, %v6197
        %v6360 = vpack.c.b16 %v6207, %v6198
        %v6361 = vpack.c.b16 %v6217, %v6208
        %v6362 = vpack.c.b16 %v6218, %v6209
        %v6363 = vpack.c.b16 %v6219, %v6210
        %v6364 = vpack.c.b16 %v6220, %v6211
        %v6365 = vpack.c.b16 %v6221, %v6212
        %v6366 = vpack.c.b16 %v6222, %v6213
        %v6367 = vpack.c.b16 %v6223, %v6214
        %v6368 = vpack.c.b16 %v6224, %v6215
        %v6369 = vpack.c.b16 %v6225, %v6216
        %v6658 = vunpack.c.l.b16 %v5634
        %v6659 = vunpack.c.l.b16 %v5635
        %v6660 = vunpack.c.l.b16 %v5636
        %v6661 = vunpack.c.l.b16 %v5637
        %v6662 = vunpack.c.l.b16 %v5638
        %v6663 = vunpack.c.l.b16 %v5639
        %v6664 = vunpack.c.l.b16 %v5640
        %v6665 = vunpack.c.l.b16 %v5641
        %v6666 = vunpack.c.l.b16 %v5642
        %v6667 = vunpack.c.l.b16 %v5643
        %v6668 = vunpack.c.l.b16 %v5644
        %v6669 = vunpack.c.l.b16 %v5645
        %v6670 = vunpack.c.l.b16 %v5646
        %v6671 = vunpack.c.l.b16 %v5647
        %v6672 = vunpack.c.l.b16 %v5648
        %v6673 = vunpack.c.l.b16 %v5649
        %v6674 = vunpack.c.l.b16 %v5650
        %v6675 = vunpack.c.l.b16 %v5651
        %v6676 = vunpack.c.l.b16 %v5652
        %v6677 = vunpack.c.l.b16 %v5653
        %v6678 = vunpack.c.l.b16 %v5654
        %v6679 = vunpack.c.l.b16 %v5655
        %v6680 = vunpack.c.l.b16 %v5656
        %v6681 = vunpack.c.l.b16 %v5657
        %v6682 = vunpack.c.l.b16 %v5658
        %v6683 = vunpack.c.l.b16 %v5659
        %v6684 = vunpack.c.l.b16 %v5660
        %v6685 = vunpack.c.l.b16 %v5661
        %v6686 = vunpack.c.l.b16 %v5662
        %v6687 = vunpack.c.l.b16 %v5663
        %v6688 = vunpack.c.l.b16 %v5664
        %v6689 = vunpack.c.l.b16 %v5665
        %v6690 = vunpack.c.l.b16 %v5666
        %v6691 = vunpack.c.l.b16 %v5667
        %v6692 = vunpack.c.l.b16 %v5668
        %v6693 = vunpack.c.l.b16 %v5669
        %v6694 = vunpack.c.l.b16 %v5670
        %v6695 = vunpack.c.l.b16 %v5671
        %v6696 = vunpack.c.l.b16 %v5672
        %v6697 = vunpack.c.l.b16 %v5673
        %v6698 = vunpack.c.l.b16 %v5674
        %v6699 = vunpack.c.l.b16 %v5675
        %v6700 = vunpack.c.l.b16 %v5676
        %v6701 = vunpack.c.l.b16 %v5677
        %v6702 = vunpack.c.l.b16 %v5678
        %v6703 = vunpack.c.l.b16 %v5679
        %v6704 = vunpack.c.l.b16 %v5680
        %v6705 = vunpack.c.l.b16 %v5681
        %v6706 = vunpack.c.l.b16 %v5682
        %v6707 = vunpack.c.l.b16 %v5683
        %v6708 = vunpack.c.l.b16 %v5684
        %v6709 = vunpack.c.l.b16 %v5685
        %v6710 = vunpack.c.l.b16 %v5686
        %v6711 = vunpack.c.l.b16 %v5687
        %v6712 = vunpack.c.l.b16 %v5688
        %v6713 = vunpack.c.l.b16 %v5689
        %v6714 = vunpack.c.l.b16 %v5690
        %v6715 = vunpack.c.l.b16 %v5691
        %v6716 = vunpack.c.l.b16 %v5692
        %v6717 = vunpack.c.l.b16 %v5693
        %v6718 = vunpack.c.l.b16 %v5694
        %v6719 = vunpack.c.l.b16 %v5695
        %v6720 = vunpack.c.l.b16 %v5696
        %v6721 = vunpack.c.l.b16 %v5697
        %v6722 = vunpack.c.l.b16 %v5698
        %v6723 = vunpack.c.l.b16 %v5699
        %v6724 = vunpack.c.l.b16 %v5700
        %v6725 = vunpack.c.l.b16 %v5701
        %v6726 = vunpack.c.l.b16 %v5702
        %v6727 = vunpack.c.l.b16 %v5703
        %v6728 = vunpack.c.l.b16 %v5704
        %v6729 = vunpack.c.l.b16 %v5705
        %v6730 = vunpack.c.l.b16 %v5706
        %v6731 = vunpack.c.l.b16 %v5707
        %v6732 = vunpack.c.l.b16 %v5708
        %v6733 = vunpack.c.l.b16 %v5709
        %v6734 = vunpack.c.l.b16 %v5710
        %v6735 = vunpack.c.l.b16 %v5711
        %v6736 = vunpack.c.l.b16 %v5712
        %v6737 = vunpack.c.l.b16 %v5713
        %v6738 = vunpack.c.l.b16 %v5714
        %v6739 = vunpack.c.l.b16 %v5715
        %v6740 = vunpack.c.l.b16 %v5716
        %v6741 = vunpack.c.l.b16 %v5717
        %v6742 = vunpack.c.l.b16 %v5718
        %v6743 = vunpack.c.l.b16 %v5719
        %v6744 = vunpack.c.l.b16 %v5720
        %v6745 = vunpack.c.l.b16 %v5721
        %v6746 = vunpack.c.l.b16 %v5722
        %v6747 = vunpack.c.l.b16 %v5723
        %v6748 = vunpack.c.l.b16 %v5724
        %v6749 = vunpack.c.l.b16 %v5725
        %v6750 = vunpack.c.l.b16 %v5726
        %v6751 = vunpack.c.l.b16 %v5727
        %v6752 = vunpack.c.l.b16 %v5728
        %v6753 = vunpack.c.l.b16 %v5729
        %v6754 = vunpack.c.l.b16 %v5730
        %v6755 = vunpack.c.l.b16 %v5731
        %v6756 = vunpack.c.l.b16 %v5732
        %v6757 = vunpack.c.l.b16 %v5733
        %v6758 = vunpack.c.l.b16 %v5734
        %v6759 = vunpack.c.l.b16 %v5735
        %v6760 = vunpack.c.l.b16 %v5736
        %v6761 = vunpack.c.l.b16 %v5737
        %v6762 = vunpack.c.l.b16 %v5738
        %v6763 = vunpack.c.l.b16 %v5739
        %v6764 = vunpack.c.l.b16 %v5740
        %v6765 = vunpack.c.l.b16 %v5741
        %v6766 = vunpack.c.l.b16 %v5742
        %v6767 = vunpack.c.l.b16 %v5743
        %v6768 = vunpack.c.l.b16 %v5744
        %v6769 = vunpack.c.l.b16 %v5745
        %v6770 = vunpack.c.l.b16 %v5746
        %v6771 = vunpack.c.l.b16 %v5747
        %v6772 = vunpack.c.l.b16 %v5748
        %v6773 = vunpack.c.l.b16 %v5749
        %v6774 = vunpack.c.l.b16 %v5750
        %v6775 = vunpack.c.l.b16 %v5751
        %v6776 = vunpack.c.l.b16 %v5752
        %v6777 = vunpack.c.l.b16 %v5753
        %v6778 = vunpack.c.l.b16 %v5754
        %v6779 = vunpack.c.l.b16 %v5755
        %v6780 = vunpack.c.l.b16 %v5756
        %v6781 = vunpack.c.l.b16 %v5757
        %v6782 = vunpack.c.l.b16 %v5758
        %v6783 = vunpack.c.l.b16 %v5759
        %v6784 = vunpack.c.l.b16 %v5760
        %v6785 = vunpack.c.l.b16 %v5761
        %v6786 = vunpack.c.l.b16 %v5762
        %v6787 = vunpack.c.l.b16 %v5763
        %v6788 = vunpack.c.l.b16 %v5764
        %v6789 = vunpack.c.l.b16 %v5765
        %v6790 = vunpack.c.l.b16 %v5766
        %v6791 = vunpack.c.l.b16 %v5767
        %v6792 = vunpack.c.l.b16 %v5768
        %v6793 = vunpack.c.l.b16 %v5769
        %v6794 = vunpack.c.l.b16 %v5770
        %v6795 = vunpack.c.l.b16 %v5771
        %v6796 = vunpack.c.l.b16 %v5772
        %v6797 = vunpack.c.l.b16 %v5773
        %v6798 = vunpack.c.l.b16 %v5774
        %v6799 = vunpack.c.l.b16 %v5775
        %v6800 = vunpack.c.l.b16 %v5776
        %v6801 = vunpack.c.l.b16 %v5777
        %v6802 = vpack.c.b16 %v6659, %v6658
        %v6803 = vpack.c.b16 %v6661, %v6660
        %v6804 = vpack.c.b16 %v6663, %v6662
        %v6805 = vpack.c.b16 %v6665, %v6664
        %v6806 = vpack.c.b16 %v6667, %v6666
        %v6807 = vpack.c.b16 %v6669, %v6668
        %v6808 = vpack.c.b16 %v6671, %v6670
        %v6809 = vpack.c.b16 %v6673, %v6672
        %v6810 = vpack.c.b16 %v6675, %v6674
        %v6811 = vpack.c.b16 %v6677, %v6676
        %v6812 = vpack.c.b16 %v6679, %v6678
        %v6813 = vpack.c.b16 %v6681, %v6680
        %v6814 = vpack.c.b16 %v6683, %v6682
        %v6815 = vpack.c.b16 %v6685, %v6684
        %v6816 = vpack.c.b16 %v6687, %v6686
        %v6817 = vpack.c.b16 %v6689, %v6688
        %v6818 = vpack.c.b16 %v6691, %v6690
        %v6819 = vpack.c.b16 %v6693, %v6692
        %v6820 = vpack.c.b16 %v6695, %v6694
        %v6821 = vpack.c.b16 %v6697, %v6696
        %v6822 = vpack.c.b16 %v6699, %v6698
        %v6823 = vpack.c.b16 %v6701, %v6700
        %v6824 = vpack.c.b16 %v6703, %v6702
        %v6825 = vpack.c.b16 %v6705, %v6704
        %v6826 = vpack.c.b16 %v6707, %v6706
        %v6827 = vpack.c.b16 %v6709, %v6708
        %v6828 = vpack.c.b16 %v6711, %v6710
        %v6829 = vpack.c.b16 %v6713, %v6712
        %v6830 = vpack.c.b16 %v6715, %v6714
        %v6831 = vpack.c.b16 %v6717, %v6716
        %v6832 = vpack.c.b16 %v6719, %v6718
        %v6833 = vpack.c.b16 %v6721, %v6720
        %v6834 = vpack.c.b16 %v6723, %v6722
        %v6835 = vpack.c.b16 %v6725, %v6724
        %v6836 = vpack.c.b16 %v6727, %v6726
        %v6837 = vpack.c.b16 %v6729, %v6728
        %v6838 = vpack.c.b16 %v6731, %v6730
        %v6839 = vpack.c.b16 %v6733, %v6732
        %v6840 = vpack.c.b16 %v6735, %v6734
        %v6841 = vpack.c.b16 %v6737, %v6736
        %v6842 = vpack.c.b16 %v6739, %v6738
        %v6843 = vpack.c.b16 %v6741, %v6740
        %v6844 = vpack.c.b16 %v6743, %v6742
        %v6845 = vpack.c.b16 %v6745, %v6744
        %v6846 = vpack.c.b16 %v6747, %v6746
        %v6847 = vpack.c.b16 %v6749, %v6748
        %v6848 = vpack.c.b16 %v6751, %v6750
        %v6849 = vpack.c.b16 %v6753, %v6752
        %v6850 = vpack.c.b16 %v6755, %v6754
        %v6851 = vpack.c.b16 %v6757, %v6756
        %v6852 = vpack.c.b16 %v6759, %v6758
        %v6853 = vpack.c.b16 %v6761, %v6760
        %v6854 = vpack.c.b16 %v6763, %v6762
        %v6855 = vpack.c.b16 %v6765, %v6764
        %v6856 = vpack.c.b16 %v6767, %v6766
        %v6857 = vpack.c.b16 %v6769, %v6768
        %v6858 = vpack.c.b16 %v6771, %v6770
        %v6859 = vpack.c.b16 %v6773, %v6772
        %v6860 = vpack.c.b16 %v6775, %v6774
        %v6861 = vpack.c.b16 %v6777, %v6776
        %v6862 = vpack.c.b16 %v6779, %v6778
        %v6863 = vpack.c.b16 %v6781, %v6780
        %v6864 = vpack.c.b16 %v6783, %v6782
        %v6865 = vpack.c.b16 %v6785, %v6784
        %v6866 = vpack.c.b16 %v6787, %v6786
        %v6867 = vpack.c.b16 %v6789, %v6788
        %v6868 = vpack.c.b16 %v6791, %v6790
        %v6869 = vpack.c.b16 %v6793, %v6792
        %v6870 = vpack.c.b16 %v6795, %v6794
        %v6871 = vpack.c.b16 %v6797, %v6796
        %v6872 = vpack.c.b16 %v6799, %v6798
        %v6873 = vpack.c.b16 %v6801, %v6800
        %6946 = vmatpush.bf16.msra.mxu0 %v6809
        %6947 = vmatpush.bf16.msra.mxu0 %v6808
        %6948 = vmatpush.bf16.msra.mxu0 %v6807
        %6949 = vmatpush.bf16.msra.mxu0 %v6806
        %6950 = vmatpush.bf16.msra.mxu0 %v6805
        %6951 = vmatpush.bf16.msra.mxu0 %v6804
        %6952 = vmatpush.bf16.msra.mxu0 %v6803
        %6953 = vmatpush.bf16.msra.mxu0 %v6802
        %6954 = vmatmul.bf16.gmra.mxu0 %v6226
        %v6955 = vpop.f32.mrf.mxu0
        %v6956 = vadd.f32 0.0, %v6955
        %v6957 = vpop.f32.mrf.mxu0
        %v6958 = vadd.f32 0.0, %v6957
        %6959 = vmatmul.bf16.gmra.mxu0 %v6235
        %v6960 = vpop.f32.mrf.mxu0
        %v6961 = vadd.f32 0.0, %v6960
        %v6962 = vpop.f32.mrf.mxu0
        %v6963 = vadd.f32 0.0, %v6962
        %6964 = vmatmul.bf16.gmra.mxu0 %v6244
        %v6965 = vpop.f32.mrf.mxu0
        %v6966 = vadd.f32 0.0, %v6965
        %v6967 = vpop.f32.mrf.mxu0
        %v6968 = vadd.f32 0.0, %v6967
        %6969 = vmatmul.bf16.gmra.mxu0 %v6253
        %v6970 = vpop.f32.mrf.mxu0
        %v6971 = vadd.f32 0.0, %v6970
        %v6972 = vpop.f32.mrf.mxu0
        %v6973 = vadd.f32 0.0, %v6972
        %6974 = vmatmul.bf16.gmra.mxu0 %v6262
        %v6975 = vpop.f32.mrf.mxu0
        %v6976 = vadd.f32 0.0, %v6975
        %v6977 = vpop.f32.mrf.mxu0
        %v6978 = vadd.f32 0.0, %v6977
        %6979 = vmatmul.bf16.gmra.mxu0 %v6271
        %v6980 = vpop.f32.mrf.mxu0
        %v6981 = vadd.f32 0.0, %v6980
        %v6982 = vpop.f32.mrf.mxu0
        %v6983 = vadd.f32 0.0, %v6982
        %6984 = vmatmul.bf16.gmra.mxu0 %v6280
        %v6985 = vpop.f32.mrf.mxu0
        %v6986 = vadd.f32 0.0, %v6985
        %v6987 = vpop.f32.mrf.mxu0
        %v6988 = vadd.f32 0.0, %v6987
        %6989 = vmatmul.bf16.gmra.mxu0 %v6289
        %v6990 = vpop.f32.mrf.mxu0
        %v6991 = vadd.f32 0.0, %v6990
        %v6992 = vpop.f32.mrf.mxu0
        %v6993 = vadd.f32 0.0, %v6992
        %6994 = vmatmul.bf16.gmra.mxu0 %v6298
        %v6995 = vpop.f32.mrf.mxu0
        %v6996 = vadd.f32 0.0, %v6995
        %v6997 = vpop.f32.mrf.mxu0
        %v6998 = vadd.f32 0.0, %v6997
        %6999 = vmatmul.bf16.gmra.mxu0 %v6307
        %v7000 = vpop.f32.mrf.mxu0
        %v7001 = vadd.f32 0.0, %v7000
        %v7002 = vpop.f32.mrf.mxu0
        %v7003 = vadd.f32 0.0, %v7002
        %7004 = vmatmul.bf16.gmra.mxu0 %v6316
        %v7005 = vpop.f32.mrf.mxu0
        %v7006 = vadd.f32 0.0, %v7005
        %v7007 = vpop.f32.mrf.mxu0
        %v7008 = vadd.f32 0.0, %v7007
        %7009 = vmatmul.bf16.gmra.mxu0 %v6325
        %v7010 = vpop.f32.mrf.mxu0
        %v7011 = vadd.f32 0.0, %v7010
        %v7012 = vpop.f32.mrf.mxu0
        %v7013 = vadd.f32 0.0, %v7012
        %7014 = vmatmul.bf16.gmra.mxu0 %v6334
        %v7015 = vpop.f32.mrf.mxu0
        %v7016 = vadd.f32 0.0, %v7015
        %v7017 = vpop.f32.mrf.mxu0
        %v7018 = vadd.f32 0.0, %v7017
        %7019 = vmatmul.bf16.gmra.mxu0 %v6343
        %v7020 = vpop.f32.mrf.mxu0
        %v7021 = vadd.f32 0.0, %v7020
        %v7022 = vpop.f32.mrf.mxu0
        %v7023 = vadd.f32 0.0, %v7022
        %7024 = vmatmul.bf16.gmra.mxu0 %v6352
        %v7025 = vpop.f32.mrf.mxu0
        %v7026 = vadd.f32 0.0, %v7025
        %v7027 = vpop.f32.mrf.mxu0
        %v7028 = vadd.f32 0.0, %v7027
        %7029 = vmatmul.bf16.gmra.mxu0 %v6361
        %v7030 = vpop.f32.mrf.mxu0
        %v7031 = vadd.f32 0.0, %v7030
        %v7032 = vpop.f32.mrf.mxu0
        %v7033 = vadd.f32 0.0, %v7032
        %7034 = vdwg.mxu0
        %7035 = vmatpush.bf16.msra.mxu0 %v6817
        %7036 = vmatpush.bf16.msra.mxu0 %v6816
        %7037 = vmatpush.bf16.msra.mxu0 %v6815
        %7038 = vmatpush.bf16.msra.mxu0 %v6814
        %7039 = vmatpush.bf16.msra.mxu0 %v6813
        %7040 = vmatpush.bf16.msra.mxu0 %v6812
        %7041 = vmatpush.bf16.msra.mxu0 %v6811
        %7042 = vmatpush.bf16.msra.mxu0 %v6810
        %7043 = vmatmul.bf16.gmra.mxu0 %v6227
        %v7044 = vpop.f32.mrf.mxu0
        %v7045 = vadd.f32 %v6956, %v7044
        %v7046 = vpop.f32.mrf.mxu0
        %v7047 = vadd.f32 %v6958, %v7046
        %7048 = vmatmul.bf16.gmra.mxu0 %v6236
        %v7049 = vpop.f32.mrf.mxu0
        %v7050 = vadd.f32 %v6961, %v7049
        %v7051 = vpop.f32.mrf.mxu0
        %v7052 = vadd.f32 %v6963, %v7051
        %7053 = vmatmul.bf16.gmra.mxu0 %v6245
        %v7054 = vpop.f32.mrf.mxu0
        %v7055 = vadd.f32 %v6966, %v7054
        %v7056 = vpop.f32.mrf.mxu0
        %v7057 = vadd.f32 %v6968, %v7056
        %7058 = vmatmul.bf16.gmra.mxu0 %v6254
        %v7059 = vpop.f32.mrf.mxu0
        %v7060 = vadd.f32 %v6971, %v7059
        %v7061 = vpop.f32.mrf.mxu0
        %v7062 = vadd.f32 %v6973, %v7061
        %7063 = vmatmul.bf16.gmra.mxu0 %v6263
        %v7064 = vpop.f32.mrf.mxu0
        %v7065 = vadd.f32 %v6976, %v7064
        %v7066 = vpop.f32.mrf.mxu0
        %v7067 = vadd.f32 %v6978, %v7066
        %7068 = vmatmul.bf16.gmra.mxu0 %v6272
        %v7069 = vpop.f32.mrf.mxu0
        %v7070 = vadd.f32 %v6981, %v7069
        %v7071 = vpop.f32.mrf.mxu0
        %v7072 = vadd.f32 %v6983, %v7071
        %7073 = vmatmul.bf16.gmra.mxu0 %v6281
        %v7074 = vpop.f32.mrf.mxu0
        %v7075 = vadd.f32 %v6986, %v7074
        %v7076 = vpop.f32.mrf.mxu0
        %v7077 = vadd.f32 %v6988, %v7076
        %7078 = vmatmul.bf16.gmra.mxu0 %v6290
        %v7079 = vpop.f32.mrf.mxu0
        %v7080 = vadd.f32 %v6991, %v7079
        %v7081 = vpop.f32.mrf.mxu0
        %v7082 = vadd.f32 %v6993, %v7081
        %7083 = vmatmul.bf16.gmra.mxu0 %v6299
        %v7084 = vpop.f32.mrf.mxu0
        %v7085 = vadd.f32 %v6996, %v7084
        %v7086 = vpop.f32.mrf.mxu0
        %v7087 = vadd.f32 %v6998, %v7086
        %7088 = vmatmul.bf16.gmra.mxu0 %v6308
        %v7089 = vpop.f32.mrf.mxu0
        %v7090 = vadd.f32 %v7001, %v7089
        %v7091 = vpop.f32.mrf.mxu0
        %v7092 = vadd.f32 %v7003, %v7091
        %7093 = vmatmul.bf16.gmra.mxu0 %v6317
        %v7094 = vpop.f32.mrf.mxu0
        %v7095 = vadd.f32 %v7006, %v7094
        %v7096 = vpop.f32.mrf.mxu0
        %v7097 = vadd.f32 %v7008, %v7096
        %7098 = vmatmul.bf16.gmra.mxu0 %v6326
        %v7099 = vpop.f32.mrf.mxu0
        %v7100 = vadd.f32 %v7011, %v7099
        %v7101 = vpop.f32.mrf.mxu0
        %v7102 = vadd.f32 %v7013, %v7101
        %7103 = vmatmul.bf16.gmra.mxu0 %v6335
        %v7104 = vpop.f32.mrf.mxu0
        %v7105 = vadd.f32 %v7016, %v7104
        %v7106 = vpop.f32.mrf.mxu0
        %v7107 = vadd.f32 %v7018, %v7106
        %7108 = vmatmul.bf16.gmra.mxu0 %v6344
        %v7109 = vpop.f32.mrf.mxu0
        %v7110 = vadd.f32 %v7021, %v7109
        %v7111 = vpop.f32.mrf.mxu0
        %v7112 = vadd.f32 %v7023, %v7111
        %7113 = vmatmul.bf16.gmra.mxu0 %v6353
        %v7114 = vpop.f32.mrf.mxu0
        %v7115 = vadd.f32 %v7026, %v7114
        %v7116 = vpop.f32.mrf.mxu0
        %v7117 = vadd.f32 %v7028, %v7116
        %7118 = vmatmul.bf16.gmra.mxu0 %v6362
        %v7119 = vpop.f32.mrf.mxu0
        %v7120 = vadd.f32 %v7031, %v7119
        %v7121 = vpop.f32.mrf.mxu0
        %v7122 = vadd.f32 %v7033, %v7121
        %7123 = vdwg.mxu0
        %7124 = vmatpush.bf16.msra.mxu0 %v6825
        %7125 = vmatpush.bf16.msra.mxu0 %v6824
        %7126 = vmatpush.bf16.msra.mxu0 %v6823
        %7127 = vmatpush.bf16.msra.mxu0 %v6822
        %7128 = vmatpush.bf16.msra.mxu0 %v6821
        %7129 = vmatpush.bf16.msra.mxu0 %v6820
        %7130 = vmatpush.bf16.msra.mxu0 %v6819
        %7131 = vmatpush.bf16.msra.mxu0 %v6818
        %7132 = vmatmul.bf16.gmra.mxu0 %v6228
        %v7133 = vpop.f32.mrf.mxu0
        %v7134 = vadd.f32 %v7045, %v7133
        %v7135 = vpop.f32.mrf.mxu0
        %v7136 = vadd.f32 %v7047, %v7135
        %7137 = vmatmul.bf16.gmra.mxu0 %v6237
        %v7138 = vpop.f32.mrf.mxu0
        %v7139 = vadd.f32 %v7050, %v7138
        %v7140 = vpop.f32.mrf.mxu0
        %v7141 = vadd.f32 %v7052, %v7140
        %7142 = vmatmul.bf16.gmra.mxu0 %v6246
        %v7143 = vpop.f32.mrf.mxu0
        %v7144 = vadd.f32 %v7055, %v7143
        %v7145 = vpop.f32.mrf.mxu0
        %v7146 = vadd.f32 %v7057, %v7145
        %7147 = vmatmul.bf16.gmra.mxu0 %v6255
        %v7148 = vpop.f32.mrf.mxu0
        %v7149 = vadd.f32 %v7060, %v7148
        %v7150 = vpop.f32.mrf.mxu0
        %v7151 = vadd.f32 %v7062, %v7150
        %7152 = vmatmul.bf16.gmra.mxu0 %v6264
        %v7153 = vpop.f32.mrf.mxu0
        %v7154 = vadd.f32 %v7065, %v7153
        %v7155 = vpop.f32.mrf.mxu0
        %v7156 = vadd.f32 %v7067, %v7155
        %7157 = vmatmul.bf16.gmra.mxu0 %v6273
        %v7158 = vpop.f32.mrf.mxu0
        %v7159 = vadd.f32 %v7070, %v7158
        %v7160 = vpop.f32.mrf.mxu0
        %v7161 = vadd.f32 %v7072, %v7160
        %7162 = vmatmul.bf16.gmra.mxu0 %v6282
        %v7163 = vpop.f32.mrf.mxu0
        %v7164 = vadd.f32 %v7075, %v7163
        %v7165 = vpop.f32.mrf.mxu0
        %v7166 = vadd.f32 %v7077, %v7165
        %7167 = vmatmul.bf16.gmra.mxu0 %v6291
        %v7168 = vpop.f32.mrf.mxu0
        %v7169 = vadd.f32 %v7080, %v7168
        %v7170 = vpop.f32.mrf.mxu0
        %v7171 = vadd.f32 %v7082, %v7170
        %7172 = vmatmul.bf16.gmra.mxu0 %v6300
        %v7173 = vpop.f32.mrf.mxu0
        %v7174 = vadd.f32 %v7085, %v7173
        %v7175 = vpop.f32.mrf.mxu0
        %v7176 = vadd.f32 %v7087, %v7175
        %7177 = vmatmul.bf16.gmra.mxu0 %v6309
        %v7178 = vpop.f32.mrf.mxu0
        %v7179 = vadd.f32 %v7090, %v7178
        %v7180 = vpop.f32.mrf.mxu0
        %v7181 = vadd.f32 %v7092, %v7180
        %7182 = vmatmul.bf16.gmra.mxu0 %v6318
        %v7183 = vpop.f32.mrf.mxu0
        %v7184 = vadd.f32 %v7095, %v7183
        %v7185 = vpop.f32.mrf.mxu0
        %v7186 = vadd.f32 %v7097, %v7185
        %7187 = vmatmul.bf16.gmra.mxu0 %v6327
        %v7188 = vpop.f32.mrf.mxu0
        %v7189 = vadd.f32 %v7100, %v7188
        %v7190 = vpop.f32.mrf.mxu0
        %v7191 = vadd.f32 %v7102, %v7190
        %7192 = vmatmul.bf16.gmra.mxu0 %v6336
        %v7193 = vpop.f32.mrf.mxu0
        %v7194 = vadd.f32 %v7105, %v7193
        %v7195 = vpop.f32.mrf.mxu0
        %v7196 = vadd.f32 %v7107, %v7195
        %7197 = vmatmul.bf16.gmra.mxu0 %v6345
        %v7198 = vpop.f32.mrf.mxu0
        %v7199 = vadd.f32 %v7110, %v7198
        %v7200 = vpop.f32.mrf.mxu0
        %v7201 = vadd.f32 %v7112, %v7200
        %7202 = vmatmul.bf16.gmra.mxu0 %v6354
        %v7203 = vpop.f32.mrf.mxu0
        %v7204 = vadd.f32 %v7115, %v7203
        %v7205 = vpop.f32.mrf.mxu0
        %v7206 = vadd.f32 %v7117, %v7205
        %7207 = vmatmul.bf16.gmra.mxu0 %v6363
        %v7208 = vpop.f32.mrf.mxu0
        %v7209 = vadd.f32 %v7120, %v7208
        %v7210 = vpop.f32.mrf.mxu0
        %v7211 = vadd.f32 %v7122, %v7210
        %7212 = vdwg.mxu0
        %7213 = vmatpush.bf16.msra.mxu0 %v6833
        %7214 = vmatpush.bf16.msra.mxu0 %v6832
        %7215 = vmatpush.bf16.msra.mxu0 %v6831
        %7216 = vmatpush.bf16.msra.mxu0 %v6830
        %7217 = vmatpush.bf16.msra.mxu0 %v6829
        %7218 = vmatpush.bf16.msra.mxu0 %v6828
        %7219 = vmatpush.bf16.msra.mxu0 %v6827
        %7220 = vmatpush.bf16.msra.mxu0 %v6826
        %7221 = vmatmul.bf16.gmra.mxu0 %v6229
        %v7222 = vpop.f32.mrf.mxu0
        %v7223 = vadd.f32 %v7134, %v7222
        %v7224 = vpop.f32.mrf.mxu0
        %v7225 = vadd.f32 %v7136, %v7224
        %7226 = vmatmul.bf16.gmra.mxu0 %v6238
        %v7227 = vpop.f32.mrf.mxu0
        %v7228 = vadd.f32 %v7139, %v7227
        %v7229 = vpop.f32.mrf.mxu0
        %v7230 = vadd.f32 %v7141, %v7229
        %7231 = vmatmul.bf16.gmra.mxu0 %v6247
        %v7232 = vpop.f32.mrf.mxu0
        %v7233 = vadd.f32 %v7144, %v7232
        %v7234 = vpop.f32.mrf.mxu0
        %v7235 = vadd.f32 %v7146, %v7234
        %7236 = vmatmul.bf16.gmra.mxu0 %v6256
        %v7237 = vpop.f32.mrf.mxu0
        %v7238 = vadd.f32 %v7149, %v7237
        %v7239 = vpop.f32.mrf.mxu0
        %v7240 = vadd.f32 %v7151, %v7239
        %7241 = vmatmul.bf16.gmra.mxu0 %v6265
        %v7242 = vpop.f32.mrf.mxu0
        %v7243 = vadd.f32 %v7154, %v7242
        %v7244 = vpop.f32.mrf.mxu0
        %v7245 = vadd.f32 %v7156, %v7244
        %7246 = vmatmul.bf16.gmra.mxu0 %v6274
        %v7247 = vpop.f32.mrf.mxu0
        %v7248 = vadd.f32 %v7159, %v7247
        %v7249 = vpop.f32.mrf.mxu0
        %v7250 = vadd.f32 %v7161, %v7249
        %7251 = vmatmul.bf16.gmra.mxu0 %v6283
        %v7252 = vpop.f32.mrf.mxu0
        %v7253 = vadd.f32 %v7164, %v7252
        %v7254 = vpop.f32.mrf.mxu0
        %v7255 = vadd.f32 %v7166, %v7254
        %7256 = vmatmul.bf16.gmra.mxu0 %v6292
        %v7257 = vpop.f32.mrf.mxu0
        %v7258 = vadd.f32 %v7169, %v7257
        %v7259 = vpop.f32.mrf.mxu0
        %v7260 = vadd.f32 %v7171, %v7259
        %7261 = vmatmul.bf16.gmra.mxu0 %v6301
        %v7262 = vpop.f32.mrf.mxu0
        %v7263 = vadd.f32 %v7174, %v7262
        %v7264 = vpop.f32.mrf.mxu0
        %v7265 = vadd.f32 %v7176, %v7264
        %7266 = vmatmul.bf16.gmra.mxu0 %v6310
        %v7267 = vpop.f32.mrf.mxu0
        %v7268 = vadd.f32 %v7179, %v7267
        %v7269 = vpop.f32.mrf.mxu0
        %v7270 = vadd.f32 %v7181, %v7269
        %7271 = vmatmul.bf16.gmra.mxu0 %v6319
        %v7272 = vpop.f32.mrf.mxu0
        %v7273 = vadd.f32 %v7184, %v7272
        %v7274 = vpop.f32.mrf.mxu0
        %v7275 = vadd.f32 %v7186, %v7274
        %7276 = vmatmul.bf16.gmra.mxu0 %v6328
        %v7277 = vpop.f32.mrf.mxu0
        %v7278 = vadd.f32 %v7189, %v7277
        %v7279 = vpop.f32.mrf.mxu0
        %v7280 = vadd.f32 %v7191, %v7279
        %7281 = vmatmul.bf16.gmra.mxu0 %v6337
        %v7282 = vpop.f32.mrf.mxu0
        %v7283 = vadd.f32 %v7194, %v7282
        %v7284 = vpop.f32.mrf.mxu0
        %v7285 = vadd.f32 %v7196, %v7284
        %7286 = vmatmul.bf16.gmra.mxu0 %v6346
        %v7287 = vpop.f32.mrf.mxu0
        %v7288 = vadd.f32 %v7199, %v7287
        %v7289 = vpop.f32.mrf.mxu0
        %v7290 = vadd.f32 %v7201, %v7289
        %7291 = vmatmul.bf16.gmra.mxu0 %v6355
        %v7292 = vpop.f32.mrf.mxu0
        %v7293 = vadd.f32 %v7204, %v7292
        %v7294 = vpop.f32.mrf.mxu0
        %v7295 = vadd.f32 %v7206, %v7294
        %7296 = vmatmul.bf16.gmra.mxu0 %v6364
        %v7297 = vpop.f32.mrf.mxu0
        %v7298 = vadd.f32 %v7209, %v7297
        %v7299 = vpop.f32.mrf.mxu0
        %v7300 = vadd.f32 %v7211, %v7299
        %7301 = vdwg.mxu0
        %7302 = vmatpush.bf16.msra.mxu0 %v6841
        %7303 = vmatpush.bf16.msra.mxu0 %v6840
        %7304 = vmatpush.bf16.msra.mxu0 %v6839
        %7305 = vmatpush.bf16.msra.mxu0 %v6838
        %7306 = vmatpush.bf16.msra.mxu0 %v6837
        %7307 = vmatpush.bf16.msra.mxu0 %v6836
        %7308 = vmatpush.bf16.msra.mxu0 %v6835
        %7309 = vmatpush.bf16.msra.mxu0 %v6834
        %7310 = vmatmul.bf16.gmra.mxu0 %v6230
        %v7311 = vpop.f32.mrf.mxu0
        %v7312 = vadd.f32 %v7223, %v7311
        %v7313 = vpop.f32.mrf.mxu0
        %v7314 = vadd.f32 %v7225, %v7313
        %7315 = vmatmul.bf16.gmra.mxu0 %v6239
        %v7316 = vpop.f32.mrf.mxu0
        %v7317 = vadd.f32 %v7228, %v7316
        %v7318 = vpop.f32.mrf.mxu0
        %v7319 = vadd.f32 %v7230, %v7318
        %7320 = vmatmul.bf16.gmra.mxu0 %v6248
        %v7321 = vpop.f32.mrf.mxu0
        %v7322 = vadd.f32 %v7233, %v7321
        %v7323 = vpop.f32.mrf.mxu0
        %v7324 = vadd.f32 %v7235, %v7323
        %7325 = vmatmul.bf16.gmra.mxu0 %v6257
        %v7326 = vpop.f32.mrf.mxu0
        %v7327 = vadd.f32 %v7238, %v7326
        %v7328 = vpop.f32.mrf.mxu0
        %v7329 = vadd.f32 %v7240, %v7328
        %7330 = vmatmul.bf16.gmra.mxu0 %v6266
        %v7331 = vpop.f32.mrf.mxu0
        %v7332 = vadd.f32 %v7243, %v7331
        %v7333 = vpop.f32.mrf.mxu0
        %v7334 = vadd.f32 %v7245, %v7333
        %7335 = vmatmul.bf16.gmra.mxu0 %v6275
        %v7336 = vpop.f32.mrf.mxu0
        %v7337 = vadd.f32 %v7248, %v7336
        %v7338 = vpop.f32.mrf.mxu0
        %v7339 = vadd.f32 %v7250, %v7338
        %7340 = vmatmul.bf16.gmra.mxu0 %v6284
        %v7341 = vpop.f32.mrf.mxu0
        %v7342 = vadd.f32 %v7253, %v7341
        %v7343 = vpop.f32.mrf.mxu0
        %v7344 = vadd.f32 %v7255, %v7343
        %7345 = vmatmul.bf16.gmra.mxu0 %v6293
        %v7346 = vpop.f32.mrf.mxu0
        %v7347 = vadd.f32 %v7258, %v7346
        %v7348 = vpop.f32.mrf.mxu0
        %v7349 = vadd.f32 %v7260, %v7348
        %7350 = vmatmul.bf16.gmra.mxu0 %v6302
        %v7351 = vpop.f32.mrf.mxu0
        %v7352 = vadd.f32 %v7263, %v7351
        %v7353 = vpop.f32.mrf.mxu0
        %v7354 = vadd.f32 %v7265, %v7353
        %7355 = vmatmul.bf16.gmra.mxu0 %v6311
        %v7356 = vpop.f32.mrf.mxu0
        %v7357 = vadd.f32 %v7268, %v7356
        %v7358 = vpop.f32.mrf.mxu0
        %v7359 = vadd.f32 %v7270, %v7358
        %7360 = vmatmul.bf16.gmra.mxu0 %v6320
        %v7361 = vpop.f32.mrf.mxu0
        %v7362 = vadd.f32 %v7273, %v7361
        %v7363 = vpop.f32.mrf.mxu0
        %v7364 = vadd.f32 %v7275, %v7363
        %7365 = vmatmul.bf16.gmra.mxu0 %v6329
        %v7366 = vpop.f32.mrf.mxu0
        %v7367 = vadd.f32 %v7278, %v7366
        %v7368 = vpop.f32.mrf.mxu0
        %v7369 = vadd.f32 %v7280, %v7368
        %7370 = vmatmul.bf16.gmra.mxu0 %v6338
        %v7371 = vpop.f32.mrf.mxu0
        %v7372 = vadd.f32 %v7283, %v7371
        %v7373 = vpop.f32.mrf.mxu0
        %v7374 = vadd.f32 %v7285, %v7373
        %7375 = vmatmul.bf16.gmra.mxu0 %v6347
        %v7376 = vpop.f32.mrf.mxu0
        %v7377 = vadd.f32 %v7288, %v7376
        %v7378 = vpop.f32.mrf.mxu0
        %v7379 = vadd.f32 %v7290, %v7378
        %7380 = vmatmul.bf16.gmra.mxu0 %v6356
        %v7381 = vpop.f32.mrf.mxu0
        %v7382 = vadd.f32 %v7293, %v7381
        %v7383 = vpop.f32.mrf.mxu0
        %v7384 = vadd.f32 %v7295, %v7383
        %7385 = vmatmul.bf16.gmra.mxu0 %v6365
        %v7386 = vpop.f32.mrf.mxu0
        %v7387 = vadd.f32 %v7298, %v7386
        %v7388 = vpop.f32.mrf.mxu0
        %v7389 = vadd.f32 %v7300, %v7388
        %7390 = vdwg.mxu0
        %7391 = vmatpush.bf16.msra.mxu0 %v6849
        %7392 = vmatpush.bf16.msra.mxu0 %v6848
        %7393 = vmatpush.bf16.msra.mxu0 %v6847
        %7394 = vmatpush.bf16.msra.mxu0 %v6846
        %7395 = vmatpush.bf16.msra.mxu0 %v6845
        %7396 = vmatpush.bf16.msra.mxu0 %v6844
        %7397 = vmatpush.bf16.msra.mxu0 %v6843
        %7398 = vmatpush.bf16.msra.mxu0 %v6842
        %7399 = vmatmul.bf16.gmra.mxu0 %v6231
        %v7400 = vpop.f32.mrf.mxu0
        %v7401 = vadd.f32 %v7312, %v7400
        %v7402 = vpop.f32.mrf.mxu0
        %v7403 = vadd.f32 %v7314, %v7402
        %7404 = vmatmul.bf16.gmra.mxu0 %v6240
        %v7405 = vpop.f32.mrf.mxu0
        %v7406 = vadd.f32 %v7317, %v7405
        %v7407 = vpop.f32.mrf.mxu0
        %v7408 = vadd.f32 %v7319, %v7407
        %7409 = vmatmul.bf16.gmra.mxu0 %v6249
        %v7410 = vpop.f32.mrf.mxu0
        %v7411 = vadd.f32 %v7322, %v7410
        %v7412 = vpop.f32.mrf.mxu0
        %v7413 = vadd.f32 %v7324, %v7412
        %7414 = vmatmul.bf16.gmra.mxu0 %v6258
        %v7415 = vpop.f32.mrf.mxu0
        %v7416 = vadd.f32 %v7327, %v7415
        %v7417 = vpop.f32.mrf.mxu0
        %v7418 = vadd.f32 %v7329, %v7417
        %7419 = vmatmul.bf16.gmra.mxu0 %v6267
        %v7420 = vpop.f32.mrf.mxu0
        %v7421 = vadd.f32 %v7332, %v7420
        %v7422 = vpop.f32.mrf.mxu0
        %v7423 = vadd.f32 %v7334, %v7422
        %7424 = vmatmul.bf16.gmra.mxu0 %v6276
        %v7425 = vpop.f32.mrf.mxu0
        %v7426 = vadd.f32 %v7337, %v7425
        %v7427 = vpop.f32.mrf.mxu0
        %v7428 = vadd.f32 %v7339, %v7427
        %7429 = vmatmul.bf16.gmra.mxu0 %v6285
        %v7430 = vpop.f32.mrf.mxu0
        %v7431 = vadd.f32 %v7342, %v7430
        %v7432 = vpop.f32.mrf.mxu0
        %v7433 = vadd.f32 %v7344, %v7432
        %7434 = vmatmul.bf16.gmra.mxu0 %v6294
        %v7435 = vpop.f32.mrf.mxu0
        %v7436 = vadd.f32 %v7347, %v7435
        %v7437 = vpop.f32.mrf.mxu0
        %v7438 = vadd.f32 %v7349, %v7437
        %7439 = vmatmul.bf16.gmra.mxu0 %v6303
        %v7440 = vpop.f32.mrf.mxu0
        %v7441 = vadd.f32 %v7352, %v7440
        %v7442 = vpop.f32.mrf.mxu0
        %v7443 = vadd.f32 %v7354, %v7442
        %7444 = vmatmul.bf16.gmra.mxu0 %v6312
        %v7445 = vpop.f32.mrf.mxu0
        %v7446 = vadd.f32 %v7357, %v7445
        %v7447 = vpop.f32.mrf.mxu0
        %v7448 = vadd.f32 %v7359, %v7447
        %7449 = vmatmul.bf16.gmra.mxu0 %v6321
        %v7450 = vpop.f32.mrf.mxu0
        %v7451 = vadd.f32 %v7362, %v7450
        %v7452 = vpop.f32.mrf.mxu0
        %v7453 = vadd.f32 %v7364, %v7452
        %7454 = vmatmul.bf16.gmra.mxu0 %v6330
        %v7455 = vpop.f32.mrf.mxu0
        %v7456 = vadd.f32 %v7367, %v7455
        %v7457 = vpop.f32.mrf.mxu0
        %v7458 = vadd.f32 %v7369, %v7457
        %7459 = vmatmul.bf16.gmra.mxu0 %v6339
        %v7460 = vpop.f32.mrf.mxu0
        %v7461 = vadd.f32 %v7372, %v7460
        %v7462 = vpop.f32.mrf.mxu0
        %v7463 = vadd.f32 %v7374, %v7462
        %7464 = vmatmul.bf16.gmra.mxu0 %v6348
        %v7465 = vpop.f32.mrf.mxu0
        %v7466 = vadd.f32 %v7377, %v7465
        %v7467 = vpop.f32.mrf.mxu0
        %v7468 = vadd.f32 %v7379, %v7467
        %7469 = vmatmul.bf16.gmra.mxu0 %v6357
        %v7470 = vpop.f32.mrf.mxu0
        %v7471 = vadd.f32 %v7382, %v7470
        %v7472 = vpop.f32.mrf.mxu0
        %v7473 = vadd.f32 %v7384, %v7472
        %7474 = vmatmul.bf16.gmra.mxu0 %v6366
        %v7475 = vpop.f32.mrf.mxu0
        %v7476 = vadd.f32 %v7387, %v7475
        %v7477 = vpop.f32.mrf.mxu0
        %v7478 = vadd.f32 %v7389, %v7477
        %7479 = vdwg.mxu0
        %7480 = vmatpush.bf16.msra.mxu0 %v6857
        %7481 = vmatpush.bf16.msra.mxu0 %v6856
        %7482 = vmatpush.bf16.msra.mxu0 %v6855
        %7483 = vmatpush.bf16.msra.mxu0 %v6854
        %7484 = vmatpush.bf16.msra.mxu0 %v6853
        %7485 = vmatpush.bf16.msra.mxu0 %v6852
        %7486 = vmatpush.bf16.msra.mxu0 %v6851
        %7487 = vmatpush.bf16.msra.mxu0 %v6850
        %7488 = vmatmul.bf16.gmra.mxu0 %v6232
        %v7489 = vpop.f32.mrf.mxu0
        %v7490 = vadd.f32 %v7401, %v7489
        %v7491 = vpop.f32.mrf.mxu0
        %v7492 = vadd.f32 %v7403, %v7491
        %7493 = vmatmul.bf16.gmra.mxu0 %v6241
        %v7494 = vpop.f32.mrf.mxu0
        %v7495 = vadd.f32 %v7406, %v7494
        %v7496 = vpop.f32.mrf.mxu0
        %v7497 = vadd.f32 %v7408, %v7496
        %7498 = vmatmul.bf16.gmra.mxu0 %v6250
        %v7499 = vpop.f32.mrf.mxu0
        %v7500 = vadd.f32 %v7411, %v7499
        %v7501 = vpop.f32.mrf.mxu0
        %v7502 = vadd.f32 %v7413, %v7501
        %7503 = vmatmul.bf16.gmra.mxu0 %v6259
        %v7504 = vpop.f32.mrf.mxu0
        %v7505 = vadd.f32 %v7416, %v7504
        %v7506 = vpop.f32.mrf.mxu0
        %v7507 = vadd.f32 %v7418, %v7506
        %7508 = vmatmul.bf16.gmra.mxu0 %v6268
        %v7509 = vpop.f32.mrf.mxu0
        %v7510 = vadd.f32 %v7421, %v7509
        %v7511 = vpop.f32.mrf.mxu0
        %v7512 = vadd.f32 %v7423, %v7511
        %7513 = vmatmul.bf16.gmra.mxu0 %v6277
        %v7514 = vpop.f32.mrf.mxu0
        %v7515 = vadd.f32 %v7426, %v7514
        %v7516 = vpop.f32.mrf.mxu0
        %v7517 = vadd.f32 %v7428, %v7516
        %7518 = vmatmul.bf16.gmra.mxu0 %v6286
        %v7519 = vpop.f32.mrf.mxu0
        %v7520 = vadd.f32 %v7431, %v7519
        %v7521 = vpop.f32.mrf.mxu0
        %v7522 = vadd.f32 %v7433, %v7521
        %7523 = vmatmul.bf16.gmra.mxu0 %v6295
        %v7524 = vpop.f32.mrf.mxu0
        %v7525 = vadd.f32 %v7436, %v7524
        %v7526 = vpop.f32.mrf.mxu0
        %v7527 = vadd.f32 %v7438, %v7526
        %7528 = vmatmul.bf16.gmra.mxu0 %v6304
        %v7529 = vpop.f32.mrf.mxu0
        %v7530 = vadd.f32 %v7441, %v7529
        %v7531 = vpop.f32.mrf.mxu0
        %v7532 = vadd.f32 %v7443, %v7531
        %7533 = vmatmul.bf16.gmra.mxu0 %v6313
        %v7534 = vpop.f32.mrf.mxu0
        %v7535 = vadd.f32 %v7446, %v7534
        %v7536 = vpop.f32.mrf.mxu0
        %v7537 = vadd.f32 %v7448, %v7536
        %7538 = vmatmul.bf16.gmra.mxu0 %v6322
        %v7539 = vpop.f32.mrf.mxu0
        %v7540 = vadd.f32 %v7451, %v7539
        %v7541 = vpop.f32.mrf.mxu0
        %v7542 = vadd.f32 %v7453, %v7541
        %7543 = vmatmul.bf16.gmra.mxu0 %v6331
        %v7544 = vpop.f32.mrf.mxu0
        %v7545 = vadd.f32 %v7456, %v7544
        %v7546 = vpop.f32.mrf.mxu0
        %v7547 = vadd.f32 %v7458, %v7546
        %7548 = vmatmul.bf16.gmra.mxu0 %v6340
        %v7549 = vpop.f32.mrf.mxu0
        %v7550 = vadd.f32 %v7461, %v7549
        %v7551 = vpop.f32.mrf.mxu0
        %v7552 = vadd.f32 %v7463, %v7551
        %7553 = vmatmul.bf16.gmra.mxu0 %v6349
        %v7554 = vpop.f32.mrf.mxu0
        %v7555 = vadd.f32 %v7466, %v7554
        %v7556 = vpop.f32.mrf.mxu0
        %v7557 = vadd.f32 %v7468, %v7556
        %7558 = vmatmul.bf16.gmra.mxu0 %v6358
        %v7559 = vpop.f32.mrf.mxu0
        %v7560 = vadd.f32 %v7471, %v7559
        %v7561 = vpop.f32.mrf.mxu0
        %v7562 = vadd.f32 %v7473, %v7561
        %7563 = vmatmul.bf16.gmra.mxu0 %v6367
        %v7564 = vpop.f32.mrf.mxu0
        %v7565 = vadd.f32 %v7476, %v7564
        %v7566 = vpop.f32.mrf.mxu0
        %v7567 = vadd.f32 %v7478, %v7566
        %7568 = vdwg.mxu0
        %7569 = vmatpush.bf16.msra.mxu0 %v6865
        %7570 = vmatpush.bf16.msra.mxu0 %v6864
        %7571 = vmatpush.bf16.msra.mxu0 %v6863
        %7572 = vmatpush.bf16.msra.mxu0 %v6862
        %7573 = vmatpush.bf16.msra.mxu0 %v6861
        %7574 = vmatpush.bf16.msra.mxu0 %v6860
        %7575 = vmatpush.bf16.msra.mxu0 %v6859
        %7576 = vmatpush.bf16.msra.mxu0 %v6858
        %7577 = vmatmul.bf16.gmra.mxu0 %v6233
        %v7578 = vpop.f32.mrf.mxu0
        %v7579 = vadd.f32 %v7490, %v7578
        %v7580 = vpop.f32.mrf.mxu0
        %v7581 = vadd.f32 %v7492, %v7580
        %7582 = vmatmul.bf16.gmra.mxu0 %v6242
        %v7583 = vpop.f32.mrf.mxu0
        %v7584 = vadd.f32 %v7495, %v7583
        %v7585 = vpop.f32.mrf.mxu0
        %v7586 = vadd.f32 %v7497, %v7585
        %7587 = vmatmul.bf16.gmra.mxu0 %v6251
        %v7588 = vpop.f32.mrf.mxu0
        %v7589 = vadd.f32 %v7500, %v7588
        %v7590 = vpop.f32.mrf.mxu0
        %v7591 = vadd.f32 %v7502, %v7590
        %7592 = vmatmul.bf16.gmra.mxu0 %v6260
        %v7593 = vpop.f32.mrf.mxu0
        %v7594 = vadd.f32 %v7505, %v7593
        %v7595 = vpop.f32.mrf.mxu0
        %v7596 = vadd.f32 %v7507, %v7595
        %7597 = vmatmul.bf16.gmra.mxu0 %v6269
        %v7598 = vpop.f32.mrf.mxu0
        %v7599 = vadd.f32 %v7510, %v7598
        %v7600 = vpop.f32.mrf.mxu0
        %v7601 = vadd.f32 %v7512, %v7600
        %7602 = vmatmul.bf16.gmra.mxu0 %v6278
        %v7603 = vpop.f32.mrf.mxu0
        %v7604 = vadd.f32 %v7515, %v7603
        %v7605 = vpop.f32.mrf.mxu0
        %v7606 = vadd.f32 %v7517, %v7605
        %7607 = vmatmul.bf16.gmra.mxu0 %v6287
        %v7608 = vpop.f32.mrf.mxu0
        %v7609 = vadd.f32 %v7520, %v7608
        %v7610 = vpop.f32.mrf.mxu0
        %v7611 = vadd.f32 %v7522, %v7610
        %7612 = vmatmul.bf16.gmra.mxu0 %v6296
        %v7613 = vpop.f32.mrf.mxu0
        %v7614 = vadd.f32 %v7525, %v7613
        %v7615 = vpop.f32.mrf.mxu0
        %v7616 = vadd.f32 %v7527, %v7615
        %7617 = vmatmul.bf16.gmra.mxu0 %v6305
        %v7618 = vpop.f32.mrf.mxu0
        %v7619 = vadd.f32 %v7530, %v7618
        %v7620 = vpop.f32.mrf.mxu0
        %v7621 = vadd.f32 %v7532, %v7620
        %7622 = vmatmul.bf16.gmra.mxu0 %v6314
        %v7623 = vpop.f32.mrf.mxu0
        %v7624 = vadd.f32 %v7535, %v7623
        %v7625 = vpop.f32.mrf.mxu0
        %v7626 = vadd.f32 %v7537, %v7625
        %7627 = vmatmul.bf16.gmra.mxu0 %v6323
        %v7628 = vpop.f32.mrf.mxu0
        %v7629 = vadd.f32 %v7540, %v7628
        %v7630 = vpop.f32.mrf.mxu0
        %v7631 = vadd.f32 %v7542, %v7630
        %7632 = vmatmul.bf16.gmra.mxu0 %v6332
        %v7633 = vpop.f32.mrf.mxu0
        %v7634 = vadd.f32 %v7545, %v7633
        %v7635 = vpop.f32.mrf.mxu0
        %v7636 = vadd.f32 %v7547, %v7635
        %7637 = vmatmul.bf16.gmra.mxu0 %v6341
        %v7638 = vpop.f32.mrf.mxu0
        %v7639 = vadd.f32 %v7550, %v7638
        %v7640 = vpop.f32.mrf.mxu0
        %v7641 = vadd.f32 %v7552, %v7640
        %7642 = vmatmul.bf16.gmra.mxu0 %v6350
        %v7643 = vpop.f32.mrf.mxu0
        %v7644 = vadd.f32 %v7555, %v7643
        %v7645 = vpop.f32.mrf.mxu0
        %v7646 = vadd.f32 %v7557, %v7645
        %7647 = vmatmul.bf16.gmra.mxu0 %v6359
        %v7648 = vpop.f32.mrf.mxu0
        %v7649 = vadd.f32 %v7560, %v7648
        %v7650 = vpop.f32.mrf.mxu0
        %v7651 = vadd.f32 %v7562, %v7650
        %7652 = vmatmul.bf16.gmra.mxu0 %v6368
        %v7653 = vpop.f32.mrf.mxu0
        %v7654 = vadd.f32 %v7565, %v7653
        %v7655 = vpop.f32.mrf.mxu0
        %v7656 = vadd.f32 %v7567, %v7655
        %7657 = vdwg.mxu0
        %7658 = vmatpush.bf16.msra.mxu0 %v6873
        %7659 = vmatpush.bf16.msra.mxu0 %v6872
        %7660 = vmatpush.bf16.msra.mxu0 %v6871
        %7661 = vmatpush.bf16.msra.mxu0 %v6870
        %7662 = vmatpush.bf16.msra.mxu0 %v6869
        %7663 = vmatpush.bf16.msra.mxu0 %v6868
        %7664 = vmatpush.bf16.msra.mxu0 %v6867
        %7665 = vmatpush.bf16.msra.mxu0 %v6866
        %7666 = vmatmul.bf16.gmra.mxu0 %v6234
        %v7667 = vpop.f32.mrf.mxu0
        %v7668 = vadd.f32 %v7579, %v7667
        %v7669 = vpop.f32.mrf.mxu0
        %v7670 = vadd.f32 %v7581, %v7669
        %7671 = vmatmul.bf16.gmra.mxu0 %v6243
        %v7672 = vpop.f32.mrf.mxu0
        %v7673 = vadd.f32 %v7584, %v7672
        %v7674 = vpop.f32.mrf.mxu0
        %v7675 = vadd.f32 %v7586, %v7674
        %7676 = vmatmul.bf16.gmra.mxu0 %v6252
        %v7677 = vpop.f32.mrf.mxu0
        %v7678 = vadd.f32 %v7589, %v7677
        %v7679 = vpop.f32.mrf.mxu0
        %v7680 = vadd.f32 %v7591, %v7679
        %7681 = vmatmul.bf16.gmra.mxu0 %v6261
        %v7682 = vpop.f32.mrf.mxu0
        %v7683 = vadd.f32 %v7594, %v7682
        %v7684 = vpop.f32.mrf.mxu0
        %v7685 = vadd.f32 %v7596, %v7684
        %7686 = vmatmul.bf16.gmra.mxu0 %v6270
        %v7687 = vpop.f32.mrf.mxu0
        %v7688 = vadd.f32 %v7599, %v7687
        %v7689 = vpop.f32.mrf.mxu0
        %v7690 = vadd.f32 %v7601, %v7689
        %7691 = vmatmul.bf16.gmra.mxu0 %v6279
        %v7692 = vpop.f32.mrf.mxu0
        %v7693 = vadd.f32 %v7604, %v7692
        %v7694 = vpop.f32.mrf.mxu0
        %v7695 = vadd.f32 %v7606, %v7694
        %7696 = vmatmul.bf16.gmra.mxu0 %v6288
        %v7697 = vpop.f32.mrf.mxu0
        %v7698 = vadd.f32 %v7609, %v7697
        %v7699 = vpop.f32.mrf.mxu0
        %v7700 = vadd.f32 %v7611, %v7699
        %7701 = vmatmul.bf16.gmra.mxu0 %v6297
        %v7702 = vpop.f32.mrf.mxu0
        %v7703 = vadd.f32 %v7614, %v7702
        %v7704 = vpop.f32.mrf.mxu0
        %v7705 = vadd.f32 %v7616, %v7704
        %7706 = vmatmul.bf16.gmra.mxu0 %v6306
        %v7707 = vpop.f32.mrf.mxu0
        %v7708 = vadd.f32 %v7619, %v7707
        %v7709 = vpop.f32.mrf.mxu0
        %v7710 = vadd.f32 %v7621, %v7709
        %7711 = vmatmul.bf16.gmra.mxu0 %v6315
        %v7712 = vpop.f32.mrf.mxu0
        %v7713 = vadd.f32 %v7624, %v7712
        %v7714 = vpop.f32.mrf.mxu0
        %v7715 = vadd.f32 %v7626, %v7714
        %7716 = vmatmul.bf16.gmra.mxu0 %v6324
        %v7717 = vpop.f32.mrf.mxu0
        %v7718 = vadd.f32 %v7629, %v7717
        %v7719 = vpop.f32.mrf.mxu0
        %v7720 = vadd.f32 %v7631, %v7719
        %7721 = vmatmul.bf16.gmra.mxu0 %v6333
        %v7722 = vpop.f32.mrf.mxu0
        %v7723 = vadd.f32 %v7634, %v7722
        %v7724 = vpop.f32.mrf.mxu0
        %v7725 = vadd.f32 %v7636, %v7724
        %7726 = vmatmul.bf16.gmra.mxu0 %v6342
        %v7727 = vpop.f32.mrf.mxu0
        %v7728 = vadd.f32 %v7639, %v7727
        %v7729 = vpop.f32.mrf.mxu0
        %v7730 = vadd.f32 %v7641, %v7729
        %7731 = vmatmul.bf16.gmra.mxu0 %v6351
        %v7732 = vpop.f32.mrf.mxu0
        %v7733 = vadd.f32 %v7644, %v7732
        %v7734 = vpop.f32.mrf.mxu0
        %v7735 = vadd.f32 %v7646, %v7734
        %7736 = vmatmul.bf16.gmra.mxu0 %v6360
        %v7737 = vpop.f32.mrf.mxu0
        %v7738 = vadd.f32 %v7649, %v7737
        %v7739 = vpop.f32.mrf.mxu0
        %v7740 = vadd.f32 %v7651, %v7739
        %7741 = vmatmul.bf16.gmra.mxu0 %v6369
        %v7742 = vpop.f32.mrf.mxu0
        %v7743 = vadd.f32 %v7654, %v7742
        %v7744 = vpop.f32.mrf.mxu0
        %v7745 = vadd.f32 %v7656, %v7744
        %7746 = vdwg.mxu0
        %v7747 = vld [vmem:[%s5] sm:$0x1]
        %v7749 = vperm.slane %v7747, 0
        %v7751 = vmul.f32 %v7668, %v7749
        %v7752 = vmul.f32 %v7670, %v7749
        %v7753 = vmul.f32 %v7673, %v7749
        %v7754 = vmul.f32 %v7675, %v7749
        %v7755 = vmul.f32 %v7678, %v7749
        %v7756 = vmul.f32 %v7680, %v7749
        %v7757 = vmul.f32 %v7683, %v7749
        %v7758 = vmul.f32 %v7685, %v7749
        %v7759 = vmul.f32 %v7688, %v7749
        %v7760 = vmul.f32 %v7690, %v7749
        %v7761 = vmul.f32 %v7693, %v7749
        %v7762 = vmul.f32 %v7695, %v7749
        %v7763 = vmul.f32 %v7698, %v7749
        %v7764 = vmul.f32 %v7700, %v7749
        %v7765 = vmul.f32 %v7703, %v7749
        %v7766 = vmul.f32 %v7705, %v7749
        %v7767 = vmul.f32 %v7708, %v7749
        %v7768 = vmul.f32 %v7710, %v7749
        %v7769 = vmul.f32 %v7713, %v7749
        %v7770 = vmul.f32 %v7715, %v7749
        %v7771 = vmul.f32 %v7718, %v7749
        %v7772 = vmul.f32 %v7720, %v7749
        %v7773 = vmul.f32 %v7723, %v7749
        %v7774 = vmul.f32 %v7725, %v7749
        %v7775 = vmul.f32 %v7728, %v7749
        %v7776 = vmul.f32 %v7730, %v7749
        %v7777 = vmul.f32 %v7733, %v7749
        %v7778 = vmul.f32 %v7735, %v7749
        %v7779 = vmul.f32 %v7738, %v7749
        %v7780 = vmul.f32 %v7740, %v7749
        %v7781 = vmul.f32 %v7743, %v7749
        %v7782 = vmul.f32 %v7745, %v7749
        %v7783 = vld [vmem:[%s6] sm:$0x1]
        %v7785 = vperm.slane %v7783, 0
        %v7787 = vadd.f32 %v7751, %v7785
        %v7788 = vadd.f32 %v7752, %v7785
        %v7789 = vadd.f32 %v7753, %v7785
        %v7790 = vadd.f32 %v7754, %v7785
        %v7791 = vadd.f32 %v7755, %v7785
        %v7792 = vadd.f32 %v7756, %v7785
        %v7793 = vadd.f32 %v7757, %v7785
        %v7794 = vadd.f32 %v7758, %v7785
        %v7795 = vadd.f32 %v7759, %v7785
        %v7796 = vadd.f32 %v7760, %v7785
        %v7797 = vadd.f32 %v7761, %v7785
        %v7798 = vadd.f32 %v7762, %v7785
        %v7799 = vadd.f32 %v7763, %v7785
        %v7800 = vadd.f32 %v7764, %v7785
        %v7801 = vadd.f32 %v7765, %v7785
        %v7802 = vadd.f32 %v7766, %v7785
        %v7803 = vadd.f32 %v7767, %v7785
        %v7804 = vadd.f32 %v7768, %v7785
        %v7805 = vadd.f32 %v7769, %v7785
        %v7806 = vadd.f32 %v7770, %v7785
        %v7807 = vadd.f32 %v7771, %v7785
        %v7808 = vadd.f32 %v7772, %v7785
        %v7809 = vadd.f32 %v7773, %v7785
        %v7810 = vadd.f32 %v7774, %v7785
        %v7811 = vadd.f32 %v7775, %v7785
        %v7812 = vadd.f32 %v7776, %v7785
        %v7813 = vadd.f32 %v7777, %v7785
        %v7814 = vadd.f32 %v7778, %v7785
        %v7815 = vadd.f32 %v7779, %v7785
        %v7816 = vadd.f32 %v7780, %v7785
        %v7817 = vadd.f32 %v7781, %v7785
        %v7818 = vadd.f32 %v7782, %v7785
        %v7819 = vsel %vm837, %v7787, 0.0
        %v7820 = vsel %vm837, %v7788, 0.0
        %v7821 = vadd.f32 %v7819, %v7820
        %v7822 = vsel %vm837, %v7789, 0.0
        %v7823 = vadd.f32 %v7821, %v7822
        %v7824 = vsel %vm837, %v7790, 0.0
        %v7825 = vadd.f32 %v7823, %v7824
        %v7826 = vsel %vm837, %v7791, 0.0
        %v7827 = vadd.f32 %v7825, %v7826
        %v7828 = vsel %vm837, %v7792, 0.0
        %v7829 = vadd.f32 %v7827, %v7828
        %v7830 = vsel %vm837, %v7793, 0.0
        %v7831 = vadd.f32 %v7829, %v7830
        %v7832 = vsel %vm837, %v7794, 0.0
        %v7833 = vadd.f32 %v7831, %v7832
        %v7834 = vsel %vm837, %v7795, 0.0
        %v7835 = vadd.f32 %v7833, %v7834
        %v7836 = vsel %vm837, %v7796, 0.0
        %v7837 = vadd.f32 %v7835, %v7836
        %v7838 = vsel %vm837, %v7797, 0.0
        %v7839 = vadd.f32 %v7837, %v7838
        %v7840 = vsel %vm837, %v7798, 0.0
        %v7841 = vadd.f32 %v7839, %v7840
        %v7842 = vsel %vm837, %v7799, 0.0
        %v7843 = vadd.f32 %v7841, %v7842
        %v7844 = vsel %vm837, %v7800, 0.0
        %v7845 = vadd.f32 %v7843, %v7844
        %v7846 = vsel %vm837, %v7801, 0.0
        %v7847 = vadd.f32 %v7845, %v7846
        %v7848 = vsel %vm837, %v7802, 0.0
        %v7849 = vadd.f32 %v7847, %v7848
        %v7850 = vsel %vm837, %v7803, 0.0
        %v7851 = vadd.f32 %v7849, %v7850
        %v7852 = vsel %vm837, %v7804, 0.0
        %v7853 = vadd.f32 %v7851, %v7852
        %v7854 = vsel %vm837, %v7805, 0.0
        %v7855 = vadd.f32 %v7853, %v7854
        %v7856 = vsel %vm837, %v7806, 0.0
        %v7857 = vadd.f32 %v7855, %v7856
        %v7858 = vsel %vm837, %v7807, 0.0
        %v7859 = vadd.f32 %v7857, %v7858
        %v7860 = vsel %vm837, %v7808, 0.0
        %v7861 = vadd.f32 %v7859, %v7860
        %v7862 = vsel %vm837, %v7809, 0.0
        %v7863 = vadd.f32 %v7861, %v7862
        %v7864 = vsel %vm837, %v7810, 0.0
        %v7865 = vadd.f32 %v7863, %v7864
        %v7866 = vsel %vm837, %v7811, 0.0
        %v7867 = vadd.f32 %v7865, %v7866
        %v7868 = vsel %vm837, %v7812, 0.0
        %v7869 = vadd.f32 %v7867, %v7868
        %v7870 = vsel %vm837, %v7813, 0.0
        %v7871 = vadd.f32 %v7869, %v7870
        %v7872 = vsel %vm837, %v7814, 0.0
        %v7873 = vadd.f32 %v7871, %v7872
        %v7874 = vsel %vm837, %v7815, 0.0
        %v7875 = vadd.f32 %v7873, %v7874
        %v7876 = vsel %vm837, %v7816, 0.0
        %v7877 = vadd.f32 %v7875, %v7876
        %v7878 = vsel %vm837, %v7817, 0.0
        %v7879 = vadd.f32 %v7877, %v7878
        %v7880 = vsel %vm837, %v7818, 0.0
        %v7881 = vadd.f32 %v7879, %v7880
        %v7882 = vrot.slane %v7881, 4
        %v7883 = vadd.f32 %v7881, %v7882
        %v7884 = vrot.slane %v7883, 2
        %v7885 = vadd.f32 %v7883, %v7884
        %v7886 = vrot.slane %v7885, 1
        %v7887 = vadd.f32 %v7885, %v7886
        %v7888 = vrcp.pop 256.0
        %v7889 = vmul.f32 256.0, %v7888
        %v7890 = vsub.f32 1.0, %v7889
        %v7891 = vmul.f32 %v7888, %v7890
        %v7892 = vadd.f32 %v7888, %v7891
        %vm7893 = vweird.f32 %v7888
        %v7894 = vsel %vm7893, %v7888, %v7892
        %v7895 = vmul.f32 %v7887, %v7894
        %v7896 = vpack.c.bf16 %v7895, %v7895
        %v7897 = vld [vmem:[%s7] sm:$0xf]
        %v7898 = vld [vmem:[%s7 + $0x4] sm:$0xf]
        %v7899 = vld [vmem:[%s8] sm:$0x1]
        %v7902 = vunpack.c.l.b16 %v7897
        %v7903 = vunpack.c.l.b16 %v7898
        %v7904 = vpack.c.b16 %v7903, %v7902
        %v7907 = vsel %vm837, %v7896, 0
        %7909 = vmatpush.bf16.msra.mxu0 0
        %7910 = vmatpush.bf16.msra.mxu0 0
        %7911 = vmatpush.bf16.msra.mxu0 0
        %7912 = vmatpush.bf16.msra.mxu0 0
        %7913 = vmatpush.bf16.msra.mxu0 0
        %7914 = vmatpush.bf16.msra.mxu0 0
        %7915 = vmatpush.bf16.msra.mxu0 0
        %7916 = vmatpush.bf16.msra.mxu0 %v7904
        %7917 = vmatmul.bf16.gmra.mxu0 %v7907
        %v7918 = vpop.f32.mrf.mxu0
        %v7919 = vadd.f32 %v7899, %v7918
        %v7920 = vpop.f32.mrf.mxu0
        %7921 = vdwg.mxu0
        %v7922 = vmax.f32 %v7919, 0.0
        %v7923 = vpack.c.bf16 %v7922, %v7922
        %v7924 = vld [vmem:[%s9] sm:$0x1]
        %v7925 = vld [vmem:[%s10] sm:$0x1]
        %vm7926 = vcmask 15360
        %v7928 = vsel %vm7926, %v7923, 0
        %vm7930 = vcmask 1040384
        %v7932 = vsel %vm7930, %v7924, 0
        %7934 = vmatpush.bf16.msra.mxu0 0
        %7935 = vmatpush.bf16.msra.mxu0 0
        %7936 = vmatpush.bf16.msra.mxu0 0
        %7937 = vmatpush.bf16.msra.mxu0 0
        %7938 = vmatpush.bf16.msra.mxu0 0
        %7939 = vmatpush.bf16.msra.mxu0 0
        %7940 = vmatpush.bf16.msra.mxu0 0
        %7941 = vmatpush.bf16.msra.mxu0 %v7932
        %7942 = vmatmul.bf16.gmra.mxu0 %v7928
        %v7943 = vpop.f32.mrf.mxu0
        %v7944 = vadd.f32 %v7925, %v7943
        %v7945 = vpop.f32.mrf.mxu0
        %7946 = vdwg.mxu0
        %v7947 = vxor.u32 %v7944, 2147483648
        %v7948 = vmul.f32 %v7947, 1.442695
        %v7949 = vpow.pop %v7948
        %v7950 = vadd.f32 %v7949, 1.0
        %v7951 = vrcp.pop %v7950
        %v7952 = vmul.f32 %v7950, %v7951
        %v7953 = vsub.f32 1.0, %v7952
        %v7954 = vmul.f32 %v7951, %v7953
        %v7955 = vadd.f32 %v7951, %v7954
        %vm7956 = vweird.f32 %v7950
        %vm7957 = vweird.f32 %v7951
        %vm7958 = vmor %vm7956, %vm7957
        %v7959 = vsel %vm7958, %v7951, %v7955
        %v7960 = vand.u32 2147483647, %v7950
        %vm7961 = vcmp.eq.f32.partialorder %v7960, 8.507059e+37
        %v7962 = vand.u32 %v7950, 2147483648
        %v7963 = vor.u32 1.1754944e-38, %v7962
        %v7964 = vsel %vm7961, %v7963, %v7959
        %v7965 = vmul.f32 1.0, %v7964
        %v7966 = vperm.slane %v7965, 0
        %v7967 = vmul.f32 %v7787, %v7966
        %v7968 = vmul.f32 %v7788, %v7966
        %v7969 = vmul.f32 %v7789, %v7966
        %v7970 = vmul.f32 %v7790, %v7966
        %v7971 = vmul.f32 %v7791, %v7966
        %v7972 = vmul.f32 %v7792, %v7966
        %v7973 = vmul.f32 %v7793, %v7966
        %v7974 = vmul.f32 %v7794, %v7966
        %v7975 = vmul.f32 %v7795, %v7966
        %v7976 = vmul.f32 %v7796, %v7966
        %v7977 = vmul.f32 %v7797, %v7966
        %v7978 = vmul.f32 %v7798, %v7966
        %v7979 = vmul.f32 %v7799, %v7966
        %v7980 = vmul.f32 %v7800, %v7966
        %v7981 = vmul.f32 %v7801, %v7966
        %v7982 = vmul.f32 %v7802, %v7966
        %v7983 = vmul.f32 %v7803, %v7966
        %v7984 = vmul.f32 %v7804, %v7966
        %v7985 = vmul.f32 %v7805, %v7966
        %v7986 = vmul.f32 %v7806, %v7966
        %v7987 = vmul.f32 %v7807, %v7966
        %v7988 = vmul.f32 %v7808, %v7966
        %v7989 = vmul.f32 %v7809, %v7966
        %v7990 = vmul.f32 %v7810, %v7966
        %v7991 = vmul.f32 %v7811, %v7966
        %v7992 = vmul.f32 %v7812, %v7966
        %v7993 = vmul.f32 %v7813, %v7966
        %v7994 = vmul.f32 %v7814, %v7966
        %v7995 = vmul.f32 %v7815, %v7966
        %v7996 = vmul.f32 %v7816, %v7966
        %v7997 = vmul.f32 %v7817, %v7966
        %v7998 = vmul.f32 %v7818, %v7966
        %v7999 = vadd.f32 %v7967, %v386
        %v8000 = vadd.f32 %v7968, %v387
        %v8001 = vadd.f32 %v7969, %v388
        %v8002 = vadd.f32 %v7970, %v389
        %v8003 = vadd.f32 %v7971, %v390
        %v8004 = vadd.f32 %v7972, %v391
        %v8005 = vadd.f32 %v7973, %v392
        %v8006 = vadd.f32 %v7974, %v393
        %v8007 = vadd.f32 %v7975, %v394
        %v8008 = vadd.f32 %v7976, %v395
        %v8009 = vadd.f32 %v7977, %v396
        %v8010 = vadd.f32 %v7978, %v397
        %v8011 = vadd.f32 %v7979, %v398
        %v8012 = vadd.f32 %v7980, %v399
        %v8013 = vadd.f32 %v7981, %v400
        %v8014 = vadd.f32 %v7982, %v401
        %v8015 = vadd.f32 %v7983, %v402
        %v8016 = vadd.f32 %v7984, %v403
        %v8017 = vadd.f32 %v7985, %v404
        %v8018 = vadd.f32 %v7986, %v405
        %v8019 = vadd.f32 %v7987, %v406
        %v8020 = vadd.f32 %v7988, %v407
        %v8021 = vadd.f32 %v7989, %v408
        %v8022 = vadd.f32 %v7990, %v409
        %v8023 = vadd.f32 %v7991, %v410
        %v8024 = vadd.f32 %v7992, %v411
        %v8025 = vadd.f32 %v7993, %v412
        %v8026 = vadd.f32 %v7994, %v413
        %v8027 = vadd.f32 %v7995, %v414
        %v8028 = vadd.f32 %v7996, %v415
        %v8029 = vadd.f32 %v7997, %v416
        %v8030 = vadd.f32 %v7998, %v417
        %v8031 = vmax.f32 %v7999, 0.0
        %v8032 = vmax.f32 %v8000, 0.0
        %v8033 = vmax.f32 %v8001, 0.0
        %v8034 = vmax.f32 %v8002, 0.0
        %v8035 = vmax.f32 %v8003, 0.0
        %v8036 = vmax.f32 %v8004, 0.0
        %v8037 = vmax.f32 %v8005, 0.0
        %v8038 = vmax.f32 %v8006, 0.0
        %v8039 = vmax.f32 %v8007, 0.0
        %v8040 = vmax.f32 %v8008, 0.0
        %v8041 = vmax.f32 %v8009, 0.0
        %v8042 = vmax.f32 %v8010, 0.0
        %v8043 = vmax.f32 %v8011, 0.0
        %v8044 = vmax.f32 %v8012, 0.0
        %v8045 = vmax.f32 %v8013, 0.0
        %v8046 = vmax.f32 %v8014, 0.0
        %v8047 = vmax.f32 %v8015, 0.0
        %v8048 = vmax.f32 %v8016, 0.0
        %v8049 = vmax.f32 %v8017, 0.0
        %v8050 = vmax.f32 %v8018, 0.0
        %v8051 = vmax.f32 %v8019, 0.0
        %v8052 = vmax.f32 %v8020, 0.0
        %v8053 = vmax.f32 %v8021, 0.0
        %v8054 = vmax.f32 %v8022, 0.0
        %v8055 = vmax.f32 %v8023, 0.0
        %v8056 = vmax.f32 %v8024, 0.0
        %v8057 = vmax.f32 %v8025, 0.0
        %v8058 = vmax.f32 %v8026, 0.0
        %v8059 = vmax.f32 %v8027, 0.0
        %v8060 = vmax.f32 %v8028, 0.0
        %v8061 = vmax.f32 %v8029, 0.0
        %v8062 = vmax.f32 %v8030, 0.0
        %8063 = vst.msk [vmem:[%s379] sm:$0xff] %vm837, %v8031
        %8064 = vst.msk [vmem:[%s379 + $0x8] sm:$0xff] %vm837, %v8032
        %8065 = vst.msk [vmem:[%s379 + $0x10] sm:$0xff] %vm837, %v8033
        %8066 = vst.msk [vmem:[%s379 + $0x18] sm:$0xff] %vm837, %v8034
        %8067 = vst.msk [vmem:[%s379 + $0x20] sm:$0xff] %vm837, %v8035
        %8068 = vst.msk [vmem:[%s379 + $0x28] sm:$0xff] %vm837, %v8036
        %8069 = vst.msk [vmem:[%s379 + $0x30] sm:$0xff] %vm837, %v8037
        %8070 = vst.msk [vmem:[%s379 + $0x38] sm:$0xff] %vm837, %v8038
        %8071 = vst.msk [vmem:[%s379 + $0x40] sm:$0xff] %vm837, %v8039
        %8072 = vst.msk [vmem:[%s379 + $0x48] sm:$0xff] %vm837, %v8040
        %8073 = vst.msk [vmem:[%s379 + $0x50] sm:$0xff] %vm837, %v8041
        %8074 = vst.msk [vmem:[%s379 + $0x58] sm:$0xff] %vm837, %v8042
        %8075 = vst.msk [vmem:[%s379 + $0x60] sm:$0xff] %vm837, %v8043
        %8076 = vst.msk [vmem:[%s379 + $0x68] sm:$0xff] %vm837, %v8044
        %8077 = vst.msk [vmem:[%s379 + $0x70] sm:$0xff] %vm837, %v8045
        %8078 = vst.msk [vmem:[%s379 + $0x78] sm:$0xff] %vm837, %v8046
        %8079 = vst.msk [vmem:[%s379 + $0x80] sm:$0xff] %vm837, %v8047
        %8080 = vst.msk [vmem:[%s379 + $0x88] sm:$0xff] %vm837, %v8048
        %8081 = vst.msk [vmem:[%s379 + $0x90] sm:$0xff] %vm837, %v8049
        %8082 = vst.msk [vmem:[%s379 + $0x98] sm:$0xff] %vm837, %v8050
        %8083 = vst.msk [vmem:[%s379 + $0xa0] sm:$0xff] %vm837, %v8051
        %8084 = vst.msk [vmem:[%s379 + $0xa8] sm:$0xff] %vm837, %v8052
        %8085 = vst.msk [vmem:[%s379 + $0xb0] sm:$0xff] %vm837, %v8053
        %8086 = vst.msk [vmem:[%s379 + $0xb8] sm:$0xff] %vm837, %v8054
        %8087 = vst.msk [vmem:[%s379 + $0xc0] sm:$0xff] %vm837, %v8055
        %8088 = vst.msk [vmem:[%s379 + $0xc8] sm:$0xff] %vm837, %v8056
        %8089 = vst.msk [vmem:[%s379 + $0xd0] sm:$0xff] %vm837, %v8057
        %8090 = vst.msk [vmem:[%s379 + $0xd8] sm:$0xff] %vm837, %v8058
        %8091 = vst.msk [vmem:[%s379 + $0xe0] sm:$0xff] %vm837, %v8059
        %8092 = vst.msk [vmem:[%s379 + $0xe8] sm:$0xff] %vm837, %v8060
        %8093 = vst.msk [vmem:[%s379 + $0xf0] sm:$0xff] %vm837, %v8061
        %8094 = vst.msk [vmem:[%s379 + $0xf8] sm:$0xff] %vm837, %v8062
        %s8095 = sand.u32 %s269, 1
        %s8096 = scalar_lea.sflag [#allocation4], %s8095
        %s8097 = sand.u32 %s269, 1
        %s8098 = smul.addr %s8097, 256
        %s8099 = scalar_lea.vmem [#allocation3], %s8098
        // Predicated region
        $region65: #{se_basic_block.1} parent=63 // pred_check
          %p8100 = pneg %p279
        $region66: #{se_basic_block.1} parent=63 // pred_check_branch
          %8102 = sbr.rel (%p8100) target = $region68
        $region67: #{se_basic_block.1} parent=63 // pred_region
          %8104 = vsyncadd %s8096, 0
          %s8105 = smul.addr %s25, 32
          %s8106 = smul.addr %s8105, 8
          %s8107 = scalar_lea.hbm %s11, %s8106
          %s8108 = sshll.u32 %s8099, 4
          %s8109 = int_to_ptr.vmem [resolvable:$true] %s8108
          %s8110 = sshll.u32 %s8107, 4
          %s8111 = int_to_ptr.hbm [resolvable:$true] %s8110
          %8116 = dma.vmem_to_hbm [thread:$0]  %s8109, 4096, %s8111, %s8096, 128, 128, 8
        $region68: #{se_basic_block.1} parent=63 // pred_fallthru
          _
      $region64: #{se_basic_block.1} parent=5 // pred_fallthru
        _
      %p8117 = scmp.le.s32.totalorder 2, %s20
      // Predicated region
      $region69: #{se_basic_block.1} parent=5 // pred_check
        %p8118 = pneg %p8117
      $region70: #{se_basic_block.1} parent=5 // pred_check_branch
        %8120 = sbr.rel (%p8118) target = $region72
      $region71: #{se_basic_block.1} parent=5 // pred_region
        %s8121 = ssub.s32 %s20, 2
        // Predicated region
        $region73: #{se_basic_block.1} parent=71 // pred_check
          %p8122 = pneg %p285
        $region74: #{se_basic_block.1} parent=71 // pred_check_branch
          %8124 = sbr.rel (%p8122) target = $region76
        $region75: #{se_basic_block.1} parent=71 // pred_region
          %s8125 = sand.u32 %s270, 1
          %s8126 = scalar_lea.sflag [#allocation4], %s8125
          %s8127 = sand.u32 %s270, 1
          %s8128 = smul.addr %s8127, 256
          %s8129 = scalar_lea.vmem [#allocation3], %s8128
          %8131 = dma.done %s8126, 4096
        $region76: #{se_basic_block.1} parent=71 // pred_fallthru
          _
      $region72: #{se_basic_block.1} parent=5 // pred_fallthru
        _
    $region6: #{se_basic_block.1} parent=1 // loop_footer
      %s24 = sadd.s32 1, %s20
    $region7: #{se_basic_block.1} parent=1 // loop_footer_branch
      %19 = sbr.rel target = $region3
    $region8: #{se_basic_block.1} parent=1 // loop_exit
      _
    %8132 = vsyncpa [#allocation4], 1
    %s8133 = scalar_lea.sflag [#allocation4], 1
    %8134 = vsyncpa %s8133, 1

</llo_original>
